<compile_context>
chip_gen: v5e
topology: v5e:2x2
jax: 0.10.0
libtpu: 0.0.40
codegen_flags: <defaults>
</compile_context>

<pallas_src>
import functools

import numpy as np
import jax
import jax.numpy as jnp
from jax import lax
from jax.experimental import pallas as pl
from jax.experimental.pallas import tpu as pltpu

EPS = 1e-5


# ----------------------------------------------------------------------------
# Fused Pallas kernel: one (batch element, coarse-row strip) per grid step.
# ----------------------------------------------------------------------------
def _upconv_block_kernel(TH, W, Cin, Cout,
                         x_ref, wup_ref, w2_ref,
                         scale_up_ref, bias_up_ref, scale2_ref, bias2_ref,
                         out_ref, hpp_ref):
    """Fused UpConvBlock forward for one (image, TH-coarse-row strip).

    x_ref:        (TH+4, W+2, Cin)     bf16  zero-padded input rows covering the strip
                                             plus a 1-coarse-row halo (recomputed/strip)
    wup_ref:      (4, 4*Cin, 2*Cout)   bf16  per-phase polyphase weights, cols=[upconv1|upsample]
    w2_ref:       (9, Cout, Cout)      bf16  conv2 weights per 3x3 tap (index ky*3+kx)
    scale_up_ref: (1, 2*Cout)          f32   folded [bn1 | bn_up] scale
    bias_up_ref:  (1, 2*Cout)          f32   folded [bn1 | bn_up] bias
    scale2_ref:   (1, Cout)            f32   folded bn2 scale
    bias2_ref:    (1, Cout)            f32   folded bn2 bias
    out_ref:      (TH*W, 4*Cout)       bf16  output strip, phases concatenated on lanes;
                                             also used to park the residual between stages
    hpp_ref:      (4, TH+2, W+2, Cout) bf16  scratch: zero-bordered phase images of h
                                             (strip + 1-coarse-row halo)
    """
    s = pl.program_id(1)
    last = pl.num_programs(1) - 1
    HB = TH + 2                                        # halo-extended coarse rows

    xs = x_ref[...]                                    # (TH+4, W+2, Cin) bf16
    scale_up = scale_up_ref[...]
    bias_up = bias_up_ref[...]

    # ---- stage 1: fused upconv1 + upsample (exact polyphase), one matmul per phase ----
    # y[2a+pi, 2b+pj] = sum_{dy,dx in {0,1}} xpad[a+pi+dy, b+pj+dx] . wflip[pi+2dy, pj+2dx]
    # evaluated for the TH+2 halo-extended coarse rows of this strip.
    res_parts = []
    for p in range(4):
        pi, pj = p // 2, p % 2
        taps = [xs[pi + dy: pi + dy + HB, pj + dx: pj + dx + W, :]
                for dy in range(2) for dx in range(2)]
        patch = jnp.concatenate(taps, axis=-1).reshape(HB * W, 4 * Cin)       # bf16
        y = jnp.dot(patch, wup_ref[p], preferred_element_type=jnp.float32)    # (HB*W, 2*Cout)
        y = y * scale_up + bias_up

        # relu(bn1(upconv1(x))): store only the interior of the zero-bordered phase image.
        h = jnp.maximum(y[:, :Cout], 0.0).astype(hpp_ref.dtype).reshape(HB, W, Cout)
        hpp_ref[p, :, 1:W + 1, :] = h
        # conv2's spatial-padding zeros: rewrite the (tiny) column borders every step, so
        # no cross-step scratch persistence is assumed (safe under megacore splitting).
        zcol = jnp.zeros((HB, 1, Cout), hpp_ref.dtype)
        hpp_ref[p, :, 0:1, :] = zcol
        hpp_ref[p, :, W + 1:W + 2, :] = zcol

        @pl.when(s == 0)
        def _():        # halo coarse row above the image does not exist -> zero
            hpp_ref[p, 0:1, :, :] = jnp.zeros((1, W + 2, Cout), hpp_ref.dtype)

        @pl.when(s == last)
        def _():        # halo coarse row below the image does not exist -> zero
            hpp_ref[p, TH + 1:TH + 2, :, :] = jnp.zeros((1, W + 2, Cout), hpp_ref.dtype)

        # bn_up(upsample(x)) (no relu), strip rows only; parked in out_ref (bf16).
        res_parts.append(y[W:(TH + 1) * W, Cout:].astype(out_ref.dtype))

    out_ref[...] = jnp.concatenate(res_parts, axis=-1)            # one lane-dense store

    # ---- stage 2: conv2(3x3, pad 1) + bn2 + residual + relu, in the phase domain -------
    # output fine row 2a+pi+u lives in h-phase qi=(pi+u)%2 at coarse row a+(pi+u-qi)/2; the
    # zero borders of the padded phase images supply conv2's spatial padding.  9
    # accumulating K=Cout matmuls per phase (no 9*Cout-wide im2col temp).
    scale2 = scale2_ref[...]
    bias2 = bias2_ref[...]
    out_parts = []
    for p in range(4):
        pi, pj = p // 2, p % 2
        acc = jnp.zeros((TH * W, Cout), jnp.float32)
        for ky in range(3):
            u = ky - 1
            qi = (pi + u) % 2
            ri = (pi + u - qi) // 2                    # coarse row offset in {-1,0,1}
            for kx in range(3):
                v = kx - 1
                qj = (pj + v) % 2
                rj = (pj + v - qj) // 2
                tap = hpp_ref[2 * qi + qj, 1 + ri:1 + ri + TH, 1 + rj:1 + rj + W, :]
                acc = acc + jnp.dot(tap.reshape(TH * W, Cout), w2_ref[3 * ky + kx],
                                    preferred_element_type=jnp.float32)
        res = out_ref[:, p * Cout:(p + 1) * Cout]      # residual parked by stage 1
        y2 = acc * scale2 + bias2 + res
        out_parts.append(jnp.maximum(y2, 0.0).astype(out_ref.dtype))

    out_ref[...] = jnp.concatenate(out_parts, axis=-1)             # one lane-dense store


# ----------------------------------------------------------------------------
# Wrapper-side weight repacking / BN folding / tiling heuristics (pure JAX glue)
# ----------------------------------------------------------------------------
def _tconv_flip_taps(w_t):
    """PyTorch ConvTranspose2d weight (Cin, Cout, KH, KW) -> flipped taps (KH, KW, Cin, Cout)."""
    return jnp.transpose(w_t[:, :, ::-1, ::-1], (2, 3, 0, 1))


def pack_upconv_phase_weights(w_upconv1_t, w_upsample_t):
    """(Cin, Cout, 4, 4) x2 -> (4 phases, 4*Cin, 2*Cout) exact polyphase weights.
    Row order of the 4*Cin axis is (dy, dx, cin) to match the kernel's patch concat;
    columns are [upconv1 | upsample]."""
    wf1 = _tconv_flip_taps(w_upconv1_t)
    wfu = _tconv_flip_taps(w_upsample_t)
    phases = []
    for pi in range(2):
        for pj in range(2):
            w1 = jnp.concatenate([wf1[pi + 2 * dy, pj + 2 * dx]
                                  for dy in range(2) for dx in range(2)], axis=0)
            wu = jnp.concatenate([wfu[pi + 2 * dy, pj + 2 * dx]
                                  for dy in range(2) for dx in range(2)], axis=0)
            phases.append(jnp.concatenate([w1, wu], axis=1))        # (4*Cin, 2*Cout)
    return jnp.stack(phases, axis=0)                                # (4, 4*Cin, 2*Cout)


def fold_bn(bn, eps=EPS):
    scale = bn["gamma"] / jnp.sqrt(bn["var"] + eps)
    bias = bn["beta"] - bn["mean"] * scale
    return (scale.reshape(1, -1).astype(jnp.float32),
            bias.reshape(1, -1).astype(jnp.float32))


def _vmem_limit_bytes():
    """Generation-aware VMEM limit (v5e/v6e: 128 MiB physical, v7x: 64 MiB)."""
    try:
        cap = int(getattr(pltpu.get_tpu_info(), "vmem_capacity_bytes", 64 * 1024 * 1024))
    except Exception:
        cap = 64 * 1024 * 1024
    return int(max(min(cap - 16 * 1024 * 1024, 112 * 1024 * 1024), 32 * 1024 * 1024))


def _pick_row_tile(H, W, Cin, Cout, budget_bytes=24 * 1024 * 1024):
    """Largest divisor of H whose per-strip VMEM footprint fits the budget."""
    def footprint(th):
        x_blk = 2 * (th + 4) * (W + 2) * Cin * 2        # double-buffered bf16 input strip
        out_blk = 2 * th * W * 4 * Cout * 2             # double-buffered bf16 output block
        hpp = 4 * (th + 2) * (W + 2) * Cout * 2         # persistent scratch
        tmp = (th + 2) * W * (4 * Cin * 2 + 2 * Cout * 4) + th * W * Cout * 4
        return x_blk + out_blk + hpp + tmp

    smallest_valid = H
    for th in range(H, 0, -1):
        if H % th:
            continue
        if th != H and (th * W) % 8:
            continue                                    # keep output block sublane-aligned
        smallest_valid = th
        if footprint(th) <= budget_bytes:
            return th
    return smallest_valid


def upconvblock_forward(x_nchw, params, row_tile=None):
    """UpConvBlock.forward; NCHW f32 in / NCHW f32 out (matches the PyTorch module).

    TODO(synk): training-mode BatchNorm batch statistics are not reproduced; inference-mode
    running statistics are folded into per-channel scale/bias.
    """
    x = jnp.transpose(x_nchw, (0, 2, 3, 1))                          # NHWC
    N, H, W, Cin = x.shape
    Cout = params["w_conv2"].shape[0]

    TH = _pick_row_tile(H, W, Cin, Cout) if row_tile is None else int(row_tile)
    assert H % TH == 0, "row_tile must divide H"
    assert TH == H or (TH * W) % 8 == 0, "TH*W must be a multiple of 8 (or TH == H)"
    S = H // TH

    wup = pack_upconv_phase_weights(params["w_upconv1"],
                                    params["w_upsample"]).astype(jnp.bfloat16)
    w2 = jnp.transpose(params["w_conv2"], (2, 3, 1, 0)).reshape(9, Cout, Cout)
    w2 = w2.astype(jnp.bfloat16)

    s1, b1 = fold_bn(params["bn1"])
    su, bu = fold_bn(params["bn_up"])
    s2, b2 = fold_bn(params["bn2"])
    scale_up = jnp.concatenate([s1, su], axis=1)                     # (1, 2*Cout)
    bias_up = jnp.concatenate([b1, bu], axis=1)

    # Zero-pad the input in the wrapper (fuses with the NCHW->NHWC transpose): 1 px
    # left/right (ConvTranspose padding) and 2 rows top/bottom (padding + strip halo),
    # then gather overlapping (TH+4)-row strips so every grid step gets a halo'd block.
    xq = jnp.pad(x.astype(jnp.bfloat16), ((0, 0), (2, 2), (1, 1), (0, 0)))
    x_strips = jnp.stack(
        [lax.dynamic_slice_in_dim(xq, s * TH, TH + 4, axis=1) for s in range(S)], axis=1
    )                                                                # (N, S, TH+4, W+2, Cin)

    kernel = functools.partial(_upconv_block_kernel, TH, W, Cin, Cout)

    flops = N * S * (2 * (TH + 2) * W * (4 * Cin) * (2 * Cout) * 4
                     + 2 * TH * W * Cout * Cout * 9 * 4)
    bytes_accessed = (x_strips.size * 2 + N * H * W * 4 * Cout * 2
                      + wup.size * 2 + w2.size * 2)

    out_flat = pl.pallas_call(
        kernel,
        out_shape=jax.ShapeDtypeStruct((N, H * W, 4 * Cout), jnp.bfloat16),
        grid_spec=pltpu.PrefetchScalarGridSpec(
            num_scalar_prefetch=0,
            grid=(N, S),
            in_specs=[
                pl.BlockSpec((None, None, TH + 4, W + 2, Cin),
                             lambda n, s: (n, s, 0, 0, 0)),
                pl.BlockSpec((4, 4 * Cin, 2 * Cout), lambda n, s: (0, 0, 0)),
                pl.BlockSpec((9, Cout, Cout), lambda n, s: (0, 0, 0)),
                pl.BlockSpec((1, 2 * Cout), lambda n, s: (0, 0)),
                pl.BlockSpec((1, 2 * Cout), lambda n, s: (0, 0)),
                pl.BlockSpec((1, Cout), lambda n, s: (0, 0)),
                pl.BlockSpec((1, Cout), lambda n, s: (0, 0)),
            ],
            out_specs=pl.BlockSpec((None, TH * W, 4 * Cout), lambda n, s: (n, s, 0)),
            scratch_shapes=[
                pltpu.VMEM((4, TH + 2, W + 2, Cout), jnp.bfloat16),  # padded phase imgs of h
            ],
        ),
        compiler_params=pltpu.CompilerParams(
            dimension_semantics=("parallel", "parallel"),
            vmem_limit_bytes=_vmem_limit_bytes(),
        ),
        cost_estimate=pl.CostEstimate(flops=int(flops), transcendentals=0,
                                      bytes_accessed=int(bytes_accessed)),
    )(x_strips, wup, w2, scale_up, bias_up, s2, b2)

    # Interleave the 4 parity phases while still bf16; cast to f32 only at the very end.
    out = out_flat.reshape(N, H, W, 2, 2, Cout)
    out = jnp.transpose(out, (0, 1, 3, 2, 4, 5)).reshape(N, 2 * H, 2 * W, Cout)
    return jnp.transpose(out, (0, 3, 1, 2)).astype(jnp.float32)


# ----------------------------------------------------------------------------
# Parameter init + pure-JAX reference (lax convolutions) for validation
# ----------------------------------------------------------------------------
def init_params(key, inplanes, planes):
    ks = jax.random.split(key, 6)

    def bn_params(k):
        k1, k2, k3, k4 = jax.random.split(k, 4)
        return dict(
            gamma=jax.random.uniform(k1, (planes,), minval=0.5, maxval=1.5),
            beta=0.1 * jax.random.normal(k2, (planes,)),
            mean=0.1 * jax.random.normal(k3, (planes,)),
            var=jax.random.uniform(k4, (planes,), minval=0.5, maxval=1.5),
        )

    return dict(
        w_upconv1=0.1 * jax.random.normal(ks[0], (inplanes, planes, 4, 4), jnp.float32),
        w_conv2=0.1 * jax.random.normal(ks[1], (planes, planes, 3, 3), jnp.float32),
        w_upsample=0.1 * jax.random.normal(ks[2], (inplanes, planes, 4, 4), jnp.float32),
        bn1=bn_params(ks[3]),
        bn2=bn_params(ks[4]),
        bn_up=bn_params(ks[5]),
    )


def ref_forward(x_nchw, params, eps=EPS, emulate_bf16=False):
    """lax-conv reference. emulate_bf16=True rounds conv operands (and the intermediate
    activation) to bf16, mirroring the kernel's bf16-operand / f32-accumulate MXU math."""
    if emulate_bf16:
        q = lambda t: t.astype(jnp.bfloat16).astype(jnp.float32)
    else:
        q = lambda t: t

    x = jnp.transpose(x_nchw, (0, 2, 3, 1))

    def tconv(xx, w_t):
        w = jnp.transpose(w_t[:, :, ::-1, ::-1], (2, 3, 0, 1))
        return lax.conv_general_dilated(
            q(xx), q(w), window_strides=(1, 1), padding=((2, 2), (2, 2)),
            lhs_dilation=(2, 2), dimension_numbers=("NHWC", "HWIO", "NHWC"),
            preferred_element_type=jnp.float32)

    def conv3(xx, w):
        wh = jnp.transpose(w, (2, 3, 1, 0))
        return lax.conv_general_dilated(
            q(xx), q(wh), window_strides=(1, 1), padding=((1, 1), (1, 1)),
            dimension_numbers=("NHWC", "HWIO", "NHWC"),
            preferred_element_type=jnp.float32)

    def bn(xx, b):
        return (xx - b["mean"]) / jnp.sqrt(b["var"] + eps) * b["gamma"] + b["beta"]

    h = jax.nn.relu(bn(tconv(x, params["w_upconv1"]), params["bn1"]))
    h2 = bn(conv3(h, params["w_conv2"]), params["bn2"])
    r = bn(tconv(x, params["w_upsample"]), params["bn_up"])
    return jnp.transpose(jax.nn.relu(h2 + r), (0, 3, 1, 2))


if __name__ == "__main__":
    key = jax.random.PRNGKey(0)
    kx, kp = jax.random.split(key)

    inplanes, planes = 16, 16
    N, H, W = 2, 16, 16

    x = jax.random.normal(kx, (N, inplanes, H, W), jnp.float32)
    params = init_params(kp, inplanes, planes)

    ref_bf16 = ref_forward(x, params, emulate_bf16=True)
    ref_f32 = ref_forward(x, params)

    # multi-strip path (2 coarse-row strips per image)
    fwd_strips = jax.jit(functools.partial(upconvblock_forward, row_tile=8))
    out = jax.block_until_ready(fwd_strips(x, params))
    assert out.shape == (N, planes, 2 * H, 2 * W)
    np.testing.assert_allclose(np.asarray(out), np.asarray(ref_bf16), rtol=3e-2, atol=3e-2)
    np.testing.assert_allclose(np.asarray(out), np.asarray(ref_f32), rtol=1e-1, atol=1e-1)

    # whole-image (single strip) path picked by the heuristic
    fwd_whole = jax.jit(upconvblock_forward)
    out1 = jax.block_until_ready(fwd_whole(x, params))
    np.testing.assert_allclose(np.asarray(out1), np.asarray(ref_bf16), rtol=3e-2, atol=3e-2)

    print("KERNEL_OK")
</pallas_src>

<mosaic_0001>
module attributes {stable_mosaic.version = 11 : i64} {
  func.func @_upconv_block_kernel(%arg0: i32, %arg1: i32, %arg2: memref<1x1x12x18x16xbf16, #tpu.memory_space<vmem>>, %arg3: memref<4x64x32xbf16, #tpu.memory_space<vmem>>, %arg4: memref<9x16x16xbf16, #tpu.memory_space<vmem>>, %arg5: memref<1x32xf32, #tpu.memory_space<vmem>>, %arg6: memref<1x32xf32, #tpu.memory_space<vmem>>, %arg7: memref<1x16xf32, #tpu.memory_space<vmem>>, %arg8: memref<1x16xf32, #tpu.memory_space<vmem>>, %arg9: memref<1x128x64xbf16, #tpu.memory_space<vmem>>, %arg10: memref<4x10x18x16xbf16, #tpu.memory_space<vmem>>) attributes {dimension_semantics = [#tpu.dimension_semantics<parallel>, #tpu.dimension_semantics<parallel>], iteration_bounds = array<i64: 2, 2>, scalar_prefetch = 0 : i64, scratch_operands = 1 : i64, tpu.core_type = #tpu.core_type<tc>, window_params = [{transform_indices = @transform_0, window_bounds = array<i64: 1, 1, 12, 18, 16>}, {pipeline_mode = #tpu.pipeline_mode<synchronous>, transform_indices = @transform_1, window_bounds = array<i64: 4, 64, 32>}, {pipeline_mode = #tpu.pipeline_mode<synchronous>, transform_indices = @transform_2, window_bounds = array<i64: 9, 16, 16>}, {pipeline_mode = #tpu.pipeline_mode<synchronous>, transform_indices = @transform_3, window_bounds = array<i64: 1, 32>}, {pipeline_mode = #tpu.pipeline_mode<synchronous>, transform_indices = @transform_4, window_bounds = array<i64: 1, 32>}, {pipeline_mode = #tpu.pipeline_mode<synchronous>, transform_indices = @transform_5, window_bounds = array<i64: 1, 16>}, {pipeline_mode = #tpu.pipeline_mode<synchronous>, transform_indices = @transform_6, window_bounds = array<i64: 1, 16>}, {transform_indices = @transform_7, window_bounds = array<i64: 1, 128, 64>}]} {
    %c0 = arith.constant 0 : index
    %c0_0 = arith.constant 0 : index
    %c0_1 = arith.constant 0 : index
    %c0_2 = arith.constant 0 : index
    %c0_3 = arith.constant 0 : index
    %0 = vector.load %arg2[%c0, %c0_0, %c0_1, %c0_2, %c0_3] : memref<1x1x12x18x16xbf16, #tpu.memory_space<vmem>>, vector<1x1x12x18x16xbf16>
    %1 = vector.shape_cast %0 : vector<1x1x12x18x16xbf16> to vector<12x18x16xbf16>
    %c0_4 = arith.constant 0 : index
    %c0_5 = arith.constant 0 : index
    %2 = vector.load %arg5[%c0_4, %c0_5] : memref<1x32xf32, #tpu.memory_space<vmem>>, vector<1x32xf32>
    %c0_6 = arith.constant 0 : index
    %c0_7 = arith.constant 0 : index
    %3 = vector.load %arg6[%c0_6, %c0_7] : memref<1x32xf32, #tpu.memory_space<vmem>>, vector<1x32xf32>
    %4 = vector.extract_strided_slice %1 {offsets = [0, 0, 0], sizes = [10, 16, 16], strides = [1, 1, 1]} : vector<12x18x16xbf16> to vector<10x16x16xbf16>
    %5 = vector.extract_strided_slice %1 {offsets = [0, 1, 0], sizes = [10, 16, 16], strides = [1, 1, 1]} : vector<12x18x16xbf16> to vector<10x16x16xbf16>
    %6 = vector.extract_strided_slice %1 {offsets = [1, 0, 0], sizes = [10, 16, 16], strides = [1, 1, 1]} : vector<12x18x16xbf16> to vector<10x16x16xbf16>
    %7 = vector.extract_strided_slice %1 {offsets = [1, 1, 0], sizes = [10, 16, 16], strides = [1, 1, 1]} : vector<12x18x16xbf16> to vector<10x16x16xbf16>
    %8 = tpu.concatenate %4, %5, %6, %7 in 2 : vector<10x16x16xbf16>, vector<10x16x16xbf16>, vector<10x16x16xbf16>, vector<10x16x16xbf16> -> vector<10x16x64xbf16>
    %9 = vector.shape_cast %8 : vector<10x16x64xbf16> to vector<160x64xbf16>
    %c0_8 = arith.constant 0 : index
    %c0_9 = arith.constant 0 : index
    %c0_10 = arith.constant 0 : index
    %10 = vector.load %arg3[%c0_8, %c0_9, %c0_10] : memref<4x64x32xbf16, #tpu.memory_space<vmem>>, vector<1x64x32xbf16>
    %11 = vector.shape_cast %10 : vector<1x64x32xbf16> to vector<64x32xbf16>
    %cst = arith.constant dense<0.000000e+00> : vector<160x32xf32>
    %12 = tpu.matmul %9, %11, %cst {dimension_numbers = #tpu.dot_dimension_numbers<[1], [0], [0], [1], [0, 0, 1, 1], [], []>} : vector<160x64xbf16>, vector<64x32xbf16>, vector<160x32xf32> -> vector<160x32xf32>
    %13 = vector.broadcast %2 : vector<1x32xf32> to vector<160x32xf32>
    %14 = arith.mulf %12, %13 : vector<160x32xf32>
    %15 = vector.broadcast %3 : vector<1x32xf32> to vector<160x32xf32>
    %16 = arith.addf %14, %15 : vector<160x32xf32>
    %17 = vector.extract_strided_slice %16 {offsets = [0, 0], sizes = [160, 16], strides = [1, 1]} : vector<160x32xf32> to vector<160x16xf32>
    %cst_11 = arith.constant 0.000000e+00 : f32
    %18 = vector.broadcast %cst_11 : f32 to vector<160x16xf32>
    %19 = arith.maximumf %17, %18 : vector<160x16xf32>
    %20 = arith.truncf %19 : vector<160x16xf32> to vector<160x16xbf16>
    %21 = vector.shape_cast %20 : vector<160x16xbf16> to vector<10x16x16xbf16>
    %c0_12 = arith.constant 0 : index
    %c0_13 = arith.constant 0 : index
    %c1 = arith.constant 1 : index
    %c0_14 = arith.constant 0 : index
    %22 = vector.load %arg10[%c0_12, %c0_13, %c1, %c0_14] : memref<4x10x18x16xbf16, #tpu.memory_space<vmem>>, vector<1x10x16x16xbf16>
    %23 = vector.shape_cast %22 : vector<1x10x16x16xbf16> to vector<10x16x16xbf16>
    %24 = vector.shape_cast %21 : vector<10x16x16xbf16> to vector<1x10x16x16xbf16>
    tpu.vector_store %arg10[%c0_12, %c0_13, %c1, %c0_14], %24 {strides = array<i32>} : memref<4x10x18x16xbf16, #tpu.memory_space<vmem>>, vector<1x10x16x16xbf16>,
    %cst_15 = arith.constant 0.000000e+00 : bf16
    %25 = vector.broadcast %cst_15 : bf16 to vector<10x1x16xbf16>
    %c0_16 = arith.constant 0 : index
    %c0_17 = arith.constant 0 : index
    %c0_18 = arith.constant 0 : index
    %c0_19 = arith.constant 0 : index
    %26 = vector.load %arg10[%c0_16, %c0_17, %c0_18, %c0_19] : memref<4x10x18x16xbf16, #tpu.memory_space<vmem>>, vector<1x10x1x16xbf16>
    %27 = vector.shape_cast %26 : vector<1x10x1x16xbf16> to vector<10x1x16xbf16>
    %28 = vector.shape_cast %25 : vector<10x1x16xbf16> to vector<1x10x1x16xbf16>
    tpu.vector_store %arg10[%c0_16, %c0_17, %c0_18, %c0_19], %28 {strides = array<i32>} : memref<4x10x18x16xbf16, #tpu.memory_space<vmem>>, vector<1x10x1x16xbf16>,
    %c0_20 = arith.constant 0 : index
    %c0_21 = arith.constant 0 : index
    %c17 = arith.constant 17 : index
    %c0_22 = arith.constant 0 : index
    %29 = vector.load %arg10[%c0_20, %c0_21, %c17, %c0_22] : memref<4x10x18x16xbf16, #tpu.memory_space<vmem>>, vector<1x10x1x16xbf16>
    %30 = vector.shape_cast %29 : vector<1x10x1x16xbf16> to vector<10x1x16xbf16>
    %31 = vector.shape_cast %25 : vector<10x1x16xbf16> to vector<1x10x1x16xbf16>
    tpu.vector_store %arg10[%c0_20, %c0_21, %c17, %c0_22], %31 {strides = array<i32>} : memref<4x10x18x16xbf16, #tpu.memory_space<vmem>>, vector<1x10x1x16xbf16>,
    %c0_i32 = arith.constant 0 : i32
    %32 = arith.cmpi eq, %arg1, %c0_i32 : i32
    %33 = arith.extui %32 : i1 to i32
    %c0_i32_23 = arith.constant 0 : i32
    %34 = arith.cmpi ne, %33, %c0_i32_23 : i32
    scf.if %34 {
      %cst_399 = arith.constant 0.000000e+00 : bf16
      %458 = vector.broadcast %cst_399 : bf16 to vector<1x18x16xbf16>
      %c0_400 = arith.constant 0 : index
      %c0_401 = arith.constant 0 : index
      %c0_402 = arith.constant 0 : index
      %c0_403 = arith.constant 0 : index
      %459 = vector.load %arg10[%c0_400, %c0_401, %c0_402, %c0_403] : memref<4x10x18x16xbf16, #tpu.memory_space<vmem>>, vector<1x1x18x16xbf16>
      %460 = vector.shape_cast %459 : vector<1x1x18x16xbf16> to vector<1x18x16xbf16>
      %461 = vector.shape_cast %458 : vector<1x18x16xbf16> to vector<1x1x18x16xbf16>
      tpu.vector_store %arg10[%c0_400, %c0_401, %c0_402, %c0_403], %461 {strides = array<i32>} : memref<4x10x18x16xbf16, #tpu.memory_space<vmem>>, vector<1x1x18x16xbf16>,
    } else {
    }
    %c1_i32 = arith.constant 1 : i32
    %35 = arith.cmpi eq, %arg1, %c1_i32 : i32
    %36 = arith.extui %35 : i1 to i32
    %c0_i32_24 = arith.constant 0 : i32
    %37 = arith.cmpi ne, %36, %c0_i32_24 : i32
    scf.if %37 {
      %cst_399 = arith.constant 0.000000e+00 : bf16
      %458 = vector.broadcast %cst_399 : bf16 to vector<1x18x16xbf16>
      %c0_400 = arith.constant 0 : index
      %c9 = arith.constant 9 : index
      %c0_401 = arith.constant 0 : index
      %c0_402 = arith.constant 0 : index
      %459 = vector.load %arg10[%c0_400, %c9, %c0_401, %c0_402] : memref<4x10x18x16xbf16, #tpu.memory_space<vmem>>, vector<1x1x18x16xbf16>
      %460 = vector.shape_cast %459 : vector<1x1x18x16xbf16> to vector<1x18x16xbf16>
      %461 = vector.shape_cast %458 : vector<1x18x16xbf16> to vector<1x1x18x16xbf16>
      tpu.vector_store %arg10[%c0_400, %c9, %c0_401, %c0_402], %461 {strides = array<i32>} : memref<4x10x18x16xbf16, #tpu.memory_space<vmem>>, vector<1x1x18x16xbf16>,
    } else {
    }
    %38 = vector.extract_strided_slice %16 {offsets = [16, 16], sizes = [128, 16], strides = [1, 1]} : vector<160x32xf32> to vector<128x16xf32>
    %39 = arith.truncf %38 : vector<128x16xf32> to vector<128x16xbf16>
    %40 = vector.extract_strided_slice %1 {offsets = [0, 1, 0], sizes = [10, 16, 16], strides = [1, 1, 1]} : vector<12x18x16xbf16> to vector<10x16x16xbf16>
    %41 = vector.extract_strided_slice %1 {offsets = [0, 2, 0], sizes = [10, 16, 16], strides = [1, 1, 1]} : vector<12x18x16xbf16> to vector<10x16x16xbf16>
    %42 = vector.extract_strided_slice %1 {offsets = [1, 1, 0], sizes = [10, 16, 16], strides = [1, 1, 1]} : vector<12x18x16xbf16> to vector<10x16x16xbf16>
    %43 = vector.extract_strided_slice %1 {offsets = [1, 2, 0], sizes = [10, 16, 16], strides = [1, 1, 1]} : vector<12x18x16xbf16> to vector<10x16x16xbf16>
    %44 = tpu.concatenate %40, %41, %42, %43 in 2 : vector<10x16x16xbf16>, vector<10x16x16xbf16>, vector<10x16x16xbf16>, vector<10x16x16xbf16> -> vector<10x16x64xbf16>
    %45 = vector.shape_cast %44 : vector<10x16x64xbf16> to vector<160x64xbf16>
    %c1_25 = arith.constant 1 : index
    %c0_26 = arith.constant 0 : index
    %c0_27 = arith.constant 0 : index
    %46 = vector.load %arg3[%c1_25, %c0_26, %c0_27] : memref<4x64x32xbf16, #tpu.memory_space<vmem>>, vector<1x64x32xbf16>
    %47 = vector.shape_cast %46 : vector<1x64x32xbf16> to vector<64x32xbf16>
    %cst_28 = arith.constant dense<0.000000e+00> : vector<160x32xf32>
    %48 = tpu.matmul %45, %47, %cst_28 {dimension_numbers = #tpu.dot_dimension_numbers<[1], [0], [0], [1], [0, 0, 1, 1], [], []>} : vector<160x64xbf16>, vector<64x32xbf16>, vector<160x32xf32> -> vector<160x32xf32>
    %49 = vector.broadcast %2 : vector<1x32xf32> to vector<160x32xf32>
    %50 = arith.mulf %48, %49 : vector<160x32xf32>
    %51 = vector.broadcast %3 : vector<1x32xf32> to vector<160x32xf32>
    %52 = arith.addf %50, %51 : vector<160x32xf32>
    %53 = vector.extract_strided_slice %52 {offsets = [0, 0], sizes = [160, 16], strides = [1, 1]} : vector<160x32xf32> to vector<160x16xf32>
    %cst_29 = arith.constant 0.000000e+00 : f32
    %54 = vector.broadcast %cst_29 : f32 to vector<160x16xf32>
    %55 = arith.maximumf %53, %54 : vector<160x16xf32>
    %56 = arith.truncf %55 : vector<160x16xf32> to vector<160x16xbf16>
    %57 = vector.shape_cast %56 : vector<160x16xbf16> to vector<10x16x16xbf16>
    %c1_30 = arith.constant 1 : index
    %c0_31 = arith.constant 0 : index
    %c1_32 = arith.constant 1 : index
    %c0_33 = arith.constant 0 : index
    %58 = vector.load %arg10[%c1_30, %c0_31, %c1_32, %c0_33] : memref<4x10x18x16xbf16, #tpu.memory_space<vmem>>, vector<1x10x16x16xbf16>
    %59 = vector.shape_cast %58 : vector<1x10x16x16xbf16> to vector<10x16x16xbf16>
    %60 = vector.shape_cast %57 : vector<10x16x16xbf16> to vector<1x10x16x16xbf16>
    tpu.vector_store %arg10[%c1_30, %c0_31, %c1_32, %c0_33], %60 {strides = array<i32>} : memref<4x10x18x16xbf16, #tpu.memory_space<vmem>>, vector<1x10x16x16xbf16>,
    %cst_34 = arith.constant 0.000000e+00 : bf16
    %61 = vector.broadcast %cst_34 : bf16 to vector<10x1x16xbf16>
    %c1_35 = arith.constant 1 : index
    %c0_36 = arith.constant 0 : index
    %c0_37 = arith.constant 0 : index
    %c0_38 = arith.constant 0 : index
    %62 = vector.load %arg10[%c1_35, %c0_36, %c0_37, %c0_38] : memref<4x10x18x16xbf16, #tpu.memory_space<vmem>>, vector<1x10x1x16xbf16>
    %63 = vector.shape_cast %62 : vector<1x10x1x16xbf16> to vector<10x1x16xbf16>
    %64 = vector.shape_cast %61 : vector<10x1x16xbf16> to vector<1x10x1x16xbf16>
    tpu.vector_store %arg10[%c1_35, %c0_36, %c0_37, %c0_38], %64 {strides = array<i32>} : memref<4x10x18x16xbf16, #tpu.memory_space<vmem>>, vector<1x10x1x16xbf16>,
    %c1_39 = arith.constant 1 : index
    %c0_40 = arith.constant 0 : index
    %c17_41 = arith.constant 17 : index
    %c0_42 = arith.constant 0 : index
    %65 = vector.load %arg10[%c1_39, %c0_40, %c17_41, %c0_42] : memref<4x10x18x16xbf16, #tpu.memory_space<vmem>>, vector<1x10x1x16xbf16>
    %66 = vector.shape_cast %65 : vector<1x10x1x16xbf16> to vector<10x1x16xbf16>
    %67 = vector.shape_cast %61 : vector<10x1x16xbf16> to vector<1x10x1x16xbf16>
    tpu.vector_store %arg10[%c1_39, %c0_40, %c17_41, %c0_42], %67 {strides = array<i32>} : memref<4x10x18x16xbf16, #tpu.memory_space<vmem>>, vector<1x10x1x16xbf16>,
    %c0_i32_43 = arith.constant 0 : i32
    %68 = arith.cmpi eq, %arg1, %c0_i32_43 : i32
    %69 = arith.extui %68 : i1 to i32
    %c0_i32_44 = arith.constant 0 : i32
    %70 = arith.cmpi ne, %69, %c0_i32_44 : i32
    scf.if %70 {
      %cst_399 = arith.constant 0.000000e+00 : bf16
      %458 = vector.broadcast %cst_399 : bf16 to vector<1x18x16xbf16>
      %c1_400 = arith.constant 1 : index
      %c0_401 = arith.constant 0 : index
      %c0_402 = arith.constant 0 : index
      %c0_403 = arith.constant 0 : index
      %459 = vector.load %arg10[%c1_400, %c0_401, %c0_402, %c0_403] : memref<4x10x18x16xbf16, #tpu.memory_space<vmem>>, vector<1x1x18x16xbf16>
      %460 = vector.shape_cast %459 : vector<1x1x18x16xbf16> to vector<1x18x16xbf16>
      %461 = vector.shape_cast %458 : vector<1x18x16xbf16> to vector<1x1x18x16xbf16>
      tpu.vector_store %arg10[%c1_400, %c0_401, %c0_402, %c0_403], %461 {strides = array<i32>} : memref<4x10x18x16xbf16, #tpu.memory_space<vmem>>, vector<1x1x18x16xbf16>,
    } else {
    }
    %c1_i32_45 = arith.constant 1 : i32
    %71 = arith.cmpi eq, %arg1, %c1_i32_45 : i32
    %72 = arith.extui %71 : i1 to i32
    %c0_i32_46 = arith.constant 0 : i32
    %73 = arith.cmpi ne, %72, %c0_i32_46 : i32
    scf.if %73 {
      %cst_399 = arith.constant 0.000000e+00 : bf16
      %458 = vector.broadcast %cst_399 : bf16 to vector<1x18x16xbf16>
      %c1_400 = arith.constant 1 : index
      %c9 = arith.constant 9 : index
      %c0_401 = arith.constant 0 : index
      %c0_402 = arith.constant 0 : index
      %459 = vector.load %arg10[%c1_400, %c9, %c0_401, %c0_402] : memref<4x10x18x16xbf16, #tpu.memory_space<vmem>>, vector<1x1x18x16xbf16>
      %460 = vector.shape_cast %459 : vector<1x1x18x16xbf16> to vector<1x18x16xbf16>
      %461 = vector.shape_cast %458 : vector<1x18x16xbf16> to vector<1x1x18x16xbf16>
      tpu.vector_store %arg10[%c1_400, %c9, %c0_401, %c0_402], %461 {strides = array<i32>} : memref<4x10x18x16xbf16, #tpu.memory_space<vmem>>, vector<1x1x18x16xbf16>,
    } else {
    }
    %74 = vector.extract_strided_slice %52 {offsets = [16, 16], sizes = [128, 16], strides = [1, 1]} : vector<160x32xf32> to vector<128x16xf32>
    %75 = arith.truncf %74 : vector<128x16xf32> to vector<128x16xbf16>
    %76 = vector.extract_strided_slice %1 {offsets = [1, 0, 0], sizes = [10, 16, 16], strides = [1, 1, 1]} : vector<12x18x16xbf16> to vector<10x16x16xbf16>
    %77 = vector.extract_strided_slice %1 {offsets = [1, 1, 0], sizes = [10, 16, 16], strides = [1, 1, 1]} : vector<12x18x16xbf16> to vector<10x16x16xbf16>
    %78 = vector.extract_strided_slice %1 {offsets = [2, 0, 0], sizes = [10, 16, 16], strides = [1, 1, 1]} : vector<12x18x16xbf16> to vector<10x16x16xbf16>
    %79 = vector.extract_strided_slice %1 {offsets = [2, 1, 0], sizes = [10, 16, 16], strides = [1, 1, 1]} : vector<12x18x16xbf16> to vector<10x16x16xbf16>
    %80 = tpu.concatenate %76, %77, %78, %79 in 2 : vector<10x16x16xbf16>, vector<10x16x16xbf16>, vector<10x16x16xbf16>, vector<10x16x16xbf16> -> vector<10x16x64xbf16>
    %81 = vector.shape_cast %80 : vector<10x16x64xbf16> to vector<160x64xbf16>
    %c2 = arith.constant 2 : index
    %c0_47 = arith.constant 0 : index
    %c0_48 = arith.constant 0 : index
    %82 = vector.load %arg3[%c2, %c0_47, %c0_48] : memref<4x64x32xbf16, #tpu.memory_space<vmem>>, vector<1x64x32xbf16>
    %83 = vector.shape_cast %82 : vector<1x64x32xbf16> to vector<64x32xbf16>
    %cst_49 = arith.constant dense<0.000000e+00> : vector<160x32xf32>
    %84 = tpu.matmul %81, %83, %cst_49 {dimension_numbers = #tpu.dot_dimension_numbers<[1], [0], [0], [1], [0, 0, 1, 1], [], []>} : vector<160x64xbf16>, vector<64x32xbf16>, vector<160x32xf32> -> vector<160x32xf32>
    %85 = vector.broadcast %2 : vector<1x32xf32> to vector<160x32xf32>
    %86 = arith.mulf %84, %85 : vector<160x32xf32>
    %87 = vector.broadcast %3 : vector<1x32xf32> to vector<160x32xf32>
    %88 = arith.addf %86, %87 : vector<160x32xf32>
    %89 = vector.extract_strided_slice %88 {offsets = [0, 0], sizes = [160, 16], strides = [1, 1]} : vector<160x32xf32> to vector<160x16xf32>
    %cst_50 = arith.constant 0.000000e+00 : f32
    %90 = vector.broadcast %cst_50 : f32 to vector<160x16xf32>
    %91 = arith.maximumf %89, %90 : vector<160x16xf32>
    %92 = arith.truncf %91 : vector<160x16xf32> to vector<160x16xbf16>
    %93 = vector.shape_cast %92 : vector<160x16xbf16> to vector<10x16x16xbf16>
    %c2_51 = arith.constant 2 : index
    %c0_52 = arith.constant 0 : index
    %c1_53 = arith.constant 1 : index
    %c0_54 = arith.constant 0 : index
    %94 = vector.load %arg10[%c2_51, %c0_52, %c1_53, %c0_54] : memref<4x10x18x16xbf16, #tpu.memory_space<vmem>>, vector<1x10x16x16xbf16>
    %95 = vector.shape_cast %94 : vector<1x10x16x16xbf16> to vector<10x16x16xbf16>
    %96 = vector.shape_cast %93 : vector<10x16x16xbf16> to vector<1x10x16x16xbf16>
    tpu.vector_store %arg10[%c2_51, %c0_52, %c1_53, %c0_54], %96 {strides = array<i32>} : memref<4x10x18x16xbf16, #tpu.memory_space<vmem>>, vector<1x10x16x16xbf16>,
    %cst_55 = arith.constant 0.000000e+00 : bf16
    %97 = vector.broadcast %cst_55 : bf16 to vector<10x1x16xbf16>
    %c2_56 = arith.constant 2 : index
    %c0_57 = arith.constant 0 : index
    %c0_58 = arith.constant 0 : index
    %c0_59 = arith.constant 0 : index
    %98 = vector.load %arg10[%c2_56, %c0_57, %c0_58, %c0_59] : memref<4x10x18x16xbf16, #tpu.memory_space<vmem>>, vector<1x10x1x16xbf16>
    %99 = vector.shape_cast %98 : vector<1x10x1x16xbf16> to vector<10x1x16xbf16>
    %100 = vector.shape_cast %97 : vector<10x1x16xbf16> to vector<1x10x1x16xbf16>
    tpu.vector_store %arg10[%c2_56, %c0_57, %c0_58, %c0_59], %100 {strides = array<i32>} : memref<4x10x18x16xbf16, #tpu.memory_space<vmem>>, vector<1x10x1x16xbf16>,
    %c2_60 = arith.constant 2 : index
    %c0_61 = arith.constant 0 : index
    %c17_62 = arith.constant 17 : index
    %c0_63 = arith.constant 0 : index
    %101 = vector.load %arg10[%c2_60, %c0_61, %c17_62, %c0_63] : memref<4x10x18x16xbf16, #tpu.memory_space<vmem>>, vector<1x10x1x16xbf16>
    %102 = vector.shape_cast %101 : vector<1x10x1x16xbf16> to vector<10x1x16xbf16>
    %103 = vector.shape_cast %97 : vector<10x1x16xbf16> to vector<1x10x1x16xbf16>
    tpu.vector_store %arg10[%c2_60, %c0_61, %c17_62, %c0_63], %103 {strides = array<i32>} : memref<4x10x18x16xbf16, #tpu.memory_space<vmem>>, vector<1x10x1x16xbf16>,
    %c0_i32_64 = arith.constant 0 : i32
    %104 = arith.cmpi eq, %arg1, %c0_i32_64 : i32
    %105 = arith.extui %104 : i1 to i32
    %c0_i32_65 = arith.constant 0 : i32
    %106 = arith.cmpi ne, %105, %c0_i32_65 : i32
    scf.if %106 {
      %cst_399 = arith.constant 0.000000e+00 : bf16
      %458 = vector.broadcast %cst_399 : bf16 to vector<1x18x16xbf16>
      %c2_400 = arith.constant 2 : index
      %c0_401 = arith.constant 0 : index
      %c0_402 = arith.constant 0 : index
      %c0_403 = arith.constant 0 : index
      %459 = vector.load %arg10[%c2_400, %c0_401, %c0_402, %c0_403] : memref<4x10x18x16xbf16, #tpu.memory_space<vmem>>, vector<1x1x18x16xbf16>
      %460 = vector.shape_cast %459 : vector<1x1x18x16xbf16> to vector<1x18x16xbf16>
      %461 = vector.shape_cast %458 : vector<1x18x16xbf16> to vector<1x1x18x16xbf16>
      tpu.vector_store %arg10[%c2_400, %c0_401, %c0_402, %c0_403], %461 {strides = array<i32>} : memref<4x10x18x16xbf16, #tpu.memory_space<vmem>>, vector<1x1x18x16xbf16>,
    } else {
    }
    %c1_i32_66 = arith.constant 1 : i32
    %107 = arith.cmpi eq, %arg1, %c1_i32_66 : i32
    %108 = arith.extui %107 : i1 to i32
    %c0_i32_67 = arith.constant 0 : i32
    %109 = arith.cmpi ne, %108, %c0_i32_67 : i32
    scf.if %109 {
      %cst_399 = arith.constant 0.000000e+00 : bf16
      %458 = vector.broadcast %cst_399 : bf16 to vector<1x18x16xbf16>
      %c2_400 = arith.constant 2 : index
      %c9 = arith.constant 9 : index
      %c0_401 = arith.constant 0 : index
      %c0_402 = arith.constant 0 : index
      %459 = vector.load %arg10[%c2_400, %c9, %c0_401, %c0_402] : memref<4x10x18x16xbf16, #tpu.memory_space<vmem>>, vector<1x1x18x16xbf16>
      %460 = vector.shape_cast %459 : vector<1x1x18x16xbf16> to vector<1x18x16xbf16>
      %461 = vector.shape_cast %458 : vector<1x18x16xbf16> to vector<1x1x18x16xbf16>
      tpu.vector_store %arg10[%c2_400, %c9, %c0_401, %c0_402], %461 {strides = array<i32>} : memref<4x10x18x16xbf16, #tpu.memory_space<vmem>>, vector<1x1x18x16xbf16>,
    } else {
    }
    %110 = vector.extract_strided_slice %88 {offsets = [16, 16], sizes = [128, 16], strides = [1, 1]} : vector<160x32xf32> to vector<128x16xf32>
    %111 = arith.truncf %110 : vector<128x16xf32> to vector<128x16xbf16>
    %112 = vector.extract_strided_slice %1 {offsets = [1, 1, 0], sizes = [10, 16, 16], strides = [1, 1, 1]} : vector<12x18x16xbf16> to vector<10x16x16xbf16>
    %113 = vector.extract_strided_slice %1 {offsets = [1, 2, 0], sizes = [10, 16, 16], strides = [1, 1, 1]} : vector<12x18x16xbf16> to vector<10x16x16xbf16>
    %114 = vector.extract_strided_slice %1 {offsets = [2, 1, 0], sizes = [10, 16, 16], strides = [1, 1, 1]} : vector<12x18x16xbf16> to vector<10x16x16xbf16>
    %115 = vector.extract_strided_slice %1 {offsets = [2, 2, 0], sizes = [10, 16, 16], strides = [1, 1, 1]} : vector<12x18x16xbf16> to vector<10x16x16xbf16>
    %116 = tpu.concatenate %112, %113, %114, %115 in 2 : vector<10x16x16xbf16>, vector<10x16x16xbf16>, vector<10x16x16xbf16>, vector<10x16x16xbf16> -> vector<10x16x64xbf16>
    %117 = vector.shape_cast %116 : vector<10x16x64xbf16> to vector<160x64xbf16>
    %c3 = arith.constant 3 : index
    %c0_68 = arith.constant 0 : index
    %c0_69 = arith.constant 0 : index
    %118 = vector.load %arg3[%c3, %c0_68, %c0_69] : memref<4x64x32xbf16, #tpu.memory_space<vmem>>, vector<1x64x32xbf16>
    %119 = vector.shape_cast %118 : vector<1x64x32xbf16> to vector<64x32xbf16>
    %cst_70 = arith.constant dense<0.000000e+00> : vector<160x32xf32>
    %120 = tpu.matmul %117, %119, %cst_70 {dimension_numbers = #tpu.dot_dimension_numbers<[1], [0], [0], [1], [0, 0, 1, 1], [], []>} : vector<160x64xbf16>, vector<64x32xbf16>, vector<160x32xf32> -> vector<160x32xf32>
    %121 = vector.broadcast %2 : vector<1x32xf32> to vector<160x32xf32>
    %122 = arith.mulf %120, %121 : vector<160x32xf32>
    %123 = vector.broadcast %3 : vector<1x32xf32> to vector<160x32xf32>
    %124 = arith.addf %122, %123 : vector<160x32xf32>
    %125 = vector.extract_strided_slice %124 {offsets = [0, 0], sizes = [160, 16], strides = [1, 1]} : vector<160x32xf32> to vector<160x16xf32>
    %cst_71 = arith.constant 0.000000e+00 : f32
    %126 = vector.broadcast %cst_71 : f32 to vector<160x16xf32>
    %127 = arith.maximumf %125, %126 : vector<160x16xf32>
    %128 = arith.truncf %127 : vector<160x16xf32> to vector<160x16xbf16>
    %129 = vector.shape_cast %128 : vector<160x16xbf16> to vector<10x16x16xbf16>
    %c3_72 = arith.constant 3 : index
    %c0_73 = arith.constant 0 : index
    %c1_74 = arith.constant 1 : index
    %c0_75 = arith.constant 0 : index
    %130 = vector.load %arg10[%c3_72, %c0_73, %c1_74, %c0_75] : memref<4x10x18x16xbf16, #tpu.memory_space<vmem>>, vector<1x10x16x16xbf16>
    %131 = vector.shape_cast %130 : vector<1x10x16x16xbf16> to vector<10x16x16xbf16>
    %132 = vector.shape_cast %129 : vector<10x16x16xbf16> to vector<1x10x16x16xbf16>
    tpu.vector_store %arg10[%c3_72, %c0_73, %c1_74, %c0_75], %132 {strides = array<i32>} : memref<4x10x18x16xbf16, #tpu.memory_space<vmem>>, vector<1x10x16x16xbf16>,
    %cst_76 = arith.constant 0.000000e+00 : bf16
    %133 = vector.broadcast %cst_76 : bf16 to vector<10x1x16xbf16>
    %c3_77 = arith.constant 3 : index
    %c0_78 = arith.constant 0 : index
    %c0_79 = arith.constant 0 : index
    %c0_80 = arith.constant 0 : index
    %134 = vector.load %arg10[%c3_77, %c0_78, %c0_79, %c0_80] : memref<4x10x18x16xbf16, #tpu.memory_space<vmem>>, vector<1x10x1x16xbf16>
    %135 = vector.shape_cast %134 : vector<1x10x1x16xbf16> to vector<10x1x16xbf16>
    %136 = vector.shape_cast %133 : vector<10x1x16xbf16> to vector<1x10x1x16xbf16>
    tpu.vector_store %arg10[%c3_77, %c0_78, %c0_79, %c0_80], %136 {strides = array<i32>} : memref<4x10x18x16xbf16, #tpu.memory_space<vmem>>, vector<1x10x1x16xbf16>,
    %c3_81 = arith.constant 3 : index
    %c0_82 = arith.constant 0 : index
    %c17_83 = arith.constant 17 : index
    %c0_84 = arith.constant 0 : index
    %137 = vector.load %arg10[%c3_81, %c0_82, %c17_83, %c0_84] : memref<4x10x18x16xbf16, #tpu.memory_space<vmem>>, vector<1x10x1x16xbf16>
    %138 = vector.shape_cast %137 : vector<1x10x1x16xbf16> to vector<10x1x16xbf16>
    %139 = vector.shape_cast %133 : vector<10x1x16xbf16> to vector<1x10x1x16xbf16>
    tpu.vector_store %arg10[%c3_81, %c0_82, %c17_83, %c0_84], %139 {strides = array<i32>} : memref<4x10x18x16xbf16, #tpu.memory_space<vmem>>, vector<1x10x1x16xbf16>,
    %c0_i32_85 = arith.constant 0 : i32
    %140 = arith.cmpi eq, %arg1, %c0_i32_85 : i32
    %141 = arith.extui %140 : i1 to i32
    %c0_i32_86 = arith.constant 0 : i32
    %142 = arith.cmpi ne, %141, %c0_i32_86 : i32
    scf.if %142 {
      %cst_399 = arith.constant 0.000000e+00 : bf16
      %458 = vector.broadcast %cst_399 : bf16 to vector<1x18x16xbf16>
      %c3_400 = arith.constant 3 : index
      %c0_401 = arith.constant 0 : index
      %c0_402 = arith.constant 0 : index
      %c0_403 = arith.constant 0 : index
      %459 = vector.load %arg10[%c3_400, %c0_401, %c0_402, %c0_403] : memref<4x10x18x16xbf16, #tpu.memory_space<vmem>>, vector<1x1x18x16xbf16>
      %460 = vector.shape_cast %459 : vector<1x1x18x16xbf16> to vector<1x18x16xbf16>
      %461 = vector.shape_cast %458 : vector<1x18x16xbf16> to vector<1x1x18x16xbf16>
      tpu.vector_store %arg10[%c3_400, %c0_401, %c0_402, %c0_403], %461 {strides = array<i32>} : memref<4x10x18x16xbf16, #tpu.memory_space<vmem>>, vector<1x1x18x16xbf16>,
    } else {
    }
    %c1_i32_87 = arith.constant 1 : i32
    %143 = arith.cmpi eq, %arg1, %c1_i32_87 : i32
    %144 = arith.extui %143 : i1 to i32
    %c0_i32_88 = arith.constant 0 : i32
    %145 = arith.cmpi ne, %144, %c0_i32_88 : i32
    scf.if %145 {
      %cst_399 = arith.constant 0.000000e+00 : bf16
      %458 = vector.broadcast %cst_399 : bf16 to vector<1x18x16xbf16>
      %c3_400 = arith.constant 3 : index
      %c9 = arith.constant 9 : index
      %c0_401 = arith.constant 0 : index
      %c0_402 = arith.constant 0 : index
      %459 = vector.load %arg10[%c3_400, %c9, %c0_401, %c0_402] : memref<4x10x18x16xbf16, #tpu.memory_space<vmem>>, vector<1x1x18x16xbf16>
      %460 = vector.shape_cast %459 : vector<1x1x18x16xbf16> to vector<1x18x16xbf16>
      %461 = vector.shape_cast %458 : vector<1x18x16xbf16> to vector<1x1x18x16xbf16>
      tpu.vector_store %arg10[%c3_400, %c9, %c0_401, %c0_402], %461 {strides = array<i32>} : memref<4x10x18x16xbf16, #tpu.memory_space<vmem>>, vector<1x1x18x16xbf16>,
    } else {
    }
    %146 = vector.extract_strided_slice %124 {offsets = [16, 16], sizes = [128, 16], strides = [1, 1]} : vector<160x32xf32> to vector<128x16xf32>
    %147 = arith.truncf %146 : vector<128x16xf32> to vector<128x16xbf16>
    %148 = tpu.concatenate %39, %75, %111, %147 in 1 : vector<128x16xbf16>, vector<128x16xbf16>, vector<128x16xbf16>, vector<128x16xbf16> -> vector<128x64xbf16>
    %c0_89 = arith.constant 0 : index
    %c0_90 = arith.constant 0 : index
    %c0_91 = arith.constant 0 : index
    %149 = vector.load %arg9[%c0_89, %c0_90, %c0_91] : memref<1x128x64xbf16, #tpu.memory_space<vmem>>, vector<1x128x64xbf16>
    %150 = vector.shape_cast %149 : vector<1x128x64xbf16> to vector<128x64xbf16>
    %151 = vector.shape_cast %148 : vector<128x64xbf16> to vector<1x128x64xbf16>
    tpu.vector_store %arg9[%c0_89, %c0_90, %c0_91], %151 {strides = array<i32>} : memref<1x128x64xbf16, #tpu.memory_space<vmem>>, vector<1x128x64xbf16>,
    %c0_92 = arith.constant 0 : index
    %c0_93 = arith.constant 0 : index
    %152 = vector.load %arg7[%c0_92, %c0_93] : memref<1x16xf32, #tpu.memory_space<vmem>>, vector<1x16xf32>
    %c0_94 = arith.constant 0 : index
    %c0_95 = arith.constant 0 : index
    %153 = vector.load %arg8[%c0_94, %c0_95] : memref<1x16xf32, #tpu.memory_space<vmem>>, vector<1x16xf32>
    %cst_96 = arith.constant 0.000000e+00 : f32
    %154 = vector.broadcast %cst_96 : f32 to vector<128x16xf32>
    %c3_97 = arith.constant 3 : index
    %c0_98 = arith.constant 0 : index
    %c0_99 = arith.constant 0 : index
    %c0_100 = arith.constant 0 : index
    %155 = vector.load %arg10[%c3_97, %c0_98, %c0_99, %c0_100] : memref<4x10x18x16xbf16, #tpu.memory_space<vmem>>, vector<1x8x16x16xbf16>
    %156 = vector.shape_cast %155 : vector<1x8x16x16xbf16> to vector<8x16x16xbf16>
    %157 = vector.shape_cast %156 : vector<8x16x16xbf16> to vector<128x16xbf16>
    %c0_101 = arith.constant 0 : index
    %c0_102 = arith.constant 0 : index
    %c0_103 = arith.constant 0 : index
    %158 = vector.load %arg4[%c0_101, %c0_102, %c0_103] : memref<9x16x16xbf16, #tpu.memory_space<vmem>>, vector<1x16x16xbf16>
    %159 = vector.shape_cast %158 : vector<1x16x16xbf16> to vector<16x16xbf16>
    %cst_104 = arith.constant dense<0.000000e+00> : vector<128x16xf32>
    %160 = tpu.matmul %157, %159, %cst_104 {dimension_numbers = #tpu.dot_dimension_numbers<[1], [0], [0], [1], [0, 0, 1, 1], [], []>} : vector<128x16xbf16>, vector<16x16xbf16>, vector<128x16xf32> -> vector<128x16xf32>
    %161 = arith.addf %154, %160 : vector<128x16xf32>
    %c2_105 = arith.constant 2 : index
    %c0_106 = arith.constant 0 : index
    %c1_107 = arith.constant 1 : index
    %c0_108 = arith.constant 0 : index
    %162 = vector.load %arg10[%c2_105, %c0_106, %c1_107, %c0_108] : memref<4x10x18x16xbf16, #tpu.memory_space<vmem>>, vector<1x8x16x16xbf16>
    %163 = vector.shape_cast %162 : vector<1x8x16x16xbf16> to vector<8x16x16xbf16>
    %164 = vector.shape_cast %163 : vector<8x16x16xbf16> to vector<128x16xbf16>
    %c1_109 = arith.constant 1 : index
    %c0_110 = arith.constant 0 : index
    %c0_111 = arith.constant 0 : index
    %165 = vector.load %arg4[%c1_109, %c0_110, %c0_111] : memref<9x16x16xbf16, #tpu.memory_space<vmem>>, vector<1x16x16xbf16>
    %166 = vector.shape_cast %165 : vector<1x16x16xbf16> to vector<16x16xbf16>
    %cst_112 = arith.constant dense<0.000000e+00> : vector<128x16xf32>
    %167 = tpu.matmul %164, %166, %cst_112 {dimension_numbers = #tpu.dot_dimension_numbers<[1], [0], [0], [1], [0, 0, 1, 1], [], []>} : vector<128x16xbf16>, vector<16x16xbf16>, vector<128x16xf32> -> vector<128x16xf32>
    %168 = arith.addf %161, %167 : vector<128x16xf32>
    %c3_113 = arith.constant 3 : index
    %c0_114 = arith.constant 0 : index
    %c1_115 = arith.constant 1 : index
    %c0_116 = arith.constant 0 : index
    %169 = vector.load %arg10[%c3_113, %c0_114, %c1_115, %c0_116] : memref<4x10x18x16xbf16, #tpu.memory_space<vmem>>, vector<1x8x16x16xbf16>
    %170 = vector.shape_cast %169 : vector<1x8x16x16xbf16> to vector<8x16x16xbf16>
    %171 = vector.shape_cast %170 : vector<8x16x16xbf16> to vector<128x16xbf16>
    %c2_117 = arith.constant 2 : index
    %c0_118 = arith.constant 0 : index
    %c0_119 = arith.constant 0 : index
    %172 = vector.load %arg4[%c2_117, %c0_118, %c0_119] : memref<9x16x16xbf16, #tpu.memory_space<vmem>>, vector<1x16x16xbf16>
    %173 = vector.shape_cast %172 : vector<1x16x16xbf16> to vector<16x16xbf16>
    %cst_120 = arith.constant dense<0.000000e+00> : vector<128x16xf32>
    %174 = tpu.matmul %171, %173, %cst_120 {dimension_numbers = #tpu.dot_dimension_numbers<[1], [0], [0], [1], [0, 0, 1, 1], [], []>} : vector<128x16xbf16>, vector<16x16xbf16>, vector<128x16xf32> -> vector<128x16xf32>
    %175 = arith.addf %168, %174 : vector<128x16xf32>
    %c1_121 = arith.constant 1 : index
    %c1_122 = arith.constant 1 : index
    %c0_123 = arith.constant 0 : index
    %c0_124 = arith.constant 0 : index
    %176 = vector.load %arg10[%c1_121, %c1_122, %c0_123, %c0_124] : memref<4x10x18x16xbf16, #tpu.memory_space<vmem>>, vector<1x8x16x16xbf16>
    %177 = vector.shape_cast %176 : vector<1x8x16x16xbf16> to vector<8x16x16xbf16>
    %178 = vector.shape_cast %177 : vector<8x16x16xbf16> to vector<128x16xbf16>
    %c3_125 = arith.constant 3 : index
    %c0_126 = arith.constant 0 : index
    %c0_127 = arith.constant 0 : index
    %179 = vector.load %arg4[%c3_125, %c0_126, %c0_127] : memref<9x16x16xbf16, #tpu.memory_space<vmem>>, vector<1x16x16xbf16>
    %180 = vector.shape_cast %179 : vector<1x16x16xbf16> to vector<16x16xbf16>
    %cst_128 = arith.constant dense<0.000000e+00> : vector<128x16xf32>
    %181 = tpu.matmul %178, %180, %cst_128 {dimension_numbers = #tpu.dot_dimension_numbers<[1], [0], [0], [1], [0, 0, 1, 1], [], []>} : vector<128x16xbf16>, vector<16x16xbf16>, vector<128x16xf32> -> vector<128x16xf32>
    %182 = arith.addf %175, %181 : vector<128x16xf32>
    %c0_129 = arith.constant 0 : index
    %c1_130 = arith.constant 1 : index
    %c1_131 = arith.constant 1 : index
    %c0_132 = arith.constant 0 : index
    %183 = vector.load %arg10[%c0_129, %c1_130, %c1_131, %c0_132] : memref<4x10x18x16xbf16, #tpu.memory_space<vmem>>, vector<1x8x16x16xbf16>
    %184 = vector.shape_cast %183 : vector<1x8x16x16xbf16> to vector<8x16x16xbf16>
    %185 = vector.shape_cast %184 : vector<8x16x16xbf16> to vector<128x16xbf16>
    %c4 = arith.constant 4 : index
    %c0_133 = arith.constant 0 : index
    %c0_134 = arith.constant 0 : index
    %186 = vector.load %arg4[%c4, %c0_133, %c0_134] : memref<9x16x16xbf16, #tpu.memory_space<vmem>>, vector<1x16x16xbf16>
    %187 = vector.shape_cast %186 : vector<1x16x16xbf16> to vector<16x16xbf16>
    %cst_135 = arith.constant dense<0.000000e+00> : vector<128x16xf32>
    %188 = tpu.matmul %185, %187, %cst_135 {dimension_numbers = #tpu.dot_dimension_numbers<[1], [0], [0], [1], [0, 0, 1, 1], [], []>} : vector<128x16xbf16>, vector<16x16xbf16>, vector<128x16xf32> -> vector<128x16xf32>
    %189 = arith.addf %182, %188 : vector<128x16xf32>
    %c1_136 = arith.constant 1 : index
    %c1_137 = arith.constant 1 : index
    %c1_138 = arith.constant 1 : index
    %c0_139 = arith.constant 0 : index
    %190 = vector.load %arg10[%c1_136, %c1_137, %c1_138, %c0_139] : memref<4x10x18x16xbf16, #tpu.memory_space<vmem>>, vector<1x8x16x16xbf16>
    %191 = vector.shape_cast %190 : vector<1x8x16x16xbf16> to vector<8x16x16xbf16>
    %192 = vector.shape_cast %191 : vector<8x16x16xbf16> to vector<128x16xbf16>
    %c5 = arith.constant 5 : index
    %c0_140 = arith.constant 0 : index
    %c0_141 = arith.constant 0 : index
    %193 = vector.load %arg4[%c5, %c0_140, %c0_141] : memref<9x16x16xbf16, #tpu.memory_space<vmem>>, vector<1x16x16xbf16>
    %194 = vector.shape_cast %193 : vector<1x16x16xbf16> to vector<16x16xbf16>
    %cst_142 = arith.constant dense<0.000000e+00> : vector<128x16xf32>
    %195 = tpu.matmul %192, %194, %cst_142 {dimension_numbers = #tpu.dot_dimension_numbers<[1], [0], [0], [1], [0, 0, 1, 1], [], []>} : vector<128x16xbf16>, vector<16x16xbf16>, vector<128x16xf32> -> vector<128x16xf32>
    %196 = arith.addf %189, %195 : vector<128x16xf32>
    %c3_143 = arith.constant 3 : index
    %c1_144 = arith.constant 1 : index
    %c0_145 = arith.constant 0 : index
    %c0_146 = arith.constant 0 : index
    %197 = vector.load %arg10[%c3_143, %c1_144, %c0_145, %c0_146] : memref<4x10x18x16xbf16, #tpu.memory_space<vmem>>, vector<1x8x16x16xbf16>
    %198 = vector.shape_cast %197 : vector<1x8x16x16xbf16> to vector<8x16x16xbf16>
    %199 = vector.shape_cast %198 : vector<8x16x16xbf16> to vector<128x16xbf16>
    %c6 = arith.constant 6 : index
    %c0_147 = arith.constant 0 : index
    %c0_148 = arith.constant 0 : index
    %200 = vector.load %arg4[%c6, %c0_147, %c0_148] : memref<9x16x16xbf16, #tpu.memory_space<vmem>>, vector<1x16x16xbf16>
    %201 = vector.shape_cast %200 : vector<1x16x16xbf16> to vector<16x16xbf16>
    %cst_149 = arith.constant dense<0.000000e+00> : vector<128x16xf32>
    %202 = tpu.matmul %199, %201, %cst_149 {dimension_numbers = #tpu.dot_dimension_numbers<[1], [0], [0], [1], [0, 0, 1, 1], [], []>} : vector<128x16xbf16>, vector<16x16xbf16>, vector<128x16xf32> -> vector<128x16xf32>
    %203 = arith.addf %196, %202 : vector<128x16xf32>
    %c2_150 = arith.constant 2 : index
    %c1_151 = arith.constant 1 : index
    %c1_152 = arith.constant 1 : index
    %c0_153 = arith.constant 0 : index
    %204 = vector.load %arg10[%c2_150, %c1_151, %c1_152, %c0_153] : memref<4x10x18x16xbf16, #tpu.memory_space<vmem>>, vector<1x8x16x16xbf16>
    %205 = vector.shape_cast %204 : vector<1x8x16x16xbf16> to vector<8x16x16xbf16>
    %206 = vector.shape_cast %205 : vector<8x16x16xbf16> to vector<128x16xbf16>
    %c7 = arith.constant 7 : index
    %c0_154 = arith.constant 0 : index
    %c0_155 = arith.constant 0 : index
    %207 = vector.load %arg4[%c7, %c0_154, %c0_155] : memref<9x16x16xbf16, #tpu.memory_space<vmem>>, vector<1x16x16xbf16>
    %208 = vector.shape_cast %207 : vector<1x16x16xbf16> to vector<16x16xbf16>
    %cst_156 = arith.constant dense<0.000000e+00> : vector<128x16xf32>
    %209 = tpu.matmul %206, %208, %cst_156 {dimension_numbers = #tpu.dot_dimension_numbers<[1], [0], [0], [1], [0, 0, 1, 1], [], []>} : vector<128x16xbf16>, vector<16x16xbf16>, vector<128x16xf32> -> vector<128x16xf32>
    %210 = arith.addf %203, %209 : vector<128x16xf32>
    %c3_157 = arith.constant 3 : index
    %c1_158 = arith.constant 1 : index
    %c1_159 = arith.constant 1 : index
    %c0_160 = arith.constant 0 : index
    %211 = vector.load %arg10[%c3_157, %c1_158, %c1_159, %c0_160] : memref<4x10x18x16xbf16, #tpu.memory_space<vmem>>, vector<1x8x16x16xbf16>
    %212 = vector.shape_cast %211 : vector<1x8x16x16xbf16> to vector<8x16x16xbf16>
    %213 = vector.shape_cast %212 : vector<8x16x16xbf16> to vector<128x16xbf16>
    %c8 = arith.constant 8 : index
    %c0_161 = arith.constant 0 : index
    %c0_162 = arith.constant 0 : index
    %214 = vector.load %arg4[%c8, %c0_161, %c0_162] : memref<9x16x16xbf16, #tpu.memory_space<vmem>>, vector<1x16x16xbf16>
    %215 = vector.shape_cast %214 : vector<1x16x16xbf16> to vector<16x16xbf16>
    %cst_163 = arith.constant dense<0.000000e+00> : vector<128x16xf32>
    %216 = tpu.matmul %213, %215, %cst_163 {dimension_numbers = #tpu.dot_dimension_numbers<[1], [0], [0], [1], [0, 0, 1, 1], [], []>} : vector<128x16xbf16>, vector<16x16xbf16>, vector<128x16xf32> -> vector<128x16xf32>
    %217 = arith.addf %210, %216 : vector<128x16xf32>
    %c0_164 = arith.constant 0 : index
    %c0_165 = arith.constant 0 : index
    %c0_166 = arith.constant 0 : index
    %218 = vector.load %arg9[%c0_164, %c0_165, %c0_166] : memref<1x128x64xbf16, #tpu.memory_space<vmem>>, vector<1x128x16xbf16>
    %219 = vector.shape_cast %218 : vector<1x128x16xbf16> to vector<128x16xbf16>
    %220 = vector.broadcast %152 : vector<1x16xf32> to vector<128x16xf32>
    %221 = arith.mulf %217, %220 : vector<128x16xf32>
    %222 = vector.broadcast %153 : vector<1x16xf32> to vector<128x16xf32>
    %223 = arith.addf %221, %222 : vector<128x16xf32>
    %224 = arith.extf %219 : vector<128x16xbf16> to vector<128x16xf32>
    %225 = arith.addf %223, %224 : vector<128x16xf32>
    %cst_167 = arith.constant 0.000000e+00 : f32
    %226 = vector.broadcast %cst_167 : f32 to vector<128x16xf32>
    %227 = arith.maximumf %225, %226 : vector<128x16xf32>
    %228 = arith.truncf %227 : vector<128x16xf32> to vector<128x16xbf16>
    %cst_168 = arith.constant 0.000000e+00 : f32
    %229 = vector.broadcast %cst_168 : f32 to vector<128x16xf32>
    %c2_169 = arith.constant 2 : index
    %c0_170 = arith.constant 0 : index
    %c1_171 = arith.constant 1 : index
    %c0_172 = arith.constant 0 : index
    %230 = vector.load %arg10[%c2_169, %c0_170, %c1_171, %c0_172] : memref<4x10x18x16xbf16, #tpu.memory_space<vmem>>, vector<1x8x16x16xbf16>
    %231 = vector.shape_cast %230 : vector<1x8x16x16xbf16> to vector<8x16x16xbf16>
    %232 = vector.shape_cast %231 : vector<8x16x16xbf16> to vector<128x16xbf16>
    %c0_173 = arith.constant 0 : index
    %c0_174 = arith.constant 0 : index
    %c0_175 = arith.constant 0 : index
    %233 = vector.load %arg4[%c0_173, %c0_174, %c0_175] : memref<9x16x16xbf16, #tpu.memory_space<vmem>>, vector<1x16x16xbf16>
    %234 = vector.shape_cast %233 : vector<1x16x16xbf16> to vector<16x16xbf16>
    %cst_176 = arith.constant dense<0.000000e+00> : vector<128x16xf32>
    %235 = tpu.matmul %232, %234, %cst_176 {dimension_numbers = #tpu.dot_dimension_numbers<[1], [0], [0], [1], [0, 0, 1, 1], [], []>} : vector<128x16xbf16>, vector<16x16xbf16>, vector<128x16xf32> -> vector<128x16xf32>
    %236 = arith.addf %229, %235 : vector<128x16xf32>
    %c3_177 = arith.constant 3 : index
    %c0_178 = arith.constant 0 : index
    %c1_179 = arith.constant 1 : index
    %c0_180 = arith.constant 0 : index
    %237 = vector.load %arg10[%c3_177, %c0_178, %c1_179, %c0_180] : memref<4x10x18x16xbf16, #tpu.memory_space<vmem>>, vector<1x8x16x16xbf16>
    %238 = vector.shape_cast %237 : vector<1x8x16x16xbf16> to vector<8x16x16xbf16>
    %239 = vector.shape_cast %238 : vector<8x16x16xbf16> to vector<128x16xbf16>
    %c1_181 = arith.constant 1 : index
    %c0_182 = arith.constant 0 : index
    %c0_183 = arith.constant 0 : index
    %240 = vector.load %arg4[%c1_181, %c0_182, %c0_183] : memref<9x16x16xbf16, #tpu.memory_space<vmem>>, vector<1x16x16xbf16>
    %241 = vector.shape_cast %240 : vector<1x16x16xbf16> to vector<16x16xbf16>
    %cst_184 = arith.constant dense<0.000000e+00> : vector<128x16xf32>
    %242 = tpu.matmul %239, %241, %cst_184 {dimension_numbers = #tpu.dot_dimension_numbers<[1], [0], [0], [1], [0, 0, 1, 1], [], []>} : vector<128x16xbf16>, vector<16x16xbf16>, vector<128x16xf32> -> vector<128x16xf32>
    %243 = arith.addf %236, %242 : vector<128x16xf32>
    %c2_185 = arith.constant 2 : index
    %c0_186 = arith.constant 0 : index
    %c2_187 = arith.constant 2 : index
    %c0_188 = arith.constant 0 : index
    %244 = vector.load %arg10[%c2_185, %c0_186, %c2_187, %c0_188] : memref<4x10x18x16xbf16, #tpu.memory_space<vmem>>, vector<1x8x16x16xbf16>
    %245 = vector.shape_cast %244 : vector<1x8x16x16xbf16> to vector<8x16x16xbf16>
    %246 = vector.shape_cast %245 : vector<8x16x16xbf16> to vector<128x16xbf16>
    %c2_189 = arith.constant 2 : index
    %c0_190 = arith.constant 0 : index
    %c0_191 = arith.constant 0 : index
    %247 = vector.load %arg4[%c2_189, %c0_190, %c0_191] : memref<9x16x16xbf16, #tpu.memory_space<vmem>>, vector<1x16x16xbf16>
    %248 = vector.shape_cast %247 : vector<1x16x16xbf16> to vector<16x16xbf16>
    %cst_192 = arith.constant dense<0.000000e+00> : vector<128x16xf32>
    %249 = tpu.matmul %246, %248, %cst_192 {dimension_numbers = #tpu.dot_dimension_numbers<[1], [0], [0], [1], [0, 0, 1, 1], [], []>} : vector<128x16xbf16>, vector<16x16xbf16>, vector<128x16xf32> -> vector<128x16xf32>
    %250 = arith.addf %243, %249 : vector<128x16xf32>
    %c0_193 = arith.constant 0 : index
    %c1_194 = arith.constant 1 : index
    %c1_195 = arith.constant 1 : index
    %c0_196 = arith.constant 0 : index
    %251 = vector.load %arg10[%c0_193, %c1_194, %c1_195, %c0_196] : memref<4x10x18x16xbf16, #tpu.memory_space<vmem>>, vector<1x8x16x16xbf16>
    %252 = vector.shape_cast %251 : vector<1x8x16x16xbf16> to vector<8x16x16xbf16>
    %253 = vector.shape_cast %252 : vector<8x16x16xbf16> to vector<128x16xbf16>
    %c3_197 = arith.constant 3 : index
    %c0_198 = arith.constant 0 : index
    %c0_199 = arith.constant 0 : index
    %254 = vector.load %arg4[%c3_197, %c0_198, %c0_199] : memref<9x16x16xbf16, #tpu.memory_space<vmem>>, vector<1x16x16xbf16>
    %255 = vector.shape_cast %254 : vector<1x16x16xbf16> to vector<16x16xbf16>
    %cst_200 = arith.constant dense<0.000000e+00> : vector<128x16xf32>
    %256 = tpu.matmul %253, %255, %cst_200 {dimension_numbers = #tpu.dot_dimension_numbers<[1], [0], [0], [1], [0, 0, 1, 1], [], []>} : vector<128x16xbf16>, vector<16x16xbf16>, vector<128x16xf32> -> vector<128x16xf32>
    %257 = arith.addf %250, %256 : vector<128x16xf32>
    %c1_201 = arith.constant 1 : index
    %c1_202 = arith.constant 1 : index
    %c1_203 = arith.constant 1 : index
    %c0_204 = arith.constant 0 : index
    %258 = vector.load %arg10[%c1_201, %c1_202, %c1_203, %c0_204] : memref<4x10x18x16xbf16, #tpu.memory_space<vmem>>, vector<1x8x16x16xbf16>
    %259 = vector.shape_cast %258 : vector<1x8x16x16xbf16> to vector<8x16x16xbf16>
    %260 = vector.shape_cast %259 : vector<8x16x16xbf16> to vector<128x16xbf16>
    %c4_205 = arith.constant 4 : index
    %c0_206 = arith.constant 0 : index
    %c0_207 = arith.constant 0 : index
    %261 = vector.load %arg4[%c4_205, %c0_206, %c0_207] : memref<9x16x16xbf16, #tpu.memory_space<vmem>>, vector<1x16x16xbf16>
    %262 = vector.shape_cast %261 : vector<1x16x16xbf16> to vector<16x16xbf16>
    %cst_208 = arith.constant dense<0.000000e+00> : vector<128x16xf32>
    %263 = tpu.matmul %260, %262, %cst_208 {dimension_numbers = #tpu.dot_dimension_numbers<[1], [0], [0], [1], [0, 0, 1, 1], [], []>} : vector<128x16xbf16>, vector<16x16xbf16>, vector<128x16xf32> -> vector<128x16xf32>
    %264 = arith.addf %257, %263 : vector<128x16xf32>
    %c0_209 = arith.constant 0 : index
    %c1_210 = arith.constant 1 : index
    %c2_211 = arith.constant 2 : index
    %c0_212 = arith.constant 0 : index
    %265 = vector.load %arg10[%c0_209, %c1_210, %c2_211, %c0_212] : memref<4x10x18x16xbf16, #tpu.memory_space<vmem>>, vector<1x8x16x16xbf16>
    %266 = vector.shape_cast %265 : vector<1x8x16x16xbf16> to vector<8x16x16xbf16>
    %267 = vector.shape_cast %266 : vector<8x16x16xbf16> to vector<128x16xbf16>
    %c5_213 = arith.constant 5 : index
    %c0_214 = arith.constant 0 : index
    %c0_215 = arith.constant 0 : index
    %268 = vector.load %arg4[%c5_213, %c0_214, %c0_215] : memref<9x16x16xbf16, #tpu.memory_space<vmem>>, vector<1x16x16xbf16>
    %269 = vector.shape_cast %268 : vector<1x16x16xbf16> to vector<16x16xbf16>
    %cst_216 = arith.constant dense<0.000000e+00> : vector<128x16xf32>
    %270 = tpu.matmul %267, %269, %cst_216 {dimension_numbers = #tpu.dot_dimension_numbers<[1], [0], [0], [1], [0, 0, 1, 1], [], []>} : vector<128x16xbf16>, vector<16x16xbf16>, vector<128x16xf32> -> vector<128x16xf32>
    %271 = arith.addf %264, %270 : vector<128x16xf32>
    %c2_217 = arith.constant 2 : index
    %c1_218 = arith.constant 1 : index
    %c1_219 = arith.constant 1 : index
    %c0_220 = arith.constant 0 : index
    %272 = vector.load %arg10[%c2_217, %c1_218, %c1_219, %c0_220] : memref<4x10x18x16xbf16, #tpu.memory_space<vmem>>, vector<1x8x16x16xbf16>
    %273 = vector.shape_cast %272 : vector<1x8x16x16xbf16> to vector<8x16x16xbf16>
    %274 = vector.shape_cast %273 : vector<8x16x16xbf16> to vector<128x16xbf16>
    %c6_221 = arith.constant 6 : index
    %c0_222 = arith.constant 0 : index
    %c0_223 = arith.constant 0 : index
    %275 = vector.load %arg4[%c6_221, %c0_222, %c0_223] : memref<9x16x16xbf16, #tpu.memory_space<vmem>>, vector<1x16x16xbf16>
    %276 = vector.shape_cast %275 : vector<1x16x16xbf16> to vector<16x16xbf16>
    %cst_224 = arith.constant dense<0.000000e+00> : vector<128x16xf32>
    %277 = tpu.matmul %274, %276, %cst_224 {dimension_numbers = #tpu.dot_dimension_numbers<[1], [0], [0], [1], [0, 0, 1, 1], [], []>} : vector<128x16xbf16>, vector<16x16xbf16>, vector<128x16xf32> -> vector<128x16xf32>
    %278 = arith.addf %271, %277 : vector<128x16xf32>
    %c3_225 = arith.constant 3 : index
    %c1_226 = arith.constant 1 : index
    %c1_227 = arith.constant 1 : index
    %c0_228 = arith.constant 0 : index
    %279 = vector.load %arg10[%c3_225, %c1_226, %c1_227, %c0_228] : memref<4x10x18x16xbf16, #tpu.memory_space<vmem>>, vector<1x8x16x16xbf16>
    %280 = vector.shape_cast %279 : vector<1x8x16x16xbf16> to vector<8x16x16xbf16>
    %281 = vector.shape_cast %280 : vector<8x16x16xbf16> to vector<128x16xbf16>
    %c7_229 = arith.constant 7 : index
    %c0_230 = arith.constant 0 : index
    %c0_231 = arith.constant 0 : index
    %282 = vector.load %arg4[%c7_229, %c0_230, %c0_231] : memref<9x16x16xbf16, #tpu.memory_space<vmem>>, vector<1x16x16xbf16>
    %283 = vector.shape_cast %282 : vector<1x16x16xbf16> to vector<16x16xbf16>
    %cst_232 = arith.constant dense<0.000000e+00> : vector<128x16xf32>
    %284 = tpu.matmul %281, %283, %cst_232 {dimension_numbers = #tpu.dot_dimension_numbers<[1], [0], [0], [1], [0, 0, 1, 1], [], []>} : vector<128x16xbf16>, vector<16x16xbf16>, vector<128x16xf32> -> vector<128x16xf32>
    %285 = arith.addf %278, %284 : vector<128x16xf32>
    %c2_233 = arith.constant 2 : index
    %c1_234 = arith.constant 1 : index
    %c2_235 = arith.constant 2 : index
    %c0_236 = arith.constant 0 : index
    %286 = vector.load %arg10[%c2_233, %c1_234, %c2_235, %c0_236] : memref<4x10x18x16xbf16, #tpu.memory_space<vmem>>, vector<1x8x16x16xbf16>
    %287 = vector.shape_cast %286 : vector<1x8x16x16xbf16> to vector<8x16x16xbf16>
    %288 = vector.shape_cast %287 : vector<8x16x16xbf16> to vector<128x16xbf16>
    %c8_237 = arith.constant 8 : index
    %c0_238 = arith.constant 0 : index
    %c0_239 = arith.constant 0 : index
    %289 = vector.load %arg4[%c8_237, %c0_238, %c0_239] : memref<9x16x16xbf16, #tpu.memory_space<vmem>>, vector<1x16x16xbf16>
    %290 = vector.shape_cast %289 : vector<1x16x16xbf16> to vector<16x16xbf16>
    %cst_240 = arith.constant dense<0.000000e+00> : vector<128x16xf32>
    %291 = tpu.matmul %288, %290, %cst_240 {dimension_numbers = #tpu.dot_dimension_numbers<[1], [0], [0], [1], [0, 0, 1, 1], [], []>} : vector<128x16xbf16>, vector<16x16xbf16>, vector<128x16xf32> -> vector<128x16xf32>
    %292 = arith.addf %285, %291 : vector<128x16xf32>
    %c0_241 = arith.constant 0 : index
    %c0_242 = arith.constant 0 : index
    %c16 = arith.constant 16 : index
    %293 = vector.load %arg9[%c0_241, %c0_242, %c16] : memref<1x128x64xbf16, #tpu.memory_space<vmem>>, vector<1x128x16xbf16>
    %294 = vector.shape_cast %293 : vector<1x128x16xbf16> to vector<128x16xbf16>
    %295 = vector.broadcast %152 : vector<1x16xf32> to vector<128x16xf32>
    %296 = arith.mulf %292, %295 : vector<128x16xf32>
    %297 = vector.broadcast %153 : vector<1x16xf32> to vector<128x16xf32>
    %298 = arith.addf %296, %297 : vector<128x16xf32>
    %299 = arith.extf %294 : vector<128x16xbf16> to vector<128x16xf32>
    %300 = arith.addf %298, %299 : vector<128x16xf32>
    %cst_243 = arith.constant 0.000000e+00 : f32
    %301 = vector.broadcast %cst_243 : f32 to vector<128x16xf32>
    %302 = arith.maximumf %300, %301 : vector<128x16xf32>
    %303 = arith.truncf %302 : vector<128x16xf32> to vector<128x16xbf16>
    %cst_244 = arith.constant 0.000000e+00 : f32
    %304 = vector.broadcast %cst_244 : f32 to vector<128x16xf32>
    %c1_245 = arith.constant 1 : index
    %c1_246 = arith.constant 1 : index
    %c0_247 = arith.constant 0 : index
    %c0_248 = arith.constant 0 : index
    %305 = vector.load %arg10[%c1_245, %c1_246, %c0_247, %c0_248] : memref<4x10x18x16xbf16, #tpu.memory_space<vmem>>, vector<1x8x16x16xbf16>
    %306 = vector.shape_cast %305 : vector<1x8x16x16xbf16> to vector<8x16x16xbf16>
    %307 = vector.shape_cast %306 : vector<8x16x16xbf16> to vector<128x16xbf16>
    %c0_249 = arith.constant 0 : index
    %c0_250 = arith.constant 0 : index
    %c0_251 = arith.constant 0 : index
    %308 = vector.load %arg4[%c0_249, %c0_250, %c0_251] : memref<9x16x16xbf16, #tpu.memory_space<vmem>>, vector<1x16x16xbf16>
    %309 = vector.shape_cast %308 : vector<1x16x16xbf16> to vector<16x16xbf16>
    %cst_252 = arith.constant dense<0.000000e+00> : vector<128x16xf32>
    %310 = tpu.matmul %307, %309, %cst_252 {dimension_numbers = #tpu.dot_dimension_numbers<[1], [0], [0], [1], [0, 0, 1, 1], [], []>} : vector<128x16xbf16>, vector<16x16xbf16>, vector<128x16xf32> -> vector<128x16xf32>
    %311 = arith.addf %304, %310 : vector<128x16xf32>
    %c0_253 = arith.constant 0 : index
    %c1_254 = arith.constant 1 : index
    %c1_255 = arith.constant 1 : index
    %c0_256 = arith.constant 0 : index
    %312 = vector.load %arg10[%c0_253, %c1_254, %c1_255, %c0_256] : memref<4x10x18x16xbf16, #tpu.memory_space<vmem>>, vector<1x8x16x16xbf16>
    %313 = vector.shape_cast %312 : vector<1x8x16x16xbf16> to vector<8x16x16xbf16>
    %314 = vector.shape_cast %313 : vector<8x16x16xbf16> to vector<128x16xbf16>
    %c1_257 = arith.constant 1 : index
    %c0_258 = arith.constant 0 : index
    %c0_259 = arith.constant 0 : index
    %315 = vector.load %arg4[%c1_257, %c0_258, %c0_259] : memref<9x16x16xbf16, #tpu.memory_space<vmem>>, vector<1x16x16xbf16>
    %316 = vector.shape_cast %315 : vector<1x16x16xbf16> to vector<16x16xbf16>
    %cst_260 = arith.constant dense<0.000000e+00> : vector<128x16xf32>
    %317 = tpu.matmul %314, %316, %cst_260 {dimension_numbers = #tpu.dot_dimension_numbers<[1], [0], [0], [1], [0, 0, 1, 1], [], []>} : vector<128x16xbf16>, vector<16x16xbf16>, vector<128x16xf32> -> vector<128x16xf32>
    %318 = arith.addf %311, %317 : vector<128x16xf32>
    %c1_261 = arith.constant 1 : index
    %c1_262 = arith.constant 1 : index
    %c1_263 = arith.constant 1 : index
    %c0_264 = arith.constant 0 : index
    %319 = vector.load %arg10[%c1_261, %c1_262, %c1_263, %c0_264] : memref<4x10x18x16xbf16, #tpu.memory_space<vmem>>, vector<1x8x16x16xbf16>
    %320 = vector.shape_cast %319 : vector<1x8x16x16xbf16> to vector<8x16x16xbf16>
    %321 = vector.shape_cast %320 : vector<8x16x16xbf16> to vector<128x16xbf16>
    %c2_265 = arith.constant 2 : index
    %c0_266 = arith.constant 0 : index
    %c0_267 = arith.constant 0 : index
    %322 = vector.load %arg4[%c2_265, %c0_266, %c0_267] : memref<9x16x16xbf16, #tpu.memory_space<vmem>>, vector<1x16x16xbf16>
    %323 = vector.shape_cast %322 : vector<1x16x16xbf16> to vector<16x16xbf16>
    %cst_268 = arith.constant dense<0.000000e+00> : vector<128x16xf32>
    %324 = tpu.matmul %321, %323, %cst_268 {dimension_numbers = #tpu.dot_dimension_numbers<[1], [0], [0], [1], [0, 0, 1, 1], [], []>} : vector<128x16xbf16>, vector<16x16xbf16>, vector<128x16xf32> -> vector<128x16xf32>
    %325 = arith.addf %318, %324 : vector<128x16xf32>
    %c3_269 = arith.constant 3 : index
    %c1_270 = arith.constant 1 : index
    %c0_271 = arith.constant 0 : index
    %c0_272 = arith.constant 0 : index
    %326 = vector.load %arg10[%c3_269, %c1_270, %c0_271, %c0_272] : memref<4x10x18x16xbf16, #tpu.memory_space<vmem>>, vector<1x8x16x16xbf16>
    %327 = vector.shape_cast %326 : vector<1x8x16x16xbf16> to vector<8x16x16xbf16>
    %328 = vector.shape_cast %327 : vector<8x16x16xbf16> to vector<128x16xbf16>
    %c3_273 = arith.constant 3 : index
    %c0_274 = arith.constant 0 : index
    %c0_275 = arith.constant 0 : index
    %329 = vector.load %arg4[%c3_273, %c0_274, %c0_275] : memref<9x16x16xbf16, #tpu.memory_space<vmem>>, vector<1x16x16xbf16>
    %330 = vector.shape_cast %329 : vector<1x16x16xbf16> to vector<16x16xbf16>
    %cst_276 = arith.constant dense<0.000000e+00> : vector<128x16xf32>
    %331 = tpu.matmul %328, %330, %cst_276 {dimension_numbers = #tpu.dot_dimension_numbers<[1], [0], [0], [1], [0, 0, 1, 1], [], []>} : vector<128x16xbf16>, vector<16x16xbf16>, vector<128x16xf32> -> vector<128x16xf32>
    %332 = arith.addf %325, %331 : vector<128x16xf32>
    %c2_277 = arith.constant 2 : index
    %c1_278 = arith.constant 1 : index
    %c1_279 = arith.constant 1 : index
    %c0_280 = arith.constant 0 : index
    %333 = vector.load %arg10[%c2_277, %c1_278, %c1_279, %c0_280] : memref<4x10x18x16xbf16, #tpu.memory_space<vmem>>, vector<1x8x16x16xbf16>
    %334 = vector.shape_cast %333 : vector<1x8x16x16xbf16> to vector<8x16x16xbf16>
    %335 = vector.shape_cast %334 : vector<8x16x16xbf16> to vector<128x16xbf16>
    %c4_281 = arith.constant 4 : index
    %c0_282 = arith.constant 0 : index
    %c0_283 = arith.constant 0 : index
    %336 = vector.load %arg4[%c4_281, %c0_282, %c0_283] : memref<9x16x16xbf16, #tpu.memory_space<vmem>>, vector<1x16x16xbf16>
    %337 = vector.shape_cast %336 : vector<1x16x16xbf16> to vector<16x16xbf16>
    %cst_284 = arith.constant dense<0.000000e+00> : vector<128x16xf32>
    %338 = tpu.matmul %335, %337, %cst_284 {dimension_numbers = #tpu.dot_dimension_numbers<[1], [0], [0], [1], [0, 0, 1, 1], [], []>} : vector<128x16xbf16>, vector<16x16xbf16>, vector<128x16xf32> -> vector<128x16xf32>
    %339 = arith.addf %332, %338 : vector<128x16xf32>
    %c3_285 = arith.constant 3 : index
    %c1_286 = arith.constant 1 : index
    %c1_287 = arith.constant 1 : index
    %c0_288 = arith.constant 0 : index
    %340 = vector.load %arg10[%c3_285, %c1_286, %c1_287, %c0_288] : memref<4x10x18x16xbf16, #tpu.memory_space<vmem>>, vector<1x8x16x16xbf16>
    %341 = vector.shape_cast %340 : vector<1x8x16x16xbf16> to vector<8x16x16xbf16>
    %342 = vector.shape_cast %341 : vector<8x16x16xbf16> to vector<128x16xbf16>
    %c5_289 = arith.constant 5 : index
    %c0_290 = arith.constant 0 : index
    %c0_291 = arith.constant 0 : index
    %343 = vector.load %arg4[%c5_289, %c0_290, %c0_291] : memref<9x16x16xbf16, #tpu.memory_space<vmem>>, vector<1x16x16xbf16>
    %344 = vector.shape_cast %343 : vector<1x16x16xbf16> to vector<16x16xbf16>
    %cst_292 = arith.constant dense<0.000000e+00> : vector<128x16xf32>
    %345 = tpu.matmul %342, %344, %cst_292 {dimension_numbers = #tpu.dot_dimension_numbers<[1], [0], [0], [1], [0, 0, 1, 1], [], []>} : vector<128x16xbf16>, vector<16x16xbf16>, vector<128x16xf32> -> vector<128x16xf32>
    %346 = arith.addf %339, %345 : vector<128x16xf32>
    %c1_293 = arith.constant 1 : index
    %c2_294 = arith.constant 2 : index
    %c0_295 = arith.constant 0 : index
    %c0_296 = arith.constant 0 : index
    %347 = vector.load %arg10[%c1_293, %c2_294, %c0_295, %c0_296] : memref<4x10x18x16xbf16, #tpu.memory_space<vmem>>, vector<1x8x16x16xbf16>
    %348 = vector.shape_cast %347 : vector<1x8x16x16xbf16> to vector<8x16x16xbf16>
    %349 = vector.shape_cast %348 : vector<8x16x16xbf16> to vector<128x16xbf16>
    %c6_297 = arith.constant 6 : index
    %c0_298 = arith.constant 0 : index
    %c0_299 = arith.constant 0 : index
    %350 = vector.load %arg4[%c6_297, %c0_298, %c0_299] : memref<9x16x16xbf16, #tpu.memory_space<vmem>>, vector<1x16x16xbf16>
    %351 = vector.shape_cast %350 : vector<1x16x16xbf16> to vector<16x16xbf16>
    %cst_300 = arith.constant dense<0.000000e+00> : vector<128x16xf32>
    %352 = tpu.matmul %349, %351, %cst_300 {dimension_numbers = #tpu.dot_dimension_numbers<[1], [0], [0], [1], [0, 0, 1, 1], [], []>} : vector<128x16xbf16>, vector<16x16xbf16>, vector<128x16xf32> -> vector<128x16xf32>
    %353 = arith.addf %346, %352 : vector<128x16xf32>
    %c0_301 = arith.constant 0 : index
    %c2_302 = arith.constant 2 : index
    %c1_303 = arith.constant 1 : index
    %c0_304 = arith.constant 0 : index
    %354 = vector.load %arg10[%c0_301, %c2_302, %c1_303, %c0_304] : memref<4x10x18x16xbf16, #tpu.memory_space<vmem>>, vector<1x8x16x16xbf16>
    %355 = vector.shape_cast %354 : vector<1x8x16x16xbf16> to vector<8x16x16xbf16>
    %356 = vector.shape_cast %355 : vector<8x16x16xbf16> to vector<128x16xbf16>
    %c7_305 = arith.constant 7 : index
    %c0_306 = arith.constant 0 : index
    %c0_307 = arith.constant 0 : index
    %357 = vector.load %arg4[%c7_305, %c0_306, %c0_307] : memref<9x16x16xbf16, #tpu.memory_space<vmem>>, vector<1x16x16xbf16>
    %358 = vector.shape_cast %357 : vector<1x16x16xbf16> to vector<16x16xbf16>
    %cst_308 = arith.constant dense<0.000000e+00> : vector<128x16xf32>
    %359 = tpu.matmul %356, %358, %cst_308 {dimension_numbers = #tpu.dot_dimension_numbers<[1], [0], [0], [1], [0, 0, 1, 1], [], []>} : vector<128x16xbf16>, vector<16x16xbf16>, vector<128x16xf32> -> vector<128x16xf32>
    %360 = arith.addf %353, %359 : vector<128x16xf32>
    %c1_309 = arith.constant 1 : index
    %c2_310 = arith.constant 2 : index
    %c1_311 = arith.constant 1 : index
    %c0_312 = arith.constant 0 : index
    %361 = vector.load %arg10[%c1_309, %c2_310, %c1_311, %c0_312] : memref<4x10x18x16xbf16, #tpu.memory_space<vmem>>, vector<1x8x16x16xbf16>
    %362 = vector.shape_cast %361 : vector<1x8x16x16xbf16> to vector<8x16x16xbf16>
    %363 = vector.shape_cast %362 : vector<8x16x16xbf16> to vector<128x16xbf16>
    %c8_313 = arith.constant 8 : index
    %c0_314 = arith.constant 0 : index
    %c0_315 = arith.constant 0 : index
    %364 = vector.load %arg4[%c8_313, %c0_314, %c0_315] : memref<9x16x16xbf16, #tpu.memory_space<vmem>>, vector<1x16x16xbf16>
    %365 = vector.shape_cast %364 : vector<1x16x16xbf16> to vector<16x16xbf16>
    %cst_316 = arith.constant dense<0.000000e+00> : vector<128x16xf32>
    %366 = tpu.matmul %363, %365, %cst_316 {dimension_numbers = #tpu.dot_dimension_numbers<[1], [0], [0], [1], [0, 0, 1, 1], [], []>} : vector<128x16xbf16>, vector<16x16xbf16>, vector<128x16xf32> -> vector<128x16xf32>
    %367 = arith.addf %360, %366 : vector<128x16xf32>
    %c0_317 = arith.constant 0 : index
    %c0_318 = arith.constant 0 : index
    %c32 = arith.constant 32 : index
    %368 = vector.load %arg9[%c0_317, %c0_318, %c32] : memref<1x128x64xbf16, #tpu.memory_space<vmem>>, vector<1x128x16xbf16>
    %369 = vector.shape_cast %368 : vector<1x128x16xbf16> to vector<128x16xbf16>
    %370 = vector.broadcast %152 : vector<1x16xf32> to vector<128x16xf32>
    %371 = arith.mulf %367, %370 : vector<128x16xf32>
    %372 = vector.broadcast %153 : vector<1x16xf32> to vector<128x16xf32>
    %373 = arith.addf %371, %372 : vector<128x16xf32>
    %374 = arith.extf %369 : vector<128x16xbf16> to vector<128x16xf32>
    %375 = arith.addf %373, %374 : vector<128x16xf32>
    %cst_319 = arith.constant 0.000000e+00 : f32
    %376 = vector.broadcast %cst_319 : f32 to vector<128x16xf32>
    %377 = arith.maximumf %375, %376 : vector<128x16xf32>
    %378 = arith.truncf %377 : vector<128x16xf32> to vector<128x16xbf16>
    %cst_320 = arith.constant 0.000000e+00 : f32
    %379 = vector.broadcast %cst_320 : f32 to vector<128x16xf32>
    %c0_321 = arith.constant 0 : index
    %c1_322 = arith.constant 1 : index
    %c1_323 = arith.constant 1 : index
    %c0_324 = arith.constant 0 : index
    %380 = vector.load %arg10[%c0_321, %c1_322, %c1_323, %c0_324] : memref<4x10x18x16xbf16, #tpu.memory_space<vmem>>, vector<1x8x16x16xbf16>
    %381 = vector.shape_cast %380 : vector<1x8x16x16xbf16> to vector<8x16x16xbf16>
    %382 = vector.shape_cast %381 : vector<8x16x16xbf16> to vector<128x16xbf16>
    %c0_325 = arith.constant 0 : index
    %c0_326 = arith.constant 0 : index
    %c0_327 = arith.constant 0 : index
    %383 = vector.load %arg4[%c0_325, %c0_326, %c0_327] : memref<9x16x16xbf16, #tpu.memory_space<vmem>>, vector<1x16x16xbf16>
    %384 = vector.shape_cast %383 : vector<1x16x16xbf16> to vector<16x16xbf16>
    %cst_328 = arith.constant dense<0.000000e+00> : vector<128x16xf32>
    %385 = tpu.matmul %382, %384, %cst_328 {dimension_numbers = #tpu.dot_dimension_numbers<[1], [0], [0], [1], [0, 0, 1, 1], [], []>} : vector<128x16xbf16>, vector<16x16xbf16>, vector<128x16xf32> -> vector<128x16xf32>
    %386 = arith.addf %379, %385 : vector<128x16xf32>
    %c1_329 = arith.constant 1 : index
    %c1_330 = arith.constant 1 : index
    %c1_331 = arith.constant 1 : index
    %c0_332 = arith.constant 0 : index
    %387 = vector.load %arg10[%c1_329, %c1_330, %c1_331, %c0_332] : memref<4x10x18x16xbf16, #tpu.memory_space<vmem>>, vector<1x8x16x16xbf16>
    %388 = vector.shape_cast %387 : vector<1x8x16x16xbf16> to vector<8x16x16xbf16>
    %389 = vector.shape_cast %388 : vector<8x16x16xbf16> to vector<128x16xbf16>
    %c1_333 = arith.constant 1 : index
    %c0_334 = arith.constant 0 : index
    %c0_335 = arith.constant 0 : index
    %390 = vector.load %arg4[%c1_333, %c0_334, %c0_335] : memref<9x16x16xbf16, #tpu.memory_space<vmem>>, vector<1x16x16xbf16>
    %391 = vector.shape_cast %390 : vector<1x16x16xbf16> to vector<16x16xbf16>
    %cst_336 = arith.constant dense<0.000000e+00> : vector<128x16xf32>
    %392 = tpu.matmul %389, %391, %cst_336 {dimension_numbers = #tpu.dot_dimension_numbers<[1], [0], [0], [1], [0, 0, 1, 1], [], []>} : vector<128x16xbf16>, vector<16x16xbf16>, vector<128x16xf32> -> vector<128x16xf32>
    %393 = arith.addf %386, %392 : vector<128x16xf32>
    %c0_337 = arith.constant 0 : index
    %c1_338 = arith.constant 1 : index
    %c2_339 = arith.constant 2 : index
    %c0_340 = arith.constant 0 : index
    %394 = vector.load %arg10[%c0_337, %c1_338, %c2_339, %c0_340] : memref<4x10x18x16xbf16, #tpu.memory_space<vmem>>, vector<1x8x16x16xbf16>
    %395 = vector.shape_cast %394 : vector<1x8x16x16xbf16> to vector<8x16x16xbf16>
    %396 = vector.shape_cast %395 : vector<8x16x16xbf16> to vector<128x16xbf16>
    %c2_341 = arith.constant 2 : index
    %c0_342 = arith.constant 0 : index
    %c0_343 = arith.constant 0 : index
    %397 = vector.load %arg4[%c2_341, %c0_342, %c0_343] : memref<9x16x16xbf16, #tpu.memory_space<vmem>>, vector<1x16x16xbf16>
    %398 = vector.shape_cast %397 : vector<1x16x16xbf16> to vector<16x16xbf16>
    %cst_344 = arith.constant dense<0.000000e+00> : vector<128x16xf32>
    %399 = tpu.matmul %396, %398, %cst_344 {dimension_numbers = #tpu.dot_dimension_numbers<[1], [0], [0], [1], [0, 0, 1, 1], [], []>} : vector<128x16xbf16>, vector<16x16xbf16>, vector<128x16xf32> -> vector<128x16xf32>
    %400 = arith.addf %393, %399 : vector<128x16xf32>
    %c2_345 = arith.constant 2 : index
    %c1_346 = arith.constant 1 : index
    %c1_347 = arith.constant 1 : index
    %c0_348 = arith.constant 0 : index
    %401 = vector.load %arg10[%c2_345, %c1_346, %c1_347, %c0_348] : memref<4x10x18x16xbf16, #tpu.memory_space<vmem>>, vector<1x8x16x16xbf16>
    %402 = vector.shape_cast %401 : vector<1x8x16x16xbf16> to vector<8x16x16xbf16>
    %403 = vector.shape_cast %402 : vector<8x16x16xbf16> to vector<128x16xbf16>
    %c3_349 = arith.constant 3 : index
    %c0_350 = arith.constant 0 : index
    %c0_351 = arith.constant 0 : index
    %404 = vector.load %arg4[%c3_349, %c0_350, %c0_351] : memref<9x16x16xbf16, #tpu.memory_space<vmem>>, vector<1x16x16xbf16>
    %405 = vector.shape_cast %404 : vector<1x16x16xbf16> to vector<16x16xbf16>
    %cst_352 = arith.constant dense<0.000000e+00> : vector<128x16xf32>
    %406 = tpu.matmul %403, %405, %cst_352 {dimension_numbers = #tpu.dot_dimension_numbers<[1], [0], [0], [1], [0, 0, 1, 1], [], []>} : vector<128x16xbf16>, vector<16x16xbf16>, vector<128x16xf32> -> vector<128x16xf32>
    %407 = arith.addf %400, %406 : vector<128x16xf32>
    %c3_353 = arith.constant 3 : index
    %c1_354 = arith.constant 1 : index
    %c1_355 = arith.constant 1 : index
    %c0_356 = arith.constant 0 : index
    %408 = vector.load %arg10[%c3_353, %c1_354, %c1_355, %c0_356] : memref<4x10x18x16xbf16, #tpu.memory_space<vmem>>, vector<1x8x16x16xbf16>
    %409 = vector.shape_cast %408 : vector<1x8x16x16xbf16> to vector<8x16x16xbf16>
    %410 = vector.shape_cast %409 : vector<8x16x16xbf16> to vector<128x16xbf16>
    %c4_357 = arith.constant 4 : index
    %c0_358 = arith.constant 0 : index
    %c0_359 = arith.constant 0 : index
    %411 = vector.load %arg4[%c4_357, %c0_358, %c0_359] : memref<9x16x16xbf16, #tpu.memory_space<vmem>>, vector<1x16x16xbf16>
    %412 = vector.shape_cast %411 : vector<1x16x16xbf16> to vector<16x16xbf16>
    %cst_360 = arith.constant dense<0.000000e+00> : vector<128x16xf32>
    %413 = tpu.matmul %410, %412, %cst_360 {dimension_numbers = #tpu.dot_dimension_numbers<[1], [0], [0], [1], [0, 0, 1, 1], [], []>} : vector<128x16xbf16>, vector<16x16xbf16>, vector<128x16xf32> -> vector<128x16xf32>
    %414 = arith.addf %407, %413 : vector<128x16xf32>
    %c2_361 = arith.constant 2 : index
    %c1_362 = arith.constant 1 : index
    %c2_363 = arith.constant 2 : index
    %c0_364 = arith.constant 0 : index
    %415 = vector.load %arg10[%c2_361, %c1_362, %c2_363, %c0_364] : memref<4x10x18x16xbf16, #tpu.memory_space<vmem>>, vector<1x8x16x16xbf16>
    %416 = vector.shape_cast %415 : vector<1x8x16x16xbf16> to vector<8x16x16xbf16>
    %417 = vector.shape_cast %416 : vector<8x16x16xbf16> to vector<128x16xbf16>
    %c5_365 = arith.constant 5 : index
    %c0_366 = arith.constant 0 : index
    %c0_367 = arith.constant 0 : index
    %418 = vector.load %arg4[%c5_365, %c0_366, %c0_367] : memref<9x16x16xbf16, #tpu.memory_space<vmem>>, vector<1x16x16xbf16>
    %419 = vector.shape_cast %418 : vector<1x16x16xbf16> to vector<16x16xbf16>
    %cst_368 = arith.constant dense<0.000000e+00> : vector<128x16xf32>
    %420 = tpu.matmul %417, %419, %cst_368 {dimension_numbers = #tpu.dot_dimension_numbers<[1], [0], [0], [1], [0, 0, 1, 1], [], []>} : vector<128x16xbf16>, vector<16x16xbf16>, vector<128x16xf32> -> vector<128x16xf32>
    %421 = arith.addf %414, %420 : vector<128x16xf32>
    %c0_369 = arith.constant 0 : index
    %c2_370 = arith.constant 2 : index
    %c1_371 = arith.constant 1 : index
    %c0_372 = arith.constant 0 : index
    %422 = vector.load %arg10[%c0_369, %c2_370, %c1_371, %c0_372] : memref<4x10x18x16xbf16, #tpu.memory_space<vmem>>, vector<1x8x16x16xbf16>
    %423 = vector.shape_cast %422 : vector<1x8x16x16xbf16> to vector<8x16x16xbf16>
    %424 = vector.shape_cast %423 : vector<8x16x16xbf16> to vector<128x16xbf16>
    %c6_373 = arith.constant 6 : index
    %c0_374 = arith.constant 0 : index
    %c0_375 = arith.constant 0 : index
    %425 = vector.load %arg4[%c6_373, %c0_374, %c0_375] : memref<9x16x16xbf16, #tpu.memory_space<vmem>>, vector<1x16x16xbf16>
    %426 = vector.shape_cast %425 : vector<1x16x16xbf16> to vector<16x16xbf16>
    %cst_376 = arith.constant dense<0.000000e+00> : vector<128x16xf32>
    %427 = tpu.matmul %424, %426, %cst_376 {dimension_numbers = #tpu.dot_dimension_numbers<[1], [0], [0], [1], [0, 0, 1, 1], [], []>} : vector<128x16xbf16>, vector<16x16xbf16>, vector<128x16xf32> -> vector<128x16xf32>
    %428 = arith.addf %421, %427 : vector<128x16xf32>
    %c1_377 = arith.constant 1 : index
    %c2_378 = arith.constant 2 : index
    %c1_379 = arith.constant 1 : index
    %c0_380 = arith.constant 0 : index
    %429 = vector.load %arg10[%c1_377, %c2_378, %c1_379, %c0_380] : memref<4x10x18x16xbf16, #tpu.memory_space<vmem>>, vector<1x8x16x16xbf16>
    %430 = vector.shape_cast %429 : vector<1x8x16x16xbf16> to vector<8x16x16xbf16>
    %431 = vector.shape_cast %430 : vector<8x16x16xbf16> to vector<128x16xbf16>
    %c7_381 = arith.constant 7 : index
    %c0_382 = arith.constant 0 : index
    %c0_383 = arith.constant 0 : index
    %432 = vector.load %arg4[%c7_381, %c0_382, %c0_383] : memref<9x16x16xbf16, #tpu.memory_space<vmem>>, vector<1x16x16xbf16>
    %433 = vector.shape_cast %432 : vector<1x16x16xbf16> to vector<16x16xbf16>
    %cst_384 = arith.constant dense<0.000000e+00> : vector<128x16xf32>
    %434 = tpu.matmul %431, %433, %cst_384 {dimension_numbers = #tpu.dot_dimension_numbers<[1], [0], [0], [1], [0, 0, 1, 1], [], []>} : vector<128x16xbf16>, vector<16x16xbf16>, vector<128x16xf32> -> vector<128x16xf32>
    %435 = arith.addf %428, %434 : vector<128x16xf32>
    %c0_385 = arith.constant 0 : index
    %c2_386 = arith.constant 2 : index
    %c2_387 = arith.constant 2 : index
    %c0_388 = arith.constant 0 : index
    %436 = vector.load %arg10[%c0_385, %c2_386, %c2_387, %c0_388] : memref<4x10x18x16xbf16, #tpu.memory_space<vmem>>, vector<1x8x16x16xbf16>
    %437 = vector.shape_cast %436 : vector<1x8x16x16xbf16> to vector<8x16x16xbf16>
    %438 = vector.shape_cast %437 : vector<8x16x16xbf16> to vector<128x16xbf16>
    %c8_389 = arith.constant 8 : index
    %c0_390 = arith.constant 0 : index
    %c0_391 = arith.constant 0 : index
    %439 = vector.load %arg4[%c8_389, %c0_390, %c0_391] : memref<9x16x16xbf16, #tpu.memory_space<vmem>>, vector<1x16x16xbf16>
    %440 = vector.shape_cast %439 : vector<1x16x16xbf16> to vector<16x16xbf16>
    %cst_392 = arith.constant dense<0.000000e+00> : vector<128x16xf32>
    %441 = tpu.matmul %438, %440, %cst_392 {dimension_numbers = #tpu.dot_dimension_numbers<[1], [0], [0], [1], [0, 0, 1, 1], [], []>} : vector<128x16xbf16>, vector<16x16xbf16>, vector<128x16xf32> -> vector<128x16xf32>
    %442 = arith.addf %435, %441 : vector<128x16xf32>
    %c0_393 = arith.constant 0 : index
    %c0_394 = arith.constant 0 : index
    %c48 = arith.constant 48 : index
    %443 = vector.load %arg9[%c0_393, %c0_394, %c48] : memref<1x128x64xbf16, #tpu.memory_space<vmem>>, vector<1x128x16xbf16>
    %444 = vector.shape_cast %443 : vector<1x128x16xbf16> to vector<128x16xbf16>
    %445 = vector.broadcast %152 : vector<1x16xf32> to vector<128x16xf32>
    %446 = arith.mulf %442, %445 : vector<128x16xf32>
    %447 = vector.broadcast %153 : vector<1x16xf32> to vector<128x16xf32>
    %448 = arith.addf %446, %447 : vector<128x16xf32>
    %449 = arith.extf %444 : vector<128x16xbf16> to vector<128x16xf32>
    %450 = arith.addf %448, %449 : vector<128x16xf32>
    %cst_395 = arith.constant 0.000000e+00 : f32
    %451 = vector.broadcast %cst_395 : f32 to vector<128x16xf32>
    %452 = arith.maximumf %450, %451 : vector<128x16xf32>
    %453 = arith.truncf %452 : vector<128x16xf32> to vector<128x16xbf16>
    %454 = tpu.concatenate %228, %303, %378, %453 in 1 : vector<128x16xbf16>, vector<128x16xbf16>, vector<128x16xbf16>, vector<128x16xbf16> -> vector<128x64xbf16>
    %c0_396 = arith.constant 0 : index
    %c0_397 = arith.constant 0 : index
    %c0_398 = arith.constant 0 : index
    %455 = vector.load %arg9[%c0_396, %c0_397, %c0_398] : memref<1x128x64xbf16, #tpu.memory_space<vmem>>, vector<1x128x64xbf16>
    %456 = vector.shape_cast %455 : vector<1x128x64xbf16> to vector<128x64xbf16>
    %457 = vector.shape_cast %454 : vector<128x64xbf16> to vector<1x128x64xbf16>
    tpu.vector_store %arg9[%c0_396, %c0_397, %c0_398], %457 {strides = array<i32>} : memref<1x128x64xbf16, #tpu.memory_space<vmem>>, vector<1x128x64xbf16>,
    return
  }
  func.func @transform_0(%arg0: i32, %arg1: i32) -> (i32, i32, i32, i32, i32) {
    %c0_i32 = arith.constant 0 : i32
    %c0_i32_0 = arith.constant 0 : i32
    %c0_i32_1 = arith.constant 0 : i32
    %c0_i32_2 = arith.constant 0 : i32
    return %arg0, %arg1, %c0_i32, %c0_i32_0, %c0_i32_1 : i32, i32, i32, i32, i32
  }
  func.func @transform_1(%arg0: i32, %arg1: i32) -> (i32, i32, i32) {
    %c0_i32 = arith.constant 0 : i32
    %c0_i32_0 = arith.constant 0 : i32
    %c0_i32_1 = arith.constant 0 : i32
    %c0_i32_2 = arith.constant 0 : i32
    return %c0_i32, %c0_i32_0, %c0_i32_1 : i32, i32, i32
  }
  func.func @transform_2(%arg0: i32, %arg1: i32) -> (i32, i32, i32) {
    %c0_i32 = arith.constant 0 : i32
    %c0_i32_0 = arith.constant 0 : i32
    %c0_i32_1 = arith.constant 0 : i32
    %c0_i32_2 = arith.constant 0 : i32
    return %c0_i32, %c0_i32_0, %c0_i32_1 : i32, i32, i32
  }
  func.func @transform_3(%arg0: i32, %arg1: i32) -> (i32, i32) {
    %c0_i32 = arith.constant 0 : i32
    %c0_i32_0 = arith.constant 0 : i32
    %c0_i32_1 = arith.constant 0 : i32
    return %c0_i32, %c0_i32_0 : i32, i32
  }
  func.func @transform_4(%arg0: i32, %arg1: i32) -> (i32, i32) {
    %c0_i32 = arith.constant 0 : i32
    %c0_i32_0 = arith.constant 0 : i32
    %c0_i32_1 = arith.constant 0 : i32
    return %c0_i32, %c0_i32_0 : i32, i32
  }
  func.func @transform_5(%arg0: i32, %arg1: i32) -> (i32, i32) {
    %c0_i32 = arith.constant 0 : i32
    %c0_i32_0 = arith.constant 0 : i32
    %c0_i32_1 = arith.constant 0 : i32
    return %c0_i32, %c0_i32_0 : i32, i32
  }
  func.func @transform_6(%arg0: i32, %arg1: i32) -> (i32, i32) {
    %c0_i32 = arith.constant 0 : i32
    %c0_i32_0 = arith.constant 0 : i32
    %c0_i32_1 = arith.constant 0 : i32
    return %c0_i32, %c0_i32_0 : i32, i32
  }
  func.func @transform_7(%arg0: i32, %arg1: i32) -> (i32, i32, i32) {
    %c0_i32 = arith.constant 0 : i32
    %c0_i32_0 = arith.constant 0 : i32
    return %arg0, %arg1, %c0_i32 : i32, i32, i32
  }
}

</mosaic_0001>

<llo_original>
// kernel: upconvblock_forward.1
$region0: #{upconvblock_forward.1}
  #allocation0 [shape = 'u32[]', space=smem, size = 0x4, offset = 0x4, fixed_abs, tag = 'smem constant byte address 0x4 - core index']
  #allocation1 [shape = 'u32[72,128]{1,0:T(1,128)}', space=vmem, size = 0x9000, scoped, tag = 'internal scratch']
  #allocation2 [shape = 'bf16[4,10,18,16]{3,2,1,0:T(8,128)(2,1)}', space=vmem, size = 0x3c000, scoped, tag = 'scratch operand']
  %s0 = inlined_call_operand.vmem [shape: bf16[2,2,12,18,16], index: 0, kind: input, shape index: {}]
  %s1 = inlined_call_operand.vmem [shape: bf16[4,64,32], index: 1, kind: input, shape index: {}]
  %s2 = inlined_call_operand.vmem [shape: bf16[9,16,16], index: 2, kind: input, shape index: {}]
  %s3 = inlined_call_operand.vmem [shape: f32[1,32], index: 3, kind: input, shape index: {}]
  %s4 = inlined_call_operand.vmem [shape: f32[1,32], index: 4, kind: input, shape index: {}]
  %s5 = inlined_call_operand.vmem [shape: f32[1,16], index: 5, kind: input, shape index: {}]
  %s6 = inlined_call_operand.vmem [shape: f32[1,16], index: 6, kind: input, shape index: {}]
  %s7 = inlined_call_operand.vmem [shape: bf16[2,256,64], index: 7, kind: output, shape index: {}]
  %s8 = sld [smem:[#allocation0]]
  $region93: #{upconvblock_forward.1} parent=0
    _
  %s10 = ssub.s32 1, %s8
  %s11 = scalar_select 0, %s10, %s8
  loop: start=0, step=1, limit=6
  $region2: #{upconvblock_forward.1} parent=0 // loop_pre_header
    _
  $region3: #{upconvblock_forward.1} parent=0 // loop_header
    %s13 = sphi 0, %s17
    %p14 = scmp.ge.s32.totalorder %s13, 6
    %s20 = sphi 0, %s32
    %s21 = sphi 0, %s28
    %s22 = sphi 0, %s20
    %s23 = sphi 0, %s21
    %s24 = sphi 0, %s22
    %s25 = sphi 0, %s23
    %s37 = sphi 0, %s39
    %s40 = sphi 0, %s37
    %s41 = sphi 0, %s40
    %s57 = sphi 0, %s41
    %s61 = sphi 0, %s61
    %s63 = sphi 0, %s61
    %s64 = sphi 0, %s63
    %s78 = sphi 0, %s64
    %s82 = sphi 0, %s82
    %s84 = sphi 0, %s82
    %s85 = sphi 0, %s84
    %s99 = sphi 0, %s85
    %s103 = sphi 0, %s103
    %s105 = sphi 0, %s103
    %s106 = sphi 0, %s105
    %s120 = sphi 0, %s106
    %s124 = sphi 0, %s124
    %s126 = sphi 0, %s124
    %s127 = sphi 0, %s126
    %s141 = sphi 0, %s127
    %s145 = sphi 0, %s145
    %s147 = sphi 0, %s145
    %s148 = sphi 0, %s147
    %s162 = sphi 0, %s148
    %s166 = sphi 0, %s166
    %s168 = sphi 0, %s166
    %s169 = sphi 0, %s168
    %s183 = sphi 0, %s169
    %s191 = sphi 0, %s193
    %s194 = sphi 0, %s191
    %s195 = sphi 0, %s194
    %s211 = sphi 0, %s195
  $region4: #{upconvblock_forward.1} parent=0 // loop_header_branch
    %16 = sbr.rel (%p14) target = $region8
  $region5: #{upconvblock_forward.1} parent=0 // loop_body
    %s18 = ssub.s32 %s13, 1
    %s19 = ssub.s32 %s13, 2
    %s26 = sadd.s32 1, %s21
    %p27 = scmp.ge.s32.totalorder %s26, 2
    %s28 = scalar_select %p27, 0, %s26
    %s29 = sadd.s32 1, %s20
    %s30 = scalar_select %p27, %s29, %s20
    %p31 = scmp.ge.s32.totalorder %s30, 2
    %s32 = scalar_select %p31, 0, %s30
    %s33 = ssub.s32 %s20, %s32
    %s34 = ssub.s32 %s21, %s28
    %s35 = sor.u32 %s33, %s34
    %p36 = scmp.eq.s32.totalorder %s35, 0
    %s38 = sadd.s32 %s37, 1
    %s39 = scalar_select %p36, %s37, %s38
    %p42 = pneg %p36
    %p43 = scmp.eq.s32.totalorder %s13, 3
    %p44 = por %p42, %p43
    %p45 = scmp.ne.s32.totalorder %s37, %s40
    %p46 = scmp.eq.s32.totalorder %s13, 0
    %p47 = por %p45, %p46
    %p48 = scmp.ne.s32.totalorder %s37, %s40
    %p49 = scmp.eq.s32.totalorder %s18, 3
    %p50 = por %p48, %p49
    %p51 = scmp.ne.s32.totalorder %s40, %s41
    %p52 = scmp.eq.s32.totalorder %s18, 0
    %p53 = por %p51, %p52
    %p54 = scmp.ne.s32.totalorder %s40, %s41
    %p55 = scmp.eq.s32.totalorder %s19, 3
    %p56 = por %p54, %p55
    %p58 = scmp.ne.s32.totalorder %s41, %s57
    %p59 = scmp.eq.s32.totalorder %s19, 0
    %p60 = por %p58, %p59
    %s62 = sadd.s32 %s61, 1
    %p65 = scmp.eq.s32.totalorder %s13, 3
    %p66 = scmp.ne.s32.totalorder %s61, %s63
    %p67 = scmp.eq.s32.totalorder %s13, 0
    %p68 = por %p66, %p67
    %p69 = scmp.ne.s32.totalorder %s61, %s63
    %p70 = scmp.eq.s32.totalorder %s18, 3
    %p71 = por %p69, %p70
    %p72 = scmp.ne.s32.totalorder %s63, %s64
    %p73 = scmp.eq.s32.totalorder %s18, 0
    %p74 = por %p72, %p73
    %p75 = scmp.ne.s32.totalorder %s63, %s64
    %p76 = scmp.eq.s32.totalorder %s19, 3
    %p77 = por %p75, %p76
    %p79 = scmp.ne.s32.totalorder %s64, %s78
    %p80 = scmp.eq.s32.totalorder %s19, 0
    %p81 = por %p79, %p80
    %s83 = sadd.s32 %s82, 1
    %p86 = scmp.eq.s32.totalorder %s13, 3
    %p87 = scmp.ne.s32.totalorder %s82, %s84
    %p88 = scmp.eq.s32.totalorder %s13, 0
    %p89 = por %p87, %p88
    %p90 = scmp.ne.s32.totalorder %s82, %s84
    %p91 = scmp.eq.s32.totalorder %s18, 3
    %p92 = por %p90, %p91
    %p93 = scmp.ne.s32.totalorder %s84, %s85
    %p94 = scmp.eq.s32.totalorder %s18, 0
    %p95 = por %p93, %p94
    %p96 = scmp.ne.s32.totalorder %s84, %s85
    %p97 = scmp.eq.s32.totalorder %s19, 3
    %p98 = por %p96, %p97
    %p100 = scmp.ne.s32.totalorder %s85, %s99
    %p101 = scmp.eq.s32.totalorder %s19, 0
    %p102 = por %p100, %p101
    %s104 = sadd.s32 %s103, 1
    %p107 = scmp.eq.s32.totalorder %s13, 3
    %p108 = scmp.ne.s32.totalorder %s103, %s105
    %p109 = scmp.eq.s32.totalorder %s13, 0
    %p110 = por %p108, %p109
    %p111 = scmp.ne.s32.totalorder %s103, %s105
    %p112 = scmp.eq.s32.totalorder %s18, 3
    %p113 = por %p111, %p112
    %p114 = scmp.ne.s32.totalorder %s105, %s106
    %p115 = scmp.eq.s32.totalorder %s18, 0
    %p116 = por %p114, %p115
    %p117 = scmp.ne.s32.totalorder %s105, %s106
    %p118 = scmp.eq.s32.totalorder %s19, 3
    %p119 = por %p117, %p118
    %p121 = scmp.ne.s32.totalorder %s106, %s120
    %p122 = scmp.eq.s32.totalorder %s19, 0
    %p123 = por %p121, %p122
    %s125 = sadd.s32 %s124, 1
    %p128 = scmp.eq.s32.totalorder %s13, 3
    %p129 = scmp.ne.s32.totalorder %s124, %s126
    %p130 = scmp.eq.s32.totalorder %s13, 0
    %p131 = por %p129, %p130
    %p132 = scmp.ne.s32.totalorder %s124, %s126
    %p133 = scmp.eq.s32.totalorder %s18, 3
    %p134 = por %p132, %p133
    %p135 = scmp.ne.s32.totalorder %s126, %s127
    %p136 = scmp.eq.s32.totalorder %s18, 0
    %p137 = por %p135, %p136
    %p138 = scmp.ne.s32.totalorder %s126, %s127
    %p139 = scmp.eq.s32.totalorder %s19, 3
    %p140 = por %p138, %p139
    %p142 = scmp.ne.s32.totalorder %s127, %s141
    %p143 = scmp.eq.s32.totalorder %s19, 0
    %p144 = por %p142, %p143
    %s146 = sadd.s32 %s145, 1
    %p149 = scmp.eq.s32.totalorder %s13, 3
    %p150 = scmp.ne.s32.totalorder %s145, %s147
    %p151 = scmp.eq.s32.totalorder %s13, 0
    %p152 = por %p150, %p151
    %p153 = scmp.ne.s32.totalorder %s145, %s147
    %p154 = scmp.eq.s32.totalorder %s18, 3
    %p155 = por %p153, %p154
    %p156 = scmp.ne.s32.totalorder %s147, %s148
    %p157 = scmp.eq.s32.totalorder %s18, 0
    %p158 = por %p156, %p157
    %p159 = scmp.ne.s32.totalorder %s147, %s148
    %p160 = scmp.eq.s32.totalorder %s19, 3
    %p161 = por %p159, %p160
    %p163 = scmp.ne.s32.totalorder %s148, %s162
    %p164 = scmp.eq.s32.totalorder %s19, 0
    %p165 = por %p163, %p164
    %s167 = sadd.s32 %s166, 1
    %p170 = scmp.eq.s32.totalorder %s13, 3
    %p171 = scmp.ne.s32.totalorder %s166, %s168
    %p172 = scmp.eq.s32.totalorder %s13, 0
    %p173 = por %p171, %p172
    %p174 = scmp.ne.s32.totalorder %s166, %s168
    %p175 = scmp.eq.s32.totalorder %s18, 3
    %p176 = por %p174, %p175
    %p177 = scmp.ne.s32.totalorder %s168, %s169
    %p178 = scmp.eq.s32.totalorder %s18, 0
    %p179 = por %p177, %p178
    %p180 = scmp.ne.s32.totalorder %s168, %s169
    %p181 = scmp.eq.s32.totalorder %s19, 3
    %p182 = por %p180, %p181
    %p184 = scmp.ne.s32.totalorder %s169, %s183
    %p185 = scmp.eq.s32.totalorder %s19, 0
    %p186 = por %p184, %p185
    %s187 = ssub.s32 %s20, %s32
    %s188 = ssub.s32 %s21, %s28
    %s189 = sor.u32 %s187, %s188
    %p190 = scmp.eq.s32.totalorder %s189, 0
    %s192 = sadd.s32 %s191, 1
    %s193 = scalar_select %p190, %s191, %s192
    %p196 = pneg %p190
    %p197 = scmp.eq.s32.totalorder %s13, 3
    %p198 = por %p196, %p197
    %p199 = scmp.ne.s32.totalorder %s191, %s194
    %p200 = scmp.eq.s32.totalorder %s13, 0
    %p201 = por %p199, %p200
    %p202 = scmp.ne.s32.totalorder %s191, %s194
    %p203 = scmp.eq.s32.totalorder %s18, 3
    %p204 = por %p202, %p203
    %p205 = scmp.ne.s32.totalorder %s194, %s195
    %p206 = scmp.eq.s32.totalorder %s18, 0
    %p207 = por %p205, %p206
    %p208 = scmp.ne.s32.totalorder %s194, %s195
    %p209 = scmp.eq.s32.totalorder %s19, 3
    %p210 = por %p208, %p209
    %p212 = scmp.ne.s32.totalorder %s195, %s211
    %p213 = scmp.eq.s32.totalorder %s19, 0
    %p214 = por %p212, %p213
    %p215 = scmp.le.s32.totalorder 1, %s13
    %p216 = scmp.lt.s32.totalorder %s13, 5
    %p217 = pnand %p215, %p216
    %p218 = pneg %p217
    // Predicated region
    $region9: #{upconvblock_forward.1} parent=5 // pred_check
      _
    $region10: #{upconvblock_forward.1} parent=5 // pred_check_branch
      %220 = sbr.rel (%p217) target = $region12
    $region11: #{upconvblock_forward.1} parent=5 // pred_region
      %s221 = ssub.s32 %s13, 1
      // Predicated region
      $region13: #{upconvblock_forward.1} parent=11 // pred_check
        %p222 = pneg %p74
      $region14: #{upconvblock_forward.1} parent=11 // pred_check_branch
        %224 = sbr.rel (%p222) target = $region16
      $region15: #{upconvblock_forward.1} parent=11 // pred_region
        _
      $region16: #{upconvblock_forward.1} parent=11 // pred_fallthru
        _
      // Predicated region
      $region17: #{upconvblock_forward.1} parent=11 // pred_check
        %p225 = pneg %p95
      $region18: #{upconvblock_forward.1} parent=11 // pred_check_branch
        %227 = sbr.rel (%p225) target = $region20
      $region19: #{upconvblock_forward.1} parent=11 // pred_region
        _
      $region20: #{upconvblock_forward.1} parent=11 // pred_fallthru
        _
      // Predicated region
      $region21: #{upconvblock_forward.1} parent=11 // pred_check
        %p228 = pneg %p116
      $region22: #{upconvblock_forward.1} parent=11 // pred_check_branch
        %230 = sbr.rel (%p228) target = $region24
      $region23: #{upconvblock_forward.1} parent=11 // pred_region
        _
      $region24: #{upconvblock_forward.1} parent=11 // pred_fallthru
        _
      // Predicated region
      $region25: #{upconvblock_forward.1} parent=11 // pred_check
        %p231 = pneg %p137
      $region26: #{upconvblock_forward.1} parent=11 // pred_check_branch
        %233 = sbr.rel (%p231) target = $region28
      $region27: #{upconvblock_forward.1} parent=11 // pred_region
        _
      $region28: #{upconvblock_forward.1} parent=11 // pred_fallthru
        _
      // Predicated region
      $region29: #{upconvblock_forward.1} parent=11 // pred_check
        %p234 = pneg %p158
      $region30: #{upconvblock_forward.1} parent=11 // pred_check_branch
        %236 = sbr.rel (%p234) target = $region32
      $region31: #{upconvblock_forward.1} parent=11 // pred_region
        _
      $region32: #{upconvblock_forward.1} parent=11 // pred_fallthru
        _
      // Predicated region
      $region33: #{upconvblock_forward.1} parent=11 // pred_check
        %p237 = pneg %p179
      $region34: #{upconvblock_forward.1} parent=11 // pred_check_branch
        %239 = sbr.rel (%p237) target = $region36
      $region35: #{upconvblock_forward.1} parent=11 // pred_region
        _
      $region36: #{upconvblock_forward.1} parent=11 // pred_fallthru
        _
    $region12: #{upconvblock_forward.1} parent=5 // pred_fallthru
      _
    %p240 = scmp.lt.s32.totalorder %s13, 4
    // Predicated region
    $region37: #{upconvblock_forward.1} parent=5 // pred_check
      %p241 = pneg %p240
    $region38: #{upconvblock_forward.1} parent=5 // pred_check_branch
      %243 = sbr.rel (%p241) target = $region40
    $region39: #{upconvblock_forward.1} parent=5 // pred_region
      // Predicated region
      $region41: #{upconvblock_forward.1} parent=39 // pred_check
        %p244 = pneg %p47
      $region42: #{upconvblock_forward.1} parent=39 // pred_check_branch
        %246 = sbr.rel (%p244) target = $region44
      $region43: #{upconvblock_forward.1} parent=39 // pred_region
        %p247 = scmp.lt.s32.totalorder %s20, 1
        %s248 = scalar_select %p247, %s20, 1
        %p249 = scmp.lt.s32.totalorder %s21, 1
        %s250 = scalar_select %p249, %s21, 1
        %s251 = smul.addr %s250, 36
        %s252 = smul.addr %s248, 72
        %s253 = sadd.s32 %s251, %s252
        %s254 = smul.addr %s253, 4
        %s255 = scalar_lea.vmem %s0, %s254
      $region44: #{upconvblock_forward.1} parent=39 // pred_fallthru
        _
    $region40: #{upconvblock_forward.1} parent=5 // pred_fallthru
      _
    %p256 = scmp.le.s32.totalorder 1, %s13
    %p257 = scmp.lt.s32.totalorder %s13, 5
    %p258 = pnand %p256, %p257
    %p259 = pneg %p258
    // Predicated region
    $region45: #{upconvblock_forward.1} parent=5 // pred_check
      _
    $region46: #{upconvblock_forward.1} parent=5 // pred_check_branch
      %261 = sbr.rel (%p258) target = $region48
    $region47: #{upconvblock_forward.1} parent=5 // pred_region
      %s262 = ssub.s32 %s13, 1
      %p263 = scmp.lt.s32.totalorder %s22, 1
      %s264 = scalar_select %p263, %s22, 1
      %p265 = scmp.lt.s32.totalorder %s23, 1
      %s266 = scalar_select %p265, %s23, 1
      %s267 = smul.addr %s266, 36
      %s268 = smul.addr %s264, 72
      %s269 = sadd.s32 %s267, %s268
      %s270 = smul.addr %s269, 4
      %s271 = scalar_lea.vmem %s0, %s270
      %p272 = pneg %p53
      %p273 = pneg %p50
      %p274 = pneg %p74
      %p275 = pneg %p71
      %p276 = pneg %p95
      %p277 = pneg %p92
      %p278 = pneg %p116
      %p279 = pneg %p113
      %p280 = pneg %p137
      %p281 = pneg %p134
      %p282 = pneg %p158
      %p283 = pneg %p155
      %p284 = pneg %p179
      %p285 = pneg %p176
      %p286 = pneg %p207
      %p287 = pneg %p204
      %s288 = smul.u32 16, %s23
      %p289 = scmp.lt.s32.totalorder %s22, 1
      %s290 = scalar_select %p289, %s22, 1
      %p291 = scmp.lt.s32.totalorder %s288, 31
      %s292 = scalar_select %p291, %s288, 31
      %s293 = smul.addr %s290, 32
      %s294 = sadd.s32 %s292, %s293
      %s295 = smul.addr %s294, 4
      %s296 = scalar_lea.vmem %s7, %s295
      %p297 = scmp.lt.s32.totalorder %s22, 1
      %s298 = scalar_select %p297, %s22, 1
      %p299 = scmp.lt.s32.totalorder %s23, 1
      %s300 = scalar_select %p299, %s23, 1
      %s301 = smul.addr %s300, 36
      %s302 = smul.addr %s298, 72
      %s303 = sadd.s32 %s301, %s302
      %s304 = smul.addr %s303, 4
      %s305 = scalar_lea.vmem %s0, %s304
      %s306 = smul.u32 16, %s23
      %p307 = scmp.lt.s32.totalorder %s22, 1
      %s308 = scalar_select %p307, %s22, 1
      %p309 = scmp.lt.s32.totalorder %s306, 31
      %s310 = scalar_select %p309, %s306, 31
      %s311 = smul.addr %s308, 32
      %s312 = sadd.s32 %s310, %s311
      %s313 = smul.addr %s312, 4
      %s314 = scalar_lea.vmem %s7, %s313
      %s315 = smul.u32 16, %s23
      %v317 = vld [vmem:[%s305] sm:$0xf]
      %v318 = vld [vmem:[%s305 + $0x4] sm:$0xf]
      %v319 = vld [vmem:[%s305 + $0x8] sm:$0x1]
      %v320 = vld [vmem:[%s305 + $0xc] sm:$0xf]
      %v321 = vld [vmem:[%s305 + $0x10] sm:$0xf]
      %v322 = vld [vmem:[%s305 + $0x14] sm:$0x1]
      %v323 = vld [vmem:[%s305 + $0x18] sm:$0xf]
      %v324 = vld [vmem:[%s305 + $0x1c] sm:$0xf]
      %v325 = vld [vmem:[%s305 + $0x20] sm:$0x1]
      %v326 = vld [vmem:[%s305 + $0x24] sm:$0xf]
      %v327 = vld [vmem:[%s305 + $0x28] sm:$0xf]
      %v328 = vld [vmem:[%s305 + $0x2c] sm:$0x1]
      %v329 = vld [vmem:[%s305 + $0x30] sm:$0xf]
      %v330 = vld [vmem:[%s305 + $0x34] sm:$0xf]
      %v331 = vld [vmem:[%s305 + $0x38] sm:$0x1]
      %v332 = vld [vmem:[%s305 + $0x3c] sm:$0xf]
      %v333 = vld [vmem:[%s305 + $0x40] sm:$0xf]
      %v334 = vld [vmem:[%s305 + $0x44] sm:$0x1]
      %v335 = vld [vmem:[%s305 + $0x48] sm:$0xf]
      %v336 = vld [vmem:[%s305 + $0x4c] sm:$0xf]
      %v337 = vld [vmem:[%s305 + $0x50] sm:$0x1]
      %v338 = vld [vmem:[%s305 + $0x54] sm:$0xf]
      %v339 = vld [vmem:[%s305 + $0x58] sm:$0xf]
      %v340 = vld [vmem:[%s305 + $0x5c] sm:$0x1]
      %v341 = vld [vmem:[%s305 + $0x60] sm:$0xf]
      %v342 = vld [vmem:[%s305 + $0x64] sm:$0xf]
      %v343 = vld [vmem:[%s305 + $0x68] sm:$0x1]
      %v344 = vld [vmem:[%s305 + $0x6c] sm:$0xf]
      %v345 = vld [vmem:[%s305 + $0x70] sm:$0xf]
      %v346 = vld [vmem:[%s305 + $0x74] sm:$0x1]
      %v347 = vld [vmem:[%s305 + $0x78] sm:$0xf]
      %v348 = vld [vmem:[%s305 + $0x7c] sm:$0xf]
      %v349 = vld [vmem:[%s305 + $0x80] sm:$0x1]
      %v350 = vld [vmem:[%s305 + $0x84] sm:$0xf]
      %v351 = vld [vmem:[%s305 + $0x88] sm:$0xf]
      %v352 = vld [vmem:[%s305 + $0x8c] sm:$0x1]
      %v353 = vld [vmem:[%s3] sm:$0x1]
      %v354 = vld [vmem:[%s4] sm:$0x1]
      %v375 = vunpack.c.l.b16 %v317
      %v376 = vunpack.c.l.b16 %v318
      %v377 = vunpack.c.l.b16 %v320
      %v378 = vunpack.c.l.b16 %v321
      %v379 = vunpack.c.l.b16 %v323
      %v380 = vunpack.c.l.b16 %v324
      %v381 = vunpack.c.l.b16 %v326
      %v382 = vunpack.c.l.b16 %v327
      %v383 = vunpack.c.l.b16 %v329
      %v384 = vunpack.c.l.b16 %v330
      %v385 = vunpack.c.l.b16 %v332
      %v386 = vunpack.c.l.b16 %v333
      %v387 = vunpack.c.l.b16 %v335
      %v388 = vunpack.c.l.b16 %v336
      %v389 = vunpack.c.l.b16 %v338
      %v390 = vunpack.c.l.b16 %v339
      %v391 = vunpack.c.l.b16 %v341
      %v392 = vunpack.c.l.b16 %v342
      %v393 = vunpack.c.l.b16 %v344
      %v394 = vunpack.c.l.b16 %v345
      %v395 = vpack.c.b16 %v376, %v375
      %v396 = vpack.c.b16 %v378, %v377
      %v397 = vpack.c.b16 %v380, %v379
      %v398 = vpack.c.b16 %v382, %v381
      %v399 = vpack.c.b16 %v384, %v383
      %v400 = vpack.c.b16 %v386, %v385
      %v401 = vpack.c.b16 %v388, %v387
      %v402 = vpack.c.b16 %v390, %v389
      %v403 = vpack.c.b16 %v392, %v391
      %v404 = vpack.c.b16 %v394, %v393
      %v415 = vunpack.c.l.b16 %v319
      %v416 = vunpack.c.l.b16 %v322
      %v417 = vunpack.c.l.b16 %v325
      %v418 = vunpack.c.l.b16 %v328
      %v419 = vunpack.c.l.b16 %v331
      %v420 = vunpack.c.l.b16 %v334
      %v421 = vunpack.c.l.b16 %v337
      %v422 = vunpack.c.l.b16 %v340
      %v423 = vunpack.c.l.b16 %v343
      %v424 = vunpack.c.l.b16 %v346
      %v425 = vpack.c.b16 %v415, %v415
      %v426 = vpack.c.b16 %v416, %v416
      %v427 = vpack.c.b16 %v417, %v417
      %v428 = vpack.c.b16 %v418, %v418
      %v429 = vpack.c.b16 %v419, %v419
      %v430 = vpack.c.b16 %v420, %v420
      %v431 = vpack.c.b16 %v421, %v421
      %v432 = vpack.c.b16 %v422, %v422
      %v433 = vpack.c.b16 %v423, %v423
      %v434 = vpack.c.b16 %v424, %v424
      %vm435 = vsmask.f32 7424
      %v437 = vshrl.u32 %v395, 16
      %v439 = vshll.u32 %v395, 16
      %v441 = vrot.slane %v439, 1
      %v442 = vor.u32 %v437, %v441
      %v444 = vshll.u32 %v425, 16
      %v446 = vrot.slane %v444, 1
      %v447 = vsel %vm435, %v442, %v446
      %v449 = vshrl.u32 %v396, 16
      %v451 = vshll.u32 %v396, 16
      %v453 = vrot.slane %v451, 1
      %v454 = vor.u32 %v449, %v453
      %v456 = vshll.u32 %v426, 16
      %v458 = vrot.slane %v456, 1
      %v459 = vsel %vm435, %v454, %v458
      %v461 = vshrl.u32 %v397, 16
      %v463 = vshll.u32 %v397, 16
      %v465 = vrot.slane %v463, 1
      %v466 = vor.u32 %v461, %v465
      %v468 = vshll.u32 %v427, 16
      %v470 = vrot.slane %v468, 1
      %v471 = vsel %vm435, %v466, %v470
      %v473 = vshrl.u32 %v398, 16
      %v475 = vshll.u32 %v398, 16
      %v477 = vrot.slane %v475, 1
      %v478 = vor.u32 %v473, %v477
      %v480 = vshll.u32 %v428, 16
      %v482 = vrot.slane %v480, 1
      %v483 = vsel %vm435, %v478, %v482
      %v485 = vshrl.u32 %v399, 16
      %v487 = vshll.u32 %v399, 16
      %v489 = vrot.slane %v487, 1
      %v490 = vor.u32 %v485, %v489
      %v492 = vshll.u32 %v429, 16
      %v494 = vrot.slane %v492, 1
      %v495 = vsel %vm435, %v490, %v494
      %v497 = vshrl.u32 %v400, 16
      %v499 = vshll.u32 %v400, 16
      %v501 = vrot.slane %v499, 1
      %v502 = vor.u32 %v497, %v501
      %v504 = vshll.u32 %v430, 16
      %v506 = vrot.slane %v504, 1
      %v507 = vsel %vm435, %v502, %v506
      %v509 = vshrl.u32 %v401, 16
      %v511 = vshll.u32 %v401, 16
      %v513 = vrot.slane %v511, 1
      %v514 = vor.u32 %v509, %v513
      %v516 = vshll.u32 %v431, 16
      %v518 = vrot.slane %v516, 1
      %v519 = vsel %vm435, %v514, %v518
      %v521 = vshrl.u32 %v402, 16
      %v523 = vshll.u32 %v402, 16
      %v525 = vrot.slane %v523, 1
      %v526 = vor.u32 %v521, %v525
      %v528 = vshll.u32 %v432, 16
      %v530 = vrot.slane %v528, 1
      %v531 = vsel %vm435, %v526, %v530
      %v533 = vshrl.u32 %v403, 16
      %v535 = vshll.u32 %v403, 16
      %v537 = vrot.slane %v535, 1
      %v538 = vor.u32 %v533, %v537
      %v540 = vshll.u32 %v433, 16
      %v542 = vrot.slane %v540, 1
      %v543 = vsel %vm435, %v538, %v542
      %v545 = vshrl.u32 %v404, 16
      %v547 = vshll.u32 %v404, 16
      %v549 = vrot.slane %v547, 1
      %v550 = vor.u32 %v545, %v549
      %v552 = vshll.u32 %v434, 16
      %v554 = vrot.slane %v552, 1
      %v555 = vsel %vm435, %v550, %v554
      %556 = vrot.lane.b32.xlu0 %v447, 16
      %v557 = vpop.permute.xlu0 %556
      %558 = vrot.lane.b32.xlu0 %v459, 16
      %v559 = vpop.permute.xlu0 %558
      %560 = vrot.lane.b32.xlu0 %v471, 16
      %v561 = vpop.permute.xlu0 %560
      %562 = vrot.lane.b32.xlu0 %v483, 16
      %v563 = vpop.permute.xlu0 %562
      %564 = vrot.lane.b32.xlu0 %v495, 16
      %v565 = vpop.permute.xlu0 %564
      %566 = vrot.lane.b32.xlu0 %v507, 16
      %v567 = vpop.permute.xlu0 %566
      %568 = vrot.lane.b32.xlu0 %v519, 16
      %v569 = vpop.permute.xlu0 %568
      %570 = vrot.lane.b32.xlu0 %v531, 16
      %v571 = vpop.permute.xlu0 %570
      %572 = vrot.lane.b32.xlu0 %v543, 16
      %v573 = vpop.permute.xlu0 %572
      %574 = vrot.lane.b32.xlu0 %v555, 16
      %v575 = vpop.permute.xlu0 %574
      %v578 = vunpack.c.l.b16 %v347
      %v579 = vunpack.c.l.b16 %v348
      %v580 = vpack.c.b16 %v579, %v578
      %581 = vrot.lane.b32.xlu0 %v396, 32
      %v582 = vpop.permute.xlu0 %581
      %583 = vrot.lane.b32.xlu0 %v397, 32
      %v584 = vpop.permute.xlu0 %583
      %585 = vrot.lane.b32.xlu0 %v398, 32
      %v586 = vpop.permute.xlu0 %585
      %587 = vrot.lane.b32.xlu0 %v399, 32
      %v588 = vpop.permute.xlu0 %587
      %589 = vrot.lane.b32.xlu0 %v400, 32
      %v590 = vpop.permute.xlu0 %589
      %591 = vrot.lane.b32.xlu0 %v401, 32
      %v592 = vpop.permute.xlu0 %591
      %593 = vrot.lane.b32.xlu0 %v402, 32
      %v594 = vpop.permute.xlu0 %593
      %595 = vrot.lane.b32.xlu0 %v403, 32
      %v596 = vpop.permute.xlu0 %595
      %597 = vrot.lane.b32.xlu0 %v404, 32
      %v598 = vpop.permute.xlu0 %597
      %599 = vrot.lane.b32.xlu0 %v580, 32
      %v600 = vpop.permute.xlu0 %599
      %v602 = vunpack.c.l.b16 %v349
      %v603 = vpack.c.b16 %v602, %v602
      %v605 = vshrl.u32 %v580, 16
      %v607 = vshll.u32 %v580, 16
      %v609 = vrot.slane %v607, 1
      %v610 = vor.u32 %v605, %v609
      %v612 = vshll.u32 %v603, 16
      %v614 = vrot.slane %v612, 1
      %v615 = vsel %vm435, %v610, %v614
      %616 = vrot.lane.b32.xlu0 %v459, 48
      %v617 = vpop.permute.xlu0 %616
      %618 = vrot.lane.b32.xlu0 %v471, 48
      %v619 = vpop.permute.xlu0 %618
      %620 = vrot.lane.b32.xlu0 %v483, 48
      %v621 = vpop.permute.xlu0 %620
      %622 = vrot.lane.b32.xlu0 %v495, 48
      %v623 = vpop.permute.xlu0 %622
      %624 = vrot.lane.b32.xlu0 %v507, 48
      %v625 = vpop.permute.xlu0 %624
      %626 = vrot.lane.b32.xlu0 %v519, 48
      %v627 = vpop.permute.xlu0 %626
      %628 = vrot.lane.b32.xlu0 %v531, 48
      %v629 = vpop.permute.xlu0 %628
      %630 = vrot.lane.b32.xlu0 %v543, 48
      %v631 = vpop.permute.xlu0 %630
      %632 = vrot.lane.b32.xlu0 %v555, 48
      %v633 = vpop.permute.xlu0 %632
      %634 = vrot.lane.b32.xlu0 %v615, 48
      %v635 = vpop.permute.xlu0 %634
      %vm636 = vcmask 130048
      %v638 = vsel %vm636, %v395, %v557
      %v640 = vsel %vm636, %v396, %v559
      %v642 = vsel %vm636, %v397, %v561
      %v644 = vsel %vm636, %v398, %v563
      %v646 = vsel %vm636, %v399, %v565
      %v648 = vsel %vm636, %v400, %v567
      %v650 = vsel %vm636, %v401, %v569
      %v652 = vsel %vm636, %v402, %v571
      %v654 = vsel %vm636, %v403, %v573
      %v656 = vsel %vm636, %v404, %v575
      %vm657 = vcmask 261120
      %v659 = vsel %vm657, %v638, %v582
      %v661 = vsel %vm657, %v640, %v584
      %v663 = vsel %vm657, %v642, %v586
      %v665 = vsel %vm657, %v644, %v588
      %v667 = vsel %vm657, %v646, %v590
      %v669 = vsel %vm657, %v648, %v592
      %v671 = vsel %vm657, %v650, %v594
      %v673 = vsel %vm657, %v652, %v596
      %v675 = vsel %vm657, %v654, %v598
      %v677 = vsel %vm657, %v656, %v600
      %vm678 = vcmask 392192
      %v680 = vsel %vm678, %v659, %v617
      %v682 = vsel %vm678, %v661, %v619
      %v684 = vsel %vm678, %v663, %v621
      %v686 = vsel %vm678, %v665, %v623
      %v688 = vsel %vm678, %v667, %v625
      %v690 = vsel %vm678, %v669, %v627
      %v692 = vsel %vm678, %v671, %v629
      %v694 = vsel %vm678, %v673, %v631
      %v696 = vsel %vm678, %v675, %v633
      %v698 = vsel %vm678, %v677, %v635
      %v699 = vld [vmem:[%s1] sm:$0xf]
      %v700 = vld [vmem:[%s1 + $0x4] sm:$0xf]
      %v701 = vld [vmem:[%s1 + $0x8] sm:$0xf]
      %v702 = vld [vmem:[%s1 + $0xc] sm:$0xf]
      %v703 = vld [vmem:[%s1 + $0x10] sm:$0xf]
      %v704 = vld [vmem:[%s1 + $0x14] sm:$0xf]
      %v705 = vld [vmem:[%s1 + $0x18] sm:$0xf]
      %v706 = vld [vmem:[%s1 + $0x1c] sm:$0xf]
      %v715 = vunpack.c.l.b16 %v699
      %v716 = vunpack.c.l.b16 %v700
      %v717 = vunpack.c.l.b16 %v701
      %v718 = vunpack.c.l.b16 %v702
      %v719 = vunpack.c.l.b16 %v703
      %v720 = vunpack.c.l.b16 %v704
      %v721 = vunpack.c.l.b16 %v705
      %v722 = vunpack.c.l.b16 %v706
      %v723 = vpack.c.b16 %v716, %v715
      %v724 = vpack.c.b16 %v718, %v717
      %v725 = vpack.c.b16 %v720, %v719
      %v726 = vpack.c.b16 %v722, %v721
      %vm731 = vcmask 523264
      %v732 = vsel %vm731, %v680, 0
      %v734 = vsel %vm731, %v682, 0
      %v736 = vsel %vm731, %v684, 0
      %v738 = vsel %vm731, %v686, 0
      %v740 = vsel %vm731, %v688, 0
      %v742 = vsel %vm731, %v690, 0
      %v744 = vsel %vm731, %v692, 0
      %v746 = vsel %vm731, %v694, 0
      %v748 = vsel %vm731, %v696, 0
      %v750 = vsel %vm731, %v698, 0
      %752 = vmatpush.bf16.msra.mxu0 0
      %753 = vmatpush.bf16.msra.mxu0 0
      %754 = vmatpush.bf16.msra.mxu0 0
      %755 = vmatpush.bf16.msra.mxu0 0
      %756 = vmatpush.bf16.msra.mxu0 %v726
      %757 = vmatpush.bf16.msra.mxu0 %v725
      %758 = vmatpush.bf16.msra.mxu0 %v724
      %759 = vmatpush.bf16.msra.mxu0 %v723
      %760 = vmatmul.bf16.gmra.mxu0 %v732
      %v761 = vpop.f32.mrf.mxu0
      %v762 = vadd.f32 0.0, %v761
      %v763 = vpop.f32.mrf.mxu0
      %v764 = vadd.f32 0.0, %v763
      %765 = vmatmul.bf16.gmra.mxu0 %v734
      %v766 = vpop.f32.mrf.mxu0
      %v767 = vadd.f32 0.0, %v766
      %v768 = vpop.f32.mrf.mxu0
      %v769 = vadd.f32 0.0, %v768
      %770 = vmatmul.bf16.gmra.mxu0 %v736
      %v771 = vpop.f32.mrf.mxu0
      %v772 = vadd.f32 0.0, %v771
      %v773 = vpop.f32.mrf.mxu0
      %v774 = vadd.f32 0.0, %v773
      %775 = vmatmul.bf16.gmra.mxu0 %v738
      %v776 = vpop.f32.mrf.mxu0
      %v777 = vadd.f32 0.0, %v776
      %v778 = vpop.f32.mrf.mxu0
      %v779 = vadd.f32 0.0, %v778
      %780 = vmatmul.bf16.gmra.mxu0 %v740
      %v781 = vpop.f32.mrf.mxu0
      %v782 = vadd.f32 0.0, %v781
      %v783 = vpop.f32.mrf.mxu0
      %v784 = vadd.f32 0.0, %v783
      %785 = vmatmul.bf16.gmra.mxu0 %v742
      %v786 = vpop.f32.mrf.mxu0
      %v787 = vadd.f32 0.0, %v786
      %v788 = vpop.f32.mrf.mxu0
      %v789 = vadd.f32 0.0, %v788
      %790 = vmatmul.bf16.gmra.mxu0 %v744
      %v791 = vpop.f32.mrf.mxu0
      %v792 = vadd.f32 0.0, %v791
      %v793 = vpop.f32.mrf.mxu0
      %v794 = vadd.f32 0.0, %v793
      %795 = vmatmul.bf16.gmra.mxu0 %v746
      %v796 = vpop.f32.mrf.mxu0
      %v797 = vadd.f32 0.0, %v796
      %v798 = vpop.f32.mrf.mxu0
      %v799 = vadd.f32 0.0, %v798
      %800 = vmatmul.bf16.gmra.mxu0 %v748
      %v801 = vpop.f32.mrf.mxu0
      %v802 = vadd.f32 0.0, %v801
      %v803 = vpop.f32.mrf.mxu0
      %v804 = vadd.f32 0.0, %v803
      %805 = vmatmul.bf16.gmra.mxu0 %v750
      %v806 = vpop.f32.mrf.mxu0
      %v807 = vadd.f32 0.0, %v806
      %v808 = vpop.f32.mrf.mxu0
      %v809 = vadd.f32 0.0, %v808
      %810 = vdwg.mxu0
      %v812 = vperm.slane %v353, 0
      %v814 = vmul.f32 %v762, %v812
      %v815 = vmul.f32 %v764, %v812
      %v816 = vmul.f32 %v767, %v812
      %v817 = vmul.f32 %v769, %v812
      %v818 = vmul.f32 %v772, %v812
      %v819 = vmul.f32 %v774, %v812
      %v820 = vmul.f32 %v777, %v812
      %v821 = vmul.f32 %v779, %v812
      %v822 = vmul.f32 %v782, %v812
      %v823 = vmul.f32 %v784, %v812
      %v824 = vmul.f32 %v787, %v812
      %v825 = vmul.f32 %v789, %v812
      %v826 = vmul.f32 %v792, %v812
      %v827 = vmul.f32 %v794, %v812
      %v828 = vmul.f32 %v797, %v812
      %v829 = vmul.f32 %v799, %v812
      %v830 = vmul.f32 %v802, %v812
      %v831 = vmul.f32 %v804, %v812
      %v832 = vmul.f32 %v807, %v812
      %v833 = vmul.f32 %v809, %v812
      %v835 = vperm.slane %v354, 0
      %v837 = vadd.f32 %v814, %v835
      %v838 = vadd.f32 %v815, %v835
      %v839 = vadd.f32 %v816, %v835
      %v840 = vadd.f32 %v817, %v835
      %v841 = vadd.f32 %v818, %v835
      %v842 = vadd.f32 %v819, %v835
      %v843 = vadd.f32 %v820, %v835
      %v844 = vadd.f32 %v821, %v835
      %v845 = vadd.f32 %v822, %v835
      %v846 = vadd.f32 %v823, %v835
      %v847 = vadd.f32 %v824, %v835
      %v848 = vadd.f32 %v825, %v835
      %v849 = vadd.f32 %v826, %v835
      %v850 = vadd.f32 %v827, %v835
      %v851 = vadd.f32 %v828, %v835
      %v852 = vadd.f32 %v829, %v835
      %v853 = vadd.f32 %v830, %v835
      %v854 = vadd.f32 %v831, %v835
      %v855 = vadd.f32 %v832, %v835
      %v856 = vadd.f32 %v833, %v835
      %v857 = vmax.f32 %v837, 0.0
      %v858 = vmax.f32 %v838, 0.0
      %v859 = vmax.f32 %v839, 0.0
      %v860 = vmax.f32 %v840, 0.0
      %v861 = vmax.f32 %v841, 0.0
      %v862 = vmax.f32 %v842, 0.0
      %v863 = vmax.f32 %v843, 0.0
      %v864 = vmax.f32 %v844, 0.0
      %v865 = vmax.f32 %v845, 0.0
      %v866 = vmax.f32 %v846, 0.0
      %v867 = vmax.f32 %v847, 0.0
      %v868 = vmax.f32 %v848, 0.0
      %v869 = vmax.f32 %v849, 0.0
      %v870 = vmax.f32 %v850, 0.0
      %v871 = vmax.f32 %v851, 0.0
      %v872 = vmax.f32 %v852, 0.0
      %v873 = vmax.f32 %v853, 0.0
      %v874 = vmax.f32 %v854, 0.0
      %v875 = vmax.f32 %v855, 0.0
      %v876 = vmax.f32 %v856, 0.0
      %v877 = vpack.c.bf16 %v857, %v857
      %v878 = vpack.c.bf16 %v858, %v858
      %v879 = vpack.c.bf16 %v859, %v859
      %v880 = vpack.c.bf16 %v860, %v860
      %v881 = vpack.c.bf16 %v861, %v861
      %v882 = vpack.c.bf16 %v862, %v862
      %v883 = vpack.c.bf16 %v863, %v863
      %v884 = vpack.c.bf16 %v864, %v864
      %v885 = vpack.c.bf16 %v865, %v865
      %v886 = vpack.c.bf16 %v866, %v866
      %v887 = vpack.c.bf16 %v867, %v867
      %v888 = vpack.c.bf16 %v868, %v868
      %v889 = vpack.c.bf16 %v869, %v869
      %v890 = vpack.c.bf16 %v870, %v870
      %v891 = vpack.c.bf16 %v871, %v871
      %v892 = vpack.c.bf16 %v872, %v872
      %v893 = vpack.c.bf16 %v873, %v873
      %v894 = vpack.c.bf16 %v874, %v874
      %v895 = vpack.c.bf16 %v875, %v875
      %v896 = vpack.c.bf16 %v876, %v876
      %vm897 = vsmask.f32 256
      %vm898 = vsmask.f32 4368
      %vm899 = vmor %vm897, %vm898
      %v901 = vshrl.u32 %v877, 16
      %v903 = vrot.slane %v901, 7
      %v904 = vshll.u32 %v877, 16
      %v906 = vor.u32 %v903, %v904
      %v907 = vrot.slane %v903, 4
      %v909 = vshrl.u32 %v878, 16
      %v911 = vrot.slane %v909, 7
      %v912 = vshll.u32 %v878, 16
      %v914 = vor.u32 %v911, %v912
      %v915 = vsel %vm899, %v907, %v914
      %v916 = vrot.slane %v911, 4
      %v918 = vshrl.u32 %v879, 16
      %v920 = vrot.slane %v918, 7
      %v921 = vshll.u32 %v879, 16
      %v923 = vor.u32 %v920, %v921
      %v924 = vrot.slane %v920, 4
      %v926 = vshrl.u32 %v880, 16
      %v928 = vrot.slane %v926, 7
      %v929 = vshll.u32 %v880, 16
      %v931 = vor.u32 %v928, %v929
      %v932 = vsel %vm899, %v924, %v931
      %v933 = vrot.slane %v928, 4
      %v935 = vshrl.u32 %v881, 16
      %v937 = vrot.slane %v935, 7
      %v938 = vshll.u32 %v881, 16
      %v940 = vor.u32 %v937, %v938
      %v941 = vrot.slane %v937, 4
      %v943 = vshrl.u32 %v882, 16
      %v945 = vrot.slane %v943, 7
      %v946 = vshll.u32 %v882, 16
      %v948 = vor.u32 %v945, %v946
      %v949 = vsel %vm899, %v941, %v948
      %v950 = vrot.slane %v945, 4
      %v952 = vshrl.u32 %v883, 16
      %v954 = vrot.slane %v952, 7
      %v955 = vshll.u32 %v883, 16
      %v957 = vor.u32 %v954, %v955
      %v958 = vrot.slane %v954, 4
      %v960 = vshrl.u32 %v884, 16
      %v962 = vrot.slane %v960, 7
      %v963 = vshll.u32 %v884, 16
      %v965 = vor.u32 %v962, %v963
      %v966 = vsel %vm899, %v958, %v965
      %v967 = vrot.slane %v962, 4
      %v969 = vshrl.u32 %v885, 16
      %v971 = vrot.slane %v969, 7
      %v972 = vshll.u32 %v885, 16
      %v974 = vor.u32 %v971, %v972
      %v975 = vrot.slane %v971, 4
      %v977 = vshrl.u32 %v886, 16
      %v979 = vrot.slane %v977, 7
      %v980 = vshll.u32 %v886, 16
      %v982 = vor.u32 %v979, %v980
      %v983 = vsel %vm899, %v975, %v982
      %v984 = vrot.slane %v979, 4
      %v986 = vshrl.u32 %v887, 16
      %v988 = vrot.slane %v986, 7
      %v989 = vshll.u32 %v887, 16
      %v991 = vor.u32 %v988, %v989
      %v992 = vrot.slane %v988, 4
      %v994 = vshrl.u32 %v888, 16
      %v996 = vrot.slane %v994, 7
      %v997 = vshll.u32 %v888, 16
      %v999 = vor.u32 %v996, %v997
      %v1000 = vsel %vm899, %v992, %v999
      %v1001 = vrot.slane %v996, 4
      %v1003 = vshrl.u32 %v889, 16
      %v1005 = vrot.slane %v1003, 7
      %v1006 = vshll.u32 %v889, 16
      %v1008 = vor.u32 %v1005, %v1006
      %v1009 = vrot.slane %v1005, 4
      %v1011 = vshrl.u32 %v890, 16
      %v1013 = vrot.slane %v1011, 7
      %v1014 = vshll.u32 %v890, 16
      %v1016 = vor.u32 %v1013, %v1014
      %v1017 = vsel %vm899, %v1009, %v1016
      %v1018 = vrot.slane %v1013, 4
      %v1020 = vshrl.u32 %v891, 16
      %v1022 = vrot.slane %v1020, 7
      %v1023 = vshll.u32 %v891, 16
      %v1025 = vor.u32 %v1022, %v1023
      %v1026 = vrot.slane %v1022, 4
      %v1028 = vshrl.u32 %v892, 16
      %v1030 = vrot.slane %v1028, 7
      %v1031 = vshll.u32 %v892, 16
      %v1033 = vor.u32 %v1030, %v1031
      %v1034 = vsel %vm899, %v1026, %v1033
      %v1035 = vrot.slane %v1030, 4
      %v1037 = vshrl.u32 %v893, 16
      %v1039 = vrot.slane %v1037, 7
      %v1040 = vshll.u32 %v893, 16
      %v1042 = vor.u32 %v1039, %v1040
      %v1043 = vrot.slane %v1039, 4
      %v1045 = vshrl.u32 %v894, 16
      %v1047 = vrot.slane %v1045, 7
      %v1048 = vshll.u32 %v894, 16
      %v1050 = vor.u32 %v1047, %v1048
      %v1051 = vsel %vm899, %v1043, %v1050
      %v1052 = vrot.slane %v1047, 4
      %v1054 = vshrl.u32 %v895, 16
      %v1056 = vrot.slane %v1054, 7
      %v1057 = vshll.u32 %v895, 16
      %v1059 = vor.u32 %v1056, %v1057
      %v1060 = vrot.slane %v1056, 4
      %v1062 = vshrl.u32 %v896, 16
      %v1064 = vrot.slane %v1062, 7
      %v1065 = vshll.u32 %v896, 16
      %v1067 = vor.u32 %v1064, %v1065
      %v1068 = vsel %vm899, %v1060, %v1067
      %v1069 = vrot.slane %v1064, 4
      %vm1100 = vcmask 125952
      %vm1101 = vsmask.f32 7938
      %vm1102 = vmand %vm1100, %vm1101
      %v1103 = vld [vmem:[#allocation2] sm:$0xf]
      %v1104 = vsel %vm1102, %v906, %v1103
      %1105 = vst [vmem:[#allocation2] sm:$0xf] %v1104
      %vm1106 = vcmask 125952
      %1107 = vst.msk [vmem:[#allocation2 + $0x4] sm:$0xf] %vm1106, %v915
      %vm1108 = vcmask 122880
      %vm1109 = vmand %vm1108, %vm897
      %v1110 = vld [vmem:[#allocation2 + $0x8] sm:$0x1]
      %v1111 = vsel %vm1109, %v916, %v1110
      %1112 = vst [vmem:[#allocation2 + $0x8] sm:$0x1] %v1111
      %v1113 = vld [vmem:[#allocation2 + $0xc] sm:$0xf]
      %v1114 = vsel %vm1102, %v923, %v1113
      %1115 = vst [vmem:[#allocation2 + $0xc] sm:$0xf] %v1114
      %1116 = vst.msk [vmem:[#allocation2 + $0x10] sm:$0xf] %vm1106, %v932
      %v1117 = vld [vmem:[#allocation2 + $0x14] sm:$0x1]
      %v1118 = vsel %vm1109, %v933, %v1117
      %1119 = vst [vmem:[#allocation2 + $0x14] sm:$0x1] %v1118
      %v1120 = vld [vmem:[#allocation2 + $0x18] sm:$0xf]
      %v1121 = vsel %vm1102, %v940, %v1120
      %1122 = vst [vmem:[#allocation2 + $0x18] sm:$0xf] %v1121
      %1123 = vst.msk [vmem:[#allocation2 + $0x1c] sm:$0xf] %vm1106, %v949
      %v1124 = vld [vmem:[#allocation2 + $0x20] sm:$0x1]
      %v1125 = vsel %vm1109, %v950, %v1124
      %1126 = vst [vmem:[#allocation2 + $0x20] sm:$0x1] %v1125
      %v1127 = vld [vmem:[#allocation2 + $0x24] sm:$0xf]
      %v1128 = vsel %vm1102, %v957, %v1127
      %1129 = vst [vmem:[#allocation2 + $0x24] sm:$0xf] %v1128
      %1130 = vst.msk [vmem:[#allocation2 + $0x28] sm:$0xf] %vm1106, %v966
      %v1131 = vld [vmem:[#allocation2 + $0x2c] sm:$0x1]
      %v1132 = vsel %vm1109, %v967, %v1131
      %1133 = vst [vmem:[#allocation2 + $0x2c] sm:$0x1] %v1132
      %v1134 = vld [vmem:[#allocation2 + $0x30] sm:$0xf]
      %v1135 = vsel %vm1102, %v974, %v1134
      %1136 = vst [vmem:[#allocation2 + $0x30] sm:$0xf] %v1135
      %1137 = vst.msk [vmem:[#allocation2 + $0x34] sm:$0xf] %vm1106, %v983
      %v1138 = vld [vmem:[#allocation2 + $0x38] sm:$0x1]
      %v1139 = vsel %vm1109, %v984, %v1138
      %1140 = vst [vmem:[#allocation2 + $0x38] sm:$0x1] %v1139
      %v1141 = vld [vmem:[#allocation2 + $0x3c] sm:$0xf]
      %v1142 = vsel %vm1102, %v991, %v1141
      %1143 = vst [vmem:[#allocation2 + $0x3c] sm:$0xf] %v1142
      %1144 = vst.msk [vmem:[#allocation2 + $0x40] sm:$0xf] %vm1106, %v1000
      %v1145 = vld [vmem:[#allocation2 + $0x44] sm:$0x1]
      %v1146 = vsel %vm1109, %v1001, %v1145
      %1147 = vst [vmem:[#allocation2 + $0x44] sm:$0x1] %v1146
      %v1148 = vld [vmem:[#allocation2 + $0x48] sm:$0xf]
      %v1149 = vsel %vm1102, %v1008, %v1148
      %1150 = vst [vmem:[#allocation2 + $0x48] sm:$0xf] %v1149
      %1151 = vst.msk [vmem:[#allocation2 + $0x4c] sm:$0xf] %vm1106, %v1017
      %v1152 = vld [vmem:[#allocation2 + $0x50] sm:$0x1]
      %v1153 = vsel %vm1109, %v1018, %v1152
      %1154 = vst [vmem:[#allocation2 + $0x50] sm:$0x1] %v1153
      %v1155 = vld [vmem:[#allocation2 + $0x54] sm:$0xf]
      %v1156 = vsel %vm1102, %v1025, %v1155
      %1157 = vst [vmem:[#allocation2 + $0x54] sm:$0xf] %v1156
      %1158 = vst.msk [vmem:[#allocation2 + $0x58] sm:$0xf] %vm1106, %v1034
      %v1159 = vld [vmem:[#allocation2 + $0x5c] sm:$0x1]
      %v1160 = vsel %vm1109, %v1035, %v1159
      %1161 = vst [vmem:[#allocation2 + $0x5c] sm:$0x1] %v1160
      %v1162 = vld [vmem:[#allocation2 + $0x60] sm:$0xf]
      %v1163 = vsel %vm1102, %v1042, %v1162
      %1164 = vst [vmem:[#allocation2 + $0x60] sm:$0xf] %v1163
      %1165 = vst.msk [vmem:[#allocation2 + $0x64] sm:$0xf] %vm1106, %v1051
      %v1166 = vld [vmem:[#allocation2 + $0x68] sm:$0x1]
      %v1167 = vsel %vm1109, %v1052, %v1166
      %1168 = vst [vmem:[#allocation2 + $0x68] sm:$0x1] %v1167
      %v1169 = vld [vmem:[#allocation2 + $0x6c] sm:$0xf]
      %v1170 = vsel %vm1102, %v1059, %v1169
      %1171 = vst [vmem:[#allocation2 + $0x6c] sm:$0xf] %v1170
      %1172 = vst.msk [vmem:[#allocation2 + $0x70] sm:$0xf] %vm1106, %v1068
      %v1173 = vld [vmem:[#allocation2 + $0x74] sm:$0x1]
      %v1174 = vsel %vm1109, %v1069, %v1173
      %1175 = vst [vmem:[#allocation2 + $0x74] sm:$0x1] %v1174
      %v1176 = vld [vmem:[#allocation2] sm:$0x1]
      %v1177 = vsel %vm1109, 0, %v1176
      %1178 = vst [vmem:[#allocation2] sm:$0x1] %v1177
      %v1179 = vld [vmem:[#allocation2 + $0xc] sm:$0x1]
      %v1180 = vsel %vm1109, 0, %v1179
      %1181 = vst [vmem:[#allocation2 + $0xc] sm:$0x1] %v1180
      %v1182 = vld [vmem:[#allocation2 + $0x18] sm:$0x1]
      %v1183 = vsel %vm1109, 0, %v1182
      %1184 = vst [vmem:[#allocation2 + $0x18] sm:$0x1] %v1183
      %v1185 = vld [vmem:[#allocation2 + $0x24] sm:$0x1]
      %v1186 = vsel %vm1109, 0, %v1185
      %1187 = vst [vmem:[#allocation2 + $0x24] sm:$0x1] %v1186
      %v1188 = vld [vmem:[#allocation2 + $0x30] sm:$0x1]
      %v1189 = vsel %vm1109, 0, %v1188
      %1190 = vst [vmem:[#allocation2 + $0x30] sm:$0x1] %v1189
      %v1191 = vld [vmem:[#allocation2 + $0x3c] sm:$0x1]
      %v1192 = vsel %vm1109, 0, %v1191
      %1193 = vst [vmem:[#allocation2 + $0x3c] sm:$0x1] %v1192
      %v1194 = vld [vmem:[#allocation2 + $0x48] sm:$0x1]
      %v1195 = vsel %vm1109, 0, %v1194
      %1196 = vst [vmem:[#allocation2 + $0x48] sm:$0x1] %v1195
      %v1197 = vld [vmem:[#allocation2 + $0x54] sm:$0x1]
      %v1198 = vsel %vm1109, 0, %v1197
      %1199 = vst [vmem:[#allocation2 + $0x54] sm:$0x1] %v1198
      %v1200 = vld [vmem:[#allocation2 + $0x60] sm:$0x1]
      %v1201 = vsel %vm1109, 0, %v1200
      %1202 = vst [vmem:[#allocation2 + $0x60] sm:$0x1] %v1201
      %v1203 = vld [vmem:[#allocation2 + $0x6c] sm:$0x1]
      %v1204 = vsel %vm1109, 0, %v1203
      %1205 = vst [vmem:[#allocation2 + $0x6c] sm:$0x1] %v1204
      %vm1206 = vmand %vm1108, %vm1101
      %v1207 = vld [vmem:[#allocation2 + $0x8] sm:$0x1]
      %v1208 = vsel %vm1206, 0, %v1207
      %1209 = vst [vmem:[#allocation2 + $0x8] sm:$0x1] %v1208
      %v1210 = vld [vmem:[#allocation2 + $0x14] sm:$0x1]
      %v1211 = vsel %vm1206, 0, %v1210
      %1212 = vst [vmem:[#allocation2 + $0x14] sm:$0x1] %v1211
      %v1213 = vld [vmem:[#allocation2 + $0x20] sm:$0x1]
      %v1214 = vsel %vm1206, 0, %v1213
      %1215 = vst [vmem:[#allocation2 + $0x20] sm:$0x1] %v1214
      %v1216 = vld [vmem:[#allocation2 + $0x2c] sm:$0x1]
      %v1217 = vsel %vm1206, 0, %v1216
      %1218 = vst [vmem:[#allocation2 + $0x2c] sm:$0x1] %v1217
      %v1219 = vld [vmem:[#allocation2 + $0x38] sm:$0x1]
      %v1220 = vsel %vm1206, 0, %v1219
      %1221 = vst [vmem:[#allocation2 + $0x38] sm:$0x1] %v1220
      %v1222 = vld [vmem:[#allocation2 + $0x44] sm:$0x1]
      %v1223 = vsel %vm1206, 0, %v1222
      %1224 = vst [vmem:[#allocation2 + $0x44] sm:$0x1] %v1223
      %v1225 = vld [vmem:[#allocation2 + $0x50] sm:$0x1]
      %v1226 = vsel %vm1206, 0, %v1225
      %1227 = vst [vmem:[#allocation2 + $0x50] sm:$0x1] %v1226
      %v1228 = vld [vmem:[#allocation2 + $0x5c] sm:$0x1]
      %v1229 = vsel %vm1206, 0, %v1228
      %1230 = vst [vmem:[#allocation2 + $0x5c] sm:$0x1] %v1229
      %v1231 = vld [vmem:[#allocation2 + $0x68] sm:$0x1]
      %v1232 = vsel %vm1206, 0, %v1231
      %1233 = vst [vmem:[#allocation2 + $0x68] sm:$0x1] %v1232
      %v1234 = vld [vmem:[#allocation2 + $0x74] sm:$0x1]
      %v1235 = vsel %vm1206, 0, %v1234
      %1236 = vst [vmem:[#allocation2 + $0x74] sm:$0x1] %v1235
      %p1237 = scmp.eq.s32.totalorder %s23, 0
      // Predicated region
      $region49: #{upconvblock_forward.1} parent=47 // pred_check
        %p1238 = pneg %p1237
      $region50: #{upconvblock_forward.1} parent=47 // pred_check_branch
        %1240 = sbr.rel (%p1238) target = $region52
      $region51: #{upconvblock_forward.1} parent=47 // pred_region
        %1241 = vst.msk [vmem:[#allocation2] sm:$0xf] %vm1106, 0
        %1242 = vst.msk [vmem:[#allocation2 + $0x4] sm:$0xf] %vm1106, 0
        %vm1243 = vcmask 122880
        %1244 = vst.msk [vmem:[#allocation2 + $0x8] sm:$0x1] %vm1243, 0
      $region52: #{upconvblock_forward.1} parent=47 // pred_fallthru
        _
      %p1245 = scmp.eq.s32.totalorder %s23, 1
      // Predicated region
      $region53: #{upconvblock_forward.1} parent=47 // pred_check
        %p1246 = pneg %p1245
      $region54: #{upconvblock_forward.1} parent=47 // pred_check_branch
        %1248 = sbr.rel (%p1246) target = $region56
      $region55: #{upconvblock_forward.1} parent=47 // pred_region
        %s1249 = scalar_lea.vmem [#allocation2], 108
        %1250 = vst.msk [vmem:[%s1249] sm:$0xf] %vm1106, 0
        %1251 = vst.msk [vmem:[%s1249 + $0x4] sm:$0xf] %vm1106, 0
        %vm1252 = vcmask 122880
        %1253 = vst.msk [vmem:[%s1249 + $0x8] sm:$0x1] %vm1252, 0
      $region56: #{upconvblock_forward.1} parent=47 // pred_fallthru
        _
      %v1254 = vpack.c.bf16 %v839, %v839
      %v1255 = vpack.c.bf16 %v840, %v840
      %v1256 = vpack.c.bf16 %v841, %v841
      %v1257 = vpack.c.bf16 %v842, %v842
      %v1258 = vpack.c.bf16 %v843, %v843
      %v1259 = vpack.c.bf16 %v844, %v844
      %v1260 = vpack.c.bf16 %v845, %v845
      %v1261 = vpack.c.bf16 %v846, %v846
      %v1262 = vpack.c.bf16 %v847, %v847
      %v1263 = vpack.c.bf16 %v848, %v848
      %v1264 = vpack.c.bf16 %v849, %v849
      %v1265 = vpack.c.bf16 %v850, %v850
      %v1266 = vpack.c.bf16 %v851, %v851
      %v1267 = vpack.c.bf16 %v852, %v852
      %v1268 = vpack.c.bf16 %v853, %v853
      %v1269 = vpack.c.bf16 %v854, %v854
      %v1270 = vshrl.u32 %v425, 16
      %v1272 = vshrl.u32 %v426, 16
      %v1274 = vshrl.u32 %v427, 16
      %v1276 = vshrl.u32 %v428, 16
      %v1278 = vshrl.u32 %v429, 16
      %v1280 = vshrl.u32 %v430, 16
      %v1282 = vshrl.u32 %v431, 16
      %v1284 = vshrl.u32 %v432, 16
      %v1286 = vshrl.u32 %v433, 16
      %v1288 = vshrl.u32 %v434, 16
      %1290 = vrot.lane.b32.xlu0 %v1270, 16
      %v1291 = vpop.permute.xlu0 %1290
      %1292 = vrot.lane.b32.xlu0 %v1272, 16
      %v1293 = vpop.permute.xlu0 %1292
      %1294 = vrot.lane.b32.xlu0 %v1274, 16
      %v1295 = vpop.permute.xlu0 %1294
      %1296 = vrot.lane.b32.xlu0 %v1276, 16
      %v1297 = vpop.permute.xlu0 %1296
      %1298 = vrot.lane.b32.xlu0 %v1278, 16
      %v1299 = vpop.permute.xlu0 %1298
      %1300 = vrot.lane.b32.xlu0 %v1280, 16
      %v1301 = vpop.permute.xlu0 %1300
      %1302 = vrot.lane.b32.xlu0 %v1282, 16
      %v1303 = vpop.permute.xlu0 %1302
      %1304 = vrot.lane.b32.xlu0 %v1284, 16
      %v1305 = vpop.permute.xlu0 %1304
      %1306 = vrot.lane.b32.xlu0 %v1286, 16
      %v1307 = vpop.permute.xlu0 %1306
      %1308 = vrot.lane.b32.xlu0 %v1288, 16
      %v1309 = vpop.permute.xlu0 %1308
      %1310 = vrot.lane.b32.xlu0 %v426, 32
      %v1311 = vpop.permute.xlu0 %1310
      %1312 = vrot.lane.b32.xlu0 %v427, 32
      %v1313 = vpop.permute.xlu0 %1312
      %1314 = vrot.lane.b32.xlu0 %v428, 32
      %v1315 = vpop.permute.xlu0 %1314
      %1316 = vrot.lane.b32.xlu0 %v429, 32
      %v1317 = vpop.permute.xlu0 %1316
      %1318 = vrot.lane.b32.xlu0 %v430, 32
      %v1319 = vpop.permute.xlu0 %1318
      %1320 = vrot.lane.b32.xlu0 %v431, 32
      %v1321 = vpop.permute.xlu0 %1320
      %1322 = vrot.lane.b32.xlu0 %v432, 32
      %v1323 = vpop.permute.xlu0 %1322
      %1324 = vrot.lane.b32.xlu0 %v433, 32
      %v1325 = vpop.permute.xlu0 %1324
      %1326 = vrot.lane.b32.xlu0 %v434, 32
      %v1327 = vpop.permute.xlu0 %1326
      %1328 = vrot.lane.b32.xlu0 %v603, 32
      %v1329 = vpop.permute.xlu0 %1328
      %v1330 = vshrl.u32 %v603, 16
      %1332 = vrot.lane.b32.xlu0 %v1272, 48
      %v1333 = vpop.permute.xlu0 %1332
      %1334 = vrot.lane.b32.xlu0 %v1274, 48
      %v1335 = vpop.permute.xlu0 %1334
      %1336 = vrot.lane.b32.xlu0 %v1276, 48
      %v1337 = vpop.permute.xlu0 %1336
      %1338 = vrot.lane.b32.xlu0 %v1278, 48
      %v1339 = vpop.permute.xlu0 %1338
      %1340 = vrot.lane.b32.xlu0 %v1280, 48
      %v1341 = vpop.permute.xlu0 %1340
      %1342 = vrot.lane.b32.xlu0 %v1282, 48
      %v1343 = vpop.permute.xlu0 %1342
      %1344 = vrot.lane.b32.xlu0 %v1284, 48
      %v1345 = vpop.permute.xlu0 %1344
      %1346 = vrot.lane.b32.xlu0 %v1286, 48
      %v1347 = vpop.permute.xlu0 %1346
      %1348 = vrot.lane.b32.xlu0 %v1288, 48
      %v1349 = vpop.permute.xlu0 %1348
      %1350 = vrot.lane.b32.xlu0 %v1330, 48
      %v1351 = vpop.permute.xlu0 %1350
      %v1353 = vsel %vm636, %v425, %v1291
      %v1355 = vsel %vm636, %v426, %v1293
      %v1357 = vsel %vm636, %v427, %v1295
      %v1359 = vsel %vm636, %v428, %v1297
      %v1361 = vsel %vm636, %v429, %v1299
      %v1363 = vsel %vm636, %v430, %v1301
      %v1365 = vsel %vm636, %v431, %v1303
      %v1367 = vsel %vm636, %v432, %v1305
      %v1369 = vsel %vm636, %v433, %v1307
      %v1371 = vsel %vm636, %v434, %v1309
      %v1373 = vsel %vm657, %v1353, %v1311
      %v1375 = vsel %vm657, %v1355, %v1313
      %v1377 = vsel %vm657, %v1357, %v1315
      %v1379 = vsel %vm657, %v1359, %v1317
      %v1381 = vsel %vm657, %v1361, %v1319
      %v1383 = vsel %vm657, %v1363, %v1321
      %v1385 = vsel %vm657, %v1365, %v1323
      %v1387 = vsel %vm657, %v1367, %v1325
      %v1389 = vsel %vm657, %v1369, %v1327
      %v1391 = vsel %vm657, %v1371, %v1329
      %v1393 = vsel %vm678, %v1373, %v1333
      %v1395 = vsel %vm678, %v1375, %v1335
      %v1397 = vsel %vm678, %v1377, %v1337
      %v1399 = vsel %vm678, %v1379, %v1339
      %v1401 = vsel %vm678, %v1381, %v1341
      %v1403 = vsel %vm678, %v1383, %v1343
      %v1405 = vsel %vm678, %v1385, %v1345
      %v1407 = vsel %vm678, %v1387, %v1347
      %v1409 = vsel %vm678, %v1389, %v1349
      %v1411 = vsel %vm678, %v1391, %v1351
      %v1412 = vshrl.u32 %v680, 16
      %v1414 = vshll.u32 %v680, 16
      %v1416 = vrot.slane %v1414, 1
      %v1417 = vor.u32 %v1412, %v1416
      %v1418 = vshll.u32 %v1393, 16
      %v1420 = vrot.slane %v1418, 1
      %v1421 = vsel %vm435, %v1417, %v1420
      %v1422 = vshrl.u32 %v682, 16
      %v1424 = vshll.u32 %v682, 16
      %v1426 = vrot.slane %v1424, 1
      %v1427 = vor.u32 %v1422, %v1426
      %v1428 = vshll.u32 %v1395, 16
      %v1430 = vrot.slane %v1428, 1
      %v1431 = vsel %vm435, %v1427, %v1430
      %v1432 = vshrl.u32 %v684, 16
      %v1434 = vshll.u32 %v684, 16
      %v1436 = vrot.slane %v1434, 1
      %v1437 = vor.u32 %v1432, %v1436
      %v1438 = vshll.u32 %v1397, 16
      %v1440 = vrot.slane %v1438, 1
      %v1441 = vsel %vm435, %v1437, %v1440
      %v1442 = vshrl.u32 %v686, 16
      %v1444 = vshll.u32 %v686, 16
      %v1446 = vrot.slane %v1444, 1
      %v1447 = vor.u32 %v1442, %v1446
      %v1448 = vshll.u32 %v1399, 16
      %v1450 = vrot.slane %v1448, 1
      %v1451 = vsel %vm435, %v1447, %v1450
      %v1452 = vshrl.u32 %v688, 16
      %v1454 = vshll.u32 %v688, 16
      %v1456 = vrot.slane %v1454, 1
      %v1457 = vor.u32 %v1452, %v1456
      %v1458 = vshll.u32 %v1401, 16
      %v1460 = vrot.slane %v1458, 1
      %v1461 = vsel %vm435, %v1457, %v1460
      %v1462 = vshrl.u32 %v690, 16
      %v1464 = vshll.u32 %v690, 16
      %v1466 = vrot.slane %v1464, 1
      %v1467 = vor.u32 %v1462, %v1466
      %v1468 = vshll.u32 %v1403, 16
      %v1470 = vrot.slane %v1468, 1
      %v1471 = vsel %vm435, %v1467, %v1470
      %v1472 = vshrl.u32 %v692, 16
      %v1474 = vshll.u32 %v692, 16
      %v1476 = vrot.slane %v1474, 1
      %v1477 = vor.u32 %v1472, %v1476
      %v1478 = vshll.u32 %v1405, 16
      %v1480 = vrot.slane %v1478, 1
      %v1481 = vsel %vm435, %v1477, %v1480
      %v1482 = vshrl.u32 %v694, 16
      %v1484 = vshll.u32 %v694, 16
      %v1486 = vrot.slane %v1484, 1
      %v1487 = vor.u32 %v1482, %v1486
      %v1488 = vshll.u32 %v1407, 16
      %v1490 = vrot.slane %v1488, 1
      %v1491 = vsel %vm435, %v1487, %v1490
      %v1492 = vshrl.u32 %v696, 16
      %v1494 = vshll.u32 %v696, 16
      %v1496 = vrot.slane %v1494, 1
      %v1497 = vor.u32 %v1492, %v1496
      %v1498 = vshll.u32 %v1409, 16
      %v1500 = vrot.slane %v1498, 1
      %v1501 = vsel %vm435, %v1497, %v1500
      %v1502 = vshrl.u32 %v698, 16
      %v1504 = vshll.u32 %v698, 16
      %v1506 = vrot.slane %v1504, 1
      %v1507 = vor.u32 %v1502, %v1506
      %v1508 = vshll.u32 %v1411, 16
      %v1510 = vrot.slane %v1508, 1
      %v1511 = vsel %vm435, %v1507, %v1510
      %s1512 = scalar_lea.vmem %s1, 32
      %v1513 = vld [vmem:[%s1512] sm:$0xf]
      %v1514 = vld [vmem:[%s1512 + $0x4] sm:$0xf]
      %v1515 = vld [vmem:[%s1512 + $0x8] sm:$0xf]
      %v1516 = vld [vmem:[%s1512 + $0xc] sm:$0xf]
      %v1517 = vld [vmem:[%s1512 + $0x10] sm:$0xf]
      %v1518 = vld [vmem:[%s1512 + $0x14] sm:$0xf]
      %v1519 = vld [vmem:[%s1512 + $0x18] sm:$0xf]
      %v1520 = vld [vmem:[%s1512 + $0x1c] sm:$0xf]
      %v1529 = vunpack.c.l.b16 %v1513
      %v1530 = vunpack.c.l.b16 %v1514
      %v1531 = vunpack.c.l.b16 %v1515
      %v1532 = vunpack.c.l.b16 %v1516
      %v1533 = vunpack.c.l.b16 %v1517
      %v1534 = vunpack.c.l.b16 %v1518
      %v1535 = vunpack.c.l.b16 %v1519
      %v1536 = vunpack.c.l.b16 %v1520
      %v1537 = vpack.c.b16 %v1530, %v1529
      %v1538 = vpack.c.b16 %v1532, %v1531
      %v1539 = vpack.c.b16 %v1534, %v1533
      %v1540 = vpack.c.b16 %v1536, %v1535
      %v1546 = vsel %vm731, %v1421, 0
      %v1549 = vsel %vm731, %v1431, 0
      %v1552 = vsel %vm731, %v1441, 0
      %v1555 = vsel %vm731, %v1451, 0
      %v1558 = vsel %vm731, %v1461, 0
      %v1561 = vsel %vm731, %v1471, 0
      %v1564 = vsel %vm731, %v1481, 0
      %v1567 = vsel %vm731, %v1491, 0
      %v1570 = vsel %vm731, %v1501, 0
      %v1573 = vsel %vm731, %v1511, 0
      %1575 = vmatpush.bf16.msra.mxu0 0
      %1576 = vmatpush.bf16.msra.mxu0 0
      %1577 = vmatpush.bf16.msra.mxu0 0
      %1578 = vmatpush.bf16.msra.mxu0 0
      %1579 = vmatpush.bf16.msra.mxu0 %v1540
      %1580 = vmatpush.bf16.msra.mxu0 %v1539
      %1581 = vmatpush.bf16.msra.mxu0 %v1538
      %1582 = vmatpush.bf16.msra.mxu0 %v1537
      %1583 = vmatmul.bf16.gmra.mxu0 %v1546
      %v1584 = vpop.f32.mrf.mxu0
      %v1585 = vadd.f32 0.0, %v1584
      %v1586 = vpop.f32.mrf.mxu0
      %v1587 = vadd.f32 0.0, %v1586
      %1588 = vmatmul.bf16.gmra.mxu0 %v1549
      %v1589 = vpop.f32.mrf.mxu0
      %v1590 = vadd.f32 0.0, %v1589
      %v1591 = vpop.f32.mrf.mxu0
      %v1592 = vadd.f32 0.0, %v1591
      %1593 = vmatmul.bf16.gmra.mxu0 %v1552
      %v1594 = vpop.f32.mrf.mxu0
      %v1595 = vadd.f32 0.0, %v1594
      %v1596 = vpop.f32.mrf.mxu0
      %v1597 = vadd.f32 0.0, %v1596
      %1598 = vmatmul.bf16.gmra.mxu0 %v1555
      %v1599 = vpop.f32.mrf.mxu0
      %v1600 = vadd.f32 0.0, %v1599
      %v1601 = vpop.f32.mrf.mxu0
      %v1602 = vadd.f32 0.0, %v1601
      %1603 = vmatmul.bf16.gmra.mxu0 %v1558
      %v1604 = vpop.f32.mrf.mxu0
      %v1605 = vadd.f32 0.0, %v1604
      %v1606 = vpop.f32.mrf.mxu0
      %v1607 = vadd.f32 0.0, %v1606
      %1608 = vmatmul.bf16.gmra.mxu0 %v1561
      %v1609 = vpop.f32.mrf.mxu0
      %v1610 = vadd.f32 0.0, %v1609
      %v1611 = vpop.f32.mrf.mxu0
      %v1612 = vadd.f32 0.0, %v1611
      %1613 = vmatmul.bf16.gmra.mxu0 %v1564
      %v1614 = vpop.f32.mrf.mxu0
      %v1615 = vadd.f32 0.0, %v1614
      %v1616 = vpop.f32.mrf.mxu0
      %v1617 = vadd.f32 0.0, %v1616
      %1618 = vmatmul.bf16.gmra.mxu0 %v1567
      %v1619 = vpop.f32.mrf.mxu0
      %v1620 = vadd.f32 0.0, %v1619
      %v1621 = vpop.f32.mrf.mxu0
      %v1622 = vadd.f32 0.0, %v1621
      %1623 = vmatmul.bf16.gmra.mxu0 %v1570
      %v1624 = vpop.f32.mrf.mxu0
      %v1625 = vadd.f32 0.0, %v1624
      %v1626 = vpop.f32.mrf.mxu0
      %v1627 = vadd.f32 0.0, %v1626
      %1628 = vmatmul.bf16.gmra.mxu0 %v1573
      %v1629 = vpop.f32.mrf.mxu0
      %v1630 = vadd.f32 0.0, %v1629
      %v1631 = vpop.f32.mrf.mxu0
      %v1632 = vadd.f32 0.0, %v1631
      %1633 = vdwg.mxu0
      %v1634 = vmul.f32 %v1585, %v812
      %v1635 = vmul.f32 %v1587, %v812
      %v1636 = vmul.f32 %v1590, %v812
      %v1637 = vmul.f32 %v1592, %v812
      %v1638 = vmul.f32 %v1595, %v812
      %v1639 = vmul.f32 %v1597, %v812
      %v1640 = vmul.f32 %v1600, %v812
      %v1641 = vmul.f32 %v1602, %v812
      %v1642 = vmul.f32 %v1605, %v812
      %v1643 = vmul.f32 %v1607, %v812
      %v1644 = vmul.f32 %v1610, %v812
      %v1645 = vmul.f32 %v1612, %v812
      %v1646 = vmul.f32 %v1615, %v812
      %v1647 = vmul.f32 %v1617, %v812
      %v1648 = vmul.f32 %v1620, %v812
      %v1649 = vmul.f32 %v1622, %v812
      %v1650 = vmul.f32 %v1625, %v812
      %v1651 = vmul.f32 %v1627, %v812
      %v1652 = vmul.f32 %v1630, %v812
      %v1653 = vmul.f32 %v1632, %v812
      %v1654 = vadd.f32 %v1634, %v835
      %v1655 = vadd.f32 %v1635, %v835
      %v1656 = vadd.f32 %v1636, %v835
      %v1657 = vadd.f32 %v1637, %v835
      %v1658 = vadd.f32 %v1638, %v835
      %v1659 = vadd.f32 %v1639, %v835
      %v1660 = vadd.f32 %v1640, %v835
      %v1661 = vadd.f32 %v1641, %v835
      %v1662 = vadd.f32 %v1642, %v835
      %v1663 = vadd.f32 %v1643, %v835
      %v1664 = vadd.f32 %v1644, %v835
      %v1665 = vadd.f32 %v1645, %v835
      %v1666 = vadd.f32 %v1646, %v835
      %v1667 = vadd.f32 %v1647, %v835
      %v1668 = vadd.f32 %v1648, %v835
      %v1669 = vadd.f32 %v1649, %v835
      %v1670 = vadd.f32 %v1650, %v835
      %v1671 = vadd.f32 %v1651, %v835
      %v1672 = vadd.f32 %v1652, %v835
      %v1673 = vadd.f32 %v1653, %v835
      %v1674 = vmax.f32 %v1654, 0.0
      %v1675 = vmax.f32 %v1655, 0.0
      %v1676 = vmax.f32 %v1656, 0.0
      %v1677 = vmax.f32 %v1657, 0.0
      %v1678 = vmax.f32 %v1658, 0.0
      %v1679 = vmax.f32 %v1659, 0.0
      %v1680 = vmax.f32 %v1660, 0.0
      %v1681 = vmax.f32 %v1661, 0.0
      %v1682 = vmax.f32 %v1662, 0.0
      %v1683 = vmax.f32 %v1663, 0.0
      %v1684 = vmax.f32 %v1664, 0.0
      %v1685 = vmax.f32 %v1665, 0.0
      %v1686 = vmax.f32 %v1666, 0.0
      %v1687 = vmax.f32 %v1667, 0.0
      %v1688 = vmax.f32 %v1668, 0.0
      %v1689 = vmax.f32 %v1669, 0.0
      %v1690 = vmax.f32 %v1670, 0.0
      %v1691 = vmax.f32 %v1671, 0.0
      %v1692 = vmax.f32 %v1672, 0.0
      %v1693 = vmax.f32 %v1673, 0.0
      %v1694 = vpack.c.bf16 %v1674, %v1674
      %v1695 = vpack.c.bf16 %v1675, %v1675
      %v1696 = vpack.c.bf16 %v1676, %v1676
      %v1697 = vpack.c.bf16 %v1677, %v1677
      %v1698 = vpack.c.bf16 %v1678, %v1678
      %v1699 = vpack.c.bf16 %v1679, %v1679
      %v1700 = vpack.c.bf16 %v1680, %v1680
      %v1701 = vpack.c.bf16 %v1681, %v1681
      %v1702 = vpack.c.bf16 %v1682, %v1682
      %v1703 = vpack.c.bf16 %v1683, %v1683
      %v1704 = vpack.c.bf16 %v1684, %v1684
      %v1705 = vpack.c.bf16 %v1685, %v1685
      %v1706 = vpack.c.bf16 %v1686, %v1686
      %v1707 = vpack.c.bf16 %v1687, %v1687
      %v1708 = vpack.c.bf16 %v1688, %v1688
      %v1709 = vpack.c.bf16 %v1689, %v1689
      %v1710 = vpack.c.bf16 %v1690, %v1690
      %v1711 = vpack.c.bf16 %v1691, %v1691
      %v1712 = vpack.c.bf16 %v1692, %v1692
      %v1713 = vpack.c.bf16 %v1693, %v1693
      %v1715 = vshrl.u32 %v1694, 16
      %v1717 = vrot.slane %v1715, 7
      %v1718 = vshll.u32 %v1694, 16
      %v1720 = vor.u32 %v1717, %v1718
      %v1721 = vrot.slane %v1717, 4
      %v1723 = vshrl.u32 %v1695, 16
      %v1725 = vrot.slane %v1723, 7
      %v1726 = vshll.u32 %v1695, 16
      %v1728 = vor.u32 %v1725, %v1726
      %v1729 = vsel %vm899, %v1721, %v1728
      %v1730 = vrot.slane %v1725, 4
      %v1732 = vshrl.u32 %v1696, 16
      %v1734 = vrot.slane %v1732, 7
      %v1735 = vshll.u32 %v1696, 16
      %v1737 = vor.u32 %v1734, %v1735
      %v1738 = vrot.slane %v1734, 4
      %v1740 = vshrl.u32 %v1697, 16
      %v1742 = vrot.slane %v1740, 7
      %v1743 = vshll.u32 %v1697, 16
      %v1745 = vor.u32 %v1742, %v1743
      %v1746 = vsel %vm899, %v1738, %v1745
      %v1747 = vrot.slane %v1742, 4
      %v1749 = vshrl.u32 %v1698, 16
      %v1751 = vrot.slane %v1749, 7
      %v1752 = vshll.u32 %v1698, 16
      %v1754 = vor.u32 %v1751, %v1752
      %v1755 = vrot.slane %v1751, 4
      %v1757 = vshrl.u32 %v1699, 16
      %v1759 = vrot.slane %v1757, 7
      %v1760 = vshll.u32 %v1699, 16
      %v1762 = vor.u32 %v1759, %v1760
      %v1763 = vsel %vm899, %v1755, %v1762
      %v1764 = vrot.slane %v1759, 4
      %v1766 = vshrl.u32 %v1700, 16
      %v1768 = vrot.slane %v1766, 7
      %v1769 = vshll.u32 %v1700, 16
      %v1771 = vor.u32 %v1768, %v1769
      %v1772 = vrot.slane %v1768, 4
      %v1774 = vshrl.u32 %v1701, 16
      %v1776 = vrot.slane %v1774, 7
      %v1777 = vshll.u32 %v1701, 16
      %v1779 = vor.u32 %v1776, %v1777
      %v1780 = vsel %vm899, %v1772, %v1779
      %v1781 = vrot.slane %v1776, 4
      %v1783 = vshrl.u32 %v1702, 16
      %v1785 = vrot.slane %v1783, 7
      %v1786 = vshll.u32 %v1702, 16
      %v1788 = vor.u32 %v1785, %v1786
      %v1789 = vrot.slane %v1785, 4
      %v1791 = vshrl.u32 %v1703, 16
      %v1793 = vrot.slane %v1791, 7
      %v1794 = vshll.u32 %v1703, 16
      %v1796 = vor.u32 %v1793, %v1794
      %v1797 = vsel %vm899, %v1789, %v1796
      %v1798 = vrot.slane %v1793, 4
      %v1800 = vshrl.u32 %v1704, 16
      %v1802 = vrot.slane %v1800, 7
      %v1803 = vshll.u32 %v1704, 16
      %v1805 = vor.u32 %v1802, %v1803
      %v1806 = vrot.slane %v1802, 4
      %v1808 = vshrl.u32 %v1705, 16
      %v1810 = vrot.slane %v1808, 7
      %v1811 = vshll.u32 %v1705, 16
      %v1813 = vor.u32 %v1810, %v1811
      %v1814 = vsel %vm899, %v1806, %v1813
      %v1815 = vrot.slane %v1810, 4
      %v1817 = vshrl.u32 %v1706, 16
      %v1819 = vrot.slane %v1817, 7
      %v1820 = vshll.u32 %v1706, 16
      %v1822 = vor.u32 %v1819, %v1820
      %v1823 = vrot.slane %v1819, 4
      %v1825 = vshrl.u32 %v1707, 16
      %v1827 = vrot.slane %v1825, 7
      %v1828 = vshll.u32 %v1707, 16
      %v1830 = vor.u32 %v1827, %v1828
      %v1831 = vsel %vm899, %v1823, %v1830
      %v1832 = vrot.slane %v1827, 4
      %v1834 = vshrl.u32 %v1708, 16
      %v1836 = vrot.slane %v1834, 7
      %v1837 = vshll.u32 %v1708, 16
      %v1839 = vor.u32 %v1836, %v1837
      %v1840 = vrot.slane %v1836, 4
      %v1842 = vshrl.u32 %v1709, 16
      %v1844 = vrot.slane %v1842, 7
      %v1845 = vshll.u32 %v1709, 16
      %v1847 = vor.u32 %v1844, %v1845
      %v1848 = vsel %vm899, %v1840, %v1847
      %v1849 = vrot.slane %v1844, 4
      %v1851 = vshrl.u32 %v1710, 16
      %v1853 = vrot.slane %v1851, 7
      %v1854 = vshll.u32 %v1710, 16
      %v1856 = vor.u32 %v1853, %v1854
      %v1857 = vrot.slane %v1853, 4
      %v1859 = vshrl.u32 %v1711, 16
      %v1861 = vrot.slane %v1859, 7
      %v1862 = vshll.u32 %v1711, 16
      %v1864 = vor.u32 %v1861, %v1862
      %v1865 = vsel %vm899, %v1857, %v1864
      %v1866 = vrot.slane %v1861, 4
      %v1868 = vshrl.u32 %v1712, 16
      %v1870 = vrot.slane %v1868, 7
      %v1871 = vshll.u32 %v1712, 16
      %v1873 = vor.u32 %v1870, %v1871
      %v1874 = vrot.slane %v1870, 4
      %v1876 = vshrl.u32 %v1713, 16
      %v1878 = vrot.slane %v1876, 7
      %v1879 = vshll.u32 %v1713, 16
      %v1881 = vor.u32 %v1878, %v1879
      %v1882 = vsel %vm899, %v1874, %v1881
      %v1883 = vrot.slane %v1878, 4
      %s1914 = scalar_lea.vmem [#allocation2], 120
      %v1915 = vld [vmem:[%s1914] sm:$0xf]
      %v1916 = vsel %vm1102, %v1720, %v1915
      %1917 = vst [vmem:[%s1914] sm:$0xf] %v1916
      %1918 = vst.msk [vmem:[%s1914 + $0x4] sm:$0xf] %vm1106, %v1729
      %v1919 = vld [vmem:[%s1914 + $0x8] sm:$0x1]
      %v1920 = vsel %vm1109, %v1730, %v1919
      %1921 = vst [vmem:[%s1914 + $0x8] sm:$0x1] %v1920
      %v1922 = vld [vmem:[%s1914 + $0xc] sm:$0xf]
      %v1923 = vsel %vm1102, %v1737, %v1922
      %1924 = vst [vmem:[%s1914 + $0xc] sm:$0xf] %v1923
      %1925 = vst.msk [vmem:[%s1914 + $0x10] sm:$0xf] %vm1106, %v1746
      %v1926 = vld [vmem:[%s1914 + $0x14] sm:$0x1]
      %v1927 = vsel %vm1109, %v1747, %v1926
      %1928 = vst [vmem:[%s1914 + $0x14] sm:$0x1] %v1927
      %v1929 = vld [vmem:[%s1914 + $0x18] sm:$0xf]
      %v1930 = vsel %vm1102, %v1754, %v1929
      %1931 = vst [vmem:[%s1914 + $0x18] sm:$0xf] %v1930
      %1932 = vst.msk [vmem:[%s1914 + $0x1c] sm:$0xf] %vm1106, %v1763
      %v1933 = vld [vmem:[%s1914 + $0x20] sm:$0x1]
      %v1934 = vsel %vm1109, %v1764, %v1933
      %1935 = vst [vmem:[%s1914 + $0x20] sm:$0x1] %v1934
      %v1936 = vld [vmem:[%s1914 + $0x24] sm:$0xf]
      %v1937 = vsel %vm1102, %v1771, %v1936
      %1938 = vst [vmem:[%s1914 + $0x24] sm:$0xf] %v1937
      %1939 = vst.msk [vmem:[%s1914 + $0x28] sm:$0xf] %vm1106, %v1780
      %v1940 = vld [vmem:[%s1914 + $0x2c] sm:$0x1]
      %v1941 = vsel %vm1109, %v1781, %v1940
      %1942 = vst [vmem:[%s1914 + $0x2c] sm:$0x1] %v1941
      %v1943 = vld [vmem:[%s1914 + $0x30] sm:$0xf]
      %v1944 = vsel %vm1102, %v1788, %v1943
      %1945 = vst [vmem:[%s1914 + $0x30] sm:$0xf] %v1944
      %1946 = vst.msk [vmem:[%s1914 + $0x34] sm:$0xf] %vm1106, %v1797
      %v1947 = vld [vmem:[%s1914 + $0x38] sm:$0x1]
      %v1948 = vsel %vm1109, %v1798, %v1947
      %1949 = vst [vmem:[%s1914 + $0x38] sm:$0x1] %v1948
      %v1950 = vld [vmem:[%s1914 + $0x3c] sm:$0xf]
      %v1951 = vsel %vm1102, %v1805, %v1950
      %1952 = vst [vmem:[%s1914 + $0x3c] sm:$0xf] %v1951
      %1953 = vst.msk [vmem:[%s1914 + $0x40] sm:$0xf] %vm1106, %v1814
      %v1954 = vld [vmem:[%s1914 + $0x44] sm:$0x1]
      %v1955 = vsel %vm1109, %v1815, %v1954
      %1956 = vst [vmem:[%s1914 + $0x44] sm:$0x1] %v1955
      %v1957 = vld [vmem:[%s1914 + $0x48] sm:$0xf]
      %v1958 = vsel %vm1102, %v1822, %v1957
      %1959 = vst [vmem:[%s1914 + $0x48] sm:$0xf] %v1958
      %1960 = vst.msk [vmem:[%s1914 + $0x4c] sm:$0xf] %vm1106, %v1831
      %v1961 = vld [vmem:[%s1914 + $0x50] sm:$0x1]
      %v1962 = vsel %vm1109, %v1832, %v1961
      %1963 = vst [vmem:[%s1914 + $0x50] sm:$0x1] %v1962
      %v1964 = vld [vmem:[%s1914 + $0x54] sm:$0xf]
      %v1965 = vsel %vm1102, %v1839, %v1964
      %1966 = vst [vmem:[%s1914 + $0x54] sm:$0xf] %v1965
      %1967 = vst.msk [vmem:[%s1914 + $0x58] sm:$0xf] %vm1106, %v1848
      %v1968 = vld [vmem:[%s1914 + $0x5c] sm:$0x1]
      %v1969 = vsel %vm1109, %v1849, %v1968
      %1970 = vst [vmem:[%s1914 + $0x5c] sm:$0x1] %v1969
      %v1971 = vld [vmem:[%s1914 + $0x60] sm:$0xf]
      %v1972 = vsel %vm1102, %v1856, %v1971
      %1973 = vst [vmem:[%s1914 + $0x60] sm:$0xf] %v1972
      %1974 = vst.msk [vmem:[%s1914 + $0x64] sm:$0xf] %vm1106, %v1865
      %v1975 = vld [vmem:[%s1914 + $0x68] sm:$0x1]
      %v1976 = vsel %vm1109, %v1866, %v1975
      %1977 = vst [vmem:[%s1914 + $0x68] sm:$0x1] %v1976
      %v1978 = vld [vmem:[%s1914 + $0x6c] sm:$0xf]
      %v1979 = vsel %vm1102, %v1873, %v1978
      %1980 = vst [vmem:[%s1914 + $0x6c] sm:$0xf] %v1979
      %1981 = vst.msk [vmem:[%s1914 + $0x70] sm:$0xf] %vm1106, %v1882
      %v1982 = vld [vmem:[%s1914 + $0x74] sm:$0x1]
      %v1983 = vsel %vm1109, %v1883, %v1982
      %1984 = vst [vmem:[%s1914 + $0x74] sm:$0x1] %v1983
      %v1985 = vld [vmem:[%s1914] sm:$0x1]
      %v1986 = vsel %vm1109, 0, %v1985
      %1987 = vst [vmem:[%s1914] sm:$0x1] %v1986
      %v1988 = vld [vmem:[%s1914 + $0xc] sm:$0x1]
      %v1989 = vsel %vm1109, 0, %v1988
      %1990 = vst [vmem:[%s1914 + $0xc] sm:$0x1] %v1989
      %v1991 = vld [vmem:[%s1914 + $0x18] sm:$0x1]
      %v1992 = vsel %vm1109, 0, %v1991
      %1993 = vst [vmem:[%s1914 + $0x18] sm:$0x1] %v1992
      %v1994 = vld [vmem:[%s1914 + $0x24] sm:$0x1]
      %v1995 = vsel %vm1109, 0, %v1994
      %1996 = vst [vmem:[%s1914 + $0x24] sm:$0x1] %v1995
      %v1997 = vld [vmem:[%s1914 + $0x30] sm:$0x1]
      %v1998 = vsel %vm1109, 0, %v1997
      %1999 = vst [vmem:[%s1914 + $0x30] sm:$0x1] %v1998
      %v2000 = vld [vmem:[%s1914 + $0x3c] sm:$0x1]
      %v2001 = vsel %vm1109, 0, %v2000
      %2002 = vst [vmem:[%s1914 + $0x3c] sm:$0x1] %v2001
      %v2003 = vld [vmem:[%s1914 + $0x48] sm:$0x1]
      %v2004 = vsel %vm1109, 0, %v2003
      %2005 = vst [vmem:[%s1914 + $0x48] sm:$0x1] %v2004
      %v2006 = vld [vmem:[%s1914 + $0x54] sm:$0x1]
      %v2007 = vsel %vm1109, 0, %v2006
      %2008 = vst [vmem:[%s1914 + $0x54] sm:$0x1] %v2007
      %v2009 = vld [vmem:[%s1914 + $0x60] sm:$0x1]
      %v2010 = vsel %vm1109, 0, %v2009
      %2011 = vst [vmem:[%s1914 + $0x60] sm:$0x1] %v2010
      %v2012 = vld [vmem:[%s1914 + $0x6c] sm:$0x1]
      %v2013 = vsel %vm1109, 0, %v2012
      %2014 = vst [vmem:[%s1914 + $0x6c] sm:$0x1] %v2013
      %v2015 = vld [vmem:[%s1914 + $0x8] sm:$0x1]
      %v2016 = vsel %vm1206, 0, %v2015
      %2017 = vst [vmem:[%s1914 + $0x8] sm:$0x1] %v2016
      %v2018 = vld [vmem:[%s1914 + $0x14] sm:$0x1]
      %v2019 = vsel %vm1206, 0, %v2018
      %2020 = vst [vmem:[%s1914 + $0x14] sm:$0x1] %v2019
      %v2021 = vld [vmem:[%s1914 + $0x20] sm:$0x1]
      %v2022 = vsel %vm1206, 0, %v2021
      %2023 = vst [vmem:[%s1914 + $0x20] sm:$0x1] %v2022
      %v2024 = vld [vmem:[%s1914 + $0x2c] sm:$0x1]
      %v2025 = vsel %vm1206, 0, %v2024
      %2026 = vst [vmem:[%s1914 + $0x2c] sm:$0x1] %v2025
      %v2027 = vld [vmem:[%s1914 + $0x38] sm:$0x1]
      %v2028 = vsel %vm1206, 0, %v2027
      %2029 = vst [vmem:[%s1914 + $0x38] sm:$0x1] %v2028
      %v2030 = vld [vmem:[%s1914 + $0x44] sm:$0x1]
      %v2031 = vsel %vm1206, 0, %v2030
      %2032 = vst [vmem:[%s1914 + $0x44] sm:$0x1] %v2031
      %v2033 = vld [vmem:[%s1914 + $0x50] sm:$0x1]
      %v2034 = vsel %vm1206, 0, %v2033
      %2035 = vst [vmem:[%s1914 + $0x50] sm:$0x1] %v2034
      %v2036 = vld [vmem:[%s1914 + $0x5c] sm:$0x1]
      %v2037 = vsel %vm1206, 0, %v2036
      %2038 = vst [vmem:[%s1914 + $0x5c] sm:$0x1] %v2037
      %v2039 = vld [vmem:[%s1914 + $0x68] sm:$0x1]
      %v2040 = vsel %vm1206, 0, %v2039
      %2041 = vst [vmem:[%s1914 + $0x68] sm:$0x1] %v2040
      %v2042 = vld [vmem:[%s1914 + $0x74] sm:$0x1]
      %v2043 = vsel %vm1206, 0, %v2042
      %2044 = vst [vmem:[%s1914 + $0x74] sm:$0x1] %v2043
      // Predicated region
      $region57: #{upconvblock_forward.1} parent=47 // pred_check
        %p2045 = pneg %p1237
      $region58: #{upconvblock_forward.1} parent=47 // pred_check_branch
        %2047 = sbr.rel (%p2045) target = $region60
      $region59: #{upconvblock_forward.1} parent=47 // pred_region
        %2048 = vst.msk [vmem:[%s1914] sm:$0xf] %vm1106, 0
        %2049 = vst.msk [vmem:[%s1914 + $0x4] sm:$0xf] %vm1106, 0
        %vm2050 = vcmask 122880
        %2051 = vst.msk [vmem:[%s1914 + $0x8] sm:$0x1] %vm2050, 0
      $region60: #{upconvblock_forward.1} parent=47 // pred_fallthru
        _
      // Predicated region
      $region61: #{upconvblock_forward.1} parent=47 // pred_check
        %p2052 = pneg %p1245
      $region62: #{upconvblock_forward.1} parent=47 // pred_check_branch
        %2054 = sbr.rel (%p2052) target = $region64
      $region63: #{upconvblock_forward.1} parent=47 // pred_region
        %s2055 = scalar_lea.vmem [#allocation2], 228
        %2056 = vst.msk [vmem:[%s2055] sm:$0xf] %vm1106, 0
        %2057 = vst.msk [vmem:[%s2055 + $0x4] sm:$0xf] %vm1106, 0
        %vm2058 = vcmask 122880
        %2059 = vst.msk [vmem:[%s2055 + $0x8] sm:$0x1] %vm2058, 0
      $region64: #{upconvblock_forward.1} parent=47 // pred_fallthru
        _
      %v2060 = vpack.c.bf16 %v1656, %v1656
      %v2061 = vpack.c.bf16 %v1657, %v1657
      %v2062 = vpack.c.bf16 %v1658, %v1658
      %v2063 = vpack.c.bf16 %v1659, %v1659
      %v2064 = vpack.c.bf16 %v1660, %v1660
      %v2065 = vpack.c.bf16 %v1661, %v1661
      %v2066 = vpack.c.bf16 %v1662, %v1662
      %v2067 = vpack.c.bf16 %v1663, %v1663
      %v2068 = vpack.c.bf16 %v1664, %v1664
      %v2069 = vpack.c.bf16 %v1665, %v1665
      %v2070 = vpack.c.bf16 %v1666, %v1666
      %v2071 = vpack.c.bf16 %v1667, %v1667
      %v2072 = vpack.c.bf16 %v1668, %v1668
      %v2073 = vpack.c.bf16 %v1669, %v1669
      %v2074 = vpack.c.bf16 %v1670, %v1670
      %v2075 = vpack.c.bf16 %v1671, %v1671
      %2076 = vrot.lane.b32.xlu0 %v615, 16
      %v2077 = vpop.permute.xlu0 %2076
      %v2080 = vunpack.c.l.b16 %v350
      %v2081 = vunpack.c.l.b16 %v351
      %v2082 = vpack.c.b16 %v2081, %v2080
      %2083 = vrot.lane.b32.xlu0 %v2082, 32
      %v2084 = vpop.permute.xlu0 %2083
      %v2086 = vunpack.c.l.b16 %v352
      %v2087 = vpack.c.b16 %v2086, %v2086
      %v2089 = vshrl.u32 %v2082, 16
      %v2091 = vshll.u32 %v2082, 16
      %v2093 = vrot.slane %v2091, 1
      %v2094 = vor.u32 %v2089, %v2093
      %v2096 = vshll.u32 %v2087, 16
      %v2098 = vrot.slane %v2096, 1
      %v2099 = vsel %vm435, %v2094, %v2098
      %2100 = vrot.lane.b32.xlu0 %v2099, 48
      %v2101 = vpop.permute.xlu0 %2100
      %v2103 = vsel %vm636, %v580, %v2077
      %v2105 = vsel %vm657, %v2103, %v2084
      %v2107 = vsel %vm678, %v2105, %v2101
      %s2108 = scalar_lea.vmem %s1, 64
      %v2109 = vld [vmem:[%s2108] sm:$0xf]
      %v2110 = vld [vmem:[%s2108 + $0x4] sm:$0xf]
      %v2111 = vld [vmem:[%s2108 + $0x8] sm:$0xf]
      %v2112 = vld [vmem:[%s2108 + $0xc] sm:$0xf]
      %v2113 = vld [vmem:[%s2108 + $0x10] sm:$0xf]
      %v2114 = vld [vmem:[%s2108 + $0x14] sm:$0xf]
      %v2115 = vld [vmem:[%s2108 + $0x18] sm:$0xf]
      %v2116 = vld [vmem:[%s2108 + $0x1c] sm:$0xf]
      %v2125 = vunpack.c.l.b16 %v2109
      %v2126 = vunpack.c.l.b16 %v2110
      %v2127 = vunpack.c.l.b16 %v2111
      %v2128 = vunpack.c.l.b16 %v2112
      %v2129 = vunpack.c.l.b16 %v2113
      %v2130 = vunpack.c.l.b16 %v2114
      %v2131 = vunpack.c.l.b16 %v2115
      %v2132 = vunpack.c.l.b16 %v2116
      %v2133 = vpack.c.b16 %v2126, %v2125
      %v2134 = vpack.c.b16 %v2128, %v2127
      %v2135 = vpack.c.b16 %v2130, %v2129
      %v2136 = vpack.c.b16 %v2132, %v2131
      %v2141 = vsel %vm731, %v2107, 0
      %2143 = vmatpush.bf16.msra.mxu0 0
      %2144 = vmatpush.bf16.msra.mxu0 0
      %2145 = vmatpush.bf16.msra.mxu0 0
      %2146 = vmatpush.bf16.msra.mxu0 0
      %2147 = vmatpush.bf16.msra.mxu0 %v2136
      %2148 = vmatpush.bf16.msra.mxu0 %v2135
      %2149 = vmatpush.bf16.msra.mxu0 %v2134
      %2150 = vmatpush.bf16.msra.mxu0 %v2133
      %2151 = vmatmul.bf16.gmra.mxu0 %v734
      %v2152 = vpop.f32.mrf.mxu0
      %v2153 = vadd.f32 0.0, %v2152
      %v2154 = vpop.f32.mrf.mxu0
      %v2155 = vadd.f32 0.0, %v2154
      %2156 = vmatmul.bf16.gmra.mxu0 %v736
      %v2157 = vpop.f32.mrf.mxu0
      %v2158 = vadd.f32 0.0, %v2157
      %v2159 = vpop.f32.mrf.mxu0
      %v2160 = vadd.f32 0.0, %v2159
      %2161 = vmatmul.bf16.gmra.mxu0 %v738
      %v2162 = vpop.f32.mrf.mxu0
      %v2163 = vadd.f32 0.0, %v2162
      %v2164 = vpop.f32.mrf.mxu0
      %v2165 = vadd.f32 0.0, %v2164
      %2166 = vmatmul.bf16.gmra.mxu0 %v740
      %v2167 = vpop.f32.mrf.mxu0
      %v2168 = vadd.f32 0.0, %v2167
      %v2169 = vpop.f32.mrf.mxu0
      %v2170 = vadd.f32 0.0, %v2169
      %2171 = vmatmul.bf16.gmra.mxu0 %v742
      %v2172 = vpop.f32.mrf.mxu0
      %v2173 = vadd.f32 0.0, %v2172
      %v2174 = vpop.f32.mrf.mxu0
      %v2175 = vadd.f32 0.0, %v2174
      %2176 = vmatmul.bf16.gmra.mxu0 %v744
      %v2177 = vpop.f32.mrf.mxu0
      %v2178 = vadd.f32 0.0, %v2177
      %v2179 = vpop.f32.mrf.mxu0
      %v2180 = vadd.f32 0.0, %v2179
      %2181 = vmatmul.bf16.gmra.mxu0 %v746
      %v2182 = vpop.f32.mrf.mxu0
      %v2183 = vadd.f32 0.0, %v2182
      %v2184 = vpop.f32.mrf.mxu0
      %v2185 = vadd.f32 0.0, %v2184
      %2186 = vmatmul.bf16.gmra.mxu0 %v748
      %v2187 = vpop.f32.mrf.mxu0
      %v2188 = vadd.f32 0.0, %v2187
      %v2189 = vpop.f32.mrf.mxu0
      %v2190 = vadd.f32 0.0, %v2189
      %2191 = vmatmul.bf16.gmra.mxu0 %v750
      %v2192 = vpop.f32.mrf.mxu0
      %v2193 = vadd.f32 0.0, %v2192
      %v2194 = vpop.f32.mrf.mxu0
      %v2195 = vadd.f32 0.0, %v2194
      %2196 = vmatmul.bf16.gmra.mxu0 %v2141
      %v2197 = vpop.f32.mrf.mxu0
      %v2198 = vadd.f32 0.0, %v2197
      %v2199 = vpop.f32.mrf.mxu0
      %v2200 = vadd.f32 0.0, %v2199
      %2201 = vdwg.mxu0
      %v2202 = vmul.f32 %v2153, %v812
      %v2203 = vmul.f32 %v2155, %v812
      %v2204 = vmul.f32 %v2158, %v812
      %v2205 = vmul.f32 %v2160, %v812
      %v2206 = vmul.f32 %v2163, %v812
      %v2207 = vmul.f32 %v2165, %v812
      %v2208 = vmul.f32 %v2168, %v812
      %v2209 = vmul.f32 %v2170, %v812
      %v2210 = vmul.f32 %v2173, %v812
      %v2211 = vmul.f32 %v2175, %v812
      %v2212 = vmul.f32 %v2178, %v812
      %v2213 = vmul.f32 %v2180, %v812
      %v2214 = vmul.f32 %v2183, %v812
      %v2215 = vmul.f32 %v2185, %v812
      %v2216 = vmul.f32 %v2188, %v812
      %v2217 = vmul.f32 %v2190, %v812
      %v2218 = vmul.f32 %v2193, %v812
      %v2219 = vmul.f32 %v2195, %v812
      %v2220 = vmul.f32 %v2198, %v812
      %v2221 = vmul.f32 %v2200, %v812
      %v2222 = vadd.f32 %v2202, %v835
      %v2223 = vadd.f32 %v2203, %v835
      %v2224 = vadd.f32 %v2204, %v835
      %v2225 = vadd.f32 %v2205, %v835
      %v2226 = vadd.f32 %v2206, %v835
      %v2227 = vadd.f32 %v2207, %v835
      %v2228 = vadd.f32 %v2208, %v835
      %v2229 = vadd.f32 %v2209, %v835
      %v2230 = vadd.f32 %v2210, %v835
      %v2231 = vadd.f32 %v2211, %v835
      %v2232 = vadd.f32 %v2212, %v835
      %v2233 = vadd.f32 %v2213, %v835
      %v2234 = vadd.f32 %v2214, %v835
      %v2235 = vadd.f32 %v2215, %v835
      %v2236 = vadd.f32 %v2216, %v835
      %v2237 = vadd.f32 %v2217, %v835
      %v2238 = vadd.f32 %v2218, %v835
      %v2239 = vadd.f32 %v2219, %v835
      %v2240 = vadd.f32 %v2220, %v835
      %v2241 = vadd.f32 %v2221, %v835
      %v2242 = vmax.f32 %v2222, 0.0
      %v2243 = vmax.f32 %v2223, 0.0
      %v2244 = vmax.f32 %v2224, 0.0
      %v2245 = vmax.f32 %v2225, 0.0
      %v2246 = vmax.f32 %v2226, 0.0
      %v2247 = vmax.f32 %v2227, 0.0
      %v2248 = vmax.f32 %v2228, 0.0
      %v2249 = vmax.f32 %v2229, 0.0
      %v2250 = vmax.f32 %v2230, 0.0
      %v2251 = vmax.f32 %v2231, 0.0
      %v2252 = vmax.f32 %v2232, 0.0
      %v2253 = vmax.f32 %v2233, 0.0
      %v2254 = vmax.f32 %v2234, 0.0
      %v2255 = vmax.f32 %v2235, 0.0
      %v2256 = vmax.f32 %v2236, 0.0
      %v2257 = vmax.f32 %v2237, 0.0
      %v2258 = vmax.f32 %v2238, 0.0
      %v2259 = vmax.f32 %v2239, 0.0
      %v2260 = vmax.f32 %v2240, 0.0
      %v2261 = vmax.f32 %v2241, 0.0
      %v2262 = vpack.c.bf16 %v2242, %v2242
      %v2263 = vpack.c.bf16 %v2243, %v2243
      %v2264 = vpack.c.bf16 %v2244, %v2244
      %v2265 = vpack.c.bf16 %v2245, %v2245
      %v2266 = vpack.c.bf16 %v2246, %v2246
      %v2267 = vpack.c.bf16 %v2247, %v2247
      %v2268 = vpack.c.bf16 %v2248, %v2248
      %v2269 = vpack.c.bf16 %v2249, %v2249
      %v2270 = vpack.c.bf16 %v2250, %v2250
      %v2271 = vpack.c.bf16 %v2251, %v2251
      %v2272 = vpack.c.bf16 %v2252, %v2252
      %v2273 = vpack.c.bf16 %v2253, %v2253
      %v2274 = vpack.c.bf16 %v2254, %v2254
      %v2275 = vpack.c.bf16 %v2255, %v2255
      %v2276 = vpack.c.bf16 %v2256, %v2256
      %v2277 = vpack.c.bf16 %v2257, %v2257
      %v2278 = vpack.c.bf16 %v2258, %v2258
      %v2279 = vpack.c.bf16 %v2259, %v2259
      %v2280 = vpack.c.bf16 %v2260, %v2260
      %v2281 = vpack.c.bf16 %v2261, %v2261
      %v2283 = vshrl.u32 %v2262, 16
      %v2285 = vrot.slane %v2283, 7
      %v2286 = vshll.u32 %v2262, 16
      %v2288 = vor.u32 %v2285, %v2286
      %v2289 = vrot.slane %v2285, 4
      %v2291 = vshrl.u32 %v2263, 16
      %v2293 = vrot.slane %v2291, 7
      %v2294 = vshll.u32 %v2263, 16
      %v2296 = vor.u32 %v2293, %v2294
      %v2297 = vsel %vm899, %v2289, %v2296
      %v2298 = vrot.slane %v2293, 4
      %v2300 = vshrl.u32 %v2264, 16
      %v2302 = vrot.slane %v2300, 7
      %v2303 = vshll.u32 %v2264, 16
      %v2305 = vor.u32 %v2302, %v2303
      %v2306 = vrot.slane %v2302, 4
      %v2308 = vshrl.u32 %v2265, 16
      %v2310 = vrot.slane %v2308, 7
      %v2311 = vshll.u32 %v2265, 16
      %v2313 = vor.u32 %v2310, %v2311
      %v2314 = vsel %vm899, %v2306, %v2313
      %v2315 = vrot.slane %v2310, 4
      %v2317 = vshrl.u32 %v2266, 16
      %v2319 = vrot.slane %v2317, 7
      %v2320 = vshll.u32 %v2266, 16
      %v2322 = vor.u32 %v2319, %v2320
      %v2323 = vrot.slane %v2319, 4
      %v2325 = vshrl.u32 %v2267, 16
      %v2327 = vrot.slane %v2325, 7
      %v2328 = vshll.u32 %v2267, 16
      %v2330 = vor.u32 %v2327, %v2328
      %v2331 = vsel %vm899, %v2323, %v2330
      %v2332 = vrot.slane %v2327, 4
      %v2334 = vshrl.u32 %v2268, 16
      %v2336 = vrot.slane %v2334, 7
      %v2337 = vshll.u32 %v2268, 16
      %v2339 = vor.u32 %v2336, %v2337
      %v2340 = vrot.slane %v2336, 4
      %v2342 = vshrl.u32 %v2269, 16
      %v2344 = vrot.slane %v2342, 7
      %v2345 = vshll.u32 %v2269, 16
      %v2347 = vor.u32 %v2344, %v2345
      %v2348 = vsel %vm899, %v2340, %v2347
      %v2349 = vrot.slane %v2344, 4
      %v2351 = vshrl.u32 %v2270, 16
      %v2353 = vrot.slane %v2351, 7
      %v2354 = vshll.u32 %v2270, 16
      %v2356 = vor.u32 %v2353, %v2354
      %v2357 = vrot.slane %v2353, 4
      %v2359 = vshrl.u32 %v2271, 16
      %v2361 = vrot.slane %v2359, 7
      %v2362 = vshll.u32 %v2271, 16
      %v2364 = vor.u32 %v2361, %v2362
      %v2365 = vsel %vm899, %v2357, %v2364
      %v2366 = vrot.slane %v2361, 4
      %v2368 = vshrl.u32 %v2272, 16
      %v2370 = vrot.slane %v2368, 7
      %v2371 = vshll.u32 %v2272, 16
      %v2373 = vor.u32 %v2370, %v2371
      %v2374 = vrot.slane %v2370, 4
      %v2376 = vshrl.u32 %v2273, 16
      %v2378 = vrot.slane %v2376, 7
      %v2379 = vshll.u32 %v2273, 16
      %v2381 = vor.u32 %v2378, %v2379
      %v2382 = vsel %vm899, %v2374, %v2381
      %v2383 = vrot.slane %v2378, 4
      %v2385 = vshrl.u32 %v2274, 16
      %v2387 = vrot.slane %v2385, 7
      %v2388 = vshll.u32 %v2274, 16
      %v2390 = vor.u32 %v2387, %v2388
      %v2391 = vrot.slane %v2387, 4
      %v2393 = vshrl.u32 %v2275, 16
      %v2395 = vrot.slane %v2393, 7
      %v2396 = vshll.u32 %v2275, 16
      %v2398 = vor.u32 %v2395, %v2396
      %v2399 = vsel %vm899, %v2391, %v2398
      %v2400 = vrot.slane %v2395, 4
      %v2402 = vshrl.u32 %v2276, 16
      %v2404 = vrot.slane %v2402, 7
      %v2405 = vshll.u32 %v2276, 16
      %v2407 = vor.u32 %v2404, %v2405
      %v2408 = vrot.slane %v2404, 4
      %v2410 = vshrl.u32 %v2277, 16
      %v2412 = vrot.slane %v2410, 7
      %v2413 = vshll.u32 %v2277, 16
      %v2415 = vor.u32 %v2412, %v2413
      %v2416 = vsel %vm899, %v2408, %v2415
      %v2417 = vrot.slane %v2412, 4
      %v2419 = vshrl.u32 %v2278, 16
      %v2421 = vrot.slane %v2419, 7
      %v2422 = vshll.u32 %v2278, 16
      %v2424 = vor.u32 %v2421, %v2422
      %v2425 = vrot.slane %v2421, 4
      %v2427 = vshrl.u32 %v2279, 16
      %v2429 = vrot.slane %v2427, 7
      %v2430 = vshll.u32 %v2279, 16
      %v2432 = vor.u32 %v2429, %v2430
      %v2433 = vsel %vm899, %v2425, %v2432
      %v2434 = vrot.slane %v2429, 4
      %v2436 = vshrl.u32 %v2280, 16
      %v2438 = vrot.slane %v2436, 7
      %v2439 = vshll.u32 %v2280, 16
      %v2441 = vor.u32 %v2438, %v2439
      %v2442 = vrot.slane %v2438, 4
      %v2444 = vshrl.u32 %v2281, 16
      %v2446 = vrot.slane %v2444, 7
      %v2447 = vshll.u32 %v2281, 16
      %v2449 = vor.u32 %v2446, %v2447
      %v2450 = vsel %vm899, %v2442, %v2449
      %v2451 = vrot.slane %v2446, 4
      %s2482 = scalar_lea.vmem [#allocation2], 240
      %v2483 = vld [vmem:[%s2482] sm:$0xf]
      %v2484 = vsel %vm1102, %v2288, %v2483
      %2485 = vst [vmem:[%s2482] sm:$0xf] %v2484
      %2486 = vst.msk [vmem:[%s2482 + $0x4] sm:$0xf] %vm1106, %v2297
      %v2487 = vld [vmem:[%s2482 + $0x8] sm:$0x1]
      %v2488 = vsel %vm1109, %v2298, %v2487
      %2489 = vst [vmem:[%s2482 + $0x8] sm:$0x1] %v2488
      %v2490 = vld [vmem:[%s2482 + $0xc] sm:$0xf]
      %v2491 = vsel %vm1102, %v2305, %v2490
      %2492 = vst [vmem:[%s2482 + $0xc] sm:$0xf] %v2491
      %2493 = vst.msk [vmem:[%s2482 + $0x10] sm:$0xf] %vm1106, %v2314
      %v2494 = vld [vmem:[%s2482 + $0x14] sm:$0x1]
      %v2495 = vsel %vm1109, %v2315, %v2494
      %2496 = vst [vmem:[%s2482 + $0x14] sm:$0x1] %v2495
      %v2497 = vld [vmem:[%s2482 + $0x18] sm:$0xf]
      %v2498 = vsel %vm1102, %v2322, %v2497
      %2499 = vst [vmem:[%s2482 + $0x18] sm:$0xf] %v2498
      %2500 = vst.msk [vmem:[%s2482 + $0x1c] sm:$0xf] %vm1106, %v2331
      %v2501 = vld [vmem:[%s2482 + $0x20] sm:$0x1]
      %v2502 = vsel %vm1109, %v2332, %v2501
      %2503 = vst [vmem:[%s2482 + $0x20] sm:$0x1] %v2502
      %v2504 = vld [vmem:[%s2482 + $0x24] sm:$0xf]
      %v2505 = vsel %vm1102, %v2339, %v2504
      %2506 = vst [vmem:[%s2482 + $0x24] sm:$0xf] %v2505
      %2507 = vst.msk [vmem:[%s2482 + $0x28] sm:$0xf] %vm1106, %v2348
      %v2508 = vld [vmem:[%s2482 + $0x2c] sm:$0x1]
      %v2509 = vsel %vm1109, %v2349, %v2508
      %2510 = vst [vmem:[%s2482 + $0x2c] sm:$0x1] %v2509
      %v2511 = vld [vmem:[%s2482 + $0x30] sm:$0xf]
      %v2512 = vsel %vm1102, %v2356, %v2511
      %2513 = vst [vmem:[%s2482 + $0x30] sm:$0xf] %v2512
      %2514 = vst.msk [vmem:[%s2482 + $0x34] sm:$0xf] %vm1106, %v2365
      %v2515 = vld [vmem:[%s2482 + $0x38] sm:$0x1]
      %v2516 = vsel %vm1109, %v2366, %v2515
      %2517 = vst [vmem:[%s2482 + $0x38] sm:$0x1] %v2516
      %v2518 = vld [vmem:[%s2482 + $0x3c] sm:$0xf]
      %v2519 = vsel %vm1102, %v2373, %v2518
      %2520 = vst [vmem:[%s2482 + $0x3c] sm:$0xf] %v2519
      %2521 = vst.msk [vmem:[%s2482 + $0x40] sm:$0xf] %vm1106, %v2382
      %v2522 = vld [vmem:[%s2482 + $0x44] sm:$0x1]
      %v2523 = vsel %vm1109, %v2383, %v2522
      %2524 = vst [vmem:[%s2482 + $0x44] sm:$0x1] %v2523
      %v2525 = vld [vmem:[%s2482 + $0x48] sm:$0xf]
      %v2526 = vsel %vm1102, %v2390, %v2525
      %2527 = vst [vmem:[%s2482 + $0x48] sm:$0xf] %v2526
      %2528 = vst.msk [vmem:[%s2482 + $0x4c] sm:$0xf] %vm1106, %v2399
      %v2529 = vld [vmem:[%s2482 + $0x50] sm:$0x1]
      %v2530 = vsel %vm1109, %v2400, %v2529
      %2531 = vst [vmem:[%s2482 + $0x50] sm:$0x1] %v2530
      %v2532 = vld [vmem:[%s2482 + $0x54] sm:$0xf]
      %v2533 = vsel %vm1102, %v2407, %v2532
      %2534 = vst [vmem:[%s2482 + $0x54] sm:$0xf] %v2533
      %2535 = vst.msk [vmem:[%s2482 + $0x58] sm:$0xf] %vm1106, %v2416
      %v2536 = vld [vmem:[%s2482 + $0x5c] sm:$0x1]
      %v2537 = vsel %vm1109, %v2417, %v2536
      %2538 = vst [vmem:[%s2482 + $0x5c] sm:$0x1] %v2537
      %v2539 = vld [vmem:[%s2482 + $0x60] sm:$0xf]
      %v2540 = vsel %vm1102, %v2424, %v2539
      %2541 = vst [vmem:[%s2482 + $0x60] sm:$0xf] %v2540
      %2542 = vst.msk [vmem:[%s2482 + $0x64] sm:$0xf] %vm1106, %v2433
      %v2543 = vld [vmem:[%s2482 + $0x68] sm:$0x1]
      %v2544 = vsel %vm1109, %v2434, %v2543
      %2545 = vst [vmem:[%s2482 + $0x68] sm:$0x1] %v2544
      %v2546 = vld [vmem:[%s2482 + $0x6c] sm:$0xf]
      %v2547 = vsel %vm1102, %v2441, %v2546
      %2548 = vst [vmem:[%s2482 + $0x6c] sm:$0xf] %v2547
      %2549 = vst.msk [vmem:[%s2482 + $0x70] sm:$0xf] %vm1106, %v2450
      %v2550 = vld [vmem:[%s2482 + $0x74] sm:$0x1]
      %v2551 = vsel %vm1109, %v2451, %v2550
      %2552 = vst [vmem:[%s2482 + $0x74] sm:$0x1] %v2551
      %v2553 = vld [vmem:[%s2482] sm:$0x1]
      %v2554 = vsel %vm1109, 0, %v2553
      %2555 = vst [vmem:[%s2482] sm:$0x1] %v2554
      %v2556 = vld [vmem:[%s2482 + $0xc] sm:$0x1]
      %v2557 = vsel %vm1109, 0, %v2556
      %2558 = vst [vmem:[%s2482 + $0xc] sm:$0x1] %v2557
      %v2559 = vld [vmem:[%s2482 + $0x18] sm:$0x1]
      %v2560 = vsel %vm1109, 0, %v2559
      %2561 = vst [vmem:[%s2482 + $0x18] sm:$0x1] %v2560
      %v2562 = vld [vmem:[%s2482 + $0x24] sm:$0x1]
      %v2563 = vsel %vm1109, 0, %v2562
      %2564 = vst [vmem:[%s2482 + $0x24] sm:$0x1] %v2563
      %v2565 = vld [vmem:[%s2482 + $0x30] sm:$0x1]
      %v2566 = vsel %vm1109, 0, %v2565
      %2567 = vst [vmem:[%s2482 + $0x30] sm:$0x1] %v2566
      %v2568 = vld [vmem:[%s2482 + $0x3c] sm:$0x1]
      %v2569 = vsel %vm1109, 0, %v2568
      %2570 = vst [vmem:[%s2482 + $0x3c] sm:$0x1] %v2569
      %v2571 = vld [vmem:[%s2482 + $0x48] sm:$0x1]
      %v2572 = vsel %vm1109, 0, %v2571
      %2573 = vst [vmem:[%s2482 + $0x48] sm:$0x1] %v2572
      %v2574 = vld [vmem:[%s2482 + $0x54] sm:$0x1]
      %v2575 = vsel %vm1109, 0, %v2574
      %2576 = vst [vmem:[%s2482 + $0x54] sm:$0x1] %v2575
      %v2577 = vld [vmem:[%s2482 + $0x60] sm:$0x1]
      %v2578 = vsel %vm1109, 0, %v2577
      %2579 = vst [vmem:[%s2482 + $0x60] sm:$0x1] %v2578
      %v2580 = vld [vmem:[%s2482 + $0x6c] sm:$0x1]
      %v2581 = vsel %vm1109, 0, %v2580
      %2582 = vst [vmem:[%s2482 + $0x6c] sm:$0x1] %v2581
      %v2583 = vld [vmem:[%s2482 + $0x8] sm:$0x1]
      %v2584 = vsel %vm1206, 0, %v2583
      %2585 = vst [vmem:[%s2482 + $0x8] sm:$0x1] %v2584
      %v2586 = vld [vmem:[%s2482 + $0x14] sm:$0x1]
      %v2587 = vsel %vm1206, 0, %v2586
      %2588 = vst [vmem:[%s2482 + $0x14] sm:$0x1] %v2587
      %v2589 = vld [vmem:[%s2482 + $0x20] sm:$0x1]
      %v2590 = vsel %vm1206, 0, %v2589
      %2591 = vst [vmem:[%s2482 + $0x20] sm:$0x1] %v2590
      %v2592 = vld [vmem:[%s2482 + $0x2c] sm:$0x1]
      %v2593 = vsel %vm1206, 0, %v2592
      %2594 = vst [vmem:[%s2482 + $0x2c] sm:$0x1] %v2593
      %v2595 = vld [vmem:[%s2482 + $0x38] sm:$0x1]
      %v2596 = vsel %vm1206, 0, %v2595
      %2597 = vst [vmem:[%s2482 + $0x38] sm:$0x1] %v2596
      %v2598 = vld [vmem:[%s2482 + $0x44] sm:$0x1]
      %v2599 = vsel %vm1206, 0, %v2598
      %2600 = vst [vmem:[%s2482 + $0x44] sm:$0x1] %v2599
      %v2601 = vld [vmem:[%s2482 + $0x50] sm:$0x1]
      %v2602 = vsel %vm1206, 0, %v2601
      %2603 = vst [vmem:[%s2482 + $0x50] sm:$0x1] %v2602
      %v2604 = vld [vmem:[%s2482 + $0x5c] sm:$0x1]
      %v2605 = vsel %vm1206, 0, %v2604
      %2606 = vst [vmem:[%s2482 + $0x5c] sm:$0x1] %v2605
      %v2607 = vld [vmem:[%s2482 + $0x68] sm:$0x1]
      %v2608 = vsel %vm1206, 0, %v2607
      %2609 = vst [vmem:[%s2482 + $0x68] sm:$0x1] %v2608
      %v2610 = vld [vmem:[%s2482 + $0x74] sm:$0x1]
      %v2611 = vsel %vm1206, 0, %v2610
      %2612 = vst [vmem:[%s2482 + $0x74] sm:$0x1] %v2611
      // Predicated region
      $region65: #{upconvblock_forward.1} parent=47 // pred_check
        %p2613 = pneg %p1237
      $region66: #{upconvblock_forward.1} parent=47 // pred_check_branch
        %2615 = sbr.rel (%p2613) target = $region68
      $region67: #{upconvblock_forward.1} parent=47 // pred_region
        %2616 = vst.msk [vmem:[%s2482] sm:$0xf] %vm1106, 0
        %2617 = vst.msk [vmem:[%s2482 + $0x4] sm:$0xf] %vm1106, 0
        %vm2618 = vcmask 122880
        %2619 = vst.msk [vmem:[%s2482 + $0x8] sm:$0x1] %vm2618, 0
      $region68: #{upconvblock_forward.1} parent=47 // pred_fallthru
        _
      // Predicated region
      $region69: #{upconvblock_forward.1} parent=47 // pred_check
        %p2620 = pneg %p1245
      $region70: #{upconvblock_forward.1} parent=47 // pred_check_branch
        %2622 = sbr.rel (%p2620) target = $region72
      $region71: #{upconvblock_forward.1} parent=47 // pred_region
        %s2623 = scalar_lea.vmem [#allocation2], 348
        %2624 = vst.msk [vmem:[%s2623] sm:$0xf] %vm1106, 0
        %2625 = vst.msk [vmem:[%s2623 + $0x4] sm:$0xf] %vm1106, 0
        %vm2626 = vcmask 122880
        %2627 = vst.msk [vmem:[%s2623 + $0x8] sm:$0x1] %vm2626, 0
      $region72: #{upconvblock_forward.1} parent=47 // pred_fallthru
        _
      %v2628 = vpack.c.bf16 %v2224, %v2224
      %v2629 = vpack.c.bf16 %v2225, %v2225
      %v2630 = vpack.c.bf16 %v2226, %v2226
      %v2631 = vpack.c.bf16 %v2227, %v2227
      %v2632 = vpack.c.bf16 %v2228, %v2228
      %v2633 = vpack.c.bf16 %v2229, %v2229
      %v2634 = vpack.c.bf16 %v2230, %v2230
      %v2635 = vpack.c.bf16 %v2231, %v2231
      %v2636 = vpack.c.bf16 %v2232, %v2232
      %v2637 = vpack.c.bf16 %v2233, %v2233
      %v2638 = vpack.c.bf16 %v2234, %v2234
      %v2639 = vpack.c.bf16 %v2235, %v2235
      %v2640 = vpack.c.bf16 %v2236, %v2236
      %v2641 = vpack.c.bf16 %v2237, %v2237
      %v2642 = vpack.c.bf16 %v2238, %v2238
      %v2643 = vpack.c.bf16 %v2239, %v2239
      %2644 = vrot.lane.b32.xlu0 %v1330, 16
      %v2645 = vpop.permute.xlu0 %2644
      %2646 = vrot.lane.b32.xlu0 %v2087, 32
      %v2647 = vpop.permute.xlu0 %2646
      %v2648 = vshrl.u32 %v2087, 16
      %2650 = vrot.lane.b32.xlu0 %v2648, 48
      %v2651 = vpop.permute.xlu0 %2650
      %v2653 = vsel %vm636, %v603, %v2645
      %v2655 = vsel %vm657, %v2653, %v2647
      %v2657 = vsel %vm678, %v2655, %v2651
      %v2658 = vshrl.u32 %v2107, 16
      %v2660 = vshll.u32 %v2107, 16
      %v2662 = vrot.slane %v2660, 1
      %v2663 = vor.u32 %v2658, %v2662
      %v2664 = vshll.u32 %v2657, 16
      %v2666 = vrot.slane %v2664, 1
      %v2667 = vsel %vm435, %v2663, %v2666
      %s2668 = scalar_lea.vmem %s1, 96
      %v2669 = vld [vmem:[%s2668] sm:$0xf]
      %v2670 = vld [vmem:[%s2668 + $0x4] sm:$0xf]
      %v2671 = vld [vmem:[%s2668 + $0x8] sm:$0xf]
      %v2672 = vld [vmem:[%s2668 + $0xc] sm:$0xf]
      %v2673 = vld [vmem:[%s2668 + $0x10] sm:$0xf]
      %v2674 = vld [vmem:[%s2668 + $0x14] sm:$0xf]
      %v2675 = vld [vmem:[%s2668 + $0x18] sm:$0xf]
      %v2676 = vld [vmem:[%s2668 + $0x1c] sm:$0xf]
      %v2685 = vunpack.c.l.b16 %v2669
      %v2686 = vunpack.c.l.b16 %v2670
      %v2687 = vunpack.c.l.b16 %v2671
      %v2688 = vunpack.c.l.b16 %v2672
      %v2689 = vunpack.c.l.b16 %v2673
      %v2690 = vunpack.c.l.b16 %v2674
      %v2691 = vunpack.c.l.b16 %v2675
      %v2692 = vunpack.c.l.b16 %v2676
      %v2693 = vpack.c.b16 %v2686, %v2685
      %v2694 = vpack.c.b16 %v2688, %v2687
      %v2695 = vpack.c.b16 %v2690, %v2689
      %v2696 = vpack.c.b16 %v2692, %v2691
      %v2702 = vsel %vm731, %v2667, 0
      %2704 = vmatpush.bf16.msra.mxu0 0
      %2705 = vmatpush.bf16.msra.mxu0 0
      %2706 = vmatpush.bf16.msra.mxu0 0
      %2707 = vmatpush.bf16.msra.mxu0 0
      %2708 = vmatpush.bf16.msra.mxu0 %v2696
      %2709 = vmatpush.bf16.msra.mxu0 %v2695
      %2710 = vmatpush.bf16.msra.mxu0 %v2694
      %2711 = vmatpush.bf16.msra.mxu0 %v2693
      %2712 = vmatmul.bf16.gmra.mxu0 %v1549
      %v2713 = vpop.f32.mrf.mxu0
      %v2714 = vadd.f32 0.0, %v2713
      %v2715 = vpop.f32.mrf.mxu0
      %v2716 = vadd.f32 0.0, %v2715
      %2717 = vmatmul.bf16.gmra.mxu0 %v1552
      %v2718 = vpop.f32.mrf.mxu0
      %v2719 = vadd.f32 0.0, %v2718
      %v2720 = vpop.f32.mrf.mxu0
      %v2721 = vadd.f32 0.0, %v2720
      %2722 = vmatmul.bf16.gmra.mxu0 %v1555
      %v2723 = vpop.f32.mrf.mxu0
      %v2724 = vadd.f32 0.0, %v2723
      %v2725 = vpop.f32.mrf.mxu0
      %v2726 = vadd.f32 0.0, %v2725
      %2727 = vmatmul.bf16.gmra.mxu0 %v1558
      %v2728 = vpop.f32.mrf.mxu0
      %v2729 = vadd.f32 0.0, %v2728
      %v2730 = vpop.f32.mrf.mxu0
      %v2731 = vadd.f32 0.0, %v2730
      %2732 = vmatmul.bf16.gmra.mxu0 %v1561
      %v2733 = vpop.f32.mrf.mxu0
      %v2734 = vadd.f32 0.0, %v2733
      %v2735 = vpop.f32.mrf.mxu0
      %v2736 = vadd.f32 0.0, %v2735
      %2737 = vmatmul.bf16.gmra.mxu0 %v1564
      %v2738 = vpop.f32.mrf.mxu0
      %v2739 = vadd.f32 0.0, %v2738
      %v2740 = vpop.f32.mrf.mxu0
      %v2741 = vadd.f32 0.0, %v2740
      %2742 = vmatmul.bf16.gmra.mxu0 %v1567
      %v2743 = vpop.f32.mrf.mxu0
      %v2744 = vadd.f32 0.0, %v2743
      %v2745 = vpop.f32.mrf.mxu0
      %v2746 = vadd.f32 0.0, %v2745
      %2747 = vmatmul.bf16.gmra.mxu0 %v1570
      %v2748 = vpop.f32.mrf.mxu0
      %v2749 = vadd.f32 0.0, %v2748
      %v2750 = vpop.f32.mrf.mxu0
      %v2751 = vadd.f32 0.0, %v2750
      %2752 = vmatmul.bf16.gmra.mxu0 %v1573
      %v2753 = vpop.f32.mrf.mxu0
      %v2754 = vadd.f32 0.0, %v2753
      %v2755 = vpop.f32.mrf.mxu0
      %v2756 = vadd.f32 0.0, %v2755
      %2757 = vmatmul.bf16.gmra.mxu0 %v2702
      %v2758 = vpop.f32.mrf.mxu0
      %v2759 = vadd.f32 0.0, %v2758
      %v2760 = vpop.f32.mrf.mxu0
      %v2761 = vadd.f32 0.0, %v2760
      %2762 = vdwg.mxu0
      %v2763 = vmul.f32 %v2714, %v812
      %v2764 = vmul.f32 %v2716, %v812
      %v2765 = vmul.f32 %v2719, %v812
      %v2766 = vmul.f32 %v2721, %v812
      %v2767 = vmul.f32 %v2724, %v812
      %v2768 = vmul.f32 %v2726, %v812
      %v2769 = vmul.f32 %v2729, %v812
      %v2770 = vmul.f32 %v2731, %v812
      %v2771 = vmul.f32 %v2734, %v812
      %v2772 = vmul.f32 %v2736, %v812
      %v2773 = vmul.f32 %v2739, %v812
      %v2774 = vmul.f32 %v2741, %v812
      %v2775 = vmul.f32 %v2744, %v812
      %v2776 = vmul.f32 %v2746, %v812
      %v2777 = vmul.f32 %v2749, %v812
      %v2778 = vmul.f32 %v2751, %v812
      %v2779 = vmul.f32 %v2754, %v812
      %v2780 = vmul.f32 %v2756, %v812
      %v2781 = vmul.f32 %v2759, %v812
      %v2782 = vmul.f32 %v2761, %v812
      %v2783 = vadd.f32 %v2763, %v835
      %v2784 = vadd.f32 %v2764, %v835
      %v2785 = vadd.f32 %v2765, %v835
      %v2786 = vadd.f32 %v2766, %v835
      %v2787 = vadd.f32 %v2767, %v835
      %v2788 = vadd.f32 %v2768, %v835
      %v2789 = vadd.f32 %v2769, %v835
      %v2790 = vadd.f32 %v2770, %v835
      %v2791 = vadd.f32 %v2771, %v835
      %v2792 = vadd.f32 %v2772, %v835
      %v2793 = vadd.f32 %v2773, %v835
      %v2794 = vadd.f32 %v2774, %v835
      %v2795 = vadd.f32 %v2775, %v835
      %v2796 = vadd.f32 %v2776, %v835
      %v2797 = vadd.f32 %v2777, %v835
      %v2798 = vadd.f32 %v2778, %v835
      %v2799 = vadd.f32 %v2779, %v835
      %v2800 = vadd.f32 %v2780, %v835
      %v2801 = vadd.f32 %v2781, %v835
      %v2802 = vadd.f32 %v2782, %v835
      %v2803 = vmax.f32 %v2783, 0.0
      %v2804 = vmax.f32 %v2784, 0.0
      %v2805 = vmax.f32 %v2785, 0.0
      %v2806 = vmax.f32 %v2786, 0.0
      %v2807 = vmax.f32 %v2787, 0.0
      %v2808 = vmax.f32 %v2788, 0.0
      %v2809 = vmax.f32 %v2789, 0.0
      %v2810 = vmax.f32 %v2790, 0.0
      %v2811 = vmax.f32 %v2791, 0.0
      %v2812 = vmax.f32 %v2792, 0.0
      %v2813 = vmax.f32 %v2793, 0.0
      %v2814 = vmax.f32 %v2794, 0.0
      %v2815 = vmax.f32 %v2795, 0.0
      %v2816 = vmax.f32 %v2796, 0.0
      %v2817 = vmax.f32 %v2797, 0.0
      %v2818 = vmax.f32 %v2798, 0.0
      %v2819 = vmax.f32 %v2799, 0.0
      %v2820 = vmax.f32 %v2800, 0.0
      %v2821 = vmax.f32 %v2801, 0.0
      %v2822 = vmax.f32 %v2802, 0.0
      %v2823 = vpack.c.bf16 %v2803, %v2803
      %v2824 = vpack.c.bf16 %v2804, %v2804
      %v2825 = vpack.c.bf16 %v2805, %v2805
      %v2826 = vpack.c.bf16 %v2806, %v2806
      %v2827 = vpack.c.bf16 %v2807, %v2807
      %v2828 = vpack.c.bf16 %v2808, %v2808
      %v2829 = vpack.c.bf16 %v2809, %v2809
      %v2830 = vpack.c.bf16 %v2810, %v2810
      %v2831 = vpack.c.bf16 %v2811, %v2811
      %v2832 = vpack.c.bf16 %v2812, %v2812
      %v2833 = vpack.c.bf16 %v2813, %v2813
      %v2834 = vpack.c.bf16 %v2814, %v2814
      %v2835 = vpack.c.bf16 %v2815, %v2815
      %v2836 = vpack.c.bf16 %v2816, %v2816
      %v2837 = vpack.c.bf16 %v2817, %v2817
      %v2838 = vpack.c.bf16 %v2818, %v2818
      %v2839 = vpack.c.bf16 %v2819, %v2819
      %v2840 = vpack.c.bf16 %v2820, %v2820
      %v2841 = vpack.c.bf16 %v2821, %v2821
      %v2842 = vpack.c.bf16 %v2822, %v2822
      %v2844 = vshrl.u32 %v2823, 16
      %v2846 = vrot.slane %v2844, 7
      %v2847 = vshll.u32 %v2823, 16
      %v2849 = vor.u32 %v2846, %v2847
      %v2850 = vrot.slane %v2846, 4
      %v2852 = vshrl.u32 %v2824, 16
      %v2854 = vrot.slane %v2852, 7
      %v2855 = vshll.u32 %v2824, 16
      %v2857 = vor.u32 %v2854, %v2855
      %v2858 = vsel %vm899, %v2850, %v2857
      %v2859 = vrot.slane %v2854, 4
      %v2861 = vshrl.u32 %v2825, 16
      %v2863 = vrot.slane %v2861, 7
      %v2864 = vshll.u32 %v2825, 16
      %v2866 = vor.u32 %v2863, %v2864
      %v2867 = vrot.slane %v2863, 4
      %v2869 = vshrl.u32 %v2826, 16
      %v2871 = vrot.slane %v2869, 7
      %v2872 = vshll.u32 %v2826, 16
      %v2874 = vor.u32 %v2871, %v2872
      %v2875 = vsel %vm899, %v2867, %v2874
      %v2876 = vrot.slane %v2871, 4
      %v2878 = vshrl.u32 %v2827, 16
      %v2880 = vrot.slane %v2878, 7
      %v2881 = vshll.u32 %v2827, 16
      %v2883 = vor.u32 %v2880, %v2881
      %v2884 = vrot.slane %v2880, 4
      %v2886 = vshrl.u32 %v2828, 16
      %v2888 = vrot.slane %v2886, 7
      %v2889 = vshll.u32 %v2828, 16
      %v2891 = vor.u32 %v2888, %v2889
      %v2892 = vsel %vm899, %v2884, %v2891
      %v2893 = vrot.slane %v2888, 4
      %v2895 = vshrl.u32 %v2829, 16
      %v2897 = vrot.slane %v2895, 7
      %v2898 = vshll.u32 %v2829, 16
      %v2900 = vor.u32 %v2897, %v2898
      %v2901 = vrot.slane %v2897, 4
      %v2903 = vshrl.u32 %v2830, 16
      %v2905 = vrot.slane %v2903, 7
      %v2906 = vshll.u32 %v2830, 16
      %v2908 = vor.u32 %v2905, %v2906
      %v2909 = vsel %vm899, %v2901, %v2908
      %v2910 = vrot.slane %v2905, 4
      %v2912 = vshrl.u32 %v2831, 16
      %v2914 = vrot.slane %v2912, 7
      %v2915 = vshll.u32 %v2831, 16
      %v2917 = vor.u32 %v2914, %v2915
      %v2918 = vrot.slane %v2914, 4
      %v2920 = vshrl.u32 %v2832, 16
      %v2922 = vrot.slane %v2920, 7
      %v2923 = vshll.u32 %v2832, 16
      %v2925 = vor.u32 %v2922, %v2923
      %v2926 = vsel %vm899, %v2918, %v2925
      %v2927 = vrot.slane %v2922, 4
      %v2929 = vshrl.u32 %v2833, 16
      %v2931 = vrot.slane %v2929, 7
      %v2932 = vshll.u32 %v2833, 16
      %v2934 = vor.u32 %v2931, %v2932
      %v2935 = vrot.slane %v2931, 4
      %v2937 = vshrl.u32 %v2834, 16
      %v2939 = vrot.slane %v2937, 7
      %v2940 = vshll.u32 %v2834, 16
      %v2942 = vor.u32 %v2939, %v2940
      %v2943 = vsel %vm899, %v2935, %v2942
      %v2944 = vrot.slane %v2939, 4
      %v2946 = vshrl.u32 %v2835, 16
      %v2948 = vrot.slane %v2946, 7
      %v2949 = vshll.u32 %v2835, 16
      %v2951 = vor.u32 %v2948, %v2949
      %v2952 = vrot.slane %v2948, 4
      %v2954 = vshrl.u32 %v2836, 16
      %v2956 = vrot.slane %v2954, 7
      %v2957 = vshll.u32 %v2836, 16
      %v2959 = vor.u32 %v2956, %v2957
      %v2960 = vsel %vm899, %v2952, %v2959
      %v2961 = vrot.slane %v2956, 4
      %v2963 = vshrl.u32 %v2837, 16
      %v2965 = vrot.slane %v2963, 7
      %v2966 = vshll.u32 %v2837, 16
      %v2968 = vor.u32 %v2965, %v2966
      %v2969 = vrot.slane %v2965, 4
      %v2971 = vshrl.u32 %v2838, 16
      %v2973 = vrot.slane %v2971, 7
      %v2974 = vshll.u32 %v2838, 16
      %v2976 = vor.u32 %v2973, %v2974
      %v2977 = vsel %vm899, %v2969, %v2976
      %v2978 = vrot.slane %v2973, 4
      %v2980 = vshrl.u32 %v2839, 16
      %v2982 = vrot.slane %v2980, 7
      %v2983 = vshll.u32 %v2839, 16
      %v2985 = vor.u32 %v2982, %v2983
      %v2986 = vrot.slane %v2982, 4
      %v2988 = vshrl.u32 %v2840, 16
      %v2990 = vrot.slane %v2988, 7
      %v2991 = vshll.u32 %v2840, 16
      %v2993 = vor.u32 %v2990, %v2991
      %v2994 = vsel %vm899, %v2986, %v2993
      %v2995 = vrot.slane %v2990, 4
      %v2997 = vshrl.u32 %v2841, 16
      %v2999 = vrot.slane %v2997, 7
      %v3000 = vshll.u32 %v2841, 16
      %v3002 = vor.u32 %v2999, %v3000
      %v3003 = vrot.slane %v2999, 4
      %v3005 = vshrl.u32 %v2842, 16
      %v3007 = vrot.slane %v3005, 7
      %v3008 = vshll.u32 %v2842, 16
      %v3010 = vor.u32 %v3007, %v3008
      %v3011 = vsel %vm899, %v3003, %v3010
      %v3012 = vrot.slane %v3007, 4
      %s3043 = scalar_lea.vmem [#allocation2], 360
      %v3044 = vld [vmem:[%s3043] sm:$0xf]
      %v3045 = vsel %vm1102, %v2849, %v3044
      %3046 = vst [vmem:[%s3043] sm:$0xf] %v3045
      %3047 = vst.msk [vmem:[%s3043 + $0x4] sm:$0xf] %vm1106, %v2858
      %v3048 = vld [vmem:[%s3043 + $0x8] sm:$0x1]
      %v3049 = vsel %vm1109, %v2859, %v3048
      %3050 = vst [vmem:[%s3043 + $0x8] sm:$0x1] %v3049
      %v3051 = vld [vmem:[%s3043 + $0xc] sm:$0xf]
      %v3052 = vsel %vm1102, %v2866, %v3051
      %3053 = vst [vmem:[%s3043 + $0xc] sm:$0xf] %v3052
      %3054 = vst.msk [vmem:[%s3043 + $0x10] sm:$0xf] %vm1106, %v2875
      %v3055 = vld [vmem:[%s3043 + $0x14] sm:$0x1]
      %v3056 = vsel %vm1109, %v2876, %v3055
      %3057 = vst [vmem:[%s3043 + $0x14] sm:$0x1] %v3056
      %v3058 = vld [vmem:[%s3043 + $0x18] sm:$0xf]
      %v3059 = vsel %vm1102, %v2883, %v3058
      %3060 = vst [vmem:[%s3043 + $0x18] sm:$0xf] %v3059
      %3061 = vst.msk [vmem:[%s3043 + $0x1c] sm:$0xf] %vm1106, %v2892
      %v3062 = vld [vmem:[%s3043 + $0x20] sm:$0x1]
      %v3063 = vsel %vm1109, %v2893, %v3062
      %3064 = vst [vmem:[%s3043 + $0x20] sm:$0x1] %v3063
      %v3065 = vld [vmem:[%s3043 + $0x24] sm:$0xf]
      %v3066 = vsel %vm1102, %v2900, %v3065
      %3067 = vst [vmem:[%s3043 + $0x24] sm:$0xf] %v3066
      %3068 = vst.msk [vmem:[%s3043 + $0x28] sm:$0xf] %vm1106, %v2909
      %v3069 = vld [vmem:[%s3043 + $0x2c] sm:$0x1]
      %v3070 = vsel %vm1109, %v2910, %v3069
      %3071 = vst [vmem:[%s3043 + $0x2c] sm:$0x1] %v3070
      %v3072 = vld [vmem:[%s3043 + $0x30] sm:$0xf]
      %v3073 = vsel %vm1102, %v2917, %v3072
      %3074 = vst [vmem:[%s3043 + $0x30] sm:$0xf] %v3073
      %3075 = vst.msk [vmem:[%s3043 + $0x34] sm:$0xf] %vm1106, %v2926
      %v3076 = vld [vmem:[%s3043 + $0x38] sm:$0x1]
      %v3077 = vsel %vm1109, %v2927, %v3076
      %3078 = vst [vmem:[%s3043 + $0x38] sm:$0x1] %v3077
      %v3079 = vld [vmem:[%s3043 + $0x3c] sm:$0xf]
      %v3080 = vsel %vm1102, %v2934, %v3079
      %3081 = vst [vmem:[%s3043 + $0x3c] sm:$0xf] %v3080
      %3082 = vst.msk [vmem:[%s3043 + $0x40] sm:$0xf] %vm1106, %v2943
      %v3083 = vld [vmem:[%s3043 + $0x44] sm:$0x1]
      %v3084 = vsel %vm1109, %v2944, %v3083
      %3085 = vst [vmem:[%s3043 + $0x44] sm:$0x1] %v3084
      %v3086 = vld [vmem:[%s3043 + $0x48] sm:$0xf]
      %v3087 = vsel %vm1102, %v2951, %v3086
      %3088 = vst [vmem:[%s3043 + $0x48] sm:$0xf] %v3087
      %3089 = vst.msk [vmem:[%s3043 + $0x4c] sm:$0xf] %vm1106, %v2960
      %v3090 = vld [vmem:[%s3043 + $0x50] sm:$0x1]
      %v3091 = vsel %vm1109, %v2961, %v3090
      %3092 = vst [vmem:[%s3043 + $0x50] sm:$0x1] %v3091
      %v3093 = vld [vmem:[%s3043 + $0x54] sm:$0xf]
      %v3094 = vsel %vm1102, %v2968, %v3093
      %3095 = vst [vmem:[%s3043 + $0x54] sm:$0xf] %v3094
      %3096 = vst.msk [vmem:[%s3043 + $0x58] sm:$0xf] %vm1106, %v2977
      %v3097 = vld [vmem:[%s3043 + $0x5c] sm:$0x1]
      %v3098 = vsel %vm1109, %v2978, %v3097
      %3099 = vst [vmem:[%s3043 + $0x5c] sm:$0x1] %v3098
      %v3100 = vld [vmem:[%s3043 + $0x60] sm:$0xf]
      %v3101 = vsel %vm1102, %v2985, %v3100
      %3102 = vst [vmem:[%s3043 + $0x60] sm:$0xf] %v3101
      %3103 = vst.msk [vmem:[%s3043 + $0x64] sm:$0xf] %vm1106, %v2994
      %v3104 = vld [vmem:[%s3043 + $0x68] sm:$0x1]
      %v3105 = vsel %vm1109, %v2995, %v3104
      %3106 = vst [vmem:[%s3043 + $0x68] sm:$0x1] %v3105
      %v3107 = vld [vmem:[%s3043 + $0x6c] sm:$0xf]
      %v3108 = vsel %vm1102, %v3002, %v3107
      %3109 = vst [vmem:[%s3043 + $0x6c] sm:$0xf] %v3108
      %3110 = vst.msk [vmem:[%s3043 + $0x70] sm:$0xf] %vm1106, %v3011
      %v3111 = vld [vmem:[%s3043 + $0x74] sm:$0x1]
      %v3112 = vsel %vm1109, %v3012, %v3111
      %3113 = vst [vmem:[%s3043 + $0x74] sm:$0x1] %v3112
      %v3114 = vld [vmem:[%s3043] sm:$0x1]
      %v3115 = vsel %vm1109, 0, %v3114
      %3116 = vst [vmem:[%s3043] sm:$0x1] %v3115
      %v3117 = vld [vmem:[%s3043 + $0xc] sm:$0x1]
      %v3118 = vsel %vm1109, 0, %v3117
      %3119 = vst [vmem:[%s3043 + $0xc] sm:$0x1] %v3118
      %v3120 = vld [vmem:[%s3043 + $0x18] sm:$0x1]
      %v3121 = vsel %vm1109, 0, %v3120
      %3122 = vst [vmem:[%s3043 + $0x18] sm:$0x1] %v3121
      %v3123 = vld [vmem:[%s3043 + $0x24] sm:$0x1]
      %v3124 = vsel %vm1109, 0, %v3123
      %3125 = vst [vmem:[%s3043 + $0x24] sm:$0x1] %v3124
      %v3126 = vld [vmem:[%s3043 + $0x30] sm:$0x1]
      %v3127 = vsel %vm1109, 0, %v3126
      %3128 = vst [vmem:[%s3043 + $0x30] sm:$0x1] %v3127
      %v3129 = vld [vmem:[%s3043 + $0x3c] sm:$0x1]
      %v3130 = vsel %vm1109, 0, %v3129
      %3131 = vst [vmem:[%s3043 + $0x3c] sm:$0x1] %v3130
      %v3132 = vld [vmem:[%s3043 + $0x48] sm:$0x1]
      %v3133 = vsel %vm1109, 0, %v3132
      %3134 = vst [vmem:[%s3043 + $0x48] sm:$0x1] %v3133
      %v3135 = vld [vmem:[%s3043 + $0x54] sm:$0x1]
      %v3136 = vsel %vm1109, 0, %v3135
      %3137 = vst [vmem:[%s3043 + $0x54] sm:$0x1] %v3136
      %v3138 = vld [vmem:[%s3043 + $0x60] sm:$0x1]
      %v3139 = vsel %vm1109, 0, %v3138
      %3140 = vst [vmem:[%s3043 + $0x60] sm:$0x1] %v3139
      %v3141 = vld [vmem:[%s3043 + $0x6c] sm:$0x1]
      %v3142 = vsel %vm1109, 0, %v3141
      %3143 = vst [vmem:[%s3043 + $0x6c] sm:$0x1] %v3142
      %v3144 = vld [vmem:[%s3043 + $0x8] sm:$0x1]
      %v3145 = vsel %vm1206, 0, %v3144
      %3146 = vst [vmem:[%s3043 + $0x8] sm:$0x1] %v3145
      %v3147 = vld [vmem:[%s3043 + $0x14] sm:$0x1]
      %v3148 = vsel %vm1206, 0, %v3147
      %3149 = vst [vmem:[%s3043 + $0x14] sm:$0x1] %v3148
      %v3150 = vld [vmem:[%s3043 + $0x20] sm:$0x1]
      %v3151 = vsel %vm1206, 0, %v3150
      %3152 = vst [vmem:[%s3043 + $0x20] sm:$0x1] %v3151
      %v3153 = vld [vmem:[%s3043 + $0x2c] sm:$0x1]
      %v3154 = vsel %vm1206, 0, %v3153
      %3155 = vst [vmem:[%s3043 + $0x2c] sm:$0x1] %v3154
      %v3156 = vld [vmem:[%s3043 + $0x38] sm:$0x1]
      %v3157 = vsel %vm1206, 0, %v3156
      %3158 = vst [vmem:[%s3043 + $0x38] sm:$0x1] %v3157
      %v3159 = vld [vmem:[%s3043 + $0x44] sm:$0x1]
      %v3160 = vsel %vm1206, 0, %v3159
      %3161 = vst [vmem:[%s3043 + $0x44] sm:$0x1] %v3160
      %v3162 = vld [vmem:[%s3043 + $0x50] sm:$0x1]
      %v3163 = vsel %vm1206, 0, %v3162
      %3164 = vst [vmem:[%s3043 + $0x50] sm:$0x1] %v3163
      %v3165 = vld [vmem:[%s3043 + $0x5c] sm:$0x1]
      %v3166 = vsel %vm1206, 0, %v3165
      %3167 = vst [vmem:[%s3043 + $0x5c] sm:$0x1] %v3166
      %v3168 = vld [vmem:[%s3043 + $0x68] sm:$0x1]
      %v3169 = vsel %vm1206, 0, %v3168
      %3170 = vst [vmem:[%s3043 + $0x68] sm:$0x1] %v3169
      %v3171 = vld [vmem:[%s3043 + $0x74] sm:$0x1]
      %v3172 = vsel %vm1206, 0, %v3171
      %3173 = vst [vmem:[%s3043 + $0x74] sm:$0x1] %v3172
      // Predicated region
      $region73: #{upconvblock_forward.1} parent=47 // pred_check
        %p3174 = pneg %p1237
      $region74: #{upconvblock_forward.1} parent=47 // pred_check_branch
        %3176 = sbr.rel (%p3174) target = $region76
      $region75: #{upconvblock_forward.1} parent=47 // pred_region
        %3177 = vst.msk [vmem:[%s3043] sm:$0xf] %vm1106, 0
        %3178 = vst.msk [vmem:[%s3043 + $0x4] sm:$0xf] %vm1106, 0
        %vm3179 = vcmask 122880
        %3180 = vst.msk [vmem:[%s3043 + $0x8] sm:$0x1] %vm3179, 0
      $region76: #{upconvblock_forward.1} parent=47 // pred_fallthru
        _
      // Predicated region
      $region77: #{upconvblock_forward.1} parent=47 // pred_check
        %p3181 = pneg %p1245
      $region78: #{upconvblock_forward.1} parent=47 // pred_check_branch
        %3183 = sbr.rel (%p3181) target = $region80
      $region79: #{upconvblock_forward.1} parent=47 // pred_region
        %s3184 = scalar_lea.vmem [#allocation2], 468
        %3185 = vst.msk [vmem:[%s3184] sm:$0xf] %vm1106, 0
        %3186 = vst.msk [vmem:[%s3184 + $0x4] sm:$0xf] %vm1106, 0
        %vm3187 = vcmask 122880
        %3188 = vst.msk [vmem:[%s3184 + $0x8] sm:$0x1] %vm3187, 0
      $region80: #{upconvblock_forward.1} parent=47 // pred_fallthru
        _
      %v3189 = vpack.c.bf16 %v2785, %v2785
      %v3190 = vpack.c.bf16 %v2786, %v2786
      %v3191 = vpack.c.bf16 %v2787, %v2787
      %v3192 = vpack.c.bf16 %v2788, %v2788
      %v3193 = vpack.c.bf16 %v2789, %v2789
      %v3194 = vpack.c.bf16 %v2790, %v2790
      %v3195 = vpack.c.bf16 %v2791, %v2791
      %v3196 = vpack.c.bf16 %v2792, %v2792
      %v3197 = vpack.c.bf16 %v2793, %v2793
      %v3198 = vpack.c.bf16 %v2794, %v2794
      %v3199 = vpack.c.bf16 %v2795, %v2795
      %v3200 = vpack.c.bf16 %v2796, %v2796
      %v3201 = vpack.c.bf16 %v2797, %v2797
      %v3202 = vpack.c.bf16 %v2798, %v2798
      %v3203 = vpack.c.bf16 %v2799, %v2799
      %v3204 = vpack.c.bf16 %v2800, %v2800
      %v3221 = vunpack.c.l.b16 %v1254
      %v3222 = vunpack.c.l.b16 %v1255
      %v3223 = vunpack.c.l.b16 %v1256
      %v3224 = vunpack.c.l.b16 %v1257
      %v3225 = vunpack.c.l.b16 %v1258
      %v3226 = vunpack.c.l.b16 %v1259
      %v3227 = vunpack.c.l.b16 %v1260
      %v3228 = vunpack.c.l.b16 %v1261
      %v3229 = vunpack.c.l.b16 %v1262
      %v3230 = vunpack.c.l.b16 %v1263
      %v3231 = vunpack.c.l.b16 %v1264
      %v3232 = vunpack.c.l.b16 %v1265
      %v3233 = vunpack.c.l.b16 %v1266
      %v3234 = vunpack.c.l.b16 %v1267
      %v3235 = vunpack.c.l.b16 %v1268
      %v3236 = vunpack.c.l.b16 %v1269
      %v3237 = vpack.c.b16 %v3222, %v3221
      %v3238 = vpack.c.b16 %v3224, %v3223
      %v3239 = vpack.c.b16 %v3226, %v3225
      %v3240 = vpack.c.b16 %v3228, %v3227
      %v3241 = vpack.c.b16 %v3230, %v3229
      %v3242 = vpack.c.b16 %v3232, %v3231
      %v3243 = vpack.c.b16 %v3234, %v3233
      %v3244 = vpack.c.b16 %v3236, %v3235
      %3245 = vrot.lane.b32.xlu0 %v3237, 112
      %v3246 = vpop.permute.xlu0 %3245
      %3247 = vrot.lane.b32.xlu0 %v3238, 112
      %v3248 = vpop.permute.xlu0 %3247
      %3249 = vrot.lane.b32.xlu0 %v3239, 112
      %v3250 = vpop.permute.xlu0 %3249
      %3251 = vrot.lane.b32.xlu0 %v3240, 112
      %v3252 = vpop.permute.xlu0 %3251
      %3253 = vrot.lane.b32.xlu0 %v3241, 112
      %v3254 = vpop.permute.xlu0 %3253
      %3255 = vrot.lane.b32.xlu0 %v3242, 112
      %v3256 = vpop.permute.xlu0 %3255
      %3257 = vrot.lane.b32.xlu0 %v3243, 112
      %v3258 = vpop.permute.xlu0 %3257
      %3259 = vrot.lane.b32.xlu0 %v3244, 112
      %v3260 = vpop.permute.xlu0 %3259
      %v3277 = vunpack.c.l.b16 %v2060
      %v3278 = vunpack.c.l.b16 %v2061
      %v3279 = vunpack.c.l.b16 %v2062
      %v3280 = vunpack.c.l.b16 %v2063
      %v3281 = vunpack.c.l.b16 %v2064
      %v3282 = vunpack.c.l.b16 %v2065
      %v3283 = vunpack.c.l.b16 %v2066
      %v3284 = vunpack.c.l.b16 %v2067
      %v3285 = vunpack.c.l.b16 %v2068
      %v3286 = vunpack.c.l.b16 %v2069
      %v3287 = vunpack.c.l.b16 %v2070
      %v3288 = vunpack.c.l.b16 %v2071
      %v3289 = vunpack.c.l.b16 %v2072
      %v3290 = vunpack.c.l.b16 %v2073
      %v3291 = vunpack.c.l.b16 %v2074
      %v3292 = vunpack.c.l.b16 %v2075
      %v3293 = vpack.c.b16 %v3278, %v3277
      %v3294 = vpack.c.b16 %v3280, %v3279
      %v3295 = vpack.c.b16 %v3282, %v3281
      %v3296 = vpack.c.b16 %v3284, %v3283
      %v3297 = vpack.c.b16 %v3286, %v3285
      %v3298 = vpack.c.b16 %v3288, %v3287
      %v3299 = vpack.c.b16 %v3290, %v3289
      %v3300 = vpack.c.b16 %v3292, %v3291
      %v3317 = vunpack.c.l.b16 %v2628
      %v3318 = vunpack.c.l.b16 %v2629
      %v3319 = vunpack.c.l.b16 %v2630
      %v3320 = vunpack.c.l.b16 %v2631
      %v3321 = vunpack.c.l.b16 %v2632
      %v3322 = vunpack.c.l.b16 %v2633
      %v3323 = vunpack.c.l.b16 %v2634
      %v3324 = vunpack.c.l.b16 %v2635
      %v3325 = vunpack.c.l.b16 %v2636
      %v3326 = vunpack.c.l.b16 %v2637
      %v3327 = vunpack.c.l.b16 %v2638
      %v3328 = vunpack.c.l.b16 %v2639
      %v3329 = vunpack.c.l.b16 %v2640
      %v3330 = vunpack.c.l.b16 %v2641
      %v3331 = vunpack.c.l.b16 %v2642
      %v3332 = vunpack.c.l.b16 %v2643
      %v3333 = vpack.c.b16 %v3318, %v3317
      %v3334 = vpack.c.b16 %v3320, %v3319
      %v3335 = vpack.c.b16 %v3322, %v3321
      %v3336 = vpack.c.b16 %v3324, %v3323
      %v3337 = vpack.c.b16 %v3326, %v3325
      %v3338 = vpack.c.b16 %v3328, %v3327
      %v3339 = vpack.c.b16 %v3330, %v3329
      %v3340 = vpack.c.b16 %v3332, %v3331
      %3341 = vrot.lane.b32.xlu0 %v3333, 16
      %v3342 = vpop.permute.xlu0 %3341
      %3343 = vrot.lane.b32.xlu0 %v3334, 16
      %v3344 = vpop.permute.xlu0 %3343
      %3345 = vrot.lane.b32.xlu0 %v3335, 16
      %v3346 = vpop.permute.xlu0 %3345
      %3347 = vrot.lane.b32.xlu0 %v3336, 16
      %v3348 = vpop.permute.xlu0 %3347
      %3349 = vrot.lane.b32.xlu0 %v3337, 16
      %v3350 = vpop.permute.xlu0 %3349
      %3351 = vrot.lane.b32.xlu0 %v3338, 16
      %v3352 = vpop.permute.xlu0 %3351
      %3353 = vrot.lane.b32.xlu0 %v3339, 16
      %v3354 = vpop.permute.xlu0 %3353
      %3355 = vrot.lane.b32.xlu0 %v3340, 16
      %v3356 = vpop.permute.xlu0 %3355
      %v3373 = vunpack.c.l.b16 %v3189
      %v3374 = vunpack.c.l.b16 %v3190
      %v3375 = vunpack.c.l.b16 %v3191
      %v3376 = vunpack.c.l.b16 %v3192
      %v3377 = vunpack.c.l.b16 %v3193
      %v3378 = vunpack.c.l.b16 %v3194
      %v3379 = vunpack.c.l.b16 %v3195
      %v3380 = vunpack.c.l.b16 %v3196
      %v3381 = vunpack.c.l.b16 %v3197
      %v3382 = vunpack.c.l.b16 %v3198
      %v3383 = vunpack.c.l.b16 %v3199
      %v3384 = vunpack.c.l.b16 %v3200
      %v3385 = vunpack.c.l.b16 %v3201
      %v3386 = vunpack.c.l.b16 %v3202
      %v3387 = vunpack.c.l.b16 %v3203
      %v3388 = vunpack.c.l.b16 %v3204
      %v3389 = vpack.c.b16 %v3374, %v3373
      %v3390 = vpack.c.b16 %v3376, %v3375
      %v3391 = vpack.c.b16 %v3378, %v3377
      %v3392 = vpack.c.b16 %v3380, %v3379
      %v3393 = vpack.c.b16 %v3382, %v3381
      %v3394 = vpack.c.b16 %v3384, %v3383
      %v3395 = vpack.c.b16 %v3386, %v3385
      %v3396 = vpack.c.b16 %v3388, %v3387
      %3397 = vrot.lane.b32.xlu0 %v3389, 32
      %v3398 = vpop.permute.xlu0 %3397
      %3399 = vrot.lane.b32.xlu0 %v3390, 32
      %v3400 = vpop.permute.xlu0 %3399
      %3401 = vrot.lane.b32.xlu0 %v3391, 32
      %v3402 = vpop.permute.xlu0 %3401
      %3403 = vrot.lane.b32.xlu0 %v3392, 32
      %v3404 = vpop.permute.xlu0 %3403
      %3405 = vrot.lane.b32.xlu0 %v3393, 32
      %v3406 = vpop.permute.xlu0 %3405
      %3407 = vrot.lane.b32.xlu0 %v3394, 32
      %v3408 = vpop.permute.xlu0 %3407
      %3409 = vrot.lane.b32.xlu0 %v3395, 32
      %v3410 = vpop.permute.xlu0 %3409
      %3411 = vrot.lane.b32.xlu0 %v3396, 32
      %v3412 = vpop.permute.xlu0 %3411
      %v3415 = vsel %vm636, %v3246, %v3293
      %v3418 = vsel %vm636, %v3248, %v3294
      %v3421 = vsel %vm636, %v3250, %v3295
      %v3424 = vsel %vm636, %v3252, %v3296
      %v3427 = vsel %vm636, %v3254, %v3297
      %v3430 = vsel %vm636, %v3256, %v3298
      %v3433 = vsel %vm636, %v3258, %v3299
      %v3436 = vsel %vm636, %v3260, %v3300
      %v3438 = vsel %vm657, %v3415, %v3342
      %v3440 = vsel %vm657, %v3418, %v3344
      %v3442 = vsel %vm657, %v3421, %v3346
      %v3444 = vsel %vm657, %v3424, %v3348
      %v3446 = vsel %vm657, %v3427, %v3350
      %v3448 = vsel %vm657, %v3430, %v3352
      %v3450 = vsel %vm657, %v3433, %v3354
      %v3452 = vsel %vm657, %v3436, %v3356
      %v3454 = vsel %vm678, %v3438, %v3398
      %v3456 = vsel %vm678, %v3440, %v3400
      %v3458 = vsel %vm678, %v3442, %v3402
      %v3460 = vsel %vm678, %v3444, %v3404
      %v3462 = vsel %vm678, %v3446, %v3406
      %v3464 = vsel %vm678, %v3448, %v3408
      %v3466 = vsel %vm678, %v3450, %v3410
      %v3468 = vsel %vm678, %v3452, %v3412
      %v3477 = vunpack.c.l.b16 %v3454
      %v3478 = vunpack.c.h.b16 %v3454
      %v3479 = vunpack.c.l.b16 %v3456
      %v3480 = vunpack.c.h.b16 %v3456
      %v3481 = vunpack.c.l.b16 %v3458
      %v3482 = vunpack.c.h.b16 %v3458
      %v3483 = vunpack.c.l.b16 %v3460
      %v3484 = vunpack.c.h.b16 %v3460
      %v3485 = vunpack.c.l.b16 %v3462
      %v3486 = vunpack.c.h.b16 %v3462
      %v3487 = vunpack.c.l.b16 %v3464
      %v3488 = vunpack.c.h.b16 %v3464
      %v3489 = vunpack.c.l.b16 %v3466
      %v3490 = vunpack.c.h.b16 %v3466
      %v3491 = vunpack.c.l.b16 %v3468
      %v3492 = vunpack.c.h.b16 %v3468
      %v3493 = vpack.c.b16 %v3477, %v3477
      %v3494 = vpack.c.b16 %v3478, %v3478
      %v3495 = vpack.c.b16 %v3479, %v3479
      %v3496 = vpack.c.b16 %v3480, %v3480
      %v3497 = vpack.c.b16 %v3481, %v3481
      %v3498 = vpack.c.b16 %v3482, %v3482
      %v3499 = vpack.c.b16 %v3483, %v3483
      %v3500 = vpack.c.b16 %v3484, %v3484
      %v3501 = vpack.c.b16 %v3485, %v3485
      %v3502 = vpack.c.b16 %v3486, %v3486
      %v3503 = vpack.c.b16 %v3487, %v3487
      %v3504 = vpack.c.b16 %v3488, %v3488
      %v3505 = vpack.c.b16 %v3489, %v3489
      %v3506 = vpack.c.b16 %v3490, %v3490
      %v3507 = vpack.c.b16 %v3491, %v3491
      %v3508 = vpack.c.b16 %v3492, %v3492
      %vm3525 = vcmask 519168
      %3526 = vst.msk [vmem:[%s314] sm:$0xf] %vm3525, %v3493
      %3527 = vst.msk [vmem:[%s314 + $0x4] sm:$0xf] %vm3525, %v3494
      %3528 = vst.msk [vmem:[%s314 + $0x8] sm:$0xf] %vm3525, %v3495
      %3529 = vst.msk [vmem:[%s314 + $0xc] sm:$0xf] %vm3525, %v3496
      %3530 = vst.msk [vmem:[%s314 + $0x10] sm:$0xf] %vm3525, %v3497
      %3531 = vst.msk [vmem:[%s314 + $0x14] sm:$0xf] %vm3525, %v3498
      %3532 = vst.msk [vmem:[%s314 + $0x18] sm:$0xf] %vm3525, %v3499
      %3533 = vst.msk [vmem:[%s314 + $0x1c] sm:$0xf] %vm3525, %v3500
      %3534 = vst.msk [vmem:[%s314 + $0x20] sm:$0xf] %vm3525, %v3501
      %3535 = vst.msk [vmem:[%s314 + $0x24] sm:$0xf] %vm3525, %v3502
      %3536 = vst.msk [vmem:[%s314 + $0x28] sm:$0xf] %vm3525, %v3503
      %3537 = vst.msk [vmem:[%s314 + $0x2c] sm:$0xf] %vm3525, %v3504
      %3538 = vst.msk [vmem:[%s314 + $0x30] sm:$0xf] %vm3525, %v3505
      %3539 = vst.msk [vmem:[%s314 + $0x34] sm:$0xf] %vm3525, %v3506
      %3540 = vst.msk [vmem:[%s314 + $0x38] sm:$0xf] %vm3525, %v3507
      %3541 = vst.msk [vmem:[%s314 + $0x3c] sm:$0xf] %vm3525, %v3508
      %v3542 = vld [vmem:[%s5] sm:$0x1]
      %v3543 = vld [vmem:[%s6] sm:$0x1]
      %v3544 = vld [vmem:[%s3043] sm:$0xf]
      %v3545 = vld [vmem:[%s3043 + $0x4] sm:$0xf]
      %v3546 = vld [vmem:[%s3043 + $0xc] sm:$0xf]
      %v3547 = vld [vmem:[%s3043 + $0x10] sm:$0xf]
      %v3548 = vld [vmem:[%s3043 + $0x18] sm:$0xf]
      %v3549 = vld [vmem:[%s3043 + $0x1c] sm:$0xf]
      %v3550 = vld [vmem:[%s3043 + $0x24] sm:$0xf]
      %v3551 = vld [vmem:[%s3043 + $0x28] sm:$0xf]
      %v3552 = vld [vmem:[%s3043 + $0x30] sm:$0xf]
      %v3553 = vld [vmem:[%s3043 + $0x34] sm:$0xf]
      %v3554 = vld [vmem:[%s3043 + $0x3c] sm:$0xf]
      %v3555 = vld [vmem:[%s3043 + $0x40] sm:$0xf]
      %v3556 = vld [vmem:[%s3043 + $0x48] sm:$0xf]
      %v3557 = vld [vmem:[%s3043 + $0x4c] sm:$0xf]
      %v3558 = vld [vmem:[%s3043 + $0x54] sm:$0xf]
      %v3559 = vld [vmem:[%s3043 + $0x58] sm:$0xf]
      %v3560 = vld [vmem:[%s2] sm:$0xf]
      %v3561 = vld [vmem:[%s2 + $0x4] sm:$0xf]
      %v3562 = vld [vmem:[%s2482] sm:$0xf]
      %v3563 = vld [vmem:[%s2482 + $0x4] sm:$0xf]
      %v3564 = vld [vmem:[%s2482 + $0x8] sm:$0x1]
      %v3565 = vld [vmem:[%s2482 + $0xc] sm:$0xf]
      %v3566 = vld [vmem:[%s2482 + $0x10] sm:$0xf]
      %v3567 = vld [vmem:[%s2482 + $0x14] sm:$0x1]
      %v3568 = vld [vmem:[%s2482 + $0x18] sm:$0xf]
      %v3569 = vld [vmem:[%s2482 + $0x1c] sm:$0xf]
      %v3570 = vld [vmem:[%s2482 + $0x20] sm:$0x1]
      %v3571 = vld [vmem:[%s2482 + $0x24] sm:$0xf]
      %v3572 = vld [vmem:[%s2482 + $0x28] sm:$0xf]
      %v3573 = vld [vmem:[%s2482 + $0x2c] sm:$0x1]
      %v3574 = vld [vmem:[%s2482 + $0x30] sm:$0xf]
      %v3575 = vld [vmem:[%s2482 + $0x34] sm:$0xf]
      %v3576 = vld [vmem:[%s2482 + $0x38] sm:$0x1]
      %v3577 = vld [vmem:[%s2482 + $0x3c] sm:$0xf]
      %v3578 = vld [vmem:[%s2482 + $0x40] sm:$0xf]
      %v3579 = vld [vmem:[%s2482 + $0x44] sm:$0x1]
      %v3580 = vld [vmem:[%s2482 + $0x48] sm:$0xf]
      %v3581 = vld [vmem:[%s2482 + $0x4c] sm:$0xf]
      %v3582 = vld [vmem:[%s2482 + $0x50] sm:$0x1]
      %v3583 = vld [vmem:[%s2482 + $0x54] sm:$0xf]
      %v3584 = vld [vmem:[%s2482 + $0x58] sm:$0xf]
      %v3585 = vld [vmem:[%s2482 + $0x5c] sm:$0x1]
      %vm3586 = vsmask.f32 3328
      %vm3587 = vsmask.f32 7440
      %vm3588 = vmor %vm3586, %vm3587
      %v3590 = vshrl.u32 %v3562, 16
      %v3592 = vrot.slane %v3590, 4
      %v3593 = vshll.u32 %v3562, 16
      %v3595 = vrot.slane %v3593, 5
      %v3596 = vor.u32 %v3592, %v3595
      %v3597 = vrot.slane %v3596, 4
      %v3599 = vshll.u32 %v3563, 16
      %v3601 = vrot.slane %v3599, 5
      %v3602 = vsel %vm3588, %v3597, %v3601
      %v3603 = vshrl.u32 %v3563, 16
      %v3605 = vrot.slane %v3603, 4
      %v3606 = vor.u32 %v3605, %v3601
      %v3607 = vrot.slane %v3606, 4
      %v3609 = vshll.u32 %v3564, 16
      %v3611 = vrot.slane %v3609, 5
      %v3612 = vsel %vm3588, %v3607, %v3611
      %v3614 = vshrl.u32 %v3565, 16
      %v3616 = vrot.slane %v3614, 4
      %v3617 = vshll.u32 %v3565, 16
      %v3619 = vrot.slane %v3617, 5
      %v3620 = vor.u32 %v3616, %v3619
      %v3621 = vrot.slane %v3620, 4
      %v3623 = vshll.u32 %v3566, 16
      %v3625 = vrot.slane %v3623, 5
      %v3626 = vsel %vm3588, %v3621, %v3625
      %v3627 = vshrl.u32 %v3566, 16
      %v3629 = vrot.slane %v3627, 4
      %v3630 = vor.u32 %v3629, %v3625
      %v3631 = vrot.slane %v3630, 4
      %v3633 = vshll.u32 %v3567, 16
      %v3635 = vrot.slane %v3633, 5
      %v3636 = vsel %vm3588, %v3631, %v3635
      %v3638 = vshrl.u32 %v3568, 16
      %v3640 = vrot.slane %v3638, 4
      %v3641 = vshll.u32 %v3568, 16
      %v3643 = vrot.slane %v3641, 5
      %v3644 = vor.u32 %v3640, %v3643
      %v3645 = vrot.slane %v3644, 4
      %v3647 = vshll.u32 %v3569, 16
      %v3649 = vrot.slane %v3647, 5
      %v3650 = vsel %vm3588, %v3645, %v3649
      %v3651 = vshrl.u32 %v3569, 16
      %v3653 = vrot.slane %v3651, 4
      %v3654 = vor.u32 %v3653, %v3649
      %v3655 = vrot.slane %v3654, 4
      %v3657 = vshll.u32 %v3570, 16
      %v3659 = vrot.slane %v3657, 5
      %v3660 = vsel %vm3588, %v3655, %v3659
      %v3662 = vshrl.u32 %v3571, 16
      %v3664 = vrot.slane %v3662, 4
      %v3665 = vshll.u32 %v3571, 16
      %v3667 = vrot.slane %v3665, 5
      %v3668 = vor.u32 %v3664, %v3667
      %v3669 = vrot.slane %v3668, 4
      %v3671 = vshll.u32 %v3572, 16
      %v3673 = vrot.slane %v3671, 5
      %v3674 = vsel %vm3588, %v3669, %v3673
      %v3675 = vshrl.u32 %v3572, 16
      %v3677 = vrot.slane %v3675, 4
      %v3678 = vor.u32 %v3677, %v3673
      %v3679 = vrot.slane %v3678, 4
      %v3681 = vshll.u32 %v3573, 16
      %v3683 = vrot.slane %v3681, 5
      %v3684 = vsel %vm3588, %v3679, %v3683
      %v3686 = vshrl.u32 %v3574, 16
      %v3688 = vrot.slane %v3686, 4
      %v3689 = vshll.u32 %v3574, 16
      %v3691 = vrot.slane %v3689, 5
      %v3692 = vor.u32 %v3688, %v3691
      %v3693 = vrot.slane %v3692, 4
      %v3695 = vshll.u32 %v3575, 16
      %v3697 = vrot.slane %v3695, 5
      %v3698 = vsel %vm3588, %v3693, %v3697
      %v3699 = vshrl.u32 %v3575, 16
      %v3701 = vrot.slane %v3699, 4
      %v3702 = vor.u32 %v3701, %v3697
      %v3703 = vrot.slane %v3702, 4
      %v3705 = vshll.u32 %v3576, 16
      %v3707 = vrot.slane %v3705, 5
      %v3708 = vsel %vm3588, %v3703, %v3707
      %v3710 = vshrl.u32 %v3577, 16
      %v3712 = vrot.slane %v3710, 4
      %v3713 = vshll.u32 %v3577, 16
      %v3715 = vrot.slane %v3713, 5
      %v3716 = vor.u32 %v3712, %v3715
      %v3717 = vrot.slane %v3716, 4
      %v3719 = vshll.u32 %v3578, 16
      %v3721 = vrot.slane %v3719, 5
      %v3722 = vsel %vm3588, %v3717, %v3721
      %v3723 = vshrl.u32 %v3578, 16
      %v3725 = vrot.slane %v3723, 4
      %v3726 = vor.u32 %v3725, %v3721
      %v3727 = vrot.slane %v3726, 4
      %v3729 = vshll.u32 %v3579, 16
      %v3731 = vrot.slane %v3729, 5
      %v3732 = vsel %vm3588, %v3727, %v3731
      %v3734 = vshrl.u32 %v3580, 16
      %v3736 = vrot.slane %v3734, 4
      %v3737 = vshll.u32 %v3580, 16
      %v3739 = vrot.slane %v3737, 5
      %v3740 = vor.u32 %v3736, %v3739
      %v3741 = vrot.slane %v3740, 4
      %v3743 = vshll.u32 %v3581, 16
      %v3745 = vrot.slane %v3743, 5
      %v3746 = vsel %vm3588, %v3741, %v3745
      %v3747 = vshrl.u32 %v3581, 16
      %v3749 = vrot.slane %v3747, 4
      %v3750 = vor.u32 %v3749, %v3745
      %v3751 = vrot.slane %v3750, 4
      %v3753 = vshll.u32 %v3582, 16
      %v3755 = vrot.slane %v3753, 5
      %v3756 = vsel %vm3588, %v3751, %v3755
      %v3758 = vshrl.u32 %v3583, 16
      %v3760 = vrot.slane %v3758, 4
      %v3761 = vshll.u32 %v3583, 16
      %v3763 = vrot.slane %v3761, 5
      %v3764 = vor.u32 %v3760, %v3763
      %v3765 = vrot.slane %v3764, 4
      %v3767 = vshll.u32 %v3584, 16
      %v3769 = vrot.slane %v3767, 5
      %v3770 = vsel %vm3588, %v3765, %v3769
      %v3771 = vshrl.u32 %v3584, 16
      %v3773 = vrot.slane %v3771, 4
      %v3774 = vor.u32 %v3773, %v3769
      %v3775 = vrot.slane %v3774, 4
      %v3777 = vshll.u32 %v3585, 16
      %v3779 = vrot.slane %v3777, 5
      %v3780 = vsel %vm3588, %v3775, %v3779
      %s3781 = scalar_lea.vmem %s2, 8
      %v3782 = vld [vmem:[%s3781] sm:$0xf]
      %v3783 = vld [vmem:[%s3781 + $0x4] sm:$0xf]
      %v3784 = vunpack.c.l.b16 %v3602
      %v3785 = vunpack.c.l.b16 %v3612
      %v3786 = vunpack.c.l.b16 %v3626
      %v3787 = vunpack.c.l.b16 %v3636
      %v3788 = vunpack.c.l.b16 %v3650
      %v3789 = vunpack.c.l.b16 %v3660
      %v3790 = vunpack.c.l.b16 %v3674
      %v3791 = vunpack.c.l.b16 %v3684
      %v3792 = vunpack.c.l.b16 %v3698
      %v3793 = vunpack.c.l.b16 %v3708
      %v3794 = vunpack.c.l.b16 %v3722
      %v3795 = vunpack.c.l.b16 %v3732
      %v3796 = vunpack.c.l.b16 %v3746
      %v3797 = vunpack.c.l.b16 %v3756
      %v3798 = vunpack.c.l.b16 %v3770
      %v3799 = vunpack.c.l.b16 %v3780
      %v3800 = vpack.c.b16 %v3785, %v3784
      %v3801 = vpack.c.b16 %v3787, %v3786
      %v3802 = vpack.c.b16 %v3789, %v3788
      %v3803 = vpack.c.b16 %v3791, %v3790
      %v3804 = vpack.c.b16 %v3793, %v3792
      %v3805 = vpack.c.b16 %v3795, %v3794
      %v3806 = vpack.c.b16 %v3797, %v3796
      %v3807 = vpack.c.b16 %v3799, %v3798
      %v3810 = vunpack.c.l.b16 %v3782
      %v3811 = vunpack.c.l.b16 %v3783
      %v3812 = vpack.c.b16 %v3811, %v3810
      %v3815 = vsel %vm636, %v3800, 0
      %v3818 = vsel %vm636, %v3801, 0
      %v3821 = vsel %vm636, %v3802, 0
      %v3824 = vsel %vm636, %v3803, 0
      %v3827 = vsel %vm636, %v3804, 0
      %v3830 = vsel %vm636, %v3805, 0
      %v3833 = vsel %vm636, %v3806, 0
      %v3836 = vsel %vm636, %v3807, 0
      %3838 = vmatpush.bf16.msra.mxu0 0
      %3839 = vmatpush.bf16.msra.mxu0 0
      %3840 = vmatpush.bf16.msra.mxu0 0
      %3841 = vmatpush.bf16.msra.mxu0 0
      %3842 = vmatpush.bf16.msra.mxu0 0
      %3843 = vmatpush.bf16.msra.mxu0 0
      %3844 = vmatpush.bf16.msra.mxu0 0
      %3845 = vmatpush.bf16.msra.mxu0 %v3812
      %3846 = vmatmul.bf16.gmra.mxu0 %v3815
      %v3847 = vpop.f32.mrf.mxu0
      %v3848 = vadd.f32 0.0, %v3847
      %v3849 = vpop.f32.mrf.mxu0
      %v3850 = vadd.f32 0.0, %v3849
      %3851 = vmatmul.bf16.gmra.mxu0 %v3818
      %v3852 = vpop.f32.mrf.mxu0
      %v3853 = vadd.f32 0.0, %v3852
      %v3854 = vpop.f32.mrf.mxu0
      %v3855 = vadd.f32 0.0, %v3854
      %3856 = vmatmul.bf16.gmra.mxu0 %v3821
      %v3857 = vpop.f32.mrf.mxu0
      %v3858 = vadd.f32 0.0, %v3857
      %v3859 = vpop.f32.mrf.mxu0
      %v3860 = vadd.f32 0.0, %v3859
      %3861 = vmatmul.bf16.gmra.mxu0 %v3824
      %v3862 = vpop.f32.mrf.mxu0
      %v3863 = vadd.f32 0.0, %v3862
      %v3864 = vpop.f32.mrf.mxu0
      %v3865 = vadd.f32 0.0, %v3864
      %3866 = vmatmul.bf16.gmra.mxu0 %v3827
      %v3867 = vpop.f32.mrf.mxu0
      %v3868 = vadd.f32 0.0, %v3867
      %v3869 = vpop.f32.mrf.mxu0
      %v3870 = vadd.f32 0.0, %v3869
      %3871 = vmatmul.bf16.gmra.mxu0 %v3830
      %v3872 = vpop.f32.mrf.mxu0
      %v3873 = vadd.f32 0.0, %v3872
      %v3874 = vpop.f32.mrf.mxu0
      %v3875 = vadd.f32 0.0, %v3874
      %3876 = vmatmul.bf16.gmra.mxu0 %v3833
      %v3877 = vpop.f32.mrf.mxu0
      %v3878 = vadd.f32 0.0, %v3877
      %v3879 = vpop.f32.mrf.mxu0
      %v3880 = vadd.f32 0.0, %v3879
      %3881 = vmatmul.bf16.gmra.mxu0 %v3836
      %v3882 = vpop.f32.mrf.mxu0
      %v3883 = vadd.f32 0.0, %v3882
      %v3884 = vpop.f32.mrf.mxu0
      %v3885 = vadd.f32 0.0, %v3884
      %3886 = vdwg.mxu0
      %v3903 = vunpack.c.l.b16 %v3544
      %v3904 = vunpack.c.l.b16 %v3545
      %v3905 = vunpack.c.l.b16 %v3546
      %v3906 = vunpack.c.l.b16 %v3547
      %v3907 = vunpack.c.l.b16 %v3548
      %v3908 = vunpack.c.l.b16 %v3549
      %v3909 = vunpack.c.l.b16 %v3550
      %v3910 = vunpack.c.l.b16 %v3551
      %v3911 = vunpack.c.l.b16 %v3552
      %v3912 = vunpack.c.l.b16 %v3553
      %v3913 = vunpack.c.l.b16 %v3554
      %v3914 = vunpack.c.l.b16 %v3555
      %v3915 = vunpack.c.l.b16 %v3556
      %v3916 = vunpack.c.l.b16 %v3557
      %v3917 = vunpack.c.l.b16 %v3558
      %v3918 = vunpack.c.l.b16 %v3559
      %v3919 = vpack.c.b16 %v3904, %v3903
      %v3920 = vpack.c.b16 %v3906, %v3905
      %v3921 = vpack.c.b16 %v3908, %v3907
      %v3922 = vpack.c.b16 %v3910, %v3909
      %v3923 = vpack.c.b16 %v3912, %v3911
      %v3924 = vpack.c.b16 %v3914, %v3913
      %v3925 = vpack.c.b16 %v3916, %v3915
      %v3926 = vpack.c.b16 %v3918, %v3917
      %v3929 = vunpack.c.l.b16 %v3560
      %v3930 = vunpack.c.l.b16 %v3561
      %v3931 = vpack.c.b16 %v3930, %v3929
      %v3934 = vsel %vm636, %v3919, 0
      %v3937 = vsel %vm636, %v3920, 0
      %v3940 = vsel %vm636, %v3921, 0
      %v3943 = vsel %vm636, %v3922, 0
      %v3946 = vsel %vm636, %v3923, 0
      %v3949 = vsel %vm636, %v3924, 0
      %v3952 = vsel %vm636, %v3925, 0
      %v3955 = vsel %vm636, %v3926, 0
      %3957 = vmatpush.bf16.msra.mxu0 0
      %3958 = vmatpush.bf16.msra.mxu0 0
      %3959 = vmatpush.bf16.msra.mxu0 0
      %3960 = vmatpush.bf16.msra.mxu0 0
      %3961 = vmatpush.bf16.msra.mxu0 0
      %3962 = vmatpush.bf16.msra.mxu0 0
      %3963 = vmatpush.bf16.msra.mxu0 0
      %3964 = vmatpush.bf16.msra.mxu0 %v3931
      %3965 = vmatmul.bf16.gmra.mxu0 %v3934
      %v3966 = vpop.f32.mrf.mxu0
      %v3967 = vadd.f32 %v3848, %v3966
      %v3968 = vpop.f32.mrf.mxu0
      %v3969 = vadd.f32 %v3850, %v3968
      %3970 = vmatmul.bf16.gmra.mxu0 %v3937
      %v3971 = vpop.f32.mrf.mxu0
      %v3972 = vadd.f32 %v3853, %v3971
      %v3973 = vpop.f32.mrf.mxu0
      %v3974 = vadd.f32 %v3855, %v3973
      %3975 = vmatmul.bf16.gmra.mxu0 %v3940
      %v3976 = vpop.f32.mrf.mxu0
      %v3977 = vadd.f32 %v3858, %v3976
      %v3978 = vpop.f32.mrf.mxu0
      %v3979 = vadd.f32 %v3860, %v3978
      %3980 = vmatmul.bf16.gmra.mxu0 %v3943
      %v3981 = vpop.f32.mrf.mxu0
      %v3982 = vadd.f32 %v3863, %v3981
      %v3983 = vpop.f32.mrf.mxu0
      %v3984 = vadd.f32 %v3865, %v3983
      %3985 = vmatmul.bf16.gmra.mxu0 %v3946
      %v3986 = vpop.f32.mrf.mxu0
      %v3987 = vadd.f32 %v3868, %v3986
      %v3988 = vpop.f32.mrf.mxu0
      %v3989 = vadd.f32 %v3870, %v3988
      %3990 = vmatmul.bf16.gmra.mxu0 %v3949
      %v3991 = vpop.f32.mrf.mxu0
      %v3992 = vadd.f32 %v3873, %v3991
      %v3993 = vpop.f32.mrf.mxu0
      %v3994 = vadd.f32 %v3875, %v3993
      %3995 = vmatmul.bf16.gmra.mxu0 %v3952
      %v3996 = vpop.f32.mrf.mxu0
      %v3997 = vadd.f32 %v3878, %v3996
      %v3998 = vpop.f32.mrf.mxu0
      %v3999 = vadd.f32 %v3880, %v3998
      %4000 = vmatmul.bf16.gmra.mxu0 %v3955
      %v4001 = vpop.f32.mrf.mxu0
      %v4002 = vadd.f32 %v3883, %v4001
      %v4003 = vpop.f32.mrf.mxu0
      %v4004 = vadd.f32 %v3885, %v4003
      %4005 = vdwg.mxu0
      %v4006 = vld [vmem:[%s3043] sm:$0xf]
      %v4007 = vld [vmem:[%s3043 + $0x4] sm:$0xf]
      %v4008 = vld [vmem:[%s3043 + $0x8] sm:$0x1]
      %v4009 = vld [vmem:[%s3043 + $0xc] sm:$0xf]
      %v4010 = vld [vmem:[%s3043 + $0x10] sm:$0xf]
      %v4011 = vld [vmem:[%s3043 + $0x14] sm:$0x1]
      %v4012 = vld [vmem:[%s3043 + $0x18] sm:$0xf]
      %v4013 = vld [vmem:[%s3043 + $0x1c] sm:$0xf]
      %v4014 = vld [vmem:[%s3043 + $0x20] sm:$0x1]
      %v4015 = vld [vmem:[%s3043 + $0x24] sm:$0xf]
      %v4016 = vld [vmem:[%s3043 + $0x28] sm:$0xf]
      %v4017 = vld [vmem:[%s3043 + $0x2c] sm:$0x1]
      %v4018 = vld [vmem:[%s3043 + $0x30] sm:$0xf]
      %v4019 = vld [vmem:[%s3043 + $0x34] sm:$0xf]
      %v4020 = vld [vmem:[%s3043 + $0x38] sm:$0x1]
      %v4021 = vld [vmem:[%s3043 + $0x3c] sm:$0xf]
      %v4022 = vld [vmem:[%s3043 + $0x40] sm:$0xf]
      %v4023 = vld [vmem:[%s3043 + $0x44] sm:$0x1]
      %v4024 = vld [vmem:[%s3043 + $0x48] sm:$0xf]
      %v4025 = vld [vmem:[%s3043 + $0x4c] sm:$0xf]
      %v4026 = vld [vmem:[%s3043 + $0x50] sm:$0x1]
      %v4027 = vld [vmem:[%s3043 + $0x54] sm:$0xf]
      %v4028 = vld [vmem:[%s3043 + $0x58] sm:$0xf]
      %v4029 = vld [vmem:[%s3043 + $0x5c] sm:$0x1]
      %v4031 = vshrl.u32 %v4006, 16
      %v4033 = vrot.slane %v4031, 4
      %v4034 = vshll.u32 %v4006, 16
      %v4036 = vrot.slane %v4034, 5
      %v4037 = vor.u32 %v4033, %v4036
      %v4038 = vrot.slane %v4037, 4
      %v4040 = vshll.u32 %v4007, 16
      %v4042 = vrot.slane %v4040, 5
      %v4043 = vsel %vm3588, %v4038, %v4042
      %v4044 = vshrl.u32 %v4007, 16
      %v4046 = vrot.slane %v4044, 4
      %v4047 = vor.u32 %v4046, %v4042
      %v4048 = vrot.slane %v4047, 4
      %v4050 = vshll.u32 %v4008, 16
      %v4052 = vrot.slane %v4050, 5
      %v4053 = vsel %vm3588, %v4048, %v4052
      %v4055 = vshrl.u32 %v4009, 16
      %v4057 = vrot.slane %v4055, 4
      %v4058 = vshll.u32 %v4009, 16
      %v4060 = vrot.slane %v4058, 5
      %v4061 = vor.u32 %v4057, %v4060
      %v4062 = vrot.slane %v4061, 4
      %v4064 = vshll.u32 %v4010, 16
      %v4066 = vrot.slane %v4064, 5
      %v4067 = vsel %vm3588, %v4062, %v4066
      %v4068 = vshrl.u32 %v4010, 16
      %v4070 = vrot.slane %v4068, 4
      %v4071 = vor.u32 %v4070, %v4066
      %v4072 = vrot.slane %v4071, 4
      %v4074 = vshll.u32 %v4011, 16
      %v4076 = vrot.slane %v4074, 5
      %v4077 = vsel %vm3588, %v4072, %v4076
      %v4079 = vshrl.u32 %v4012, 16
      %v4081 = vrot.slane %v4079, 4
      %v4082 = vshll.u32 %v4012, 16
      %v4084 = vrot.slane %v4082, 5
      %v4085 = vor.u32 %v4081, %v4084
      %v4086 = vrot.slane %v4085, 4
      %v4088 = vshll.u32 %v4013, 16
      %v4090 = vrot.slane %v4088, 5
      %v4091 = vsel %vm3588, %v4086, %v4090
      %v4092 = vshrl.u32 %v4013, 16
      %v4094 = vrot.slane %v4092, 4
      %v4095 = vor.u32 %v4094, %v4090
      %v4096 = vrot.slane %v4095, 4
      %v4098 = vshll.u32 %v4014, 16
      %v4100 = vrot.slane %v4098, 5
      %v4101 = vsel %vm3588, %v4096, %v4100
      %v4103 = vshrl.u32 %v4015, 16
      %v4105 = vrot.slane %v4103, 4
      %v4106 = vshll.u32 %v4015, 16
      %v4108 = vrot.slane %v4106, 5
      %v4109 = vor.u32 %v4105, %v4108
      %v4110 = vrot.slane %v4109, 4
      %v4112 = vshll.u32 %v4016, 16
      %v4114 = vrot.slane %v4112, 5
      %v4115 = vsel %vm3588, %v4110, %v4114
      %v4116 = vshrl.u32 %v4016, 16
      %v4118 = vrot.slane %v4116, 4
      %v4119 = vor.u32 %v4118, %v4114
      %v4120 = vrot.slane %v4119, 4
      %v4122 = vshll.u32 %v4017, 16
      %v4124 = vrot.slane %v4122, 5
      %v4125 = vsel %vm3588, %v4120, %v4124
      %v4127 = vshrl.u32 %v4018, 16
      %v4129 = vrot.slane %v4127, 4
      %v4130 = vshll.u32 %v4018, 16
      %v4132 = vrot.slane %v4130, 5
      %v4133 = vor.u32 %v4129, %v4132
      %v4134 = vrot.slane %v4133, 4
      %v4136 = vshll.u32 %v4019, 16
      %v4138 = vrot.slane %v4136, 5
      %v4139 = vsel %vm3588, %v4134, %v4138
      %v4140 = vshrl.u32 %v4019, 16
      %v4142 = vrot.slane %v4140, 4
      %v4143 = vor.u32 %v4142, %v4138
      %v4144 = vrot.slane %v4143, 4
      %v4146 = vshll.u32 %v4020, 16
      %v4148 = vrot.slane %v4146, 5
      %v4149 = vsel %vm3588, %v4144, %v4148
      %v4151 = vshrl.u32 %v4021, 16
      %v4153 = vrot.slane %v4151, 4
      %v4154 = vshll.u32 %v4021, 16
      %v4156 = vrot.slane %v4154, 5
      %v4157 = vor.u32 %v4153, %v4156
      %v4158 = vrot.slane %v4157, 4
      %v4160 = vshll.u32 %v4022, 16
      %v4162 = vrot.slane %v4160, 5
      %v4163 = vsel %vm3588, %v4158, %v4162
      %v4164 = vshrl.u32 %v4022, 16
      %v4166 = vrot.slane %v4164, 4
      %v4167 = vor.u32 %v4166, %v4162
      %v4168 = vrot.slane %v4167, 4
      %v4170 = vshll.u32 %v4023, 16
      %v4172 = vrot.slane %v4170, 5
      %v4173 = vsel %vm3588, %v4168, %v4172
      %v4175 = vshrl.u32 %v4024, 16
      %v4177 = vrot.slane %v4175, 4
      %v4178 = vshll.u32 %v4024, 16
      %v4180 = vrot.slane %v4178, 5
      %v4181 = vor.u32 %v4177, %v4180
      %v4182 = vrot.slane %v4181, 4
      %v4184 = vshll.u32 %v4025, 16
      %v4186 = vrot.slane %v4184, 5
      %v4187 = vsel %vm3588, %v4182, %v4186
      %v4188 = vshrl.u32 %v4025, 16
      %v4190 = vrot.slane %v4188, 4
      %v4191 = vor.u32 %v4190, %v4186
      %v4192 = vrot.slane %v4191, 4
      %v4194 = vshll.u32 %v4026, 16
      %v4196 = vrot.slane %v4194, 5
      %v4197 = vsel %vm3588, %v4192, %v4196
      %v4199 = vshrl.u32 %v4027, 16
      %v4201 = vrot.slane %v4199, 4
      %v4202 = vshll.u32 %v4027, 16
      %v4204 = vrot.slane %v4202, 5
      %v4205 = vor.u32 %v4201, %v4204
      %v4206 = vrot.slane %v4205, 4
      %v4208 = vshll.u32 %v4028, 16
      %v4210 = vrot.slane %v4208, 5
      %v4211 = vsel %vm3588, %v4206, %v4210
      %v4212 = vshrl.u32 %v4028, 16
      %v4214 = vrot.slane %v4212, 4
      %v4215 = vor.u32 %v4214, %v4210
      %v4216 = vrot.slane %v4215, 4
      %v4218 = vshll.u32 %v4029, 16
      %v4220 = vrot.slane %v4218, 5
      %v4221 = vsel %vm3588, %v4216, %v4220
      %s4222 = scalar_lea.vmem %s2, 16
      %v4223 = vld [vmem:[%s4222] sm:$0xf]
      %v4224 = vld [vmem:[%s4222 + $0x4] sm:$0xf]
      %v4225 = vunpack.c.l.b16 %v4043
      %v4226 = vunpack.c.l.b16 %v4053
      %v4227 = vunpack.c.l.b16 %v4067
      %v4228 = vunpack.c.l.b16 %v4077
      %v4229 = vunpack.c.l.b16 %v4091
      %v4230 = vunpack.c.l.b16 %v4101
      %v4231 = vunpack.c.l.b16 %v4115
      %v4232 = vunpack.c.l.b16 %v4125
      %v4233 = vunpack.c.l.b16 %v4139
      %v4234 = vunpack.c.l.b16 %v4149
      %v4235 = vunpack.c.l.b16 %v4163
      %v4236 = vunpack.c.l.b16 %v4173
      %v4237 = vunpack.c.l.b16 %v4187
      %v4238 = vunpack.c.l.b16 %v4197
      %v4239 = vunpack.c.l.b16 %v4211
      %v4240 = vunpack.c.l.b16 %v4221
      %v4241 = vpack.c.b16 %v4226, %v4225
      %v4242 = vpack.c.b16 %v4228, %v4227
      %v4243 = vpack.c.b16 %v4230, %v4229
      %v4244 = vpack.c.b16 %v4232, %v4231
      %v4245 = vpack.c.b16 %v4234, %v4233
      %v4246 = vpack.c.b16 %v4236, %v4235
      %v4247 = vpack.c.b16 %v4238, %v4237
      %v4248 = vpack.c.b16 %v4240, %v4239
      %v4251 = vunpack.c.l.b16 %v4223
      %v4252 = vunpack.c.l.b16 %v4224
      %v4253 = vpack.c.b16 %v4252, %v4251
      %v4256 = vsel %vm636, %v4241, 0
      %v4259 = vsel %vm636, %v4242, 0
      %v4262 = vsel %vm636, %v4243, 0
      %v4265 = vsel %vm636, %v4244, 0
      %v4268 = vsel %vm636, %v4245, 0
      %v4271 = vsel %vm636, %v4246, 0
      %v4274 = vsel %vm636, %v4247, 0
      %v4277 = vsel %vm636, %v4248, 0
      %4279 = vmatpush.bf16.msra.mxu0 0
      %4280 = vmatpush.bf16.msra.mxu0 0
      %4281 = vmatpush.bf16.msra.mxu0 0
      %4282 = vmatpush.bf16.msra.mxu0 0
      %4283 = vmatpush.bf16.msra.mxu0 0
      %4284 = vmatpush.bf16.msra.mxu0 0
      %4285 = vmatpush.bf16.msra.mxu0 0
      %4286 = vmatpush.bf16.msra.mxu0 %v4253
      %4287 = vmatmul.bf16.gmra.mxu0 %v4256
      %v4288 = vpop.f32.mrf.mxu0
      %v4289 = vadd.f32 0.0, %v4288
      %v4290 = vpop.f32.mrf.mxu0
      %v4291 = vadd.f32 0.0, %v4290
      %4292 = vmatmul.bf16.gmra.mxu0 %v4259
      %v4293 = vpop.f32.mrf.mxu0
      %v4294 = vadd.f32 0.0, %v4293
      %v4295 = vpop.f32.mrf.mxu0
      %v4296 = vadd.f32 0.0, %v4295
      %4297 = vmatmul.bf16.gmra.mxu0 %v4262
      %v4298 = vpop.f32.mrf.mxu0
      %v4299 = vadd.f32 0.0, %v4298
      %v4300 = vpop.f32.mrf.mxu0
      %v4301 = vadd.f32 0.0, %v4300
      %4302 = vmatmul.bf16.gmra.mxu0 %v4265
      %v4303 = vpop.f32.mrf.mxu0
      %v4304 = vadd.f32 0.0, %v4303
      %v4305 = vpop.f32.mrf.mxu0
      %v4306 = vadd.f32 0.0, %v4305
      %4307 = vmatmul.bf16.gmra.mxu0 %v4268
      %v4308 = vpop.f32.mrf.mxu0
      %v4309 = vadd.f32 0.0, %v4308
      %v4310 = vpop.f32.mrf.mxu0
      %v4311 = vadd.f32 0.0, %v4310
      %4312 = vmatmul.bf16.gmra.mxu0 %v4271
      %v4313 = vpop.f32.mrf.mxu0
      %v4314 = vadd.f32 0.0, %v4313
      %v4315 = vpop.f32.mrf.mxu0
      %v4316 = vadd.f32 0.0, %v4315
      %4317 = vmatmul.bf16.gmra.mxu0 %v4274
      %v4318 = vpop.f32.mrf.mxu0
      %v4319 = vadd.f32 0.0, %v4318
      %v4320 = vpop.f32.mrf.mxu0
      %v4321 = vadd.f32 0.0, %v4320
      %4322 = vmatmul.bf16.gmra.mxu0 %v4277
      %v4323 = vpop.f32.mrf.mxu0
      %v4324 = vadd.f32 0.0, %v4323
      %v4325 = vpop.f32.mrf.mxu0
      %v4326 = vadd.f32 0.0, %v4325
      %4327 = vdwg.mxu0
      %v4328 = vadd.f32 %v3967, %v4289
      %v4329 = vadd.f32 %v3969, %v4291
      %v4330 = vadd.f32 %v3972, %v4294
      %v4331 = vadd.f32 %v3974, %v4296
      %v4332 = vadd.f32 %v3977, %v4299
      %v4333 = vadd.f32 %v3979, %v4301
      %v4334 = vadd.f32 %v3982, %v4304
      %v4335 = vadd.f32 %v3984, %v4306
      %v4336 = vadd.f32 %v3987, %v4309
      %v4337 = vadd.f32 %v3989, %v4311
      %v4338 = vadd.f32 %v3992, %v4314
      %v4339 = vadd.f32 %v3994, %v4316
      %v4340 = vadd.f32 %v3997, %v4319
      %v4341 = vadd.f32 %v3999, %v4321
      %v4342 = vadd.f32 %v4002, %v4324
      %v4343 = vadd.f32 %v4004, %v4326
      %s4344 = scalar_lea.vmem [#allocation2], 132
      %v4345 = vld [vmem:[%s4344] sm:$0xf]
      %v4346 = vld [vmem:[%s4344 + $0x4] sm:$0xf]
      %v4347 = vld [vmem:[%s4344 + $0xc] sm:$0xf]
      %v4348 = vld [vmem:[%s4344 + $0x10] sm:$0xf]
      %v4349 = vld [vmem:[%s4344 + $0x18] sm:$0xf]
      %v4350 = vld [vmem:[%s4344 + $0x1c] sm:$0xf]
      %v4351 = vld [vmem:[%s4344 + $0x24] sm:$0xf]
      %v4352 = vld [vmem:[%s4344 + $0x28] sm:$0xf]
      %v4353 = vld [vmem:[%s4344 + $0x30] sm:$0xf]
      %v4354 = vld [vmem:[%s4344 + $0x34] sm:$0xf]
      %v4355 = vld [vmem:[%s4344 + $0x3c] sm:$0xf]
      %v4356 = vld [vmem:[%s4344 + $0x40] sm:$0xf]
      %v4357 = vld [vmem:[%s4344 + $0x48] sm:$0xf]
      %v4358 = vld [vmem:[%s4344 + $0x4c] sm:$0xf]
      %v4359 = vld [vmem:[%s4344 + $0x54] sm:$0xf]
      %v4360 = vld [vmem:[%s4344 + $0x58] sm:$0xf]
      %s4361 = scalar_lea.vmem %s2, 24
      %v4362 = vld [vmem:[%s4361] sm:$0xf]
      %v4363 = vld [vmem:[%s4361 + $0x4] sm:$0xf]
      %v4380 = vunpack.c.l.b16 %v4345
      %v4381 = vunpack.c.l.b16 %v4346
      %v4382 = vunpack.c.l.b16 %v4347
      %v4383 = vunpack.c.l.b16 %v4348
      %v4384 = vunpack.c.l.b16 %v4349
      %v4385 = vunpack.c.l.b16 %v4350
      %v4386 = vunpack.c.l.b16 %v4351
      %v4387 = vunpack.c.l.b16 %v4352
      %v4388 = vunpack.c.l.b16 %v4353
      %v4389 = vunpack.c.l.b16 %v4354
      %v4390 = vunpack.c.l.b16 %v4355
      %v4391 = vunpack.c.l.b16 %v4356
      %v4392 = vunpack.c.l.b16 %v4357
      %v4393 = vunpack.c.l.b16 %v4358
      %v4394 = vunpack.c.l.b16 %v4359
      %v4395 = vunpack.c.l.b16 %v4360
      %v4396 = vpack.c.b16 %v4381, %v4380
      %v4397 = vpack.c.b16 %v4383, %v4382
      %v4398 = vpack.c.b16 %v4385, %v4384
      %v4399 = vpack.c.b16 %v4387, %v4386
      %v4400 = vpack.c.b16 %v4389, %v4388
      %v4401 = vpack.c.b16 %v4391, %v4390
      %v4402 = vpack.c.b16 %v4393, %v4392
      %v4403 = vpack.c.b16 %v4395, %v4394
      %v4406 = vunpack.c.l.b16 %v4362
      %v4407 = vunpack.c.l.b16 %v4363
      %v4408 = vpack.c.b16 %v4407, %v4406
      %v4411 = vsel %vm636, %v4396, 0
      %v4414 = vsel %vm636, %v4397, 0
      %v4417 = vsel %vm636, %v4398, 0
      %v4420 = vsel %vm636, %v4399, 0
      %v4423 = vsel %vm636, %v4400, 0
      %v4426 = vsel %vm636, %v4401, 0
      %v4429 = vsel %vm636, %v4402, 0
      %v4432 = vsel %vm636, %v4403, 0
      %4434 = vmatpush.bf16.msra.mxu0 0
      %4435 = vmatpush.bf16.msra.mxu0 0
      %4436 = vmatpush.bf16.msra.mxu0 0
      %4437 = vmatpush.bf16.msra.mxu0 0
      %4438 = vmatpush.bf16.msra.mxu0 0
      %4439 = vmatpush.bf16.msra.mxu0 0
      %4440 = vmatpush.bf16.msra.mxu0 0
      %4441 = vmatpush.bf16.msra.mxu0 %v4408
      %4442 = vmatmul.bf16.gmra.mxu0 %v4411
      %v4443 = vpop.f32.mrf.mxu0
      %v4444 = vadd.f32 0.0, %v4443
      %v4445 = vpop.f32.mrf.mxu0
      %v4446 = vadd.f32 0.0, %v4445
      %4447 = vmatmul.bf16.gmra.mxu0 %v4414
      %v4448 = vpop.f32.mrf.mxu0
      %v4449 = vadd.f32 0.0, %v4448
      %v4450 = vpop.f32.mrf.mxu0
      %v4451 = vadd.f32 0.0, %v4450
      %4452 = vmatmul.bf16.gmra.mxu0 %v4417
      %v4453 = vpop.f32.mrf.mxu0
      %v4454 = vadd.f32 0.0, %v4453
      %v4455 = vpop.f32.mrf.mxu0
      %v4456 = vadd.f32 0.0, %v4455
      %4457 = vmatmul.bf16.gmra.mxu0 %v4420
      %v4458 = vpop.f32.mrf.mxu0
      %v4459 = vadd.f32 0.0, %v4458
      %v4460 = vpop.f32.mrf.mxu0
      %v4461 = vadd.f32 0.0, %v4460
      %4462 = vmatmul.bf16.gmra.mxu0 %v4423
      %v4463 = vpop.f32.mrf.mxu0
      %v4464 = vadd.f32 0.0, %v4463
      %v4465 = vpop.f32.mrf.mxu0
      %v4466 = vadd.f32 0.0, %v4465
      %4467 = vmatmul.bf16.gmra.mxu0 %v4426
      %v4468 = vpop.f32.mrf.mxu0
      %v4469 = vadd.f32 0.0, %v4468
      %v4470 = vpop.f32.mrf.mxu0
      %v4471 = vadd.f32 0.0, %v4470
      %4472 = vmatmul.bf16.gmra.mxu0 %v4429
      %v4473 = vpop.f32.mrf.mxu0
      %v4474 = vadd.f32 0.0, %v4473
      %v4475 = vpop.f32.mrf.mxu0
      %v4476 = vadd.f32 0.0, %v4475
      %4477 = vmatmul.bf16.gmra.mxu0 %v4432
      %v4478 = vpop.f32.mrf.mxu0
      %v4479 = vadd.f32 0.0, %v4478
      %v4480 = vpop.f32.mrf.mxu0
      %v4481 = vadd.f32 0.0, %v4480
      %4482 = vdwg.mxu0
      %v4483 = vadd.f32 %v4328, %v4444
      %v4484 = vadd.f32 %v4329, %v4446
      %v4485 = vadd.f32 %v4330, %v4449
      %v4486 = vadd.f32 %v4331, %v4451
      %v4487 = vadd.f32 %v4332, %v4454
      %v4488 = vadd.f32 %v4333, %v4456
      %v4489 = vadd.f32 %v4334, %v4459
      %v4490 = vadd.f32 %v4335, %v4461
      %v4491 = vadd.f32 %v4336, %v4464
      %v4492 = vadd.f32 %v4337, %v4466
      %v4493 = vadd.f32 %v4338, %v4469
      %v4494 = vadd.f32 %v4339, %v4471
      %v4495 = vadd.f32 %v4340, %v4474
      %v4496 = vadd.f32 %v4341, %v4476
      %v4497 = vadd.f32 %v4342, %v4479
      %v4498 = vadd.f32 %v4343, %v4481
      %s4499 = scalar_lea.vmem [#allocation2], 12
      %v4500 = vld [vmem:[%s4499] sm:$0xf]
      %v4501 = vld [vmem:[%s4499 + $0x4] sm:$0xf]
      %v4502 = vld [vmem:[%s4499 + $0x8] sm:$0x1]
      %v4503 = vld [vmem:[%s4499 + $0xc] sm:$0xf]
      %v4504 = vld [vmem:[%s4499 + $0x10] sm:$0xf]
      %v4505 = vld [vmem:[%s4499 + $0x14] sm:$0x1]
      %v4506 = vld [vmem:[%s4499 + $0x18] sm:$0xf]
      %v4507 = vld [vmem:[%s4499 + $0x1c] sm:$0xf]
      %v4508 = vld [vmem:[%s4499 + $0x20] sm:$0x1]
      %v4509 = vld [vmem:[%s4499 + $0x24] sm:$0xf]
      %v4510 = vld [vmem:[%s4499 + $0x28] sm:$0xf]
      %v4511 = vld [vmem:[%s4499 + $0x2c] sm:$0x1]
      %v4512 = vld [vmem:[%s4499 + $0x30] sm:$0xf]
      %v4513 = vld [vmem:[%s4499 + $0x34] sm:$0xf]
      %v4514 = vld [vmem:[%s4499 + $0x38] sm:$0x1]
      %v4515 = vld [vmem:[%s4499 + $0x3c] sm:$0xf]
      %v4516 = vld [vmem:[%s4499 + $0x40] sm:$0xf]
      %v4517 = vld [vmem:[%s4499 + $0x44] sm:$0x1]
      %v4518 = vld [vmem:[%s4499 + $0x48] sm:$0xf]
      %v4519 = vld [vmem:[%s4499 + $0x4c] sm:$0xf]
      %v4520 = vld [vmem:[%s4499 + $0x50] sm:$0x1]
      %v4521 = vld [vmem:[%s4499 + $0x54] sm:$0xf]
      %v4522 = vld [vmem:[%s4499 + $0x58] sm:$0xf]
      %v4523 = vld [vmem:[%s4499 + $0x5c] sm:$0x1]
      %v4525 = vshrl.u32 %v4500, 16
      %v4527 = vrot.slane %v4525, 4
      %v4528 = vshll.u32 %v4500, 16
      %v4530 = vrot.slane %v4528, 5
      %v4531 = vor.u32 %v4527, %v4530
      %v4532 = vrot.slane %v4531, 4
      %v4534 = vshll.u32 %v4501, 16
      %v4536 = vrot.slane %v4534, 5
      %v4537 = vsel %vm3588, %v4532, %v4536
      %v4538 = vshrl.u32 %v4501, 16
      %v4540 = vrot.slane %v4538, 4
      %v4541 = vor.u32 %v4540, %v4536
      %v4542 = vrot.slane %v4541, 4
      %v4544 = vshll.u32 %v4502, 16
      %v4546 = vrot.slane %v4544, 5
      %v4547 = vsel %vm3588, %v4542, %v4546
      %v4549 = vshrl.u32 %v4503, 16
      %v4551 = vrot.slane %v4549, 4
      %v4552 = vshll.u32 %v4503, 16
      %v4554 = vrot.slane %v4552, 5
      %v4555 = vor.u32 %v4551, %v4554
      %v4556 = vrot.slane %v4555, 4
      %v4558 = vshll.u32 %v4504, 16
      %v4560 = vrot.slane %v4558, 5
      %v4561 = vsel %vm3588, %v4556, %v4560
      %v4562 = vshrl.u32 %v4504, 16
      %v4564 = vrot.slane %v4562, 4
      %v4565 = vor.u32 %v4564, %v4560
      %v4566 = vrot.slane %v4565, 4
      %v4568 = vshll.u32 %v4505, 16
      %v4570 = vrot.slane %v4568, 5
      %v4571 = vsel %vm3588, %v4566, %v4570
      %v4573 = vshrl.u32 %v4506, 16
      %v4575 = vrot.slane %v4573, 4
      %v4576 = vshll.u32 %v4506, 16
      %v4578 = vrot.slane %v4576, 5
      %v4579 = vor.u32 %v4575, %v4578
      %v4580 = vrot.slane %v4579, 4
      %v4582 = vshll.u32 %v4507, 16
      %v4584 = vrot.slane %v4582, 5
      %v4585 = vsel %vm3588, %v4580, %v4584
      %v4586 = vshrl.u32 %v4507, 16
      %v4588 = vrot.slane %v4586, 4
      %v4589 = vor.u32 %v4588, %v4584
      %v4590 = vrot.slane %v4589, 4
      %v4592 = vshll.u32 %v4508, 16
      %v4594 = vrot.slane %v4592, 5
      %v4595 = vsel %vm3588, %v4590, %v4594
      %v4597 = vshrl.u32 %v4509, 16
      %v4599 = vrot.slane %v4597, 4
      %v4600 = vshll.u32 %v4509, 16
      %v4602 = vrot.slane %v4600, 5
      %v4603 = vor.u32 %v4599, %v4602
      %v4604 = vrot.slane %v4603, 4
      %v4606 = vshll.u32 %v4510, 16
      %v4608 = vrot.slane %v4606, 5
      %v4609 = vsel %vm3588, %v4604, %v4608
      %v4610 = vshrl.u32 %v4510, 16
      %v4612 = vrot.slane %v4610, 4
      %v4613 = vor.u32 %v4612, %v4608
      %v4614 = vrot.slane %v4613, 4
      %v4616 = vshll.u32 %v4511, 16
      %v4618 = vrot.slane %v4616, 5
      %v4619 = vsel %vm3588, %v4614, %v4618
      %v4621 = vshrl.u32 %v4512, 16
      %v4623 = vrot.slane %v4621, 4
      %v4624 = vshll.u32 %v4512, 16
      %v4626 = vrot.slane %v4624, 5
      %v4627 = vor.u32 %v4623, %v4626
      %v4628 = vrot.slane %v4627, 4
      %v4630 = vshll.u32 %v4513, 16
      %v4632 = vrot.slane %v4630, 5
      %v4633 = vsel %vm3588, %v4628, %v4632
      %v4634 = vshrl.u32 %v4513, 16
      %v4636 = vrot.slane %v4634, 4
      %v4637 = vor.u32 %v4636, %v4632
      %v4638 = vrot.slane %v4637, 4
      %v4640 = vshll.u32 %v4514, 16
      %v4642 = vrot.slane %v4640, 5
      %v4643 = vsel %vm3588, %v4638, %v4642
      %v4645 = vshrl.u32 %v4515, 16
      %v4647 = vrot.slane %v4645, 4
      %v4648 = vshll.u32 %v4515, 16
      %v4650 = vrot.slane %v4648, 5
      %v4651 = vor.u32 %v4647, %v4650
      %v4652 = vrot.slane %v4651, 4
      %v4654 = vshll.u32 %v4516, 16
      %v4656 = vrot.slane %v4654, 5
      %v4657 = vsel %vm3588, %v4652, %v4656
      %v4658 = vshrl.u32 %v4516, 16
      %v4660 = vrot.slane %v4658, 4
      %v4661 = vor.u32 %v4660, %v4656
      %v4662 = vrot.slane %v4661, 4
      %v4664 = vshll.u32 %v4517, 16
      %v4666 = vrot.slane %v4664, 5
      %v4667 = vsel %vm3588, %v4662, %v4666
      %v4669 = vshrl.u32 %v4518, 16
      %v4671 = vrot.slane %v4669, 4
      %v4672 = vshll.u32 %v4518, 16
      %v4674 = vrot.slane %v4672, 5
      %v4675 = vor.u32 %v4671, %v4674
      %v4676 = vrot.slane %v4675, 4
      %v4678 = vshll.u32 %v4519, 16
      %v4680 = vrot.slane %v4678, 5
      %v4681 = vsel %vm3588, %v4676, %v4680
      %v4682 = vshrl.u32 %v4519, 16
      %v4684 = vrot.slane %v4682, 4
      %v4685 = vor.u32 %v4684, %v4680
      %v4686 = vrot.slane %v4685, 4
      %v4688 = vshll.u32 %v4520, 16
      %v4690 = vrot.slane %v4688, 5
      %v4691 = vsel %vm3588, %v4686, %v4690
      %v4693 = vshrl.u32 %v4521, 16
      %v4695 = vrot.slane %v4693, 4
      %v4696 = vshll.u32 %v4521, 16
      %v4698 = vrot.slane %v4696, 5
      %v4699 = vor.u32 %v4695, %v4698
      %v4700 = vrot.slane %v4699, 4
      %v4702 = vshll.u32 %v4522, 16
      %v4704 = vrot.slane %v4702, 5
      %v4705 = vsel %vm3588, %v4700, %v4704
      %v4706 = vshrl.u32 %v4522, 16
      %v4708 = vrot.slane %v4706, 4
      %v4709 = vor.u32 %v4708, %v4704
      %v4710 = vrot.slane %v4709, 4
      %v4712 = vshll.u32 %v4523, 16
      %v4714 = vrot.slane %v4712, 5
      %v4715 = vsel %vm3588, %v4710, %v4714
      %s4716 = scalar_lea.vmem %s2, 32
      %v4717 = vld [vmem:[%s4716] sm:$0xf]
      %v4718 = vld [vmem:[%s4716 + $0x4] sm:$0xf]
      %v4719 = vunpack.c.l.b16 %v4537
      %v4720 = vunpack.c.l.b16 %v4547
      %v4721 = vunpack.c.l.b16 %v4561
      %v4722 = vunpack.c.l.b16 %v4571
      %v4723 = vunpack.c.l.b16 %v4585
      %v4724 = vunpack.c.l.b16 %v4595
      %v4725 = vunpack.c.l.b16 %v4609
      %v4726 = vunpack.c.l.b16 %v4619
      %v4727 = vunpack.c.l.b16 %v4633
      %v4728 = vunpack.c.l.b16 %v4643
      %v4729 = vunpack.c.l.b16 %v4657
      %v4730 = vunpack.c.l.b16 %v4667
      %v4731 = vunpack.c.l.b16 %v4681
      %v4732 = vunpack.c.l.b16 %v4691
      %v4733 = vunpack.c.l.b16 %v4705
      %v4734 = vunpack.c.l.b16 %v4715
      %v4735 = vpack.c.b16 %v4720, %v4719
      %v4736 = vpack.c.b16 %v4722, %v4721
      %v4737 = vpack.c.b16 %v4724, %v4723
      %v4738 = vpack.c.b16 %v4726, %v4725
      %v4739 = vpack.c.b16 %v4728, %v4727
      %v4740 = vpack.c.b16 %v4730, %v4729
      %v4741 = vpack.c.b16 %v4732, %v4731
      %v4742 = vpack.c.b16 %v4734, %v4733
      %v4745 = vunpack.c.l.b16 %v4717
      %v4746 = vunpack.c.l.b16 %v4718
      %v4747 = vpack.c.b16 %v4746, %v4745
      %v4750 = vsel %vm636, %v4735, 0
      %v4753 = vsel %vm636, %v4736, 0
      %v4756 = vsel %vm636, %v4737, 0
      %v4759 = vsel %vm636, %v4738, 0
      %v4762 = vsel %vm636, %v4739, 0
      %v4765 = vsel %vm636, %v4740, 0
      %v4768 = vsel %vm636, %v4741, 0
      %v4771 = vsel %vm636, %v4742, 0
      %4773 = vmatpush.bf16.msra.mxu0 0
      %4774 = vmatpush.bf16.msra.mxu0 0
      %4775 = vmatpush.bf16.msra.mxu0 0
      %4776 = vmatpush.bf16.msra.mxu0 0
      %4777 = vmatpush.bf16.msra.mxu0 0
      %4778 = vmatpush.bf16.msra.mxu0 0
      %4779 = vmatpush.bf16.msra.mxu0 0
      %4780 = vmatpush.bf16.msra.mxu0 %v4747
      %4781 = vmatmul.bf16.gmra.mxu0 %v4750
      %v4782 = vpop.f32.mrf.mxu0
      %v4783 = vadd.f32 0.0, %v4782
      %v4784 = vpop.f32.mrf.mxu0
      %v4785 = vadd.f32 0.0, %v4784
      %4786 = vmatmul.bf16.gmra.mxu0 %v4753
      %v4787 = vpop.f32.mrf.mxu0
      %v4788 = vadd.f32 0.0, %v4787
      %v4789 = vpop.f32.mrf.mxu0
      %v4790 = vadd.f32 0.0, %v4789
      %4791 = vmatmul.bf16.gmra.mxu0 %v4756
      %v4792 = vpop.f32.mrf.mxu0
      %v4793 = vadd.f32 0.0, %v4792
      %v4794 = vpop.f32.mrf.mxu0
      %v4795 = vadd.f32 0.0, %v4794
      %4796 = vmatmul.bf16.gmra.mxu0 %v4759
      %v4797 = vpop.f32.mrf.mxu0
      %v4798 = vadd.f32 0.0, %v4797
      %v4799 = vpop.f32.mrf.mxu0
      %v4800 = vadd.f32 0.0, %v4799
      %4801 = vmatmul.bf16.gmra.mxu0 %v4762
      %v4802 = vpop.f32.mrf.mxu0
      %v4803 = vadd.f32 0.0, %v4802
      %v4804 = vpop.f32.mrf.mxu0
      %v4805 = vadd.f32 0.0, %v4804
      %4806 = vmatmul.bf16.gmra.mxu0 %v4765
      %v4807 = vpop.f32.mrf.mxu0
      %v4808 = vadd.f32 0.0, %v4807
      %v4809 = vpop.f32.mrf.mxu0
      %v4810 = vadd.f32 0.0, %v4809
      %4811 = vmatmul.bf16.gmra.mxu0 %v4768
      %v4812 = vpop.f32.mrf.mxu0
      %v4813 = vadd.f32 0.0, %v4812
      %v4814 = vpop.f32.mrf.mxu0
      %v4815 = vadd.f32 0.0, %v4814
      %4816 = vmatmul.bf16.gmra.mxu0 %v4771
      %v4817 = vpop.f32.mrf.mxu0
      %v4818 = vadd.f32 0.0, %v4817
      %v4819 = vpop.f32.mrf.mxu0
      %v4820 = vadd.f32 0.0, %v4819
      %4821 = vdwg.mxu0
      %v4822 = vadd.f32 %v4483, %v4783
      %v4823 = vadd.f32 %v4484, %v4785
      %v4824 = vadd.f32 %v4485, %v4788
      %v4825 = vadd.f32 %v4486, %v4790
      %v4826 = vadd.f32 %v4487, %v4793
      %v4827 = vadd.f32 %v4488, %v4795
      %v4828 = vadd.f32 %v4489, %v4798
      %v4829 = vadd.f32 %v4490, %v4800
      %v4830 = vadd.f32 %v4491, %v4803
      %v4831 = vadd.f32 %v4492, %v4805
      %v4832 = vadd.f32 %v4493, %v4808
      %v4833 = vadd.f32 %v4494, %v4810
      %v4834 = vadd.f32 %v4495, %v4813
      %v4835 = vadd.f32 %v4496, %v4815
      %v4836 = vadd.f32 %v4497, %v4818
      %v4837 = vadd.f32 %v4498, %v4820
      %v4838 = vld [vmem:[%s4344] sm:$0xf]
      %v4839 = vld [vmem:[%s4344 + $0x4] sm:$0xf]
      %v4840 = vld [vmem:[%s4344 + $0x8] sm:$0x1]
      %v4841 = vld [vmem:[%s4344 + $0xc] sm:$0xf]
      %v4842 = vld [vmem:[%s4344 + $0x10] sm:$0xf]
      %v4843 = vld [vmem:[%s4344 + $0x14] sm:$0x1]
      %v4844 = vld [vmem:[%s4344 + $0x18] sm:$0xf]
      %v4845 = vld [vmem:[%s4344 + $0x1c] sm:$0xf]
      %v4846 = vld [vmem:[%s4344 + $0x20] sm:$0x1]
      %v4847 = vld [vmem:[%s4344 + $0x24] sm:$0xf]
      %v4848 = vld [vmem:[%s4344 + $0x28] sm:$0xf]
      %v4849 = vld [vmem:[%s4344 + $0x2c] sm:$0x1]
      %v4850 = vld [vmem:[%s4344 + $0x30] sm:$0xf]
      %v4851 = vld [vmem:[%s4344 + $0x34] sm:$0xf]
      %v4852 = vld [vmem:[%s4344 + $0x38] sm:$0x1]
      %v4853 = vld [vmem:[%s4344 + $0x3c] sm:$0xf]
      %v4854 = vld [vmem:[%s4344 + $0x40] sm:$0xf]
      %v4855 = vld [vmem:[%s4344 + $0x44] sm:$0x1]
      %v4856 = vld [vmem:[%s4344 + $0x48] sm:$0xf]
      %v4857 = vld [vmem:[%s4344 + $0x4c] sm:$0xf]
      %v4858 = vld [vmem:[%s4344 + $0x50] sm:$0x1]
      %v4859 = vld [vmem:[%s4344 + $0x54] sm:$0xf]
      %v4860 = vld [vmem:[%s4344 + $0x58] sm:$0xf]
      %v4861 = vld [vmem:[%s4344 + $0x5c] sm:$0x1]
      %v4863 = vshrl.u32 %v4838, 16
      %v4865 = vrot.slane %v4863, 4
      %v4866 = vshll.u32 %v4838, 16
      %v4868 = vrot.slane %v4866, 5
      %v4869 = vor.u32 %v4865, %v4868
      %v4870 = vrot.slane %v4869, 4
      %v4872 = vshll.u32 %v4839, 16
      %v4874 = vrot.slane %v4872, 5
      %v4875 = vsel %vm3588, %v4870, %v4874
      %v4876 = vshrl.u32 %v4839, 16
      %v4878 = vrot.slane %v4876, 4
      %v4879 = vor.u32 %v4878, %v4874
      %v4880 = vrot.slane %v4879, 4
      %v4882 = vshll.u32 %v4840, 16
      %v4884 = vrot.slane %v4882, 5
      %v4885 = vsel %vm3588, %v4880, %v4884
      %v4887 = vshrl.u32 %v4841, 16
      %v4889 = vrot.slane %v4887, 4
      %v4890 = vshll.u32 %v4841, 16
      %v4892 = vrot.slane %v4890, 5
      %v4893 = vor.u32 %v4889, %v4892
      %v4894 = vrot.slane %v4893, 4
      %v4896 = vshll.u32 %v4842, 16
      %v4898 = vrot.slane %v4896, 5
      %v4899 = vsel %vm3588, %v4894, %v4898
      %v4900 = vshrl.u32 %v4842, 16
      %v4902 = vrot.slane %v4900, 4
      %v4903 = vor.u32 %v4902, %v4898
      %v4904 = vrot.slane %v4903, 4
      %v4906 = vshll.u32 %v4843, 16
      %v4908 = vrot.slane %v4906, 5
      %v4909 = vsel %vm3588, %v4904, %v4908
      %v4911 = vshrl.u32 %v4844, 16
      %v4913 = vrot.slane %v4911, 4
      %v4914 = vshll.u32 %v4844, 16
      %v4916 = vrot.slane %v4914, 5
      %v4917 = vor.u32 %v4913, %v4916
      %v4918 = vrot.slane %v4917, 4
      %v4920 = vshll.u32 %v4845, 16
      %v4922 = vrot.slane %v4920, 5
      %v4923 = vsel %vm3588, %v4918, %v4922
      %v4924 = vshrl.u32 %v4845, 16
      %v4926 = vrot.slane %v4924, 4
      %v4927 = vor.u32 %v4926, %v4922
      %v4928 = vrot.slane %v4927, 4
      %v4930 = vshll.u32 %v4846, 16
      %v4932 = vrot.slane %v4930, 5
      %v4933 = vsel %vm3588, %v4928, %v4932
      %v4935 = vshrl.u32 %v4847, 16
      %v4937 = vrot.slane %v4935, 4
      %v4938 = vshll.u32 %v4847, 16
      %v4940 = vrot.slane %v4938, 5
      %v4941 = vor.u32 %v4937, %v4940
      %v4942 = vrot.slane %v4941, 4
      %v4944 = vshll.u32 %v4848, 16
      %v4946 = vrot.slane %v4944, 5
      %v4947 = vsel %vm3588, %v4942, %v4946
      %v4948 = vshrl.u32 %v4848, 16
      %v4950 = vrot.slane %v4948, 4
      %v4951 = vor.u32 %v4950, %v4946
      %v4952 = vrot.slane %v4951, 4
      %v4954 = vshll.u32 %v4849, 16
      %v4956 = vrot.slane %v4954, 5
      %v4957 = vsel %vm3588, %v4952, %v4956
      %v4959 = vshrl.u32 %v4850, 16
      %v4961 = vrot.slane %v4959, 4
      %v4962 = vshll.u32 %v4850, 16
      %v4964 = vrot.slane %v4962, 5
      %v4965 = vor.u32 %v4961, %v4964
      %v4966 = vrot.slane %v4965, 4
      %v4968 = vshll.u32 %v4851, 16
      %v4970 = vrot.slane %v4968, 5
      %v4971 = vsel %vm3588, %v4966, %v4970
      %v4972 = vshrl.u32 %v4851, 16
      %v4974 = vrot.slane %v4972, 4
      %v4975 = vor.u32 %v4974, %v4970
      %v4976 = vrot.slane %v4975, 4
      %v4978 = vshll.u32 %v4852, 16
      %v4980 = vrot.slane %v4978, 5
      %v4981 = vsel %vm3588, %v4976, %v4980
      %v4983 = vshrl.u32 %v4853, 16
      %v4985 = vrot.slane %v4983, 4
      %v4986 = vshll.u32 %v4853, 16
      %v4988 = vrot.slane %v4986, 5
      %v4989 = vor.u32 %v4985, %v4988
      %v4990 = vrot.slane %v4989, 4
      %v4992 = vshll.u32 %v4854, 16
      %v4994 = vrot.slane %v4992, 5
      %v4995 = vsel %vm3588, %v4990, %v4994
      %v4996 = vshrl.u32 %v4854, 16
      %v4998 = vrot.slane %v4996, 4
      %v4999 = vor.u32 %v4998, %v4994
      %v5000 = vrot.slane %v4999, 4
      %v5002 = vshll.u32 %v4855, 16
      %v5004 = vrot.slane %v5002, 5
      %v5005 = vsel %vm3588, %v5000, %v5004
      %v5007 = vshrl.u32 %v4856, 16
      %v5009 = vrot.slane %v5007, 4
      %v5010 = vshll.u32 %v4856, 16
      %v5012 = vrot.slane %v5010, 5
      %v5013 = vor.u32 %v5009, %v5012
      %v5014 = vrot.slane %v5013, 4
      %v5016 = vshll.u32 %v4857, 16
      %v5018 = vrot.slane %v5016, 5
      %v5019 = vsel %vm3588, %v5014, %v5018
      %v5020 = vshrl.u32 %v4857, 16
      %v5022 = vrot.slane %v5020, 4
      %v5023 = vor.u32 %v5022, %v5018
      %v5024 = vrot.slane %v5023, 4
      %v5026 = vshll.u32 %v4858, 16
      %v5028 = vrot.slane %v5026, 5
      %v5029 = vsel %vm3588, %v5024, %v5028
      %v5031 = vshrl.u32 %v4859, 16
      %v5033 = vrot.slane %v5031, 4
      %v5034 = vshll.u32 %v4859, 16
      %v5036 = vrot.slane %v5034, 5
      %v5037 = vor.u32 %v5033, %v5036
      %v5038 = vrot.slane %v5037, 4
      %v5040 = vshll.u32 %v4860, 16
      %v5042 = vrot.slane %v5040, 5
      %v5043 = vsel %vm3588, %v5038, %v5042
      %v5044 = vshrl.u32 %v4860, 16
      %v5046 = vrot.slane %v5044, 4
      %v5047 = vor.u32 %v5046, %v5042
      %v5048 = vrot.slane %v5047, 4
      %v5050 = vshll.u32 %v4861, 16
      %v5052 = vrot.slane %v5050, 5
      %v5053 = vsel %vm3588, %v5048, %v5052
      %s5054 = scalar_lea.vmem %s2, 40
      %v5055 = vld [vmem:[%s5054] sm:$0xf]
      %v5056 = vld [vmem:[%s5054 + $0x4] sm:$0xf]
      %v5057 = vunpack.c.l.b16 %v4875
      %v5058 = vunpack.c.l.b16 %v4885
      %v5059 = vunpack.c.l.b16 %v4899
      %v5060 = vunpack.c.l.b16 %v4909
      %v5061 = vunpack.c.l.b16 %v4923
      %v5062 = vunpack.c.l.b16 %v4933
      %v5063 = vunpack.c.l.b16 %v4947
      %v5064 = vunpack.c.l.b16 %v4957
      %v5065 = vunpack.c.l.b16 %v4971
      %v5066 = vunpack.c.l.b16 %v4981
      %v5067 = vunpack.c.l.b16 %v4995
      %v5068 = vunpack.c.l.b16 %v5005
      %v5069 = vunpack.c.l.b16 %v5019
      %v5070 = vunpack.c.l.b16 %v5029
      %v5071 = vunpack.c.l.b16 %v5043
      %v5072 = vunpack.c.l.b16 %v5053
      %v5073 = vpack.c.b16 %v5058, %v5057
      %v5074 = vpack.c.b16 %v5060, %v5059
      %v5075 = vpack.c.b16 %v5062, %v5061
      %v5076 = vpack.c.b16 %v5064, %v5063
      %v5077 = vpack.c.b16 %v5066, %v5065
      %v5078 = vpack.c.b16 %v5068, %v5067
      %v5079 = vpack.c.b16 %v5070, %v5069
      %v5080 = vpack.c.b16 %v5072, %v5071
      %v5083 = vunpack.c.l.b16 %v5055
      %v5084 = vunpack.c.l.b16 %v5056
      %v5085 = vpack.c.b16 %v5084, %v5083
      %v5088 = vsel %vm636, %v5073, 0
      %v5091 = vsel %vm636, %v5074, 0
      %v5094 = vsel %vm636, %v5075, 0
      %v5097 = vsel %vm636, %v5076, 0
      %v5100 = vsel %vm636, %v5077, 0
      %v5103 = vsel %vm636, %v5078, 0
      %v5106 = vsel %vm636, %v5079, 0
      %v5109 = vsel %vm636, %v5080, 0
      %5111 = vmatpush.bf16.msra.mxu0 0
      %5112 = vmatpush.bf16.msra.mxu0 0
      %5113 = vmatpush.bf16.msra.mxu0 0
      %5114 = vmatpush.bf16.msra.mxu0 0
      %5115 = vmatpush.bf16.msra.mxu0 0
      %5116 = vmatpush.bf16.msra.mxu0 0
      %5117 = vmatpush.bf16.msra.mxu0 0
      %5118 = vmatpush.bf16.msra.mxu0 %v5085
      %5119 = vmatmul.bf16.gmra.mxu0 %v5088
      %v5120 = vpop.f32.mrf.mxu0
      %v5121 = vadd.f32 0.0, %v5120
      %v5122 = vpop.f32.mrf.mxu0
      %v5123 = vadd.f32 0.0, %v5122
      %5124 = vmatmul.bf16.gmra.mxu0 %v5091
      %v5125 = vpop.f32.mrf.mxu0
      %v5126 = vadd.f32 0.0, %v5125
      %v5127 = vpop.f32.mrf.mxu0
      %v5128 = vadd.f32 0.0, %v5127
      %5129 = vmatmul.bf16.gmra.mxu0 %v5094
      %v5130 = vpop.f32.mrf.mxu0
      %v5131 = vadd.f32 0.0, %v5130
      %v5132 = vpop.f32.mrf.mxu0
      %v5133 = vadd.f32 0.0, %v5132
      %5134 = vmatmul.bf16.gmra.mxu0 %v5097
      %v5135 = vpop.f32.mrf.mxu0
      %v5136 = vadd.f32 0.0, %v5135
      %v5137 = vpop.f32.mrf.mxu0
      %v5138 = vadd.f32 0.0, %v5137
      %5139 = vmatmul.bf16.gmra.mxu0 %v5100
      %v5140 = vpop.f32.mrf.mxu0
      %v5141 = vadd.f32 0.0, %v5140
      %v5142 = vpop.f32.mrf.mxu0
      %v5143 = vadd.f32 0.0, %v5142
      %5144 = vmatmul.bf16.gmra.mxu0 %v5103
      %v5145 = vpop.f32.mrf.mxu0
      %v5146 = vadd.f32 0.0, %v5145
      %v5147 = vpop.f32.mrf.mxu0
      %v5148 = vadd.f32 0.0, %v5147
      %5149 = vmatmul.bf16.gmra.mxu0 %v5106
      %v5150 = vpop.f32.mrf.mxu0
      %v5151 = vadd.f32 0.0, %v5150
      %v5152 = vpop.f32.mrf.mxu0
      %v5153 = vadd.f32 0.0, %v5152
      %5154 = vmatmul.bf16.gmra.mxu0 %v5109
      %v5155 = vpop.f32.mrf.mxu0
      %v5156 = vadd.f32 0.0, %v5155
      %v5157 = vpop.f32.mrf.mxu0
      %v5158 = vadd.f32 0.0, %v5157
      %5159 = vdwg.mxu0
      %v5160 = vadd.f32 %v4822, %v5121
      %v5161 = vadd.f32 %v4823, %v5123
      %v5162 = vadd.f32 %v4824, %v5126
      %v5163 = vadd.f32 %v4825, %v5128
      %v5164 = vadd.f32 %v4826, %v5131
      %v5165 = vadd.f32 %v4827, %v5133
      %v5166 = vadd.f32 %v4828, %v5136
      %v5167 = vadd.f32 %v4829, %v5138
      %v5168 = vadd.f32 %v4830, %v5141
      %v5169 = vadd.f32 %v4831, %v5143
      %v5170 = vadd.f32 %v4832, %v5146
      %v5171 = vadd.f32 %v4833, %v5148
      %v5172 = vadd.f32 %v4834, %v5151
      %v5173 = vadd.f32 %v4835, %v5153
      %v5174 = vadd.f32 %v4836, %v5156
      %v5175 = vadd.f32 %v4837, %v5158
      %s5176 = scalar_lea.vmem [#allocation2], 372
      %v5177 = vld [vmem:[%s5176] sm:$0xf]
      %v5178 = vld [vmem:[%s5176 + $0x4] sm:$0xf]
      %v5179 = vld [vmem:[%s5176 + $0xc] sm:$0xf]
      %v5180 = vld [vmem:[%s5176 + $0x10] sm:$0xf]
      %v5181 = vld [vmem:[%s5176 + $0x18] sm:$0xf]
      %v5182 = vld [vmem:[%s5176 + $0x1c] sm:$0xf]
      %v5183 = vld [vmem:[%s5176 + $0x24] sm:$0xf]
      %v5184 = vld [vmem:[%s5176 + $0x28] sm:$0xf]
      %v5185 = vld [vmem:[%s5176 + $0x30] sm:$0xf]
      %v5186 = vld [vmem:[%s5176 + $0x34] sm:$0xf]
      %v5187 = vld [vmem:[%s5176 + $0x3c] sm:$0xf]
      %v5188 = vld [vmem:[%s5176 + $0x40] sm:$0xf]
      %v5189 = vld [vmem:[%s5176 + $0x48] sm:$0xf]
      %v5190 = vld [vmem:[%s5176 + $0x4c] sm:$0xf]
      %v5191 = vld [vmem:[%s5176 + $0x54] sm:$0xf]
      %v5192 = vld [vmem:[%s5176 + $0x58] sm:$0xf]
      %s5193 = scalar_lea.vmem %s2, 48
      %v5194 = vld [vmem:[%s5193] sm:$0xf]
      %v5195 = vld [vmem:[%s5193 + $0x4] sm:$0xf]
      %v5212 = vunpack.c.l.b16 %v5177
      %v5213 = vunpack.c.l.b16 %v5178
      %v5214 = vunpack.c.l.b16 %v5179
      %v5215 = vunpack.c.l.b16 %v5180
      %v5216 = vunpack.c.l.b16 %v5181
      %v5217 = vunpack.c.l.b16 %v5182
      %v5218 = vunpack.c.l.b16 %v5183
      %v5219 = vunpack.c.l.b16 %v5184
      %v5220 = vunpack.c.l.b16 %v5185
      %v5221 = vunpack.c.l.b16 %v5186
      %v5222 = vunpack.c.l.b16 %v5187
      %v5223 = vunpack.c.l.b16 %v5188
      %v5224 = vunpack.c.l.b16 %v5189
      %v5225 = vunpack.c.l.b16 %v5190
      %v5226 = vunpack.c.l.b16 %v5191
      %v5227 = vunpack.c.l.b16 %v5192
      %v5228 = vpack.c.b16 %v5213, %v5212
      %v5229 = vpack.c.b16 %v5215, %v5214
      %v5230 = vpack.c.b16 %v5217, %v5216
      %v5231 = vpack.c.b16 %v5219, %v5218
      %v5232 = vpack.c.b16 %v5221, %v5220
      %v5233 = vpack.c.b16 %v5223, %v5222
      %v5234 = vpack.c.b16 %v5225, %v5224
      %v5235 = vpack.c.b16 %v5227, %v5226
      %v5238 = vunpack.c.l.b16 %v5194
      %v5239 = vunpack.c.l.b16 %v5195
      %v5240 = vpack.c.b16 %v5239, %v5238
      %v5243 = vsel %vm636, %v5228, 0
      %v5246 = vsel %vm636, %v5229, 0
      %v5249 = vsel %vm636, %v5230, 0
      %v5252 = vsel %vm636, %v5231, 0
      %v5255 = vsel %vm636, %v5232, 0
      %v5258 = vsel %vm636, %v5233, 0
      %v5261 = vsel %vm636, %v5234, 0
      %v5264 = vsel %vm636, %v5235, 0
      %5266 = vmatpush.bf16.msra.mxu0 0
      %5267 = vmatpush.bf16.msra.mxu0 0
      %5268 = vmatpush.bf16.msra.mxu0 0
      %5269 = vmatpush.bf16.msra.mxu0 0
      %5270 = vmatpush.bf16.msra.mxu0 0
      %5271 = vmatpush.bf16.msra.mxu0 0
      %5272 = vmatpush.bf16.msra.mxu0 0
      %5273 = vmatpush.bf16.msra.mxu0 %v5240
      %5274 = vmatmul.bf16.gmra.mxu0 %v5243
      %v5275 = vpop.f32.mrf.mxu0
      %v5276 = vadd.f32 0.0, %v5275
      %v5277 = vpop.f32.mrf.mxu0
      %v5278 = vadd.f32 0.0, %v5277
      %5279 = vmatmul.bf16.gmra.mxu0 %v5246
      %v5280 = vpop.f32.mrf.mxu0
      %v5281 = vadd.f32 0.0, %v5280
      %v5282 = vpop.f32.mrf.mxu0
      %v5283 = vadd.f32 0.0, %v5282
      %5284 = vmatmul.bf16.gmra.mxu0 %v5249
      %v5285 = vpop.f32.mrf.mxu0
      %v5286 = vadd.f32 0.0, %v5285
      %v5287 = vpop.f32.mrf.mxu0
      %v5288 = vadd.f32 0.0, %v5287
      %5289 = vmatmul.bf16.gmra.mxu0 %v5252
      %v5290 = vpop.f32.mrf.mxu0
      %v5291 = vadd.f32 0.0, %v5290
      %v5292 = vpop.f32.mrf.mxu0
      %v5293 = vadd.f32 0.0, %v5292
      %5294 = vmatmul.bf16.gmra.mxu0 %v5255
      %v5295 = vpop.f32.mrf.mxu0
      %v5296 = vadd.f32 0.0, %v5295
      %v5297 = vpop.f32.mrf.mxu0
      %v5298 = vadd.f32 0.0, %v5297
      %5299 = vmatmul.bf16.gmra.mxu0 %v5258
      %v5300 = vpop.f32.mrf.mxu0
      %v5301 = vadd.f32 0.0, %v5300
      %v5302 = vpop.f32.mrf.mxu0
      %v5303 = vadd.f32 0.0, %v5302
      %5304 = vmatmul.bf16.gmra.mxu0 %v5261
      %v5305 = vpop.f32.mrf.mxu0
      %v5306 = vadd.f32 0.0, %v5305
      %v5307 = vpop.f32.mrf.mxu0
      %v5308 = vadd.f32 0.0, %v5307
      %5309 = vmatmul.bf16.gmra.mxu0 %v5264
      %v5310 = vpop.f32.mrf.mxu0
      %v5311 = vadd.f32 0.0, %v5310
      %v5312 = vpop.f32.mrf.mxu0
      %v5313 = vadd.f32 0.0, %v5312
      %5314 = vdwg.mxu0
      %v5315 = vadd.f32 %v5160, %v5276
      %v5316 = vadd.f32 %v5161, %v5278
      %v5317 = vadd.f32 %v5162, %v5281
      %v5318 = vadd.f32 %v5163, %v5283
      %v5319 = vadd.f32 %v5164, %v5286
      %v5320 = vadd.f32 %v5165, %v5288
      %v5321 = vadd.f32 %v5166, %v5291
      %v5322 = vadd.f32 %v5167, %v5293
      %v5323 = vadd.f32 %v5168, %v5296
      %v5324 = vadd.f32 %v5169, %v5298
      %v5325 = vadd.f32 %v5170, %v5301
      %v5326 = vadd.f32 %v5171, %v5303
      %v5327 = vadd.f32 %v5172, %v5306
      %v5328 = vadd.f32 %v5173, %v5308
      %v5329 = vadd.f32 %v5174, %v5311
      %v5330 = vadd.f32 %v5175, %v5313
      %s5331 = scalar_lea.vmem [#allocation2], 252
      %v5332 = vld [vmem:[%s5331] sm:$0xf]
      %v5333 = vld [vmem:[%s5331 + $0x4] sm:$0xf]
      %v5334 = vld [vmem:[%s5331 + $0x8] sm:$0x1]
      %v5335 = vld [vmem:[%s5331 + $0xc] sm:$0xf]
      %v5336 = vld [vmem:[%s5331 + $0x10] sm:$0xf]
      %v5337 = vld [vmem:[%s5331 + $0x14] sm:$0x1]
      %v5338 = vld [vmem:[%s5331 + $0x18] sm:$0xf]
      %v5339 = vld [vmem:[%s5331 + $0x1c] sm:$0xf]
      %v5340 = vld [vmem:[%s5331 + $0x20] sm:$0x1]
      %v5341 = vld [vmem:[%s5331 + $0x24] sm:$0xf]
      %v5342 = vld [vmem:[%s5331 + $0x28] sm:$0xf]
      %v5343 = vld [vmem:[%s5331 + $0x2c] sm:$0x1]
      %v5344 = vld [vmem:[%s5331 + $0x30] sm:$0xf]
      %v5345 = vld [vmem:[%s5331 + $0x34] sm:$0xf]
      %v5346 = vld [vmem:[%s5331 + $0x38] sm:$0x1]
      %v5347 = vld [vmem:[%s5331 + $0x3c] sm:$0xf]
      %v5348 = vld [vmem:[%s5331 + $0x40] sm:$0xf]
      %v5349 = vld [vmem:[%s5331 + $0x44] sm:$0x1]
      %v5350 = vld [vmem:[%s5331 + $0x48] sm:$0xf]
      %v5351 = vld [vmem:[%s5331 + $0x4c] sm:$0xf]
      %v5352 = vld [vmem:[%s5331 + $0x50] sm:$0x1]
      %v5353 = vld [vmem:[%s5331 + $0x54] sm:$0xf]
      %v5354 = vld [vmem:[%s5331 + $0x58] sm:$0xf]
      %v5355 = vld [vmem:[%s5331 + $0x5c] sm:$0x1]
      %v5357 = vshrl.u32 %v5332, 16
      %v5359 = vrot.slane %v5357, 4
      %v5360 = vshll.u32 %v5332, 16
      %v5362 = vrot.slane %v5360, 5
      %v5363 = vor.u32 %v5359, %v5362
      %v5364 = vrot.slane %v5363, 4
      %v5366 = vshll.u32 %v5333, 16
      %v5368 = vrot.slane %v5366, 5
      %v5369 = vsel %vm3588, %v5364, %v5368
      %v5370 = vshrl.u32 %v5333, 16
      %v5372 = vrot.slane %v5370, 4
      %v5373 = vor.u32 %v5372, %v5368
      %v5374 = vrot.slane %v5373, 4
      %v5376 = vshll.u32 %v5334, 16
      %v5378 = vrot.slane %v5376, 5
      %v5379 = vsel %vm3588, %v5374, %v5378
      %v5381 = vshrl.u32 %v5335, 16
      %v5383 = vrot.slane %v5381, 4
      %v5384 = vshll.u32 %v5335, 16
      %v5386 = vrot.slane %v5384, 5
      %v5387 = vor.u32 %v5383, %v5386
      %v5388 = vrot.slane %v5387, 4
      %v5390 = vshll.u32 %v5336, 16
      %v5392 = vrot.slane %v5390, 5
      %v5393 = vsel %vm3588, %v5388, %v5392
      %v5394 = vshrl.u32 %v5336, 16
      %v5396 = vrot.slane %v5394, 4
      %v5397 = vor.u32 %v5396, %v5392
      %v5398 = vrot.slane %v5397, 4
      %v5400 = vshll.u32 %v5337, 16
      %v5402 = vrot.slane %v5400, 5
      %v5403 = vsel %vm3588, %v5398, %v5402
      %v5405 = vshrl.u32 %v5338, 16
      %v5407 = vrot.slane %v5405, 4
      %v5408 = vshll.u32 %v5338, 16
      %v5410 = vrot.slane %v5408, 5
      %v5411 = vor.u32 %v5407, %v5410
      %v5412 = vrot.slane %v5411, 4
      %v5414 = vshll.u32 %v5339, 16
      %v5416 = vrot.slane %v5414, 5
      %v5417 = vsel %vm3588, %v5412, %v5416
      %v5418 = vshrl.u32 %v5339, 16
      %v5420 = vrot.slane %v5418, 4
      %v5421 = vor.u32 %v5420, %v5416
      %v5422 = vrot.slane %v5421, 4
      %v5424 = vshll.u32 %v5340, 16
      %v5426 = vrot.slane %v5424, 5
      %v5427 = vsel %vm3588, %v5422, %v5426
      %v5429 = vshrl.u32 %v5341, 16
      %v5431 = vrot.slane %v5429, 4
      %v5432 = vshll.u32 %v5341, 16
      %v5434 = vrot.slane %v5432, 5
      %v5435 = vor.u32 %v5431, %v5434
      %v5436 = vrot.slane %v5435, 4
      %v5438 = vshll.u32 %v5342, 16
      %v5440 = vrot.slane %v5438, 5
      %v5441 = vsel %vm3588, %v5436, %v5440
      %v5442 = vshrl.u32 %v5342, 16
      %v5444 = vrot.slane %v5442, 4
      %v5445 = vor.u32 %v5444, %v5440
      %v5446 = vrot.slane %v5445, 4
      %v5448 = vshll.u32 %v5343, 16
      %v5450 = vrot.slane %v5448, 5
      %v5451 = vsel %vm3588, %v5446, %v5450
      %v5453 = vshrl.u32 %v5344, 16
      %v5455 = vrot.slane %v5453, 4
      %v5456 = vshll.u32 %v5344, 16
      %v5458 = vrot.slane %v5456, 5
      %v5459 = vor.u32 %v5455, %v5458
      %v5460 = vrot.slane %v5459, 4
      %v5462 = vshll.u32 %v5345, 16
      %v5464 = vrot.slane %v5462, 5
      %v5465 = vsel %vm3588, %v5460, %v5464
      %v5466 = vshrl.u32 %v5345, 16
      %v5468 = vrot.slane %v5466, 4
      %v5469 = vor.u32 %v5468, %v5464
      %v5470 = vrot.slane %v5469, 4
      %v5472 = vshll.u32 %v5346, 16
      %v5474 = vrot.slane %v5472, 5
      %v5475 = vsel %vm3588, %v5470, %v5474
      %v5477 = vshrl.u32 %v5347, 16
      %v5479 = vrot.slane %v5477, 4
      %v5480 = vshll.u32 %v5347, 16
      %v5482 = vrot.slane %v5480, 5
      %v5483 = vor.u32 %v5479, %v5482
      %v5484 = vrot.slane %v5483, 4
      %v5486 = vshll.u32 %v5348, 16
      %v5488 = vrot.slane %v5486, 5
      %v5489 = vsel %vm3588, %v5484, %v5488
      %v5490 = vshrl.u32 %v5348, 16
      %v5492 = vrot.slane %v5490, 4
      %v5493 = vor.u32 %v5492, %v5488
      %v5494 = vrot.slane %v5493, 4
      %v5496 = vshll.u32 %v5349, 16
      %v5498 = vrot.slane %v5496, 5
      %v5499 = vsel %vm3588, %v5494, %v5498
      %v5501 = vshrl.u32 %v5350, 16
      %v5503 = vrot.slane %v5501, 4
      %v5504 = vshll.u32 %v5350, 16
      %v5506 = vrot.slane %v5504, 5
      %v5507 = vor.u32 %v5503, %v5506
      %v5508 = vrot.slane %v5507, 4
      %v5510 = vshll.u32 %v5351, 16
      %v5512 = vrot.slane %v5510, 5
      %v5513 = vsel %vm3588, %v5508, %v5512
      %v5514 = vshrl.u32 %v5351, 16
      %v5516 = vrot.slane %v5514, 4
      %v5517 = vor.u32 %v5516, %v5512
      %v5518 = vrot.slane %v5517, 4
      %v5520 = vshll.u32 %v5352, 16
      %v5522 = vrot.slane %v5520, 5
      %v5523 = vsel %vm3588, %v5518, %v5522
      %v5525 = vshrl.u32 %v5353, 16
      %v5527 = vrot.slane %v5525, 4
      %v5528 = vshll.u32 %v5353, 16
      %v5530 = vrot.slane %v5528, 5
      %v5531 = vor.u32 %v5527, %v5530
      %v5532 = vrot.slane %v5531, 4
      %v5534 = vshll.u32 %v5354, 16
      %v5536 = vrot.slane %v5534, 5
      %v5537 = vsel %vm3588, %v5532, %v5536
      %v5538 = vshrl.u32 %v5354, 16
      %v5540 = vrot.slane %v5538, 4
      %v5541 = vor.u32 %v5540, %v5536
      %v5542 = vrot.slane %v5541, 4
      %v5544 = vshll.u32 %v5355, 16
      %v5546 = vrot.slane %v5544, 5
      %v5547 = vsel %vm3588, %v5542, %v5546
      %s5548 = scalar_lea.vmem %s2, 56
      %v5549 = vld [vmem:[%s5548] sm:$0xf]
      %v5550 = vld [vmem:[%s5548 + $0x4] sm:$0xf]
      %v5551 = vunpack.c.l.b16 %v5369
      %v5552 = vunpack.c.l.b16 %v5379
      %v5553 = vunpack.c.l.b16 %v5393
      %v5554 = vunpack.c.l.b16 %v5403
      %v5555 = vunpack.c.l.b16 %v5417
      %v5556 = vunpack.c.l.b16 %v5427
      %v5557 = vunpack.c.l.b16 %v5441
      %v5558 = vunpack.c.l.b16 %v5451
      %v5559 = vunpack.c.l.b16 %v5465
      %v5560 = vunpack.c.l.b16 %v5475
      %v5561 = vunpack.c.l.b16 %v5489
      %v5562 = vunpack.c.l.b16 %v5499
      %v5563 = vunpack.c.l.b16 %v5513
      %v5564 = vunpack.c.l.b16 %v5523
      %v5565 = vunpack.c.l.b16 %v5537
      %v5566 = vunpack.c.l.b16 %v5547
      %v5567 = vpack.c.b16 %v5552, %v5551
      %v5568 = vpack.c.b16 %v5554, %v5553
      %v5569 = vpack.c.b16 %v5556, %v5555
      %v5570 = vpack.c.b16 %v5558, %v5557
      %v5571 = vpack.c.b16 %v5560, %v5559
      %v5572 = vpack.c.b16 %v5562, %v5561
      %v5573 = vpack.c.b16 %v5564, %v5563
      %v5574 = vpack.c.b16 %v5566, %v5565
      %v5577 = vunpack.c.l.b16 %v5549
      %v5578 = vunpack.c.l.b16 %v5550
      %v5579 = vpack.c.b16 %v5578, %v5577
      %v5582 = vsel %vm636, %v5567, 0
      %v5585 = vsel %vm636, %v5568, 0
      %v5588 = vsel %vm636, %v5569, 0
      %v5591 = vsel %vm636, %v5570, 0
      %v5594 = vsel %vm636, %v5571, 0
      %v5597 = vsel %vm636, %v5572, 0
      %v5600 = vsel %vm636, %v5573, 0
      %v5603 = vsel %vm636, %v5574, 0
      %5605 = vmatpush.bf16.msra.mxu0 0
      %5606 = vmatpush.bf16.msra.mxu0 0
      %5607 = vmatpush.bf16.msra.mxu0 0
      %5608 = vmatpush.bf16.msra.mxu0 0
      %5609 = vmatpush.bf16.msra.mxu0 0
      %5610 = vmatpush.bf16.msra.mxu0 0
      %5611 = vmatpush.bf16.msra.mxu0 0
      %5612 = vmatpush.bf16.msra.mxu0 %v5579
      %5613 = vmatmul.bf16.gmra.mxu0 %v5582
      %v5614 = vpop.f32.mrf.mxu0
      %v5615 = vadd.f32 0.0, %v5614
      %v5616 = vpop.f32.mrf.mxu0
      %v5617 = vadd.f32 0.0, %v5616
      %5618 = vmatmul.bf16.gmra.mxu0 %v5585
      %v5619 = vpop.f32.mrf.mxu0
      %v5620 = vadd.f32 0.0, %v5619
      %v5621 = vpop.f32.mrf.mxu0
      %v5622 = vadd.f32 0.0, %v5621
      %5623 = vmatmul.bf16.gmra.mxu0 %v5588
      %v5624 = vpop.f32.mrf.mxu0
      %v5625 = vadd.f32 0.0, %v5624
      %v5626 = vpop.f32.mrf.mxu0
      %v5627 = vadd.f32 0.0, %v5626
      %5628 = vmatmul.bf16.gmra.mxu0 %v5591
      %v5629 = vpop.f32.mrf.mxu0
      %v5630 = vadd.f32 0.0, %v5629
      %v5631 = vpop.f32.mrf.mxu0
      %v5632 = vadd.f32 0.0, %v5631
      %5633 = vmatmul.bf16.gmra.mxu0 %v5594
      %v5634 = vpop.f32.mrf.mxu0
      %v5635 = vadd.f32 0.0, %v5634
      %v5636 = vpop.f32.mrf.mxu0
      %v5637 = vadd.f32 0.0, %v5636
      %5638 = vmatmul.bf16.gmra.mxu0 %v5597
      %v5639 = vpop.f32.mrf.mxu0
      %v5640 = vadd.f32 0.0, %v5639
      %v5641 = vpop.f32.mrf.mxu0
      %v5642 = vadd.f32 0.0, %v5641
      %5643 = vmatmul.bf16.gmra.mxu0 %v5600
      %v5644 = vpop.f32.mrf.mxu0
      %v5645 = vadd.f32 0.0, %v5644
      %v5646 = vpop.f32.mrf.mxu0
      %v5647 = vadd.f32 0.0, %v5646
      %5648 = vmatmul.bf16.gmra.mxu0 %v5603
      %v5649 = vpop.f32.mrf.mxu0
      %v5650 = vadd.f32 0.0, %v5649
      %v5651 = vpop.f32.mrf.mxu0
      %v5652 = vadd.f32 0.0, %v5651
      %5653 = vdwg.mxu0
      %v5654 = vadd.f32 %v5315, %v5615
      %v5655 = vadd.f32 %v5316, %v5617
      %v5656 = vadd.f32 %v5317, %v5620
      %v5657 = vadd.f32 %v5318, %v5622
      %v5658 = vadd.f32 %v5319, %v5625
      %v5659 = vadd.f32 %v5320, %v5627
      %v5660 = vadd.f32 %v5321, %v5630
      %v5661 = vadd.f32 %v5322, %v5632
      %v5662 = vadd.f32 %v5323, %v5635
      %v5663 = vadd.f32 %v5324, %v5637
      %v5664 = vadd.f32 %v5325, %v5640
      %v5665 = vadd.f32 %v5326, %v5642
      %v5666 = vadd.f32 %v5327, %v5645
      %v5667 = vadd.f32 %v5328, %v5647
      %v5668 = vadd.f32 %v5329, %v5650
      %v5669 = vadd.f32 %v5330, %v5652
      %v5670 = vld [vmem:[%s5176] sm:$0xf]
      %v5671 = vld [vmem:[%s5176 + $0x4] sm:$0xf]
      %v5672 = vld [vmem:[%s5176 + $0x8] sm:$0x1]
      %v5673 = vld [vmem:[%s5176 + $0xc] sm:$0xf]
      %v5674 = vld [vmem:[%s5176 + $0x10] sm:$0xf]
      %v5675 = vld [vmem:[%s5176 + $0x14] sm:$0x1]
      %v5676 = vld [vmem:[%s5176 + $0x18] sm:$0xf]
      %v5677 = vld [vmem:[%s5176 + $0x1c] sm:$0xf]
      %v5678 = vld [vmem:[%s5176 + $0x20] sm:$0x1]
      %v5679 = vld [vmem:[%s5176 + $0x24] sm:$0xf]
      %v5680 = vld [vmem:[%s5176 + $0x28] sm:$0xf]
      %v5681 = vld [vmem:[%s5176 + $0x2c] sm:$0x1]
      %v5682 = vld [vmem:[%s5176 + $0x30] sm:$0xf]
      %v5683 = vld [vmem:[%s5176 + $0x34] sm:$0xf]
      %v5684 = vld [vmem:[%s5176 + $0x38] sm:$0x1]
      %v5685 = vld [vmem:[%s5176 + $0x3c] sm:$0xf]
      %v5686 = vld [vmem:[%s5176 + $0x40] sm:$0xf]
      %v5687 = vld [vmem:[%s5176 + $0x44] sm:$0x1]
      %v5688 = vld [vmem:[%s5176 + $0x48] sm:$0xf]
      %v5689 = vld [vmem:[%s5176 + $0x4c] sm:$0xf]
      %v5690 = vld [vmem:[%s5176 + $0x50] sm:$0x1]
      %v5691 = vld [vmem:[%s5176 + $0x54] sm:$0xf]
      %v5692 = vld [vmem:[%s5176 + $0x58] sm:$0xf]
      %v5693 = vld [vmem:[%s5176 + $0x5c] sm:$0x1]
      %v5695 = vshrl.u32 %v5670, 16
      %v5697 = vrot.slane %v5695, 4
      %v5698 = vshll.u32 %v5670, 16
      %v5700 = vrot.slane %v5698, 5
      %v5701 = vor.u32 %v5697, %v5700
      %v5702 = vrot.slane %v5701, 4
      %v5704 = vshll.u32 %v5671, 16
      %v5706 = vrot.slane %v5704, 5
      %v5707 = vsel %vm3588, %v5702, %v5706
      %v5708 = vshrl.u32 %v5671, 16
      %v5710 = vrot.slane %v5708, 4
      %v5711 = vor.u32 %v5710, %v5706
      %v5712 = vrot.slane %v5711, 4
      %v5714 = vshll.u32 %v5672, 16
      %v5716 = vrot.slane %v5714, 5
      %v5717 = vsel %vm3588, %v5712, %v5716
      %v5719 = vshrl.u32 %v5673, 16
      %v5721 = vrot.slane %v5719, 4
      %v5722 = vshll.u32 %v5673, 16
      %v5724 = vrot.slane %v5722, 5
      %v5725 = vor.u32 %v5721, %v5724
      %v5726 = vrot.slane %v5725, 4
      %v5728 = vshll.u32 %v5674, 16
      %v5730 = vrot.slane %v5728, 5
      %v5731 = vsel %vm3588, %v5726, %v5730
      %v5732 = vshrl.u32 %v5674, 16
      %v5734 = vrot.slane %v5732, 4
      %v5735 = vor.u32 %v5734, %v5730
      %v5736 = vrot.slane %v5735, 4
      %v5738 = vshll.u32 %v5675, 16
      %v5740 = vrot.slane %v5738, 5
      %v5741 = vsel %vm3588, %v5736, %v5740
      %v5743 = vshrl.u32 %v5676, 16
      %v5745 = vrot.slane %v5743, 4
      %v5746 = vshll.u32 %v5676, 16
      %v5748 = vrot.slane %v5746, 5
      %v5749 = vor.u32 %v5745, %v5748
      %v5750 = vrot.slane %v5749, 4
      %v5752 = vshll.u32 %v5677, 16
      %v5754 = vrot.slane %v5752, 5
      %v5755 = vsel %vm3588, %v5750, %v5754
      %v5756 = vshrl.u32 %v5677, 16
      %v5758 = vrot.slane %v5756, 4
      %v5759 = vor.u32 %v5758, %v5754
      %v5760 = vrot.slane %v5759, 4
      %v5762 = vshll.u32 %v5678, 16
      %v5764 = vrot.slane %v5762, 5
      %v5765 = vsel %vm3588, %v5760, %v5764
      %v5767 = vshrl.u32 %v5679, 16
      %v5769 = vrot.slane %v5767, 4
      %v5770 = vshll.u32 %v5679, 16
      %v5772 = vrot.slane %v5770, 5
      %v5773 = vor.u32 %v5769, %v5772
      %v5774 = vrot.slane %v5773, 4
      %v5776 = vshll.u32 %v5680, 16
      %v5778 = vrot.slane %v5776, 5
      %v5779 = vsel %vm3588, %v5774, %v5778
      %v5780 = vshrl.u32 %v5680, 16
      %v5782 = vrot.slane %v5780, 4
      %v5783 = vor.u32 %v5782, %v5778
      %v5784 = vrot.slane %v5783, 4
      %v5786 = vshll.u32 %v5681, 16
      %v5788 = vrot.slane %v5786, 5
      %v5789 = vsel %vm3588, %v5784, %v5788
      %v5791 = vshrl.u32 %v5682, 16
      %v5793 = vrot.slane %v5791, 4
      %v5794 = vshll.u32 %v5682, 16
      %v5796 = vrot.slane %v5794, 5
      %v5797 = vor.u32 %v5793, %v5796
      %v5798 = vrot.slane %v5797, 4
      %v5800 = vshll.u32 %v5683, 16
      %v5802 = vrot.slane %v5800, 5
      %v5803 = vsel %vm3588, %v5798, %v5802
      %v5804 = vshrl.u32 %v5683, 16
      %v5806 = vrot.slane %v5804, 4
      %v5807 = vor.u32 %v5806, %v5802
      %v5808 = vrot.slane %v5807, 4
      %v5810 = vshll.u32 %v5684, 16
      %v5812 = vrot.slane %v5810, 5
      %v5813 = vsel %vm3588, %v5808, %v5812
      %v5815 = vshrl.u32 %v5685, 16
      %v5817 = vrot.slane %v5815, 4
      %v5818 = vshll.u32 %v5685, 16
      %v5820 = vrot.slane %v5818, 5
      %v5821 = vor.u32 %v5817, %v5820
      %v5822 = vrot.slane %v5821, 4
      %v5824 = vshll.u32 %v5686, 16
      %v5826 = vrot.slane %v5824, 5
      %v5827 = vsel %vm3588, %v5822, %v5826
      %v5828 = vshrl.u32 %v5686, 16
      %v5830 = vrot.slane %v5828, 4
      %v5831 = vor.u32 %v5830, %v5826
      %v5832 = vrot.slane %v5831, 4
      %v5834 = vshll.u32 %v5687, 16
      %v5836 = vrot.slane %v5834, 5
      %v5837 = vsel %vm3588, %v5832, %v5836
      %v5839 = vshrl.u32 %v5688, 16
      %v5841 = vrot.slane %v5839, 4
      %v5842 = vshll.u32 %v5688, 16
      %v5844 = vrot.slane %v5842, 5
      %v5845 = vor.u32 %v5841, %v5844
      %v5846 = vrot.slane %v5845, 4
      %v5848 = vshll.u32 %v5689, 16
      %v5850 = vrot.slane %v5848, 5
      %v5851 = vsel %vm3588, %v5846, %v5850
      %v5852 = vshrl.u32 %v5689, 16
      %v5854 = vrot.slane %v5852, 4
      %v5855 = vor.u32 %v5854, %v5850
      %v5856 = vrot.slane %v5855, 4
      %v5858 = vshll.u32 %v5690, 16
      %v5860 = vrot.slane %v5858, 5
      %v5861 = vsel %vm3588, %v5856, %v5860
      %v5863 = vshrl.u32 %v5691, 16
      %v5865 = vrot.slane %v5863, 4
      %v5866 = vshll.u32 %v5691, 16
      %v5868 = vrot.slane %v5866, 5
      %v5869 = vor.u32 %v5865, %v5868
      %v5870 = vrot.slane %v5869, 4
      %v5872 = vshll.u32 %v5692, 16
      %v5874 = vrot.slane %v5872, 5
      %v5875 = vsel %vm3588, %v5870, %v5874
      %v5876 = vshrl.u32 %v5692, 16
      %v5878 = vrot.slane %v5876, 4
      %v5879 = vor.u32 %v5878, %v5874
      %v5880 = vrot.slane %v5879, 4
      %v5882 = vshll.u32 %v5693, 16
      %v5884 = vrot.slane %v5882, 5
      %v5885 = vsel %vm3588, %v5880, %v5884
      %s5886 = scalar_lea.vmem %s2, 64
      %v5887 = vld [vmem:[%s5886] sm:$0xf]
      %v5888 = vld [vmem:[%s5886 + $0x4] sm:$0xf]
      %v5889 = vunpack.c.l.b16 %v5707
      %v5890 = vunpack.c.l.b16 %v5717
      %v5891 = vunpack.c.l.b16 %v5731
      %v5892 = vunpack.c.l.b16 %v5741
      %v5893 = vunpack.c.l.b16 %v5755
      %v5894 = vunpack.c.l.b16 %v5765
      %v5895 = vunpack.c.l.b16 %v5779
      %v5896 = vunpack.c.l.b16 %v5789
      %v5897 = vunpack.c.l.b16 %v5803
      %v5898 = vunpack.c.l.b16 %v5813
      %v5899 = vunpack.c.l.b16 %v5827
      %v5900 = vunpack.c.l.b16 %v5837
      %v5901 = vunpack.c.l.b16 %v5851
      %v5902 = vunpack.c.l.b16 %v5861
      %v5903 = vunpack.c.l.b16 %v5875
      %v5904 = vunpack.c.l.b16 %v5885
      %v5905 = vpack.c.b16 %v5890, %v5889
      %v5906 = vpack.c.b16 %v5892, %v5891
      %v5907 = vpack.c.b16 %v5894, %v5893
      %v5908 = vpack.c.b16 %v5896, %v5895
      %v5909 = vpack.c.b16 %v5898, %v5897
      %v5910 = vpack.c.b16 %v5900, %v5899
      %v5911 = vpack.c.b16 %v5902, %v5901
      %v5912 = vpack.c.b16 %v5904, %v5903
      %v5915 = vunpack.c.l.b16 %v5887
      %v5916 = vunpack.c.l.b16 %v5888
      %v5917 = vpack.c.b16 %v5916, %v5915
      %v5920 = vsel %vm636, %v5905, 0
      %v5923 = vsel %vm636, %v5906, 0
      %v5926 = vsel %vm636, %v5907, 0
      %v5929 = vsel %vm636, %v5908, 0
      %v5932 = vsel %vm636, %v5909, 0
      %v5935 = vsel %vm636, %v5910, 0
      %v5938 = vsel %vm636, %v5911, 0
      %v5941 = vsel %vm636, %v5912, 0
      %5943 = vmatpush.bf16.msra.mxu0 0
      %5944 = vmatpush.bf16.msra.mxu0 0
      %5945 = vmatpush.bf16.msra.mxu0 0
      %5946 = vmatpush.bf16.msra.mxu0 0
      %5947 = vmatpush.bf16.msra.mxu0 0
      %5948 = vmatpush.bf16.msra.mxu0 0
      %5949 = vmatpush.bf16.msra.mxu0 0
      %5950 = vmatpush.bf16.msra.mxu0 %v5917
      %5951 = vmatmul.bf16.gmra.mxu0 %v5920
      %v5952 = vpop.f32.mrf.mxu0
      %v5953 = vadd.f32 0.0, %v5952
      %v5954 = vpop.f32.mrf.mxu0
      %v5955 = vadd.f32 0.0, %v5954
      %5956 = vmatmul.bf16.gmra.mxu0 %v5923
      %v5957 = vpop.f32.mrf.mxu0
      %v5958 = vadd.f32 0.0, %v5957
      %v5959 = vpop.f32.mrf.mxu0
      %v5960 = vadd.f32 0.0, %v5959
      %5961 = vmatmul.bf16.gmra.mxu0 %v5926
      %v5962 = vpop.f32.mrf.mxu0
      %v5963 = vadd.f32 0.0, %v5962
      %v5964 = vpop.f32.mrf.mxu0
      %v5965 = vadd.f32 0.0, %v5964
      %5966 = vmatmul.bf16.gmra.mxu0 %v5929
      %v5967 = vpop.f32.mrf.mxu0
      %v5968 = vadd.f32 0.0, %v5967
      %v5969 = vpop.f32.mrf.mxu0
      %v5970 = vadd.f32 0.0, %v5969
      %5971 = vmatmul.bf16.gmra.mxu0 %v5932
      %v5972 = vpop.f32.mrf.mxu0
      %v5973 = vadd.f32 0.0, %v5972
      %v5974 = vpop.f32.mrf.mxu0
      %v5975 = vadd.f32 0.0, %v5974
      %5976 = vmatmul.bf16.gmra.mxu0 %v5935
      %v5977 = vpop.f32.mrf.mxu0
      %v5978 = vadd.f32 0.0, %v5977
      %v5979 = vpop.f32.mrf.mxu0
      %v5980 = vadd.f32 0.0, %v5979
      %5981 = vmatmul.bf16.gmra.mxu0 %v5938
      %v5982 = vpop.f32.mrf.mxu0
      %v5983 = vadd.f32 0.0, %v5982
      %v5984 = vpop.f32.mrf.mxu0
      %v5985 = vadd.f32 0.0, %v5984
      %5986 = vmatmul.bf16.gmra.mxu0 %v5941
      %v5987 = vpop.f32.mrf.mxu0
      %v5988 = vadd.f32 0.0, %v5987
      %v5989 = vpop.f32.mrf.mxu0
      %v5990 = vadd.f32 0.0, %v5989
      %5991 = vdwg.mxu0
      %v5992 = vadd.f32 %v5654, %v5953
      %v5993 = vadd.f32 %v5655, %v5955
      %v5994 = vadd.f32 %v5656, %v5958
      %v5995 = vadd.f32 %v5657, %v5960
      %v5996 = vadd.f32 %v5658, %v5963
      %v5997 = vadd.f32 %v5659, %v5965
      %v5998 = vadd.f32 %v5660, %v5968
      %v5999 = vadd.f32 %v5661, %v5970
      %v6000 = vadd.f32 %v5662, %v5973
      %v6001 = vadd.f32 %v5663, %v5975
      %v6002 = vadd.f32 %v5664, %v5978
      %v6003 = vadd.f32 %v5665, %v5980
      %v6004 = vadd.f32 %v5666, %v5983
      %v6005 = vadd.f32 %v5667, %v5985
      %v6006 = vadd.f32 %v5668, %v5988
      %v6007 = vadd.f32 %v5669, %v5990
      %v6008 = vld [vmem:[%s314] sm:$0xf]
      %v6009 = vld [vmem:[%s314 + $0x4] sm:$0xf]
      %v6010 = vld [vmem:[%s314 + $0x8] sm:$0xf]
      %v6011 = vld [vmem:[%s314 + $0xc] sm:$0xf]
      %v6012 = vld [vmem:[%s314 + $0x10] sm:$0xf]
      %v6013 = vld [vmem:[%s314 + $0x14] sm:$0xf]
      %v6014 = vld [vmem:[%s314 + $0x18] sm:$0xf]
      %v6015 = vld [vmem:[%s314 + $0x1c] sm:$0xf]
      %v6016 = vld [vmem:[%s314 + $0x20] sm:$0xf]
      %v6017 = vld [vmem:[%s314 + $0x24] sm:$0xf]
      %v6018 = vld [vmem:[%s314 + $0x28] sm:$0xf]
      %v6019 = vld [vmem:[%s314 + $0x2c] sm:$0xf]
      %v6020 = vld [vmem:[%s314 + $0x30] sm:$0xf]
      %v6021 = vld [vmem:[%s314 + $0x34] sm:$0xf]
      %v6022 = vld [vmem:[%s314 + $0x38] sm:$0xf]
      %v6023 = vld [vmem:[%s314 + $0x3c] sm:$0xf]
      %v6025 = vperm.slane %v3542, 0
      %v6027 = vmul.f32 %v5992, %v6025
      %v6028 = vmul.f32 %v5993, %v6025
      %v6029 = vmul.f32 %v5994, %v6025
      %v6030 = vmul.f32 %v5995, %v6025
      %v6031 = vmul.f32 %v5996, %v6025
      %v6032 = vmul.f32 %v5997, %v6025
      %v6033 = vmul.f32 %v5998, %v6025
      %v6034 = vmul.f32 %v5999, %v6025
      %v6035 = vmul.f32 %v6000, %v6025
      %v6036 = vmul.f32 %v6001, %v6025
      %v6037 = vmul.f32 %v6002, %v6025
      %v6038 = vmul.f32 %v6003, %v6025
      %v6039 = vmul.f32 %v6004, %v6025
      %v6040 = vmul.f32 %v6005, %v6025
      %v6041 = vmul.f32 %v6006, %v6025
      %v6042 = vmul.f32 %v6007, %v6025
      %v6044 = vperm.slane %v3543, 0
      %v6046 = vadd.f32 %v6027, %v6044
      %v6047 = vadd.f32 %v6028, %v6044
      %v6048 = vadd.f32 %v6029, %v6044
      %v6049 = vadd.f32 %v6030, %v6044
      %v6050 = vadd.f32 %v6031, %v6044
      %v6051 = vadd.f32 %v6032, %v6044
      %v6052 = vadd.f32 %v6033, %v6044
      %v6053 = vadd.f32 %v6034, %v6044
      %v6054 = vadd.f32 %v6035, %v6044
      %v6055 = vadd.f32 %v6036, %v6044
      %v6056 = vadd.f32 %v6037, %v6044
      %v6057 = vadd.f32 %v6038, %v6044
      %v6058 = vadd.f32 %v6039, %v6044
      %v6059 = vadd.f32 %v6040, %v6044
      %v6060 = vadd.f32 %v6041, %v6044
      %v6061 = vadd.f32 %v6042, %v6044
      %v6062 = vunpack.c.l.bf16 %v6008
      %v6063 = vunpack.c.l.bf16 %v6009
      %v6064 = vunpack.c.l.bf16 %v6010
      %v6065 = vunpack.c.l.bf16 %v6011
      %v6066 = vunpack.c.l.bf16 %v6012
      %v6067 = vunpack.c.l.bf16 %v6013
      %v6068 = vunpack.c.l.bf16 %v6014
      %v6069 = vunpack.c.l.bf16 %v6015
      %v6070 = vunpack.c.l.bf16 %v6016
      %v6071 = vunpack.c.l.bf16 %v6017
      %v6072 = vunpack.c.l.bf16 %v6018
      %v6073 = vunpack.c.l.bf16 %v6019
      %v6074 = vunpack.c.l.bf16 %v6020
      %v6075 = vunpack.c.l.bf16 %v6021
      %v6076 = vunpack.c.l.bf16 %v6022
      %v6077 = vunpack.c.l.bf16 %v6023
      %v6078 = vadd.f32 %v6046, %v6062
      %v6079 = vadd.f32 %v6047, %v6063
      %v6080 = vadd.f32 %v6048, %v6064
      %v6081 = vadd.f32 %v6049, %v6065
      %v6082 = vadd.f32 %v6050, %v6066
      %v6083 = vadd.f32 %v6051, %v6067
      %v6084 = vadd.f32 %v6052, %v6068
      %v6085 = vadd.f32 %v6053, %v6069
      %v6086 = vadd.f32 %v6054, %v6070
      %v6087 = vadd.f32 %v6055, %v6071
      %v6088 = vadd.f32 %v6056, %v6072
      %v6089 = vadd.f32 %v6057, %v6073
      %v6090 = vadd.f32 %v6058, %v6074
      %v6091 = vadd.f32 %v6059, %v6075
      %v6092 = vadd.f32 %v6060, %v6076
      %v6093 = vadd.f32 %v6061, %v6077
      %v6094 = vmax.f32 %v6078, 0.0
      %v6095 = vmax.f32 %v6079, 0.0
      %v6096 = vmax.f32 %v6080, 0.0
      %v6097 = vmax.f32 %v6081, 0.0
      %v6098 = vmax.f32 %v6082, 0.0
      %v6099 = vmax.f32 %v6083, 0.0
      %v6100 = vmax.f32 %v6084, 0.0
      %v6101 = vmax.f32 %v6085, 0.0
      %v6102 = vmax.f32 %v6086, 0.0
      %v6103 = vmax.f32 %v6087, 0.0
      %v6104 = vmax.f32 %v6088, 0.0
      %v6105 = vmax.f32 %v6089, 0.0
      %v6106 = vmax.f32 %v6090, 0.0
      %v6107 = vmax.f32 %v6091, 0.0
      %v6108 = vmax.f32 %v6092, 0.0
      %v6109 = vmax.f32 %v6093, 0.0
      %v6110 = vpack.c.bf16 %v6094, %v6094
      %v6111 = vpack.c.bf16 %v6095, %v6095
      %v6112 = vpack.c.bf16 %v6096, %v6096
      %v6113 = vpack.c.bf16 %v6097, %v6097
      %v6114 = vpack.c.bf16 %v6098, %v6098
      %v6115 = vpack.c.bf16 %v6099, %v6099
      %v6116 = vpack.c.bf16 %v6100, %v6100
      %v6117 = vpack.c.bf16 %v6101, %v6101
      %v6118 = vpack.c.bf16 %v6102, %v6102
      %v6119 = vpack.c.bf16 %v6103, %v6103
      %v6120 = vpack.c.bf16 %v6104, %v6104
      %v6121 = vpack.c.bf16 %v6105, %v6105
      %v6122 = vpack.c.bf16 %v6106, %v6106
      %v6123 = vpack.c.bf16 %v6107, %v6107
      %v6124 = vpack.c.bf16 %v6108, %v6108
      %v6125 = vpack.c.bf16 %v6109, %v6109
      %6126 = vmatpush.bf16.msra.mxu0 0
      %6127 = vmatpush.bf16.msra.mxu0 0
      %6128 = vmatpush.bf16.msra.mxu0 0
      %6129 = vmatpush.bf16.msra.mxu0 0
      %6130 = vmatpush.bf16.msra.mxu0 0
      %6131 = vmatpush.bf16.msra.mxu0 0
      %6132 = vmatpush.bf16.msra.mxu0 0
      %6133 = vmatpush.bf16.msra.mxu0 %v3812
      %6134 = vmatmul.bf16.gmra.mxu0 %v4256
      %v6135 = vpop.f32.mrf.mxu0
      %v6136 = vadd.f32 0.0, %v6135
      %v6137 = vpop.f32.mrf.mxu0
      %v6138 = vadd.f32 0.0, %v6137
      %6139 = vmatmul.bf16.gmra.mxu0 %v4259
      %v6140 = vpop.f32.mrf.mxu0
      %v6141 = vadd.f32 0.0, %v6140
      %v6142 = vpop.f32.mrf.mxu0
      %v6143 = vadd.f32 0.0, %v6142
      %6144 = vmatmul.bf16.gmra.mxu0 %v4262
      %v6145 = vpop.f32.mrf.mxu0
      %v6146 = vadd.f32 0.0, %v6145
      %v6147 = vpop.f32.mrf.mxu0
      %v6148 = vadd.f32 0.0, %v6147
      %6149 = vmatmul.bf16.gmra.mxu0 %v4265
      %v6150 = vpop.f32.mrf.mxu0
      %v6151 = vadd.f32 0.0, %v6150
      %v6152 = vpop.f32.mrf.mxu0
      %v6153 = vadd.f32 0.0, %v6152
      %6154 = vmatmul.bf16.gmra.mxu0 %v4268
      %v6155 = vpop.f32.mrf.mxu0
      %v6156 = vadd.f32 0.0, %v6155
      %v6157 = vpop.f32.mrf.mxu0
      %v6158 = vadd.f32 0.0, %v6157
      %6159 = vmatmul.bf16.gmra.mxu0 %v4271
      %v6160 = vpop.f32.mrf.mxu0
      %v6161 = vadd.f32 0.0, %v6160
      %v6162 = vpop.f32.mrf.mxu0
      %v6163 = vadd.f32 0.0, %v6162
      %6164 = vmatmul.bf16.gmra.mxu0 %v4274
      %v6165 = vpop.f32.mrf.mxu0
      %v6166 = vadd.f32 0.0, %v6165
      %v6167 = vpop.f32.mrf.mxu0
      %v6168 = vadd.f32 0.0, %v6167
      %6169 = vmatmul.bf16.gmra.mxu0 %v4277
      %v6170 = vpop.f32.mrf.mxu0
      %v6171 = vadd.f32 0.0, %v6170
      %v6172 = vpop.f32.mrf.mxu0
      %v6173 = vadd.f32 0.0, %v6172
      %6174 = vdwg.mxu0
      %6175 = vmatpush.bf16.msra.mxu0 0
      %6176 = vmatpush.bf16.msra.mxu0 0
      %6177 = vmatpush.bf16.msra.mxu0 0
      %6178 = vmatpush.bf16.msra.mxu0 0
      %6179 = vmatpush.bf16.msra.mxu0 0
      %6180 = vmatpush.bf16.msra.mxu0 0
      %6181 = vmatpush.bf16.msra.mxu0 0
      %6182 = vmatpush.bf16.msra.mxu0 %v3931
      %6183 = vmatmul.bf16.gmra.mxu0 %v3815
      %v6184 = vpop.f32.mrf.mxu0
      %v6185 = vadd.f32 %v6136, %v6184
      %v6186 = vpop.f32.mrf.mxu0
      %v6187 = vadd.f32 %v6138, %v6186
      %6188 = vmatmul.bf16.gmra.mxu0 %v3818
      %v6189 = vpop.f32.mrf.mxu0
      %v6190 = vadd.f32 %v6141, %v6189
      %v6191 = vpop.f32.mrf.mxu0
      %v6192 = vadd.f32 %v6143, %v6191
      %6193 = vmatmul.bf16.gmra.mxu0 %v3821
      %v6194 = vpop.f32.mrf.mxu0
      %v6195 = vadd.f32 %v6146, %v6194
      %v6196 = vpop.f32.mrf.mxu0
      %v6197 = vadd.f32 %v6148, %v6196
      %6198 = vmatmul.bf16.gmra.mxu0 %v3824
      %v6199 = vpop.f32.mrf.mxu0
      %v6200 = vadd.f32 %v6151, %v6199
      %v6201 = vpop.f32.mrf.mxu0
      %v6202 = vadd.f32 %v6153, %v6201
      %6203 = vmatmul.bf16.gmra.mxu0 %v3827
      %v6204 = vpop.f32.mrf.mxu0
      %v6205 = vadd.f32 %v6156, %v6204
      %v6206 = vpop.f32.mrf.mxu0
      %v6207 = vadd.f32 %v6158, %v6206
      %6208 = vmatmul.bf16.gmra.mxu0 %v3830
      %v6209 = vpop.f32.mrf.mxu0
      %v6210 = vadd.f32 %v6161, %v6209
      %v6211 = vpop.f32.mrf.mxu0
      %v6212 = vadd.f32 %v6163, %v6211
      %6213 = vmatmul.bf16.gmra.mxu0 %v3833
      %v6214 = vpop.f32.mrf.mxu0
      %v6215 = vadd.f32 %v6166, %v6214
      %v6216 = vpop.f32.mrf.mxu0
      %v6217 = vadd.f32 %v6168, %v6216
      %6218 = vmatmul.bf16.gmra.mxu0 %v3836
      %v6219 = vpop.f32.mrf.mxu0
      %v6220 = vadd.f32 %v6171, %v6219
      %v6221 = vpop.f32.mrf.mxu0
      %v6222 = vadd.f32 %v6173, %v6221
      %6223 = vdwg.mxu0
      %v6224 = vld [vmem:[%s2482] sm:$0xe]
      %v6225 = vld [vmem:[%s2482 + $0xc] sm:$0xe]
      %v6226 = vld [vmem:[%s2482 + $0x18] sm:$0xe]
      %v6227 = vld [vmem:[%s2482 + $0x24] sm:$0xe]
      %v6228 = vld [vmem:[%s2482 + $0x30] sm:$0xe]
      %v6229 = vld [vmem:[%s2482 + $0x3c] sm:$0xe]
      %v6230 = vld [vmem:[%s2482 + $0x48] sm:$0xe]
      %v6231 = vld [vmem:[%s2482 + $0x54] sm:$0xe]
      %vm6256 = vcmask 1042432
      %vm6257 = vcmask 1046532
      %vm6258 = vmor %vm6256, %vm6257
      %v6259 = vrot.slane %v6224, 5
      %v6260 = vrot.slane %v6259, 4
      %v6261 = vrot.slane %v3563, 5
      %v6262 = vsel %vm6258, %v6260, %v6261
      %v6263 = vrot.slane %v6261, 4
      %v6264 = vrot.slane %v3564, 5
      %v6265 = vsel %vm6258, %v6263, %v6264
      %v6266 = vrot.slane %v6225, 5
      %v6267 = vrot.slane %v6266, 4
      %v6268 = vrot.slane %v3566, 5
      %v6269 = vsel %vm6258, %v6267, %v6268
      %v6270 = vrot.slane %v6268, 4
      %v6271 = vrot.slane %v3567, 5
      %v6272 = vsel %vm6258, %v6270, %v6271
      %v6273 = vrot.slane %v6226, 5
      %v6274 = vrot.slane %v6273, 4
      %v6275 = vrot.slane %v3569, 5
      %v6276 = vsel %vm6258, %v6274, %v6275
      %v6277 = vrot.slane %v6275, 4
      %v6278 = vrot.slane %v3570, 5
      %v6279 = vsel %vm6258, %v6277, %v6278
      %v6280 = vrot.slane %v6227, 5
      %v6281 = vrot.slane %v6280, 4
      %v6282 = vrot.slane %v3572, 5
      %v6283 = vsel %vm6258, %v6281, %v6282
      %v6284 = vrot.slane %v6282, 4
      %v6285 = vrot.slane %v3573, 5
      %v6286 = vsel %vm6258, %v6284, %v6285
      %v6287 = vrot.slane %v6228, 5
      %v6288 = vrot.slane %v6287, 4
      %v6289 = vrot.slane %v3575, 5
      %v6290 = vsel %vm6258, %v6288, %v6289
      %v6291 = vrot.slane %v6289, 4
      %v6292 = vrot.slane %v3576, 5
      %v6293 = vsel %vm6258, %v6291, %v6292
      %v6294 = vrot.slane %v6229, 5
      %v6295 = vrot.slane %v6294, 4
      %v6296 = vrot.slane %v3578, 5
      %v6297 = vsel %vm6258, %v6295, %v6296
      %v6298 = vrot.slane %v6296, 4
      %v6299 = vrot.slane %v3579, 5
      %v6300 = vsel %vm6258, %v6298, %v6299
      %v6301 = vrot.slane %v6230, 5
      %v6302 = vrot.slane %v6301, 4
      %v6303 = vrot.slane %v3581, 5
      %v6304 = vsel %vm6258, %v6302, %v6303
      %v6305 = vrot.slane %v6303, 4
      %v6306 = vrot.slane %v3582, 5
      %v6307 = vsel %vm6258, %v6305, %v6306
      %v6308 = vrot.slane %v6231, 5
      %v6309 = vrot.slane %v6308, 4
      %v6310 = vrot.slane %v3584, 5
      %v6311 = vsel %vm6258, %v6309, %v6310
      %v6312 = vrot.slane %v6310, 4
      %v6313 = vrot.slane %v3585, 5
      %v6314 = vsel %vm6258, %v6312, %v6313
      %v6315 = vunpack.c.l.b16 %v6262
      %v6316 = vunpack.c.l.b16 %v6265
      %v6317 = vunpack.c.l.b16 %v6269
      %v6318 = vunpack.c.l.b16 %v6272
      %v6319 = vunpack.c.l.b16 %v6276
      %v6320 = vunpack.c.l.b16 %v6279
      %v6321 = vunpack.c.l.b16 %v6283
      %v6322 = vunpack.c.l.b16 %v6286
      %v6323 = vunpack.c.l.b16 %v6290
      %v6324 = vunpack.c.l.b16 %v6293
      %v6325 = vunpack.c.l.b16 %v6297
      %v6326 = vunpack.c.l.b16 %v6300
      %v6327 = vunpack.c.l.b16 %v6304
      %v6328 = vunpack.c.l.b16 %v6307
      %v6329 = vunpack.c.l.b16 %v6311
      %v6330 = vunpack.c.l.b16 %v6314
      %v6331 = vpack.c.b16 %v6316, %v6315
      %v6332 = vpack.c.b16 %v6318, %v6317
      %v6333 = vpack.c.b16 %v6320, %v6319
      %v6334 = vpack.c.b16 %v6322, %v6321
      %v6335 = vpack.c.b16 %v6324, %v6323
      %v6336 = vpack.c.b16 %v6326, %v6325
      %v6337 = vpack.c.b16 %v6328, %v6327
      %v6338 = vpack.c.b16 %v6330, %v6329
      %v6340 = vsel %vm636, %v6331, 0
      %v6343 = vsel %vm636, %v6332, 0
      %v6346 = vsel %vm636, %v6333, 0
      %v6349 = vsel %vm636, %v6334, 0
      %v6352 = vsel %vm636, %v6335, 0
      %v6355 = vsel %vm636, %v6336, 0
      %v6358 = vsel %vm636, %v6337, 0
      %v6361 = vsel %vm636, %v6338, 0
      %6363 = vmatpush.bf16.msra.mxu0 0
      %6364 = vmatpush.bf16.msra.mxu0 0
      %6365 = vmatpush.bf16.msra.mxu0 0
      %6366 = vmatpush.bf16.msra.mxu0 0
      %6367 = vmatpush.bf16.msra.mxu0 0
      %6368 = vmatpush.bf16.msra.mxu0 0
      %6369 = vmatpush.bf16.msra.mxu0 0
      %6370 = vmatpush.bf16.msra.mxu0 %v4253
      %6371 = vmatmul.bf16.gmra.mxu0 %v6340
      %v6372 = vpop.f32.mrf.mxu0
      %v6373 = vadd.f32 0.0, %v6372
      %v6374 = vpop.f32.mrf.mxu0
      %v6375 = vadd.f32 0.0, %v6374
      %6376 = vmatmul.bf16.gmra.mxu0 %v6343
      %v6377 = vpop.f32.mrf.mxu0
      %v6378 = vadd.f32 0.0, %v6377
      %v6379 = vpop.f32.mrf.mxu0
      %v6380 = vadd.f32 0.0, %v6379
      %6381 = vmatmul.bf16.gmra.mxu0 %v6346
      %v6382 = vpop.f32.mrf.mxu0
      %v6383 = vadd.f32 0.0, %v6382
      %v6384 = vpop.f32.mrf.mxu0
      %v6385 = vadd.f32 0.0, %v6384
      %6386 = vmatmul.bf16.gmra.mxu0 %v6349
      %v6387 = vpop.f32.mrf.mxu0
      %v6388 = vadd.f32 0.0, %v6387
      %v6389 = vpop.f32.mrf.mxu0
      %v6390 = vadd.f32 0.0, %v6389
      %6391 = vmatmul.bf16.gmra.mxu0 %v6352
      %v6392 = vpop.f32.mrf.mxu0
      %v6393 = vadd.f32 0.0, %v6392
      %v6394 = vpop.f32.mrf.mxu0
      %v6395 = vadd.f32 0.0, %v6394
      %6396 = vmatmul.bf16.gmra.mxu0 %v6355
      %v6397 = vpop.f32.mrf.mxu0
      %v6398 = vadd.f32 0.0, %v6397
      %v6399 = vpop.f32.mrf.mxu0
      %v6400 = vadd.f32 0.0, %v6399
      %6401 = vmatmul.bf16.gmra.mxu0 %v6358
      %v6402 = vpop.f32.mrf.mxu0
      %v6403 = vadd.f32 0.0, %v6402
      %v6404 = vpop.f32.mrf.mxu0
      %v6405 = vadd.f32 0.0, %v6404
      %6406 = vmatmul.bf16.gmra.mxu0 %v6361
      %v6407 = vpop.f32.mrf.mxu0
      %v6408 = vadd.f32 0.0, %v6407
      %v6409 = vpop.f32.mrf.mxu0
      %v6410 = vadd.f32 0.0, %v6409
      %6411 = vdwg.mxu0
      %v6412 = vadd.f32 %v6185, %v6373
      %v6413 = vadd.f32 %v6187, %v6375
      %v6414 = vadd.f32 %v6190, %v6378
      %v6415 = vadd.f32 %v6192, %v6380
      %v6416 = vadd.f32 %v6195, %v6383
      %v6417 = vadd.f32 %v6197, %v6385
      %v6418 = vadd.f32 %v6200, %v6388
      %v6419 = vadd.f32 %v6202, %v6390
      %v6420 = vadd.f32 %v6205, %v6393
      %v6421 = vadd.f32 %v6207, %v6395
      %v6422 = vadd.f32 %v6210, %v6398
      %v6423 = vadd.f32 %v6212, %v6400
      %v6424 = vadd.f32 %v6215, %v6403
      %v6425 = vadd.f32 %v6217, %v6405
      %v6426 = vadd.f32 %v6220, %v6408
      %v6427 = vadd.f32 %v6222, %v6410
      %6428 = vmatpush.bf16.msra.mxu0 0
      %6429 = vmatpush.bf16.msra.mxu0 0
      %6430 = vmatpush.bf16.msra.mxu0 0
      %6431 = vmatpush.bf16.msra.mxu0 0
      %6432 = vmatpush.bf16.msra.mxu0 0
      %6433 = vmatpush.bf16.msra.mxu0 0
      %6434 = vmatpush.bf16.msra.mxu0 0
      %6435 = vmatpush.bf16.msra.mxu0 %v4408
      %6436 = vmatmul.bf16.gmra.mxu0 %v4750
      %v6437 = vpop.f32.mrf.mxu0
      %v6438 = vadd.f32 0.0, %v6437
      %v6439 = vpop.f32.mrf.mxu0
      %v6440 = vadd.f32 0.0, %v6439
      %6441 = vmatmul.bf16.gmra.mxu0 %v4753
      %v6442 = vpop.f32.mrf.mxu0
      %v6443 = vadd.f32 0.0, %v6442
      %v6444 = vpop.f32.mrf.mxu0
      %v6445 = vadd.f32 0.0, %v6444
      %6446 = vmatmul.bf16.gmra.mxu0 %v4756
      %v6447 = vpop.f32.mrf.mxu0
      %v6448 = vadd.f32 0.0, %v6447
      %v6449 = vpop.f32.mrf.mxu0
      %v6450 = vadd.f32 0.0, %v6449
      %6451 = vmatmul.bf16.gmra.mxu0 %v4759
      %v6452 = vpop.f32.mrf.mxu0
      %v6453 = vadd.f32 0.0, %v6452
      %v6454 = vpop.f32.mrf.mxu0
      %v6455 = vadd.f32 0.0, %v6454
      %6456 = vmatmul.bf16.gmra.mxu0 %v4762
      %v6457 = vpop.f32.mrf.mxu0
      %v6458 = vadd.f32 0.0, %v6457
      %v6459 = vpop.f32.mrf.mxu0
      %v6460 = vadd.f32 0.0, %v6459
      %6461 = vmatmul.bf16.gmra.mxu0 %v4765
      %v6462 = vpop.f32.mrf.mxu0
      %v6463 = vadd.f32 0.0, %v6462
      %v6464 = vpop.f32.mrf.mxu0
      %v6465 = vadd.f32 0.0, %v6464
      %6466 = vmatmul.bf16.gmra.mxu0 %v4768
      %v6467 = vpop.f32.mrf.mxu0
      %v6468 = vadd.f32 0.0, %v6467
      %v6469 = vpop.f32.mrf.mxu0
      %v6470 = vadd.f32 0.0, %v6469
      %6471 = vmatmul.bf16.gmra.mxu0 %v4771
      %v6472 = vpop.f32.mrf.mxu0
      %v6473 = vadd.f32 0.0, %v6472
      %v6474 = vpop.f32.mrf.mxu0
      %v6475 = vadd.f32 0.0, %v6474
      %6476 = vdwg.mxu0
      %v6477 = vadd.f32 %v6412, %v6438
      %v6478 = vadd.f32 %v6413, %v6440
      %v6479 = vadd.f32 %v6414, %v6443
      %v6480 = vadd.f32 %v6415, %v6445
      %v6481 = vadd.f32 %v6416, %v6448
      %v6482 = vadd.f32 %v6417, %v6450
      %v6483 = vadd.f32 %v6418, %v6453
      %v6484 = vadd.f32 %v6419, %v6455
      %v6485 = vadd.f32 %v6420, %v6458
      %v6486 = vadd.f32 %v6421, %v6460
      %v6487 = vadd.f32 %v6422, %v6463
      %v6488 = vadd.f32 %v6423, %v6465
      %v6489 = vadd.f32 %v6424, %v6468
      %v6490 = vadd.f32 %v6425, %v6470
      %v6491 = vadd.f32 %v6426, %v6473
      %v6492 = vadd.f32 %v6427, %v6475
      %6493 = vmatpush.bf16.msra.mxu0 0
      %6494 = vmatpush.bf16.msra.mxu0 0
      %6495 = vmatpush.bf16.msra.mxu0 0
      %6496 = vmatpush.bf16.msra.mxu0 0
      %6497 = vmatpush.bf16.msra.mxu0 0
      %6498 = vmatpush.bf16.msra.mxu0 0
      %6499 = vmatpush.bf16.msra.mxu0 0
      %6500 = vmatpush.bf16.msra.mxu0 %v4747
      %6501 = vmatmul.bf16.gmra.mxu0 %v5088
      %v6502 = vpop.f32.mrf.mxu0
      %v6503 = vadd.f32 0.0, %v6502
      %v6504 = vpop.f32.mrf.mxu0
      %v6505 = vadd.f32 0.0, %v6504
      %6506 = vmatmul.bf16.gmra.mxu0 %v5091
      %v6507 = vpop.f32.mrf.mxu0
      %v6508 = vadd.f32 0.0, %v6507
      %v6509 = vpop.f32.mrf.mxu0
      %v6510 = vadd.f32 0.0, %v6509
      %6511 = vmatmul.bf16.gmra.mxu0 %v5094
      %v6512 = vpop.f32.mrf.mxu0
      %v6513 = vadd.f32 0.0, %v6512
      %v6514 = vpop.f32.mrf.mxu0
      %v6515 = vadd.f32 0.0, %v6514
      %6516 = vmatmul.bf16.gmra.mxu0 %v5097
      %v6517 = vpop.f32.mrf.mxu0
      %v6518 = vadd.f32 0.0, %v6517
      %v6519 = vpop.f32.mrf.mxu0
      %v6520 = vadd.f32 0.0, %v6519
      %6521 = vmatmul.bf16.gmra.mxu0 %v5100
      %v6522 = vpop.f32.mrf.mxu0
      %v6523 = vadd.f32 0.0, %v6522
      %v6524 = vpop.f32.mrf.mxu0
      %v6525 = vadd.f32 0.0, %v6524
      %6526 = vmatmul.bf16.gmra.mxu0 %v5103
      %v6527 = vpop.f32.mrf.mxu0
      %v6528 = vadd.f32 0.0, %v6527
      %v6529 = vpop.f32.mrf.mxu0
      %v6530 = vadd.f32 0.0, %v6529
      %6531 = vmatmul.bf16.gmra.mxu0 %v5106
      %v6532 = vpop.f32.mrf.mxu0
      %v6533 = vadd.f32 0.0, %v6532
      %v6534 = vpop.f32.mrf.mxu0
      %v6535 = vadd.f32 0.0, %v6534
      %6536 = vmatmul.bf16.gmra.mxu0 %v5109
      %v6537 = vpop.f32.mrf.mxu0
      %v6538 = vadd.f32 0.0, %v6537
      %v6539 = vpop.f32.mrf.mxu0
      %v6540 = vadd.f32 0.0, %v6539
      %6541 = vdwg.mxu0
      %v6542 = vadd.f32 %v6477, %v6503
      %v6543 = vadd.f32 %v6478, %v6505
      %v6544 = vadd.f32 %v6479, %v6508
      %v6545 = vadd.f32 %v6480, %v6510
      %v6546 = vadd.f32 %v6481, %v6513
      %v6547 = vadd.f32 %v6482, %v6515
      %v6548 = vadd.f32 %v6483, %v6518
      %v6549 = vadd.f32 %v6484, %v6520
      %v6550 = vadd.f32 %v6485, %v6523
      %v6551 = vadd.f32 %v6486, %v6525
      %v6552 = vadd.f32 %v6487, %v6528
      %v6553 = vadd.f32 %v6488, %v6530
      %v6554 = vadd.f32 %v6489, %v6533
      %v6555 = vadd.f32 %v6490, %v6535
      %v6556 = vadd.f32 %v6491, %v6538
      %v6557 = vadd.f32 %v6492, %v6540
      %v6558 = vld [vmem:[%s4499] sm:$0xe]
      %v6559 = vld [vmem:[%s4499 + $0xc] sm:$0xe]
      %v6560 = vld [vmem:[%s4499 + $0x18] sm:$0xe]
      %v6561 = vld [vmem:[%s4499 + $0x24] sm:$0xe]
      %v6562 = vld [vmem:[%s4499 + $0x30] sm:$0xe]
      %v6563 = vld [vmem:[%s4499 + $0x3c] sm:$0xe]
      %v6564 = vld [vmem:[%s4499 + $0x48] sm:$0xe]
      %v6565 = vld [vmem:[%s4499 + $0x54] sm:$0xe]
      %v6590 = vrot.slane %v6558, 5
      %v6591 = vrot.slane %v6590, 4
      %v6592 = vrot.slane %v4501, 5
      %v6593 = vsel %vm6258, %v6591, %v6592
      %v6594 = vrot.slane %v6592, 4
      %v6595 = vrot.slane %v4502, 5
      %v6596 = vsel %vm6258, %v6594, %v6595
      %v6597 = vrot.slane %v6559, 5
      %v6598 = vrot.slane %v6597, 4
      %v6599 = vrot.slane %v4504, 5
      %v6600 = vsel %vm6258, %v6598, %v6599
      %v6601 = vrot.slane %v6599, 4
      %v6602 = vrot.slane %v4505, 5
      %v6603 = vsel %vm6258, %v6601, %v6602
      %v6604 = vrot.slane %v6560, 5
      %v6605 = vrot.slane %v6604, 4
      %v6606 = vrot.slane %v4507, 5
      %v6607 = vsel %vm6258, %v6605, %v6606
      %v6608 = vrot.slane %v6606, 4
      %v6609 = vrot.slane %v4508, 5
      %v6610 = vsel %vm6258, %v6608, %v6609
      %v6611 = vrot.slane %v6561, 5
      %v6612 = vrot.slane %v6611, 4
      %v6613 = vrot.slane %v4510, 5
      %v6614 = vsel %vm6258, %v6612, %v6613
      %v6615 = vrot.slane %v6613, 4
      %v6616 = vrot.slane %v4511, 5
      %v6617 = vsel %vm6258, %v6615, %v6616
      %v6618 = vrot.slane %v6562, 5
      %v6619 = vrot.slane %v6618, 4
      %v6620 = vrot.slane %v4513, 5
      %v6621 = vsel %vm6258, %v6619, %v6620
      %v6622 = vrot.slane %v6620, 4
      %v6623 = vrot.slane %v4514, 5
      %v6624 = vsel %vm6258, %v6622, %v6623
      %v6625 = vrot.slane %v6563, 5
      %v6626 = vrot.slane %v6625, 4
      %v6627 = vrot.slane %v4516, 5
      %v6628 = vsel %vm6258, %v6626, %v6627
      %v6629 = vrot.slane %v6627, 4
      %v6630 = vrot.slane %v4517, 5
      %v6631 = vsel %vm6258, %v6629, %v6630
      %v6632 = vrot.slane %v6564, 5
      %v6633 = vrot.slane %v6632, 4
      %v6634 = vrot.slane %v4519, 5
      %v6635 = vsel %vm6258, %v6633, %v6634
      %v6636 = vrot.slane %v6634, 4
      %v6637 = vrot.slane %v4520, 5
      %v6638 = vsel %vm6258, %v6636, %v6637
      %v6639 = vrot.slane %v6565, 5
      %v6640 = vrot.slane %v6639, 4
      %v6641 = vrot.slane %v4522, 5
      %v6642 = vsel %vm6258, %v6640, %v6641
      %v6643 = vrot.slane %v6641, 4
      %v6644 = vrot.slane %v4523, 5
      %v6645 = vsel %vm6258, %v6643, %v6644
      %v6646 = vunpack.c.l.b16 %v6593
      %v6647 = vunpack.c.l.b16 %v6596
      %v6648 = vunpack.c.l.b16 %v6600
      %v6649 = vunpack.c.l.b16 %v6603
      %v6650 = vunpack.c.l.b16 %v6607
      %v6651 = vunpack.c.l.b16 %v6610
      %v6652 = vunpack.c.l.b16 %v6614
      %v6653 = vunpack.c.l.b16 %v6617
      %v6654 = vunpack.c.l.b16 %v6621
      %v6655 = vunpack.c.l.b16 %v6624
      %v6656 = vunpack.c.l.b16 %v6628
      %v6657 = vunpack.c.l.b16 %v6631
      %v6658 = vunpack.c.l.b16 %v6635
      %v6659 = vunpack.c.l.b16 %v6638
      %v6660 = vunpack.c.l.b16 %v6642
      %v6661 = vunpack.c.l.b16 %v6645
      %v6662 = vpack.c.b16 %v6647, %v6646
      %v6663 = vpack.c.b16 %v6649, %v6648
      %v6664 = vpack.c.b16 %v6651, %v6650
      %v6665 = vpack.c.b16 %v6653, %v6652
      %v6666 = vpack.c.b16 %v6655, %v6654
      %v6667 = vpack.c.b16 %v6657, %v6656
      %v6668 = vpack.c.b16 %v6659, %v6658
      %v6669 = vpack.c.b16 %v6661, %v6660
      %v6671 = vsel %vm636, %v6662, 0
      %v6674 = vsel %vm636, %v6663, 0
      %v6677 = vsel %vm636, %v6664, 0
      %v6680 = vsel %vm636, %v6665, 0
      %v6683 = vsel %vm636, %v6666, 0
      %v6686 = vsel %vm636, %v6667, 0
      %v6689 = vsel %vm636, %v6668, 0
      %v6692 = vsel %vm636, %v6669, 0
      %6694 = vmatpush.bf16.msra.mxu0 0
      %6695 = vmatpush.bf16.msra.mxu0 0
      %6696 = vmatpush.bf16.msra.mxu0 0
      %6697 = vmatpush.bf16.msra.mxu0 0
      %6698 = vmatpush.bf16.msra.mxu0 0
      %6699 = vmatpush.bf16.msra.mxu0 0
      %6700 = vmatpush.bf16.msra.mxu0 0
      %6701 = vmatpush.bf16.msra.mxu0 %v5085
      %6702 = vmatmul.bf16.gmra.mxu0 %v6671
      %v6703 = vpop.f32.mrf.mxu0
      %v6704 = vadd.f32 0.0, %v6703
      %v6705 = vpop.f32.mrf.mxu0
      %v6706 = vadd.f32 0.0, %v6705
      %6707 = vmatmul.bf16.gmra.mxu0 %v6674
      %v6708 = vpop.f32.mrf.mxu0
      %v6709 = vadd.f32 0.0, %v6708
      %v6710 = vpop.f32.mrf.mxu0
      %v6711 = vadd.f32 0.0, %v6710
      %6712 = vmatmul.bf16.gmra.mxu0 %v6677
      %v6713 = vpop.f32.mrf.mxu0
      %v6714 = vadd.f32 0.0, %v6713
      %v6715 = vpop.f32.mrf.mxu0
      %v6716 = vadd.f32 0.0, %v6715
      %6717 = vmatmul.bf16.gmra.mxu0 %v6680
      %v6718 = vpop.f32.mrf.mxu0
      %v6719 = vadd.f32 0.0, %v6718
      %v6720 = vpop.f32.mrf.mxu0
      %v6721 = vadd.f32 0.0, %v6720
      %6722 = vmatmul.bf16.gmra.mxu0 %v6683
      %v6723 = vpop.f32.mrf.mxu0
      %v6724 = vadd.f32 0.0, %v6723
      %v6725 = vpop.f32.mrf.mxu0
      %v6726 = vadd.f32 0.0, %v6725
      %6727 = vmatmul.bf16.gmra.mxu0 %v6686
      %v6728 = vpop.f32.mrf.mxu0
      %v6729 = vadd.f32 0.0, %v6728
      %v6730 = vpop.f32.mrf.mxu0
      %v6731 = vadd.f32 0.0, %v6730
      %6732 = vmatmul.bf16.gmra.mxu0 %v6689
      %v6733 = vpop.f32.mrf.mxu0
      %v6734 = vadd.f32 0.0, %v6733
      %v6735 = vpop.f32.mrf.mxu0
      %v6736 = vadd.f32 0.0, %v6735
      %6737 = vmatmul.bf16.gmra.mxu0 %v6692
      %v6738 = vpop.f32.mrf.mxu0
      %v6739 = vadd.f32 0.0, %v6738
      %v6740 = vpop.f32.mrf.mxu0
      %v6741 = vadd.f32 0.0, %v6740
      %6742 = vdwg.mxu0
      %v6743 = vadd.f32 %v6542, %v6704
      %v6744 = vadd.f32 %v6543, %v6706
      %v6745 = vadd.f32 %v6544, %v6709
      %v6746 = vadd.f32 %v6545, %v6711
      %v6747 = vadd.f32 %v6546, %v6714
      %v6748 = vadd.f32 %v6547, %v6716
      %v6749 = vadd.f32 %v6548, %v6719
      %v6750 = vadd.f32 %v6549, %v6721
      %v6751 = vadd.f32 %v6550, %v6724
      %v6752 = vadd.f32 %v6551, %v6726
      %v6753 = vadd.f32 %v6552, %v6729
      %v6754 = vadd.f32 %v6553, %v6731
      %v6755 = vadd.f32 %v6554, %v6734
      %v6756 = vadd.f32 %v6555, %v6736
      %v6757 = vadd.f32 %v6556, %v6739
      %v6758 = vadd.f32 %v6557, %v6741
      %6759 = vmatpush.bf16.msra.mxu0 0
      %6760 = vmatpush.bf16.msra.mxu0 0
      %6761 = vmatpush.bf16.msra.mxu0 0
      %6762 = vmatpush.bf16.msra.mxu0 0
      %6763 = vmatpush.bf16.msra.mxu0 0
      %6764 = vmatpush.bf16.msra.mxu0 0
      %6765 = vmatpush.bf16.msra.mxu0 0
      %6766 = vmatpush.bf16.msra.mxu0 %v5240
      %6767 = vmatmul.bf16.gmra.mxu0 %v5582
      %v6768 = vpop.f32.mrf.mxu0
      %v6769 = vadd.f32 0.0, %v6768
      %v6770 = vpop.f32.mrf.mxu0
      %v6771 = vadd.f32 0.0, %v6770
      %6772 = vmatmul.bf16.gmra.mxu0 %v5585
      %v6773 = vpop.f32.mrf.mxu0
      %v6774 = vadd.f32 0.0, %v6773
      %v6775 = vpop.f32.mrf.mxu0
      %v6776 = vadd.f32 0.0, %v6775
      %6777 = vmatmul.bf16.gmra.mxu0 %v5588
      %v6778 = vpop.f32.mrf.mxu0
      %v6779 = vadd.f32 0.0, %v6778
      %v6780 = vpop.f32.mrf.mxu0
      %v6781 = vadd.f32 0.0, %v6780
      %6782 = vmatmul.bf16.gmra.mxu0 %v5591
      %v6783 = vpop.f32.mrf.mxu0
      %v6784 = vadd.f32 0.0, %v6783
      %v6785 = vpop.f32.mrf.mxu0
      %v6786 = vadd.f32 0.0, %v6785
      %6787 = vmatmul.bf16.gmra.mxu0 %v5594
      %v6788 = vpop.f32.mrf.mxu0
      %v6789 = vadd.f32 0.0, %v6788
      %v6790 = vpop.f32.mrf.mxu0
      %v6791 = vadd.f32 0.0, %v6790
      %6792 = vmatmul.bf16.gmra.mxu0 %v5597
      %v6793 = vpop.f32.mrf.mxu0
      %v6794 = vadd.f32 0.0, %v6793
      %v6795 = vpop.f32.mrf.mxu0
      %v6796 = vadd.f32 0.0, %v6795
      %6797 = vmatmul.bf16.gmra.mxu0 %v5600
      %v6798 = vpop.f32.mrf.mxu0
      %v6799 = vadd.f32 0.0, %v6798
      %v6800 = vpop.f32.mrf.mxu0
      %v6801 = vadd.f32 0.0, %v6800
      %6802 = vmatmul.bf16.gmra.mxu0 %v5603
      %v6803 = vpop.f32.mrf.mxu0
      %v6804 = vadd.f32 0.0, %v6803
      %v6805 = vpop.f32.mrf.mxu0
      %v6806 = vadd.f32 0.0, %v6805
      %6807 = vdwg.mxu0
      %v6808 = vadd.f32 %v6743, %v6769
      %v6809 = vadd.f32 %v6744, %v6771
      %v6810 = vadd.f32 %v6745, %v6774
      %v6811 = vadd.f32 %v6746, %v6776
      %v6812 = vadd.f32 %v6747, %v6779
      %v6813 = vadd.f32 %v6748, %v6781
      %v6814 = vadd.f32 %v6749, %v6784
      %v6815 = vadd.f32 %v6750, %v6786
      %v6816 = vadd.f32 %v6751, %v6789
      %v6817 = vadd.f32 %v6752, %v6791
      %v6818 = vadd.f32 %v6753, %v6794
      %v6819 = vadd.f32 %v6754, %v6796
      %v6820 = vadd.f32 %v6755, %v6799
      %v6821 = vadd.f32 %v6756, %v6801
      %v6822 = vadd.f32 %v6757, %v6804
      %v6823 = vadd.f32 %v6758, %v6806
      %6824 = vmatpush.bf16.msra.mxu0 0
      %6825 = vmatpush.bf16.msra.mxu0 0
      %6826 = vmatpush.bf16.msra.mxu0 0
      %6827 = vmatpush.bf16.msra.mxu0 0
      %6828 = vmatpush.bf16.msra.mxu0 0
      %6829 = vmatpush.bf16.msra.mxu0 0
      %6830 = vmatpush.bf16.msra.mxu0 0
      %6831 = vmatpush.bf16.msra.mxu0 %v5579
      %6832 = vmatmul.bf16.gmra.mxu0 %v5920
      %v6833 = vpop.f32.mrf.mxu0
      %v6834 = vadd.f32 0.0, %v6833
      %v6835 = vpop.f32.mrf.mxu0
      %v6836 = vadd.f32 0.0, %v6835
      %6837 = vmatmul.bf16.gmra.mxu0 %v5923
      %v6838 = vpop.f32.mrf.mxu0
      %v6839 = vadd.f32 0.0, %v6838
      %v6840 = vpop.f32.mrf.mxu0
      %v6841 = vadd.f32 0.0, %v6840
      %6842 = vmatmul.bf16.gmra.mxu0 %v5926
      %v6843 = vpop.f32.mrf.mxu0
      %v6844 = vadd.f32 0.0, %v6843
      %v6845 = vpop.f32.mrf.mxu0
      %v6846 = vadd.f32 0.0, %v6845
      %6847 = vmatmul.bf16.gmra.mxu0 %v5929
      %v6848 = vpop.f32.mrf.mxu0
      %v6849 = vadd.f32 0.0, %v6848
      %v6850 = vpop.f32.mrf.mxu0
      %v6851 = vadd.f32 0.0, %v6850
      %6852 = vmatmul.bf16.gmra.mxu0 %v5932
      %v6853 = vpop.f32.mrf.mxu0
      %v6854 = vadd.f32 0.0, %v6853
      %v6855 = vpop.f32.mrf.mxu0
      %v6856 = vadd.f32 0.0, %v6855
      %6857 = vmatmul.bf16.gmra.mxu0 %v5935
      %v6858 = vpop.f32.mrf.mxu0
      %v6859 = vadd.f32 0.0, %v6858
      %v6860 = vpop.f32.mrf.mxu0
      %v6861 = vadd.f32 0.0, %v6860
      %6862 = vmatmul.bf16.gmra.mxu0 %v5938
      %v6863 = vpop.f32.mrf.mxu0
      %v6864 = vadd.f32 0.0, %v6863
      %v6865 = vpop.f32.mrf.mxu0
      %v6866 = vadd.f32 0.0, %v6865
      %6867 = vmatmul.bf16.gmra.mxu0 %v5941
      %v6868 = vpop.f32.mrf.mxu0
      %v6869 = vadd.f32 0.0, %v6868
      %v6870 = vpop.f32.mrf.mxu0
      %v6871 = vadd.f32 0.0, %v6870
      %6872 = vdwg.mxu0
      %v6873 = vadd.f32 %v6808, %v6834
      %v6874 = vadd.f32 %v6809, %v6836
      %v6875 = vadd.f32 %v6810, %v6839
      %v6876 = vadd.f32 %v6811, %v6841
      %v6877 = vadd.f32 %v6812, %v6844
      %v6878 = vadd.f32 %v6813, %v6846
      %v6879 = vadd.f32 %v6814, %v6849
      %v6880 = vadd.f32 %v6815, %v6851
      %v6881 = vadd.f32 %v6816, %v6854
      %v6882 = vadd.f32 %v6817, %v6856
      %v6883 = vadd.f32 %v6818, %v6859
      %v6884 = vadd.f32 %v6819, %v6861
      %v6885 = vadd.f32 %v6820, %v6864
      %v6886 = vadd.f32 %v6821, %v6866
      %v6887 = vadd.f32 %v6822, %v6869
      %v6888 = vadd.f32 %v6823, %v6871
      %v6889 = vld [vmem:[%s5331] sm:$0xe]
      %v6890 = vld [vmem:[%s5331 + $0xc] sm:$0xe]
      %v6891 = vld [vmem:[%s5331 + $0x18] sm:$0xe]
      %v6892 = vld [vmem:[%s5331 + $0x24] sm:$0xe]
      %v6893 = vld [vmem:[%s5331 + $0x30] sm:$0xe]
      %v6894 = vld [vmem:[%s5331 + $0x3c] sm:$0xe]
      %v6895 = vld [vmem:[%s5331 + $0x48] sm:$0xe]
      %v6896 = vld [vmem:[%s5331 + $0x54] sm:$0xe]
      %v6921 = vrot.slane %v6889, 5
      %v6922 = vrot.slane %v6921, 4
      %v6923 = vrot.slane %v5333, 5
      %v6924 = vsel %vm6258, %v6922, %v6923
      %v6925 = vrot.slane %v6923, 4
      %v6926 = vrot.slane %v5334, 5
      %v6927 = vsel %vm6258, %v6925, %v6926
      %v6928 = vrot.slane %v6890, 5
      %v6929 = vrot.slane %v6928, 4
      %v6930 = vrot.slane %v5336, 5
      %v6931 = vsel %vm6258, %v6929, %v6930
      %v6932 = vrot.slane %v6930, 4
      %v6933 = vrot.slane %v5337, 5
      %v6934 = vsel %vm6258, %v6932, %v6933
      %v6935 = vrot.slane %v6891, 5
      %v6936 = vrot.slane %v6935, 4
      %v6937 = vrot.slane %v5339, 5
      %v6938 = vsel %vm6258, %v6936, %v6937
      %v6939 = vrot.slane %v6937, 4
      %v6940 = vrot.slane %v5340, 5
      %v6941 = vsel %vm6258, %v6939, %v6940
      %v6942 = vrot.slane %v6892, 5
      %v6943 = vrot.slane %v6942, 4
      %v6944 = vrot.slane %v5342, 5
      %v6945 = vsel %vm6258, %v6943, %v6944
      %v6946 = vrot.slane %v6944, 4
      %v6947 = vrot.slane %v5343, 5
      %v6948 = vsel %vm6258, %v6946, %v6947
      %v6949 = vrot.slane %v6893, 5
      %v6950 = vrot.slane %v6949, 4
      %v6951 = vrot.slane %v5345, 5
      %v6952 = vsel %vm6258, %v6950, %v6951
      %v6953 = vrot.slane %v6951, 4
      %v6954 = vrot.slane %v5346, 5
      %v6955 = vsel %vm6258, %v6953, %v6954
      %v6956 = vrot.slane %v6894, 5
      %v6957 = vrot.slane %v6956, 4
      %v6958 = vrot.slane %v5348, 5
      %v6959 = vsel %vm6258, %v6957, %v6958
      %v6960 = vrot.slane %v6958, 4
      %v6961 = vrot.slane %v5349, 5
      %v6962 = vsel %vm6258, %v6960, %v6961
      %v6963 = vrot.slane %v6895, 5
      %v6964 = vrot.slane %v6963, 4
      %v6965 = vrot.slane %v5351, 5
      %v6966 = vsel %vm6258, %v6964, %v6965
      %v6967 = vrot.slane %v6965, 4
      %v6968 = vrot.slane %v5352, 5
      %v6969 = vsel %vm6258, %v6967, %v6968
      %v6970 = vrot.slane %v6896, 5
      %v6971 = vrot.slane %v6970, 4
      %v6972 = vrot.slane %v5354, 5
      %v6973 = vsel %vm6258, %v6971, %v6972
      %v6974 = vrot.slane %v6972, 4
      %v6975 = vrot.slane %v5355, 5
      %v6976 = vsel %vm6258, %v6974, %v6975
      %v6977 = vunpack.c.l.b16 %v6924
      %v6978 = vunpack.c.l.b16 %v6927
      %v6979 = vunpack.c.l.b16 %v6931
      %v6980 = vunpack.c.l.b16 %v6934
      %v6981 = vunpack.c.l.b16 %v6938
      %v6982 = vunpack.c.l.b16 %v6941
      %v6983 = vunpack.c.l.b16 %v6945
      %v6984 = vunpack.c.l.b16 %v6948
      %v6985 = vunpack.c.l.b16 %v6952
      %v6986 = vunpack.c.l.b16 %v6955
      %v6987 = vunpack.c.l.b16 %v6959
      %v6988 = vunpack.c.l.b16 %v6962
      %v6989 = vunpack.c.l.b16 %v6966
      %v6990 = vunpack.c.l.b16 %v6969
      %v6991 = vunpack.c.l.b16 %v6973
      %v6992 = vunpack.c.l.b16 %v6976
      %v6993 = vpack.c.b16 %v6978, %v6977
      %v6994 = vpack.c.b16 %v6980, %v6979
      %v6995 = vpack.c.b16 %v6982, %v6981
      %v6996 = vpack.c.b16 %v6984, %v6983
      %v6997 = vpack.c.b16 %v6986, %v6985
      %v6998 = vpack.c.b16 %v6988, %v6987
      %v6999 = vpack.c.b16 %v6990, %v6989
      %v7000 = vpack.c.b16 %v6992, %v6991
      %v7002 = vsel %vm636, %v6993, 0
      %v7005 = vsel %vm636, %v6994, 0
      %v7008 = vsel %vm636, %v6995, 0
      %v7011 = vsel %vm636, %v6996, 0
      %v7014 = vsel %vm636, %v6997, 0
      %v7017 = vsel %vm636, %v6998, 0
      %v7020 = vsel %vm636, %v6999, 0
      %v7023 = vsel %vm636, %v7000, 0
      %7025 = vmatpush.bf16.msra.mxu0 0
      %7026 = vmatpush.bf16.msra.mxu0 0
      %7027 = vmatpush.bf16.msra.mxu0 0
      %7028 = vmatpush.bf16.msra.mxu0 0
      %7029 = vmatpush.bf16.msra.mxu0 0
      %7030 = vmatpush.bf16.msra.mxu0 0
      %7031 = vmatpush.bf16.msra.mxu0 0
      %7032 = vmatpush.bf16.msra.mxu0 %v5917
      %7033 = vmatmul.bf16.gmra.mxu0 %v7002
      %v7034 = vpop.f32.mrf.mxu0
      %v7035 = vadd.f32 0.0, %v7034
      %v7036 = vpop.f32.mrf.mxu0
      %v7037 = vadd.f32 0.0, %v7036
      %7038 = vmatmul.bf16.gmra.mxu0 %v7005
      %v7039 = vpop.f32.mrf.mxu0
      %v7040 = vadd.f32 0.0, %v7039
      %v7041 = vpop.f32.mrf.mxu0
      %v7042 = vadd.f32 0.0, %v7041
      %7043 = vmatmul.bf16.gmra.mxu0 %v7008
      %v7044 = vpop.f32.mrf.mxu0
      %v7045 = vadd.f32 0.0, %v7044
      %v7046 = vpop.f32.mrf.mxu0
      %v7047 = vadd.f32 0.0, %v7046
      %7048 = vmatmul.bf16.gmra.mxu0 %v7011
      %v7049 = vpop.f32.mrf.mxu0
      %v7050 = vadd.f32 0.0, %v7049
      %v7051 = vpop.f32.mrf.mxu0
      %v7052 = vadd.f32 0.0, %v7051
      %7053 = vmatmul.bf16.gmra.mxu0 %v7014
      %v7054 = vpop.f32.mrf.mxu0
      %v7055 = vadd.f32 0.0, %v7054
      %v7056 = vpop.f32.mrf.mxu0
      %v7057 = vadd.f32 0.0, %v7056
      %7058 = vmatmul.bf16.gmra.mxu0 %v7017
      %v7059 = vpop.f32.mrf.mxu0
      %v7060 = vadd.f32 0.0, %v7059
      %v7061 = vpop.f32.mrf.mxu0
      %v7062 = vadd.f32 0.0, %v7061
      %7063 = vmatmul.bf16.gmra.mxu0 %v7020
      %v7064 = vpop.f32.mrf.mxu0
      %v7065 = vadd.f32 0.0, %v7064
      %v7066 = vpop.f32.mrf.mxu0
      %v7067 = vadd.f32 0.0, %v7066
      %7068 = vmatmul.bf16.gmra.mxu0 %v7023
      %v7069 = vpop.f32.mrf.mxu0
      %v7070 = vadd.f32 0.0, %v7069
      %v7071 = vpop.f32.mrf.mxu0
      %v7072 = vadd.f32 0.0, %v7071
      %7073 = vdwg.mxu0
      %v7074 = vadd.f32 %v6873, %v7035
      %v7075 = vadd.f32 %v6874, %v7037
      %v7076 = vadd.f32 %v6875, %v7040
      %v7077 = vadd.f32 %v6876, %v7042
      %v7078 = vadd.f32 %v6877, %v7045
      %v7079 = vadd.f32 %v6878, %v7047
      %v7080 = vadd.f32 %v6879, %v7050
      %v7081 = vadd.f32 %v6880, %v7052
      %v7082 = vadd.f32 %v6881, %v7055
      %v7083 = vadd.f32 %v6882, %v7057
      %v7084 = vadd.f32 %v6883, %v7060
      %v7085 = vadd.f32 %v6884, %v7062
      %v7086 = vadd.f32 %v6885, %v7065
      %v7087 = vadd.f32 %v6886, %v7067
      %v7088 = vadd.f32 %v6887, %v7070
      %v7089 = vadd.f32 %v6888, %v7072
      %v7090 = vmul.f32 %v7074, %v6025
      %v7091 = vmul.f32 %v7075, %v6025
      %v7092 = vmul.f32 %v7076, %v6025
      %v7093 = vmul.f32 %v7077, %v6025
      %v7094 = vmul.f32 %v7078, %v6025
      %v7095 = vmul.f32 %v7079, %v6025
      %v7096 = vmul.f32 %v7080, %v6025
      %v7097 = vmul.f32 %v7081, %v6025
      %v7098 = vmul.f32 %v7082, %v6025
      %v7099 = vmul.f32 %v7083, %v6025
      %v7100 = vmul.f32 %v7084, %v6025
      %v7101 = vmul.f32 %v7085, %v6025
      %v7102 = vmul.f32 %v7086, %v6025
      %v7103 = vmul.f32 %v7087, %v6025
      %v7104 = vmul.f32 %v7088, %v6025
      %v7105 = vmul.f32 %v7089, %v6025
      %v7106 = vadd.f32 %v7090, %v6044
      %v7107 = vadd.f32 %v7091, %v6044
      %v7108 = vadd.f32 %v7092, %v6044
      %v7109 = vadd.f32 %v7093, %v6044
      %v7110 = vadd.f32 %v7094, %v6044
      %v7111 = vadd.f32 %v7095, %v6044
      %v7112 = vadd.f32 %v7096, %v6044
      %v7113 = vadd.f32 %v7097, %v6044
      %v7114 = vadd.f32 %v7098, %v6044
      %v7115 = vadd.f32 %v7099, %v6044
      %v7116 = vadd.f32 %v7100, %v6044
      %v7117 = vadd.f32 %v7101, %v6044
      %v7118 = vadd.f32 %v7102, %v6044
      %v7119 = vadd.f32 %v7103, %v6044
      %v7120 = vadd.f32 %v7104, %v6044
      %v7121 = vadd.f32 %v7105, %v6044
      %7138 = vrot.lane.b32.xlu0 %v6062, 112
      %v7139 = vpop.permute.xlu0 %7138
      %7140 = vrot.lane.b32.xlu0 %v6063, 112
      %v7141 = vpop.permute.xlu0 %7140
      %7142 = vrot.lane.b32.xlu0 %v6064, 112
      %v7143 = vpop.permute.xlu0 %7142
      %7144 = vrot.lane.b32.xlu0 %v6065, 112
      %v7145 = vpop.permute.xlu0 %7144
      %7146 = vrot.lane.b32.xlu0 %v6066, 112
      %v7147 = vpop.permute.xlu0 %7146
      %7148 = vrot.lane.b32.xlu0 %v6067, 112
      %v7149 = vpop.permute.xlu0 %7148
      %7150 = vrot.lane.b32.xlu0 %v6068, 112
      %v7151 = vpop.permute.xlu0 %7150
      %7152 = vrot.lane.b32.xlu0 %v6069, 112
      %v7153 = vpop.permute.xlu0 %7152
      %7154 = vrot.lane.b32.xlu0 %v6070, 112
      %v7155 = vpop.permute.xlu0 %7154
      %7156 = vrot.lane.b32.xlu0 %v6071, 112
      %v7157 = vpop.permute.xlu0 %7156
      %7158 = vrot.lane.b32.xlu0 %v6072, 112
      %v7159 = vpop.permute.xlu0 %7158
      %7160 = vrot.lane.b32.xlu0 %v6073, 112
      %v7161 = vpop.permute.xlu0 %7160
      %7162 = vrot.lane.b32.xlu0 %v6074, 112
      %v7163 = vpop.permute.xlu0 %7162
      %7164 = vrot.lane.b32.xlu0 %v6075, 112
      %v7165 = vpop.permute.xlu0 %7164
      %7166 = vrot.lane.b32.xlu0 %v6076, 112
      %v7167 = vpop.permute.xlu0 %7166
      %7168 = vrot.lane.b32.xlu0 %v6077, 112
      %v7169 = vpop.permute.xlu0 %7168
      %v7186 = vadd.f32 %v7106, %v7139
      %v7187 = vadd.f32 %v7107, %v7141
      %v7188 = vadd.f32 %v7108, %v7143
      %v7189 = vadd.f32 %v7109, %v7145
      %v7190 = vadd.f32 %v7110, %v7147
      %v7191 = vadd.f32 %v7111, %v7149
      %v7192 = vadd.f32 %v7112, %v7151
      %v7193 = vadd.f32 %v7113, %v7153
      %v7194 = vadd.f32 %v7114, %v7155
      %v7195 = vadd.f32 %v7115, %v7157
      %v7196 = vadd.f32 %v7116, %v7159
      %v7197 = vadd.f32 %v7117, %v7161
      %v7198 = vadd.f32 %v7118, %v7163
      %v7199 = vadd.f32 %v7119, %v7165
      %v7200 = vadd.f32 %v7120, %v7167
      %v7201 = vadd.f32 %v7121, %v7169
      %v7202 = vmax.f32 %v7186, 0.0
      %v7203 = vmax.f32 %v7187, 0.0
      %v7204 = vmax.f32 %v7188, 0.0
      %v7205 = vmax.f32 %v7189, 0.0
      %v7206 = vmax.f32 %v7190, 0.0
      %v7207 = vmax.f32 %v7191, 0.0
      %v7208 = vmax.f32 %v7192, 0.0
      %v7209 = vmax.f32 %v7193, 0.0
      %v7210 = vmax.f32 %v7194, 0.0
      %v7211 = vmax.f32 %v7195, 0.0
      %v7212 = vmax.f32 %v7196, 0.0
      %v7213 = vmax.f32 %v7197, 0.0
      %v7214 = vmax.f32 %v7198, 0.0
      %v7215 = vmax.f32 %v7199, 0.0
      %v7216 = vmax.f32 %v7200, 0.0
      %v7217 = vmax.f32 %v7201, 0.0
      %v7218 = vpack.c.bf16 %v7202, %v7202
      %v7219 = vpack.c.bf16 %v7203, %v7203
      %v7220 = vpack.c.bf16 %v7204, %v7204
      %v7221 = vpack.c.bf16 %v7205, %v7205
      %v7222 = vpack.c.bf16 %v7206, %v7206
      %v7223 = vpack.c.bf16 %v7207, %v7207
      %v7224 = vpack.c.bf16 %v7208, %v7208
      %v7225 = vpack.c.bf16 %v7209, %v7209
      %v7226 = vpack.c.bf16 %v7210, %v7210
      %v7227 = vpack.c.bf16 %v7211, %v7211
      %v7228 = vpack.c.bf16 %v7212, %v7212
      %v7229 = vpack.c.bf16 %v7213, %v7213
      %v7230 = vpack.c.bf16 %v7214, %v7214
      %v7231 = vpack.c.bf16 %v7215, %v7215
      %v7232 = vpack.c.bf16 %v7216, %v7216
      %v7233 = vpack.c.bf16 %v7217, %v7217
      %7234 = vmatpush.bf16.msra.mxu0 0
      %7235 = vmatpush.bf16.msra.mxu0 0
      %7236 = vmatpush.bf16.msra.mxu0 0
      %7237 = vmatpush.bf16.msra.mxu0 0
      %7238 = vmatpush.bf16.msra.mxu0 0
      %7239 = vmatpush.bf16.msra.mxu0 0
      %7240 = vmatpush.bf16.msra.mxu0 0
      %7241 = vmatpush.bf16.msra.mxu0 %v3812
      %7242 = vmatmul.bf16.gmra.mxu0 %v4750
      %v7243 = vpop.f32.mrf.mxu0
      %v7244 = vadd.f32 0.0, %v7243
      %v7245 = vpop.f32.mrf.mxu0
      %v7246 = vadd.f32 0.0, %v7245
      %7247 = vmatmul.bf16.gmra.mxu0 %v4753
      %v7248 = vpop.f32.mrf.mxu0
      %v7249 = vadd.f32 0.0, %v7248
      %v7250 = vpop.f32.mrf.mxu0
      %v7251 = vadd.f32 0.0, %v7250
      %7252 = vmatmul.bf16.gmra.mxu0 %v4756
      %v7253 = vpop.f32.mrf.mxu0
      %v7254 = vadd.f32 0.0, %v7253
      %v7255 = vpop.f32.mrf.mxu0
      %v7256 = vadd.f32 0.0, %v7255
      %7257 = vmatmul.bf16.gmra.mxu0 %v4759
      %v7258 = vpop.f32.mrf.mxu0
      %v7259 = vadd.f32 0.0, %v7258
      %v7260 = vpop.f32.mrf.mxu0
      %v7261 = vadd.f32 0.0, %v7260
      %7262 = vmatmul.bf16.gmra.mxu0 %v4762
      %v7263 = vpop.f32.mrf.mxu0
      %v7264 = vadd.f32 0.0, %v7263
      %v7265 = vpop.f32.mrf.mxu0
      %v7266 = vadd.f32 0.0, %v7265
      %7267 = vmatmul.bf16.gmra.mxu0 %v4765
      %v7268 = vpop.f32.mrf.mxu0
      %v7269 = vadd.f32 0.0, %v7268
      %v7270 = vpop.f32.mrf.mxu0
      %v7271 = vadd.f32 0.0, %v7270
      %7272 = vmatmul.bf16.gmra.mxu0 %v4768
      %v7273 = vpop.f32.mrf.mxu0
      %v7274 = vadd.f32 0.0, %v7273
      %v7275 = vpop.f32.mrf.mxu0
      %v7276 = vadd.f32 0.0, %v7275
      %7277 = vmatmul.bf16.gmra.mxu0 %v4771
      %v7278 = vpop.f32.mrf.mxu0
      %v7279 = vadd.f32 0.0, %v7278
      %v7280 = vpop.f32.mrf.mxu0
      %v7281 = vadd.f32 0.0, %v7280
      %7282 = vdwg.mxu0
      %7283 = vmatpush.bf16.msra.mxu0 0
      %7284 = vmatpush.bf16.msra.mxu0 0
      %7285 = vmatpush.bf16.msra.mxu0 0
      %7286 = vmatpush.bf16.msra.mxu0 0
      %7287 = vmatpush.bf16.msra.mxu0 0
      %7288 = vmatpush.bf16.msra.mxu0 0
      %7289 = vmatpush.bf16.msra.mxu0 0
      %7290 = vmatpush.bf16.msra.mxu0 %v3931
      %7291 = vmatmul.bf16.gmra.mxu0 %v4411
      %v7292 = vpop.f32.mrf.mxu0
      %v7293 = vadd.f32 %v7244, %v7292
      %v7294 = vpop.f32.mrf.mxu0
      %v7295 = vadd.f32 %v7246, %v7294
      %7296 = vmatmul.bf16.gmra.mxu0 %v4414
      %v7297 = vpop.f32.mrf.mxu0
      %v7298 = vadd.f32 %v7249, %v7297
      %v7299 = vpop.f32.mrf.mxu0
      %v7300 = vadd.f32 %v7251, %v7299
      %7301 = vmatmul.bf16.gmra.mxu0 %v4417
      %v7302 = vpop.f32.mrf.mxu0
      %v7303 = vadd.f32 %v7254, %v7302
      %v7304 = vpop.f32.mrf.mxu0
      %v7305 = vadd.f32 %v7256, %v7304
      %7306 = vmatmul.bf16.gmra.mxu0 %v4420
      %v7307 = vpop.f32.mrf.mxu0
      %v7308 = vadd.f32 %v7259, %v7307
      %v7309 = vpop.f32.mrf.mxu0
      %v7310 = vadd.f32 %v7261, %v7309
      %7311 = vmatmul.bf16.gmra.mxu0 %v4423
      %v7312 = vpop.f32.mrf.mxu0
      %v7313 = vadd.f32 %v7264, %v7312
      %v7314 = vpop.f32.mrf.mxu0
      %v7315 = vadd.f32 %v7266, %v7314
      %7316 = vmatmul.bf16.gmra.mxu0 %v4426
      %v7317 = vpop.f32.mrf.mxu0
      %v7318 = vadd.f32 %v7269, %v7317
      %v7319 = vpop.f32.mrf.mxu0
      %v7320 = vadd.f32 %v7271, %v7319
      %7321 = vmatmul.bf16.gmra.mxu0 %v4429
      %v7322 = vpop.f32.mrf.mxu0
      %v7323 = vadd.f32 %v7274, %v7322
      %v7324 = vpop.f32.mrf.mxu0
      %v7325 = vadd.f32 %v7276, %v7324
      %7326 = vmatmul.bf16.gmra.mxu0 %v4432
      %v7327 = vpop.f32.mrf.mxu0
      %v7328 = vadd.f32 %v7279, %v7327
      %v7329 = vpop.f32.mrf.mxu0
      %v7330 = vadd.f32 %v7281, %v7329
      %7331 = vdwg.mxu0
      %7332 = vmatpush.bf16.msra.mxu0 0
      %7333 = vmatpush.bf16.msra.mxu0 0
      %7334 = vmatpush.bf16.msra.mxu0 0
      %7335 = vmatpush.bf16.msra.mxu0 0
      %7336 = vmatpush.bf16.msra.mxu0 0
      %7337 = vmatpush.bf16.msra.mxu0 0
      %7338 = vmatpush.bf16.msra.mxu0 0
      %7339 = vmatpush.bf16.msra.mxu0 %v4253
      %7340 = vmatmul.bf16.gmra.mxu0 %v5088
      %v7341 = vpop.f32.mrf.mxu0
      %v7342 = vadd.f32 0.0, %v7341
      %v7343 = vpop.f32.mrf.mxu0
      %v7344 = vadd.f32 0.0, %v7343
      %7345 = vmatmul.bf16.gmra.mxu0 %v5091
      %v7346 = vpop.f32.mrf.mxu0
      %v7347 = vadd.f32 0.0, %v7346
      %v7348 = vpop.f32.mrf.mxu0
      %v7349 = vadd.f32 0.0, %v7348
      %7350 = vmatmul.bf16.gmra.mxu0 %v5094
      %v7351 = vpop.f32.mrf.mxu0
      %v7352 = vadd.f32 0.0, %v7351
      %v7353 = vpop.f32.mrf.mxu0
      %v7354 = vadd.f32 0.0, %v7353
      %7355 = vmatmul.bf16.gmra.mxu0 %v5097
      %v7356 = vpop.f32.mrf.mxu0
      %v7357 = vadd.f32 0.0, %v7356
      %v7358 = vpop.f32.mrf.mxu0
      %v7359 = vadd.f32 0.0, %v7358
      %7360 = vmatmul.bf16.gmra.mxu0 %v5100
      %v7361 = vpop.f32.mrf.mxu0
      %v7362 = vadd.f32 0.0, %v7361
      %v7363 = vpop.f32.mrf.mxu0
      %v7364 = vadd.f32 0.0, %v7363
      %7365 = vmatmul.bf16.gmra.mxu0 %v5103
      %v7366 = vpop.f32.mrf.mxu0
      %v7367 = vadd.f32 0.0, %v7366
      %v7368 = vpop.f32.mrf.mxu0
      %v7369 = vadd.f32 0.0, %v7368
      %7370 = vmatmul.bf16.gmra.mxu0 %v5106
      %v7371 = vpop.f32.mrf.mxu0
      %v7372 = vadd.f32 0.0, %v7371
      %v7373 = vpop.f32.mrf.mxu0
      %v7374 = vadd.f32 0.0, %v7373
      %7375 = vmatmul.bf16.gmra.mxu0 %v5109
      %v7376 = vpop.f32.mrf.mxu0
      %v7377 = vadd.f32 0.0, %v7376
      %v7378 = vpop.f32.mrf.mxu0
      %v7379 = vadd.f32 0.0, %v7378
      %7380 = vdwg.mxu0
      %v7381 = vadd.f32 %v7293, %v7342
      %v7382 = vadd.f32 %v7295, %v7344
      %v7383 = vadd.f32 %v7298, %v7347
      %v7384 = vadd.f32 %v7300, %v7349
      %v7385 = vadd.f32 %v7303, %v7352
      %v7386 = vadd.f32 %v7305, %v7354
      %v7387 = vadd.f32 %v7308, %v7357
      %v7388 = vadd.f32 %v7310, %v7359
      %v7389 = vadd.f32 %v7313, %v7362
      %v7390 = vadd.f32 %v7315, %v7364
      %v7391 = vadd.f32 %v7318, %v7367
      %v7392 = vadd.f32 %v7320, %v7369
      %v7393 = vadd.f32 %v7323, %v7372
      %v7394 = vadd.f32 %v7325, %v7374
      %v7395 = vadd.f32 %v7328, %v7377
      %v7396 = vadd.f32 %v7330, %v7379
      %7397 = vmatpush.bf16.msra.mxu0 0
      %7398 = vmatpush.bf16.msra.mxu0 0
      %7399 = vmatpush.bf16.msra.mxu0 0
      %7400 = vmatpush.bf16.msra.mxu0 0
      %7401 = vmatpush.bf16.msra.mxu0 0
      %7402 = vmatpush.bf16.msra.mxu0 0
      %7403 = vmatpush.bf16.msra.mxu0 0
      %7404 = vmatpush.bf16.msra.mxu0 %v4408
      %7405 = vmatmul.bf16.gmra.mxu0 %v5243
      %v7406 = vpop.f32.mrf.mxu0
      %v7407 = vadd.f32 0.0, %v7406
      %v7408 = vpop.f32.mrf.mxu0
      %v7409 = vadd.f32 0.0, %v7408
      %7410 = vmatmul.bf16.gmra.mxu0 %v5246
      %v7411 = vpop.f32.mrf.mxu0
      %v7412 = vadd.f32 0.0, %v7411
      %v7413 = vpop.f32.mrf.mxu0
      %v7414 = vadd.f32 0.0, %v7413
      %7415 = vmatmul.bf16.gmra.mxu0 %v5249
      %v7416 = vpop.f32.mrf.mxu0
      %v7417 = vadd.f32 0.0, %v7416
      %v7418 = vpop.f32.mrf.mxu0
      %v7419 = vadd.f32 0.0, %v7418
      %7420 = vmatmul.bf16.gmra.mxu0 %v5252
      %v7421 = vpop.f32.mrf.mxu0
      %v7422 = vadd.f32 0.0, %v7421
      %v7423 = vpop.f32.mrf.mxu0
      %v7424 = vadd.f32 0.0, %v7423
      %7425 = vmatmul.bf16.gmra.mxu0 %v5255
      %v7426 = vpop.f32.mrf.mxu0
      %v7427 = vadd.f32 0.0, %v7426
      %v7428 = vpop.f32.mrf.mxu0
      %v7429 = vadd.f32 0.0, %v7428
      %7430 = vmatmul.bf16.gmra.mxu0 %v5258
      %v7431 = vpop.f32.mrf.mxu0
      %v7432 = vadd.f32 0.0, %v7431
      %v7433 = vpop.f32.mrf.mxu0
      %v7434 = vadd.f32 0.0, %v7433
      %7435 = vmatmul.bf16.gmra.mxu0 %v5261
      %v7436 = vpop.f32.mrf.mxu0
      %v7437 = vadd.f32 0.0, %v7436
      %v7438 = vpop.f32.mrf.mxu0
      %v7439 = vadd.f32 0.0, %v7438
      %7440 = vmatmul.bf16.gmra.mxu0 %v5264
      %v7441 = vpop.f32.mrf.mxu0
      %v7442 = vadd.f32 0.0, %v7441
      %v7443 = vpop.f32.mrf.mxu0
      %v7444 = vadd.f32 0.0, %v7443
      %7445 = vdwg.mxu0
      %v7446 = vadd.f32 %v7381, %v7407
      %v7447 = vadd.f32 %v7382, %v7409
      %v7448 = vadd.f32 %v7383, %v7412
      %v7449 = vadd.f32 %v7384, %v7414
      %v7450 = vadd.f32 %v7385, %v7417
      %v7451 = vadd.f32 %v7386, %v7419
      %v7452 = vadd.f32 %v7387, %v7422
      %v7453 = vadd.f32 %v7388, %v7424
      %v7454 = vadd.f32 %v7389, %v7427
      %v7455 = vadd.f32 %v7390, %v7429
      %v7456 = vadd.f32 %v7391, %v7432
      %v7457 = vadd.f32 %v7392, %v7434
      %v7458 = vadd.f32 %v7393, %v7437
      %v7459 = vadd.f32 %v7394, %v7439
      %v7460 = vadd.f32 %v7395, %v7442
      %v7461 = vadd.f32 %v7396, %v7444
      %7462 = vmatpush.bf16.msra.mxu0 0
      %7463 = vmatpush.bf16.msra.mxu0 0
      %7464 = vmatpush.bf16.msra.mxu0 0
      %7465 = vmatpush.bf16.msra.mxu0 0
      %7466 = vmatpush.bf16.msra.mxu0 0
      %7467 = vmatpush.bf16.msra.mxu0 0
      %7468 = vmatpush.bf16.msra.mxu0 0
      %7469 = vmatpush.bf16.msra.mxu0 %v4747
      %7470 = vmatmul.bf16.gmra.mxu0 %v5582
      %v7471 = vpop.f32.mrf.mxu0
      %v7472 = vadd.f32 0.0, %v7471
      %v7473 = vpop.f32.mrf.mxu0
      %v7474 = vadd.f32 0.0, %v7473
      %7475 = vmatmul.bf16.gmra.mxu0 %v5585
      %v7476 = vpop.f32.mrf.mxu0
      %v7477 = vadd.f32 0.0, %v7476
      %v7478 = vpop.f32.mrf.mxu0
      %v7479 = vadd.f32 0.0, %v7478
      %7480 = vmatmul.bf16.gmra.mxu0 %v5588
      %v7481 = vpop.f32.mrf.mxu0
      %v7482 = vadd.f32 0.0, %v7481
      %v7483 = vpop.f32.mrf.mxu0
      %v7484 = vadd.f32 0.0, %v7483
      %7485 = vmatmul.bf16.gmra.mxu0 %v5591
      %v7486 = vpop.f32.mrf.mxu0
      %v7487 = vadd.f32 0.0, %v7486
      %v7488 = vpop.f32.mrf.mxu0
      %v7489 = vadd.f32 0.0, %v7488
      %7490 = vmatmul.bf16.gmra.mxu0 %v5594
      %v7491 = vpop.f32.mrf.mxu0
      %v7492 = vadd.f32 0.0, %v7491
      %v7493 = vpop.f32.mrf.mxu0
      %v7494 = vadd.f32 0.0, %v7493
      %7495 = vmatmul.bf16.gmra.mxu0 %v5597
      %v7496 = vpop.f32.mrf.mxu0
      %v7497 = vadd.f32 0.0, %v7496
      %v7498 = vpop.f32.mrf.mxu0
      %v7499 = vadd.f32 0.0, %v7498
      %7500 = vmatmul.bf16.gmra.mxu0 %v5600
      %v7501 = vpop.f32.mrf.mxu0
      %v7502 = vadd.f32 0.0, %v7501
      %v7503 = vpop.f32.mrf.mxu0
      %v7504 = vadd.f32 0.0, %v7503
      %7505 = vmatmul.bf16.gmra.mxu0 %v5603
      %v7506 = vpop.f32.mrf.mxu0
      %v7507 = vadd.f32 0.0, %v7506
      %v7508 = vpop.f32.mrf.mxu0
      %v7509 = vadd.f32 0.0, %v7508
      %7510 = vdwg.mxu0
      %v7511 = vadd.f32 %v7446, %v7472
      %v7512 = vadd.f32 %v7447, %v7474
      %v7513 = vadd.f32 %v7448, %v7477
      %v7514 = vadd.f32 %v7449, %v7479
      %v7515 = vadd.f32 %v7450, %v7482
      %v7516 = vadd.f32 %v7451, %v7484
      %v7517 = vadd.f32 %v7452, %v7487
      %v7518 = vadd.f32 %v7453, %v7489
      %v7519 = vadd.f32 %v7454, %v7492
      %v7520 = vadd.f32 %v7455, %v7494
      %v7521 = vadd.f32 %v7456, %v7497
      %v7522 = vadd.f32 %v7457, %v7499
      %v7523 = vadd.f32 %v7458, %v7502
      %v7524 = vadd.f32 %v7459, %v7504
      %v7525 = vadd.f32 %v7460, %v7507
      %v7526 = vadd.f32 %v7461, %v7509
      %7527 = vmatpush.bf16.msra.mxu0 0
      %7528 = vmatpush.bf16.msra.mxu0 0
      %7529 = vmatpush.bf16.msra.mxu0 0
      %7530 = vmatpush.bf16.msra.mxu0 0
      %7531 = vmatpush.bf16.msra.mxu0 0
      %7532 = vmatpush.bf16.msra.mxu0 0
      %7533 = vmatpush.bf16.msra.mxu0 0
      %7534 = vmatpush.bf16.msra.mxu0 %v5085
      %7535 = vmatmul.bf16.gmra.mxu0 %v5920
      %v7536 = vpop.f32.mrf.mxu0
      %v7537 = vadd.f32 0.0, %v7536
      %v7538 = vpop.f32.mrf.mxu0
      %v7539 = vadd.f32 0.0, %v7538
      %7540 = vmatmul.bf16.gmra.mxu0 %v5923
      %v7541 = vpop.f32.mrf.mxu0
      %v7542 = vadd.f32 0.0, %v7541
      %v7543 = vpop.f32.mrf.mxu0
      %v7544 = vadd.f32 0.0, %v7543
      %7545 = vmatmul.bf16.gmra.mxu0 %v5926
      %v7546 = vpop.f32.mrf.mxu0
      %v7547 = vadd.f32 0.0, %v7546
      %v7548 = vpop.f32.mrf.mxu0
      %v7549 = vadd.f32 0.0, %v7548
      %7550 = vmatmul.bf16.gmra.mxu0 %v5929
      %v7551 = vpop.f32.mrf.mxu0
      %v7552 = vadd.f32 0.0, %v7551
      %v7553 = vpop.f32.mrf.mxu0
      %v7554 = vadd.f32 0.0, %v7553
      %7555 = vmatmul.bf16.gmra.mxu0 %v5932
      %v7556 = vpop.f32.mrf.mxu0
      %v7557 = vadd.f32 0.0, %v7556
      %v7558 = vpop.f32.mrf.mxu0
      %v7559 = vadd.f32 0.0, %v7558
      %7560 = vmatmul.bf16.gmra.mxu0 %v5935
      %v7561 = vpop.f32.mrf.mxu0
      %v7562 = vadd.f32 0.0, %v7561
      %v7563 = vpop.f32.mrf.mxu0
      %v7564 = vadd.f32 0.0, %v7563
      %7565 = vmatmul.bf16.gmra.mxu0 %v5938
      %v7566 = vpop.f32.mrf.mxu0
      %v7567 = vadd.f32 0.0, %v7566
      %v7568 = vpop.f32.mrf.mxu0
      %v7569 = vadd.f32 0.0, %v7568
      %7570 = vmatmul.bf16.gmra.mxu0 %v5941
      %v7571 = vpop.f32.mrf.mxu0
      %v7572 = vadd.f32 0.0, %v7571
      %v7573 = vpop.f32.mrf.mxu0
      %v7574 = vadd.f32 0.0, %v7573
      %7575 = vdwg.mxu0
      %v7576 = vadd.f32 %v7511, %v7537
      %v7577 = vadd.f32 %v7512, %v7539
      %v7578 = vadd.f32 %v7513, %v7542
      %v7579 = vadd.f32 %v7514, %v7544
      %v7580 = vadd.f32 %v7515, %v7547
      %v7581 = vadd.f32 %v7516, %v7549
      %v7582 = vadd.f32 %v7517, %v7552
      %v7583 = vadd.f32 %v7518, %v7554
      %v7584 = vadd.f32 %v7519, %v7557
      %v7585 = vadd.f32 %v7520, %v7559
      %v7586 = vadd.f32 %v7521, %v7562
      %v7587 = vadd.f32 %v7522, %v7564
      %v7588 = vadd.f32 %v7523, %v7567
      %v7589 = vadd.f32 %v7524, %v7569
      %v7590 = vadd.f32 %v7525, %v7572
      %v7591 = vadd.f32 %v7526, %v7574
      %s7592 = scalar_lea.vmem [#allocation2], 144
      %v7593 = vld [vmem:[%s7592] sm:$0xf]
      %v7594 = vld [vmem:[%s7592 + $0x4] sm:$0xf]
      %v7595 = vld [vmem:[%s7592 + $0xc] sm:$0xf]
      %v7596 = vld [vmem:[%s7592 + $0x10] sm:$0xf]
      %v7597 = vld [vmem:[%s7592 + $0x18] sm:$0xf]
      %v7598 = vld [vmem:[%s7592 + $0x1c] sm:$0xf]
      %v7599 = vld [vmem:[%s7592 + $0x24] sm:$0xf]
      %v7600 = vld [vmem:[%s7592 + $0x28] sm:$0xf]
      %v7601 = vld [vmem:[%s7592 + $0x30] sm:$0xf]
      %v7602 = vld [vmem:[%s7592 + $0x34] sm:$0xf]
      %v7603 = vld [vmem:[%s7592 + $0x3c] sm:$0xf]
      %v7604 = vld [vmem:[%s7592 + $0x40] sm:$0xf]
      %v7605 = vld [vmem:[%s7592 + $0x48] sm:$0xf]
      %v7606 = vld [vmem:[%s7592 + $0x4c] sm:$0xf]
      %v7607 = vld [vmem:[%s7592 + $0x54] sm:$0xf]
      %v7608 = vld [vmem:[%s7592 + $0x58] sm:$0xf]
      %v7625 = vunpack.c.l.b16 %v7593
      %v7626 = vunpack.c.l.b16 %v7594
      %v7627 = vunpack.c.l.b16 %v7595
      %v7628 = vunpack.c.l.b16 %v7596
      %v7629 = vunpack.c.l.b16 %v7597
      %v7630 = vunpack.c.l.b16 %v7598
      %v7631 = vunpack.c.l.b16 %v7599
      %v7632 = vunpack.c.l.b16 %v7600
      %v7633 = vunpack.c.l.b16 %v7601
      %v7634 = vunpack.c.l.b16 %v7602
      %v7635 = vunpack.c.l.b16 %v7603
      %v7636 = vunpack.c.l.b16 %v7604
      %v7637 = vunpack.c.l.b16 %v7605
      %v7638 = vunpack.c.l.b16 %v7606
      %v7639 = vunpack.c.l.b16 %v7607
      %v7640 = vunpack.c.l.b16 %v7608
      %v7641 = vpack.c.b16 %v7626, %v7625
      %v7642 = vpack.c.b16 %v7628, %v7627
      %v7643 = vpack.c.b16 %v7630, %v7629
      %v7644 = vpack.c.b16 %v7632, %v7631
      %v7645 = vpack.c.b16 %v7634, %v7633
      %v7646 = vpack.c.b16 %v7636, %v7635
      %v7647 = vpack.c.b16 %v7638, %v7637
      %v7648 = vpack.c.b16 %v7640, %v7639
      %v7650 = vsel %vm636, %v7641, 0
      %v7653 = vsel %vm636, %v7642, 0
      %v7656 = vsel %vm636, %v7643, 0
      %v7659 = vsel %vm636, %v7644, 0
      %v7662 = vsel %vm636, %v7645, 0
      %v7665 = vsel %vm636, %v7646, 0
      %v7668 = vsel %vm636, %v7647, 0
      %v7671 = vsel %vm636, %v7648, 0
      %7673 = vmatpush.bf16.msra.mxu0 0
      %7674 = vmatpush.bf16.msra.mxu0 0
      %7675 = vmatpush.bf16.msra.mxu0 0
      %7676 = vmatpush.bf16.msra.mxu0 0
      %7677 = vmatpush.bf16.msra.mxu0 0
      %7678 = vmatpush.bf16.msra.mxu0 0
      %7679 = vmatpush.bf16.msra.mxu0 0
      %7680 = vmatpush.bf16.msra.mxu0 %v5240
      %7681 = vmatmul.bf16.gmra.mxu0 %v7650
      %v7682 = vpop.f32.mrf.mxu0
      %v7683 = vadd.f32 0.0, %v7682
      %v7684 = vpop.f32.mrf.mxu0
      %v7685 = vadd.f32 0.0, %v7684
      %7686 = vmatmul.bf16.gmra.mxu0 %v7653
      %v7687 = vpop.f32.mrf.mxu0
      %v7688 = vadd.f32 0.0, %v7687
      %v7689 = vpop.f32.mrf.mxu0
      %v7690 = vadd.f32 0.0, %v7689
      %7691 = vmatmul.bf16.gmra.mxu0 %v7656
      %v7692 = vpop.f32.mrf.mxu0
      %v7693 = vadd.f32 0.0, %v7692
      %v7694 = vpop.f32.mrf.mxu0
      %v7695 = vadd.f32 0.0, %v7694
      %7696 = vmatmul.bf16.gmra.mxu0 %v7659
      %v7697 = vpop.f32.mrf.mxu0
      %v7698 = vadd.f32 0.0, %v7697
      %v7699 = vpop.f32.mrf.mxu0
      %v7700 = vadd.f32 0.0, %v7699
      %7701 = vmatmul.bf16.gmra.mxu0 %v7662
      %v7702 = vpop.f32.mrf.mxu0
      %v7703 = vadd.f32 0.0, %v7702
      %v7704 = vpop.f32.mrf.mxu0
      %v7705 = vadd.f32 0.0, %v7704
      %7706 = vmatmul.bf16.gmra.mxu0 %v7665
      %v7707 = vpop.f32.mrf.mxu0
      %v7708 = vadd.f32 0.0, %v7707
      %v7709 = vpop.f32.mrf.mxu0
      %v7710 = vadd.f32 0.0, %v7709
      %7711 = vmatmul.bf16.gmra.mxu0 %v7668
      %v7712 = vpop.f32.mrf.mxu0
      %v7713 = vadd.f32 0.0, %v7712
      %v7714 = vpop.f32.mrf.mxu0
      %v7715 = vadd.f32 0.0, %v7714
      %7716 = vmatmul.bf16.gmra.mxu0 %v7671
      %v7717 = vpop.f32.mrf.mxu0
      %v7718 = vadd.f32 0.0, %v7717
      %v7719 = vpop.f32.mrf.mxu0
      %v7720 = vadd.f32 0.0, %v7719
      %7721 = vdwg.mxu0
      %v7722 = vadd.f32 %v7576, %v7683
      %v7723 = vadd.f32 %v7577, %v7685
      %v7724 = vadd.f32 %v7578, %v7688
      %v7725 = vadd.f32 %v7579, %v7690
      %v7726 = vadd.f32 %v7580, %v7693
      %v7727 = vadd.f32 %v7581, %v7695
      %v7728 = vadd.f32 %v7582, %v7698
      %v7729 = vadd.f32 %v7583, %v7700
      %v7730 = vadd.f32 %v7584, %v7703
      %v7731 = vadd.f32 %v7585, %v7705
      %v7732 = vadd.f32 %v7586, %v7708
      %v7733 = vadd.f32 %v7587, %v7710
      %v7734 = vadd.f32 %v7588, %v7713
      %v7735 = vadd.f32 %v7589, %v7715
      %v7736 = vadd.f32 %v7590, %v7718
      %v7737 = vadd.f32 %v7591, %v7720
      %s7738 = scalar_lea.vmem [#allocation2], 24
      %v7739 = vld [vmem:[%s7738] sm:$0xf]
      %v7740 = vld [vmem:[%s7738 + $0x4] sm:$0xf]
      %v7741 = vld [vmem:[%s7738 + $0x8] sm:$0x1]
      %v7742 = vld [vmem:[%s7738 + $0xc] sm:$0xf]
      %v7743 = vld [vmem:[%s7738 + $0x10] sm:$0xf]
      %v7744 = vld [vmem:[%s7738 + $0x14] sm:$0x1]
      %v7745 = vld [vmem:[%s7738 + $0x18] sm:$0xf]
      %v7746 = vld [vmem:[%s7738 + $0x1c] sm:$0xf]
      %v7747 = vld [vmem:[%s7738 + $0x20] sm:$0x1]
      %v7748 = vld [vmem:[%s7738 + $0x24] sm:$0xf]
      %v7749 = vld [vmem:[%s7738 + $0x28] sm:$0xf]
      %v7750 = vld [vmem:[%s7738 + $0x2c] sm:$0x1]
      %v7751 = vld [vmem:[%s7738 + $0x30] sm:$0xf]
      %v7752 = vld [vmem:[%s7738 + $0x34] sm:$0xf]
      %v7753 = vld [vmem:[%s7738 + $0x38] sm:$0x1]
      %v7754 = vld [vmem:[%s7738 + $0x3c] sm:$0xf]
      %v7755 = vld [vmem:[%s7738 + $0x40] sm:$0xf]
      %v7756 = vld [vmem:[%s7738 + $0x44] sm:$0x1]
      %v7757 = vld [vmem:[%s7738 + $0x48] sm:$0xf]
      %v7758 = vld [vmem:[%s7738 + $0x4c] sm:$0xf]
      %v7759 = vld [vmem:[%s7738 + $0x50] sm:$0x1]
      %v7760 = vld [vmem:[%s7738 + $0x54] sm:$0xf]
      %v7761 = vld [vmem:[%s7738 + $0x58] sm:$0xf]
      %v7762 = vld [vmem:[%s7738 + $0x5c] sm:$0x1]
      %v7764 = vshrl.u32 %v7739, 16
      %v7766 = vrot.slane %v7764, 4
      %v7767 = vshll.u32 %v7739, 16
      %v7769 = vrot.slane %v7767, 5
      %v7770 = vor.u32 %v7766, %v7769
      %v7771 = vrot.slane %v7770, 4
      %v7773 = vshll.u32 %v7740, 16
      %v7775 = vrot.slane %v7773, 5
      %v7776 = vsel %vm3588, %v7771, %v7775
      %v7777 = vshrl.u32 %v7740, 16
      %v7779 = vrot.slane %v7777, 4
      %v7780 = vor.u32 %v7779, %v7775
      %v7781 = vrot.slane %v7780, 4
      %v7783 = vshll.u32 %v7741, 16
      %v7785 = vrot.slane %v7783, 5
      %v7786 = vsel %vm3588, %v7781, %v7785
      %v7788 = vshrl.u32 %v7742, 16
      %v7790 = vrot.slane %v7788, 4
      %v7791 = vshll.u32 %v7742, 16
      %v7793 = vrot.slane %v7791, 5
      %v7794 = vor.u32 %v7790, %v7793
      %v7795 = vrot.slane %v7794, 4
      %v7797 = vshll.u32 %v7743, 16
      %v7799 = vrot.slane %v7797, 5
      %v7800 = vsel %vm3588, %v7795, %v7799
      %v7801 = vshrl.u32 %v7743, 16
      %v7803 = vrot.slane %v7801, 4
      %v7804 = vor.u32 %v7803, %v7799
      %v7805 = vrot.slane %v7804, 4
      %v7807 = vshll.u32 %v7744, 16
      %v7809 = vrot.slane %v7807, 5
      %v7810 = vsel %vm3588, %v7805, %v7809
      %v7812 = vshrl.u32 %v7745, 16
      %v7814 = vrot.slane %v7812, 4
      %v7815 = vshll.u32 %v7745, 16
      %v7817 = vrot.slane %v7815, 5
      %v7818 = vor.u32 %v7814, %v7817
      %v7819 = vrot.slane %v7818, 4
      %v7821 = vshll.u32 %v7746, 16
      %v7823 = vrot.slane %v7821, 5
      %v7824 = vsel %vm3588, %v7819, %v7823
      %v7825 = vshrl.u32 %v7746, 16
      %v7827 = vrot.slane %v7825, 4
      %v7828 = vor.u32 %v7827, %v7823
      %v7829 = vrot.slane %v7828, 4
      %v7831 = vshll.u32 %v7747, 16
      %v7833 = vrot.slane %v7831, 5
      %v7834 = vsel %vm3588, %v7829, %v7833
      %v7836 = vshrl.u32 %v7748, 16
      %v7838 = vrot.slane %v7836, 4
      %v7839 = vshll.u32 %v7748, 16
      %v7841 = vrot.slane %v7839, 5
      %v7842 = vor.u32 %v7838, %v7841
      %v7843 = vrot.slane %v7842, 4
      %v7845 = vshll.u32 %v7749, 16
      %v7847 = vrot.slane %v7845, 5
      %v7848 = vsel %vm3588, %v7843, %v7847
      %v7849 = vshrl.u32 %v7749, 16
      %v7851 = vrot.slane %v7849, 4
      %v7852 = vor.u32 %v7851, %v7847
      %v7853 = vrot.slane %v7852, 4
      %v7855 = vshll.u32 %v7750, 16
      %v7857 = vrot.slane %v7855, 5
      %v7858 = vsel %vm3588, %v7853, %v7857
      %v7860 = vshrl.u32 %v7751, 16
      %v7862 = vrot.slane %v7860, 4
      %v7863 = vshll.u32 %v7751, 16
      %v7865 = vrot.slane %v7863, 5
      %v7866 = vor.u32 %v7862, %v7865
      %v7867 = vrot.slane %v7866, 4
      %v7869 = vshll.u32 %v7752, 16
      %v7871 = vrot.slane %v7869, 5
      %v7872 = vsel %vm3588, %v7867, %v7871
      %v7873 = vshrl.u32 %v7752, 16
      %v7875 = vrot.slane %v7873, 4
      %v7876 = vor.u32 %v7875, %v7871
      %v7877 = vrot.slane %v7876, 4
      %v7879 = vshll.u32 %v7753, 16
      %v7881 = vrot.slane %v7879, 5
      %v7882 = vsel %vm3588, %v7877, %v7881
      %v7884 = vshrl.u32 %v7754, 16
      %v7886 = vrot.slane %v7884, 4
      %v7887 = vshll.u32 %v7754, 16
      %v7889 = vrot.slane %v7887, 5
      %v7890 = vor.u32 %v7886, %v7889
      %v7891 = vrot.slane %v7890, 4
      %v7893 = vshll.u32 %v7755, 16
      %v7895 = vrot.slane %v7893, 5
      %v7896 = vsel %vm3588, %v7891, %v7895
      %v7897 = vshrl.u32 %v7755, 16
      %v7899 = vrot.slane %v7897, 4
      %v7900 = vor.u32 %v7899, %v7895
      %v7901 = vrot.slane %v7900, 4
      %v7903 = vshll.u32 %v7756, 16
      %v7905 = vrot.slane %v7903, 5
      %v7906 = vsel %vm3588, %v7901, %v7905
      %v7908 = vshrl.u32 %v7757, 16
      %v7910 = vrot.slane %v7908, 4
      %v7911 = vshll.u32 %v7757, 16
      %v7913 = vrot.slane %v7911, 5
      %v7914 = vor.u32 %v7910, %v7913
      %v7915 = vrot.slane %v7914, 4
      %v7917 = vshll.u32 %v7758, 16
      %v7919 = vrot.slane %v7917, 5
      %v7920 = vsel %vm3588, %v7915, %v7919
      %v7921 = vshrl.u32 %v7758, 16
      %v7923 = vrot.slane %v7921, 4
      %v7924 = vor.u32 %v7923, %v7919
      %v7925 = vrot.slane %v7924, 4
      %v7927 = vshll.u32 %v7759, 16
      %v7929 = vrot.slane %v7927, 5
      %v7930 = vsel %vm3588, %v7925, %v7929
      %v7932 = vshrl.u32 %v7760, 16
      %v7934 = vrot.slane %v7932, 4
      %v7935 = vshll.u32 %v7760, 16
      %v7937 = vrot.slane %v7935, 5
      %v7938 = vor.u32 %v7934, %v7937
      %v7939 = vrot.slane %v7938, 4
      %v7941 = vshll.u32 %v7761, 16
      %v7943 = vrot.slane %v7941, 5
      %v7944 = vsel %vm3588, %v7939, %v7943
      %v7945 = vshrl.u32 %v7761, 16
      %v7947 = vrot.slane %v7945, 4
      %v7948 = vor.u32 %v7947, %v7943
      %v7949 = vrot.slane %v7948, 4
      %v7951 = vshll.u32 %v7762, 16
      %v7953 = vrot.slane %v7951, 5
      %v7954 = vsel %vm3588, %v7949, %v7953
      %v7955 = vunpack.c.l.b16 %v7776
      %v7956 = vunpack.c.l.b16 %v7786
      %v7957 = vunpack.c.l.b16 %v7800
      %v7958 = vunpack.c.l.b16 %v7810
      %v7959 = vunpack.c.l.b16 %v7824
      %v7960 = vunpack.c.l.b16 %v7834
      %v7961 = vunpack.c.l.b16 %v7848
      %v7962 = vunpack.c.l.b16 %v7858
      %v7963 = vunpack.c.l.b16 %v7872
      %v7964 = vunpack.c.l.b16 %v7882
      %v7965 = vunpack.c.l.b16 %v7896
      %v7966 = vunpack.c.l.b16 %v7906
      %v7967 = vunpack.c.l.b16 %v7920
      %v7968 = vunpack.c.l.b16 %v7930
      %v7969 = vunpack.c.l.b16 %v7944
      %v7970 = vunpack.c.l.b16 %v7954
      %v7971 = vpack.c.b16 %v7956, %v7955
      %v7972 = vpack.c.b16 %v7958, %v7957
      %v7973 = vpack.c.b16 %v7960, %v7959
      %v7974 = vpack.c.b16 %v7962, %v7961
      %v7975 = vpack.c.b16 %v7964, %v7963
      %v7976 = vpack.c.b16 %v7966, %v7965
      %v7977 = vpack.c.b16 %v7968, %v7967
      %v7978 = vpack.c.b16 %v7970, %v7969
      %v7980 = vsel %vm636, %v7971, 0
      %v7983 = vsel %vm636, %v7972, 0
      %v7986 = vsel %vm636, %v7973, 0
      %v7989 = vsel %vm636, %v7974, 0
      %v7992 = vsel %vm636, %v7975, 0
      %v7995 = vsel %vm636, %v7976, 0
      %v7998 = vsel %vm636, %v7977, 0
      %v8001 = vsel %vm636, %v7978, 0
      %8003 = vmatpush.bf16.msra.mxu0 0
      %8004 = vmatpush.bf16.msra.mxu0 0
      %8005 = vmatpush.bf16.msra.mxu0 0
      %8006 = vmatpush.bf16.msra.mxu0 0
      %8007 = vmatpush.bf16.msra.mxu0 0
      %8008 = vmatpush.bf16.msra.mxu0 0
      %8009 = vmatpush.bf16.msra.mxu0 0
      %8010 = vmatpush.bf16.msra.mxu0 %v5579
      %8011 = vmatmul.bf16.gmra.mxu0 %v7980
      %v8012 = vpop.f32.mrf.mxu0
      %v8013 = vadd.f32 0.0, %v8012
      %v8014 = vpop.f32.mrf.mxu0
      %v8015 = vadd.f32 0.0, %v8014
      %8016 = vmatmul.bf16.gmra.mxu0 %v7983
      %v8017 = vpop.f32.mrf.mxu0
      %v8018 = vadd.f32 0.0, %v8017
      %v8019 = vpop.f32.mrf.mxu0
      %v8020 = vadd.f32 0.0, %v8019
      %8021 = vmatmul.bf16.gmra.mxu0 %v7986
      %v8022 = vpop.f32.mrf.mxu0
      %v8023 = vadd.f32 0.0, %v8022
      %v8024 = vpop.f32.mrf.mxu0
      %v8025 = vadd.f32 0.0, %v8024
      %8026 = vmatmul.bf16.gmra.mxu0 %v7989
      %v8027 = vpop.f32.mrf.mxu0
      %v8028 = vadd.f32 0.0, %v8027
      %v8029 = vpop.f32.mrf.mxu0
      %v8030 = vadd.f32 0.0, %v8029
      %8031 = vmatmul.bf16.gmra.mxu0 %v7992
      %v8032 = vpop.f32.mrf.mxu0
      %v8033 = vadd.f32 0.0, %v8032
      %v8034 = vpop.f32.mrf.mxu0
      %v8035 = vadd.f32 0.0, %v8034
      %8036 = vmatmul.bf16.gmra.mxu0 %v7995
      %v8037 = vpop.f32.mrf.mxu0
      %v8038 = vadd.f32 0.0, %v8037
      %v8039 = vpop.f32.mrf.mxu0
      %v8040 = vadd.f32 0.0, %v8039
      %8041 = vmatmul.bf16.gmra.mxu0 %v7998
      %v8042 = vpop.f32.mrf.mxu0
      %v8043 = vadd.f32 0.0, %v8042
      %v8044 = vpop.f32.mrf.mxu0
      %v8045 = vadd.f32 0.0, %v8044
      %8046 = vmatmul.bf16.gmra.mxu0 %v8001
      %v8047 = vpop.f32.mrf.mxu0
      %v8048 = vadd.f32 0.0, %v8047
      %v8049 = vpop.f32.mrf.mxu0
      %v8050 = vadd.f32 0.0, %v8049
      %8051 = vdwg.mxu0
      %v8052 = vadd.f32 %v7722, %v8013
      %v8053 = vadd.f32 %v7723, %v8015
      %v8054 = vadd.f32 %v7724, %v8018
      %v8055 = vadd.f32 %v7725, %v8020
      %v8056 = vadd.f32 %v7726, %v8023
      %v8057 = vadd.f32 %v7727, %v8025
      %v8058 = vadd.f32 %v7728, %v8028
      %v8059 = vadd.f32 %v7729, %v8030
      %v8060 = vadd.f32 %v7730, %v8033
      %v8061 = vadd.f32 %v7731, %v8035
      %v8062 = vadd.f32 %v7732, %v8038
      %v8063 = vadd.f32 %v7733, %v8040
      %v8064 = vadd.f32 %v7734, %v8043
      %v8065 = vadd.f32 %v7735, %v8045
      %v8066 = vadd.f32 %v7736, %v8048
      %v8067 = vadd.f32 %v7737, %v8050
      %v8068 = vld [vmem:[%s7592] sm:$0xf]
      %v8069 = vld [vmem:[%s7592 + $0x4] sm:$0xf]
      %v8070 = vld [vmem:[%s7592 + $0x8] sm:$0x1]
      %v8071 = vld [vmem:[%s7592 + $0xc] sm:$0xf]
      %v8072 = vld [vmem:[%s7592 + $0x10] sm:$0xf]
      %v8073 = vld [vmem:[%s7592 + $0x14] sm:$0x1]
      %v8074 = vld [vmem:[%s7592 + $0x18] sm:$0xf]
      %v8075 = vld [vmem:[%s7592 + $0x1c] sm:$0xf]
      %v8076 = vld [vmem:[%s7592 + $0x20] sm:$0x1]
      %v8077 = vld [vmem:[%s7592 + $0x24] sm:$0xf]
      %v8078 = vld [vmem:[%s7592 + $0x28] sm:$0xf]
      %v8079 = vld [vmem:[%s7592 + $0x2c] sm:$0x1]
      %v8080 = vld [vmem:[%s7592 + $0x30] sm:$0xf]
      %v8081 = vld [vmem:[%s7592 + $0x34] sm:$0xf]
      %v8082 = vld [vmem:[%s7592 + $0x38] sm:$0x1]
      %v8083 = vld [vmem:[%s7592 + $0x3c] sm:$0xf]
      %v8084 = vld [vmem:[%s7592 + $0x40] sm:$0xf]
      %v8085 = vld [vmem:[%s7592 + $0x44] sm:$0x1]
      %v8086 = vld [vmem:[%s7592 + $0x48] sm:$0xf]
      %v8087 = vld [vmem:[%s7592 + $0x4c] sm:$0xf]
      %v8088 = vld [vmem:[%s7592 + $0x50] sm:$0x1]
      %v8089 = vld [vmem:[%s7592 + $0x54] sm:$0xf]
      %v8090 = vld [vmem:[%s7592 + $0x58] sm:$0xf]
      %v8091 = vld [vmem:[%s7592 + $0x5c] sm:$0x1]
      %v8093 = vshrl.u32 %v8068, 16
      %v8095 = vrot.slane %v8093, 4
      %v8096 = vshll.u32 %v8068, 16
      %v8098 = vrot.slane %v8096, 5
      %v8099 = vor.u32 %v8095, %v8098
      %v8100 = vrot.slane %v8099, 4
      %v8102 = vshll.u32 %v8069, 16
      %v8104 = vrot.slane %v8102, 5
      %v8105 = vsel %vm3588, %v8100, %v8104
      %v8106 = vshrl.u32 %v8069, 16
      %v8108 = vrot.slane %v8106, 4
      %v8109 = vor.u32 %v8108, %v8104
      %v8110 = vrot.slane %v8109, 4
      %v8112 = vshll.u32 %v8070, 16
      %v8114 = vrot.slane %v8112, 5
      %v8115 = vsel %vm3588, %v8110, %v8114
      %v8117 = vshrl.u32 %v8071, 16
      %v8119 = vrot.slane %v8117, 4
      %v8120 = vshll.u32 %v8071, 16
      %v8122 = vrot.slane %v8120, 5
      %v8123 = vor.u32 %v8119, %v8122
      %v8124 = vrot.slane %v8123, 4
      %v8126 = vshll.u32 %v8072, 16
      %v8128 = vrot.slane %v8126, 5
      %v8129 = vsel %vm3588, %v8124, %v8128
      %v8130 = vshrl.u32 %v8072, 16
      %v8132 = vrot.slane %v8130, 4
      %v8133 = vor.u32 %v8132, %v8128
      %v8134 = vrot.slane %v8133, 4
      %v8136 = vshll.u32 %v8073, 16
      %v8138 = vrot.slane %v8136, 5
      %v8139 = vsel %vm3588, %v8134, %v8138
      %v8141 = vshrl.u32 %v8074, 16
      %v8143 = vrot.slane %v8141, 4
      %v8144 = vshll.u32 %v8074, 16
      %v8146 = vrot.slane %v8144, 5
      %v8147 = vor.u32 %v8143, %v8146
      %v8148 = vrot.slane %v8147, 4
      %v8150 = vshll.u32 %v8075, 16
      %v8152 = vrot.slane %v8150, 5
      %v8153 = vsel %vm3588, %v8148, %v8152
      %v8154 = vshrl.u32 %v8075, 16
      %v8156 = vrot.slane %v8154, 4
      %v8157 = vor.u32 %v8156, %v8152
      %v8158 = vrot.slane %v8157, 4
      %v8160 = vshll.u32 %v8076, 16
      %v8162 = vrot.slane %v8160, 5
      %v8163 = vsel %vm3588, %v8158, %v8162
      %v8165 = vshrl.u32 %v8077, 16
      %v8167 = vrot.slane %v8165, 4
      %v8168 = vshll.u32 %v8077, 16
      %v8170 = vrot.slane %v8168, 5
      %v8171 = vor.u32 %v8167, %v8170
      %v8172 = vrot.slane %v8171, 4
      %v8174 = vshll.u32 %v8078, 16
      %v8176 = vrot.slane %v8174, 5
      %v8177 = vsel %vm3588, %v8172, %v8176
      %v8178 = vshrl.u32 %v8078, 16
      %v8180 = vrot.slane %v8178, 4
      %v8181 = vor.u32 %v8180, %v8176
      %v8182 = vrot.slane %v8181, 4
      %v8184 = vshll.u32 %v8079, 16
      %v8186 = vrot.slane %v8184, 5
      %v8187 = vsel %vm3588, %v8182, %v8186
      %v8189 = vshrl.u32 %v8080, 16
      %v8191 = vrot.slane %v8189, 4
      %v8192 = vshll.u32 %v8080, 16
      %v8194 = vrot.slane %v8192, 5
      %v8195 = vor.u32 %v8191, %v8194
      %v8196 = vrot.slane %v8195, 4
      %v8198 = vshll.u32 %v8081, 16
      %v8200 = vrot.slane %v8198, 5
      %v8201 = vsel %vm3588, %v8196, %v8200
      %v8202 = vshrl.u32 %v8081, 16
      %v8204 = vrot.slane %v8202, 4
      %v8205 = vor.u32 %v8204, %v8200
      %v8206 = vrot.slane %v8205, 4
      %v8208 = vshll.u32 %v8082, 16
      %v8210 = vrot.slane %v8208, 5
      %v8211 = vsel %vm3588, %v8206, %v8210
      %v8213 = vshrl.u32 %v8083, 16
      %v8215 = vrot.slane %v8213, 4
      %v8216 = vshll.u32 %v8083, 16
      %v8218 = vrot.slane %v8216, 5
      %v8219 = vor.u32 %v8215, %v8218
      %v8220 = vrot.slane %v8219, 4
      %v8222 = vshll.u32 %v8084, 16
      %v8224 = vrot.slane %v8222, 5
      %v8225 = vsel %vm3588, %v8220, %v8224
      %v8226 = vshrl.u32 %v8084, 16
      %v8228 = vrot.slane %v8226, 4
      %v8229 = vor.u32 %v8228, %v8224
      %v8230 = vrot.slane %v8229, 4
      %v8232 = vshll.u32 %v8085, 16
      %v8234 = vrot.slane %v8232, 5
      %v8235 = vsel %vm3588, %v8230, %v8234
      %v8237 = vshrl.u32 %v8086, 16
      %v8239 = vrot.slane %v8237, 4
      %v8240 = vshll.u32 %v8086, 16
      %v8242 = vrot.slane %v8240, 5
      %v8243 = vor.u32 %v8239, %v8242
      %v8244 = vrot.slane %v8243, 4
      %v8246 = vshll.u32 %v8087, 16
      %v8248 = vrot.slane %v8246, 5
      %v8249 = vsel %vm3588, %v8244, %v8248
      %v8250 = vshrl.u32 %v8087, 16
      %v8252 = vrot.slane %v8250, 4
      %v8253 = vor.u32 %v8252, %v8248
      %v8254 = vrot.slane %v8253, 4
      %v8256 = vshll.u32 %v8088, 16
      %v8258 = vrot.slane %v8256, 5
      %v8259 = vsel %vm3588, %v8254, %v8258
      %v8261 = vshrl.u32 %v8089, 16
      %v8263 = vrot.slane %v8261, 4
      %v8264 = vshll.u32 %v8089, 16
      %v8266 = vrot.slane %v8264, 5
      %v8267 = vor.u32 %v8263, %v8266
      %v8268 = vrot.slane %v8267, 4
      %v8270 = vshll.u32 %v8090, 16
      %v8272 = vrot.slane %v8270, 5
      %v8273 = vsel %vm3588, %v8268, %v8272
      %v8274 = vshrl.u32 %v8090, 16
      %v8276 = vrot.slane %v8274, 4
      %v8277 = vor.u32 %v8276, %v8272
      %v8278 = vrot.slane %v8277, 4
      %v8280 = vshll.u32 %v8091, 16
      %v8282 = vrot.slane %v8280, 5
      %v8283 = vsel %vm3588, %v8278, %v8282
      %v8284 = vunpack.c.l.b16 %v8105
      %v8285 = vunpack.c.l.b16 %v8115
      %v8286 = vunpack.c.l.b16 %v8129
      %v8287 = vunpack.c.l.b16 %v8139
      %v8288 = vunpack.c.l.b16 %v8153
      %v8289 = vunpack.c.l.b16 %v8163
      %v8290 = vunpack.c.l.b16 %v8177
      %v8291 = vunpack.c.l.b16 %v8187
      %v8292 = vunpack.c.l.b16 %v8201
      %v8293 = vunpack.c.l.b16 %v8211
      %v8294 = vunpack.c.l.b16 %v8225
      %v8295 = vunpack.c.l.b16 %v8235
      %v8296 = vunpack.c.l.b16 %v8249
      %v8297 = vunpack.c.l.b16 %v8259
      %v8298 = vunpack.c.l.b16 %v8273
      %v8299 = vunpack.c.l.b16 %v8283
      %v8300 = vpack.c.b16 %v8285, %v8284
      %v8301 = vpack.c.b16 %v8287, %v8286
      %v8302 = vpack.c.b16 %v8289, %v8288
      %v8303 = vpack.c.b16 %v8291, %v8290
      %v8304 = vpack.c.b16 %v8293, %v8292
      %v8305 = vpack.c.b16 %v8295, %v8294
      %v8306 = vpack.c.b16 %v8297, %v8296
      %v8307 = vpack.c.b16 %v8299, %v8298
      %v8309 = vsel %vm636, %v8300, 0
      %v8312 = vsel %vm636, %v8301, 0
      %v8315 = vsel %vm636, %v8302, 0
      %v8318 = vsel %vm636, %v8303, 0
      %v8321 = vsel %vm636, %v8304, 0
      %v8324 = vsel %vm636, %v8305, 0
      %v8327 = vsel %vm636, %v8306, 0
      %v8330 = vsel %vm636, %v8307, 0
      %8332 = vmatpush.bf16.msra.mxu0 0
      %8333 = vmatpush.bf16.msra.mxu0 0
      %8334 = vmatpush.bf16.msra.mxu0 0
      %8335 = vmatpush.bf16.msra.mxu0 0
      %8336 = vmatpush.bf16.msra.mxu0 0
      %8337 = vmatpush.bf16.msra.mxu0 0
      %8338 = vmatpush.bf16.msra.mxu0 0
      %8339 = vmatpush.bf16.msra.mxu0 %v5917
      %8340 = vmatmul.bf16.gmra.mxu0 %v8309
      %v8341 = vpop.f32.mrf.mxu0
      %v8342 = vadd.f32 0.0, %v8341
      %v8343 = vpop.f32.mrf.mxu0
      %v8344 = vadd.f32 0.0, %v8343
      %8345 = vmatmul.bf16.gmra.mxu0 %v8312
      %v8346 = vpop.f32.mrf.mxu0
      %v8347 = vadd.f32 0.0, %v8346
      %v8348 = vpop.f32.mrf.mxu0
      %v8349 = vadd.f32 0.0, %v8348
      %8350 = vmatmul.bf16.gmra.mxu0 %v8315
      %v8351 = vpop.f32.mrf.mxu0
      %v8352 = vadd.f32 0.0, %v8351
      %v8353 = vpop.f32.mrf.mxu0
      %v8354 = vadd.f32 0.0, %v8353
      %8355 = vmatmul.bf16.gmra.mxu0 %v8318
      %v8356 = vpop.f32.mrf.mxu0
      %v8357 = vadd.f32 0.0, %v8356
      %v8358 = vpop.f32.mrf.mxu0
      %v8359 = vadd.f32 0.0, %v8358
      %8360 = vmatmul.bf16.gmra.mxu0 %v8321
      %v8361 = vpop.f32.mrf.mxu0
      %v8362 = vadd.f32 0.0, %v8361
      %v8363 = vpop.f32.mrf.mxu0
      %v8364 = vadd.f32 0.0, %v8363
      %8365 = vmatmul.bf16.gmra.mxu0 %v8324
      %v8366 = vpop.f32.mrf.mxu0
      %v8367 = vadd.f32 0.0, %v8366
      %v8368 = vpop.f32.mrf.mxu0
      %v8369 = vadd.f32 0.0, %v8368
      %8370 = vmatmul.bf16.gmra.mxu0 %v8327
      %v8371 = vpop.f32.mrf.mxu0
      %v8372 = vadd.f32 0.0, %v8371
      %v8373 = vpop.f32.mrf.mxu0
      %v8374 = vadd.f32 0.0, %v8373
      %8375 = vmatmul.bf16.gmra.mxu0 %v8330
      %v8376 = vpop.f32.mrf.mxu0
      %v8377 = vadd.f32 0.0, %v8376
      %v8378 = vpop.f32.mrf.mxu0
      %v8379 = vadd.f32 0.0, %v8378
      %8380 = vdwg.mxu0
      %v8381 = vadd.f32 %v8052, %v8342
      %v8382 = vadd.f32 %v8053, %v8344
      %v8383 = vadd.f32 %v8054, %v8347
      %v8384 = vadd.f32 %v8055, %v8349
      %v8385 = vadd.f32 %v8056, %v8352
      %v8386 = vadd.f32 %v8057, %v8354
      %v8387 = vadd.f32 %v8058, %v8357
      %v8388 = vadd.f32 %v8059, %v8359
      %v8389 = vadd.f32 %v8060, %v8362
      %v8390 = vadd.f32 %v8061, %v8364
      %v8391 = vadd.f32 %v8062, %v8367
      %v8392 = vadd.f32 %v8063, %v8369
      %v8393 = vadd.f32 %v8064, %v8372
      %v8394 = vadd.f32 %v8065, %v8374
      %v8395 = vadd.f32 %v8066, %v8377
      %v8396 = vadd.f32 %v8067, %v8379
      %v8397 = vmul.f32 %v8381, %v6025
      %v8398 = vmul.f32 %v8382, %v6025
      %v8399 = vmul.f32 %v8383, %v6025
      %v8400 = vmul.f32 %v8384, %v6025
      %v8401 = vmul.f32 %v8385, %v6025
      %v8402 = vmul.f32 %v8386, %v6025
      %v8403 = vmul.f32 %v8387, %v6025
      %v8404 = vmul.f32 %v8388, %v6025
      %v8405 = vmul.f32 %v8389, %v6025
      %v8406 = vmul.f32 %v8390, %v6025
      %v8407 = vmul.f32 %v8391, %v6025
      %v8408 = vmul.f32 %v8392, %v6025
      %v8409 = vmul.f32 %v8393, %v6025
      %v8410 = vmul.f32 %v8394, %v6025
      %v8411 = vmul.f32 %v8395, %v6025
      %v8412 = vmul.f32 %v8396, %v6025
      %v8413 = vadd.f32 %v8397, %v6044
      %v8414 = vadd.f32 %v8398, %v6044
      %v8415 = vadd.f32 %v8399, %v6044
      %v8416 = vadd.f32 %v8400, %v6044
      %v8417 = vadd.f32 %v8401, %v6044
      %v8418 = vadd.f32 %v8402, %v6044
      %v8419 = vadd.f32 %v8403, %v6044
      %v8420 = vadd.f32 %v8404, %v6044
      %v8421 = vadd.f32 %v8405, %v6044
      %v8422 = vadd.f32 %v8406, %v6044
      %v8423 = vadd.f32 %v8407, %v6044
      %v8424 = vadd.f32 %v8408, %v6044
      %v8425 = vadd.f32 %v8409, %v6044
      %v8426 = vadd.f32 %v8410, %v6044
      %v8427 = vadd.f32 %v8411, %v6044
      %v8428 = vadd.f32 %v8412, %v6044
      %8429 = vrot.lane.b32.xlu0 %v6062, 96
      %v8430 = vpop.permute.xlu0 %8429
      %8431 = vrot.lane.b32.xlu0 %v6063, 96
      %v8432 = vpop.permute.xlu0 %8431
      %8433 = vrot.lane.b32.xlu0 %v6064, 96
      %v8434 = vpop.permute.xlu0 %8433
      %8435 = vrot.lane.b32.xlu0 %v6065, 96
      %v8436 = vpop.permute.xlu0 %8435
      %8437 = vrot.lane.b32.xlu0 %v6066, 96
      %v8438 = vpop.permute.xlu0 %8437
      %8439 = vrot.lane.b32.xlu0 %v6067, 96
      %v8440 = vpop.permute.xlu0 %8439
      %8441 = vrot.lane.b32.xlu0 %v6068, 96
      %v8442 = vpop.permute.xlu0 %8441
      %8443 = vrot.lane.b32.xlu0 %v6069, 96
      %v8444 = vpop.permute.xlu0 %8443
      %8445 = vrot.lane.b32.xlu0 %v6070, 96
      %v8446 = vpop.permute.xlu0 %8445
      %8447 = vrot.lane.b32.xlu0 %v6071, 96
      %v8448 = vpop.permute.xlu0 %8447
      %8449 = vrot.lane.b32.xlu0 %v6072, 96
      %v8450 = vpop.permute.xlu0 %8449
      %8451 = vrot.lane.b32.xlu0 %v6073, 96
      %v8452 = vpop.permute.xlu0 %8451
      %8453 = vrot.lane.b32.xlu0 %v6074, 96
      %v8454 = vpop.permute.xlu0 %8453
      %8455 = vrot.lane.b32.xlu0 %v6075, 96
      %v8456 = vpop.permute.xlu0 %8455
      %8457 = vrot.lane.b32.xlu0 %v6076, 96
      %v8458 = vpop.permute.xlu0 %8457
      %8459 = vrot.lane.b32.xlu0 %v6077, 96
      %v8460 = vpop.permute.xlu0 %8459
      %v8477 = vadd.f32 %v8413, %v8430
      %v8478 = vadd.f32 %v8414, %v8432
      %v8479 = vadd.f32 %v8415, %v8434
      %v8480 = vadd.f32 %v8416, %v8436
      %v8481 = vadd.f32 %v8417, %v8438
      %v8482 = vadd.f32 %v8418, %v8440
      %v8483 = vadd.f32 %v8419, %v8442
      %v8484 = vadd.f32 %v8420, %v8444
      %v8485 = vadd.f32 %v8421, %v8446
      %v8486 = vadd.f32 %v8422, %v8448
      %v8487 = vadd.f32 %v8423, %v8450
      %v8488 = vadd.f32 %v8424, %v8452
      %v8489 = vadd.f32 %v8425, %v8454
      %v8490 = vadd.f32 %v8426, %v8456
      %v8491 = vadd.f32 %v8427, %v8458
      %v8492 = vadd.f32 %v8428, %v8460
      %v8493 = vmax.f32 %v8477, 0.0
      %v8494 = vmax.f32 %v8478, 0.0
      %v8495 = vmax.f32 %v8479, 0.0
      %v8496 = vmax.f32 %v8480, 0.0
      %v8497 = vmax.f32 %v8481, 0.0
      %v8498 = vmax.f32 %v8482, 0.0
      %v8499 = vmax.f32 %v8483, 0.0
      %v8500 = vmax.f32 %v8484, 0.0
      %v8501 = vmax.f32 %v8485, 0.0
      %v8502 = vmax.f32 %v8486, 0.0
      %v8503 = vmax.f32 %v8487, 0.0
      %v8504 = vmax.f32 %v8488, 0.0
      %v8505 = vmax.f32 %v8489, 0.0
      %v8506 = vmax.f32 %v8490, 0.0
      %v8507 = vmax.f32 %v8491, 0.0
      %v8508 = vmax.f32 %v8492, 0.0
      %v8509 = vpack.c.bf16 %v8493, %v8493
      %v8510 = vpack.c.bf16 %v8494, %v8494
      %v8511 = vpack.c.bf16 %v8495, %v8495
      %v8512 = vpack.c.bf16 %v8496, %v8496
      %v8513 = vpack.c.bf16 %v8497, %v8497
      %v8514 = vpack.c.bf16 %v8498, %v8498
      %v8515 = vpack.c.bf16 %v8499, %v8499
      %v8516 = vpack.c.bf16 %v8500, %v8500
      %v8517 = vpack.c.bf16 %v8501, %v8501
      %v8518 = vpack.c.bf16 %v8502, %v8502
      %v8519 = vpack.c.bf16 %v8503, %v8503
      %v8520 = vpack.c.bf16 %v8504, %v8504
      %v8521 = vpack.c.bf16 %v8505, %v8505
      %v8522 = vpack.c.bf16 %v8506, %v8506
      %v8523 = vpack.c.bf16 %v8507, %v8507
      %v8524 = vpack.c.bf16 %v8508, %v8508
      %8525 = vmatpush.bf16.msra.mxu0 0
      %8526 = vmatpush.bf16.msra.mxu0 0
      %8527 = vmatpush.bf16.msra.mxu0 0
      %8528 = vmatpush.bf16.msra.mxu0 0
      %8529 = vmatpush.bf16.msra.mxu0 0
      %8530 = vmatpush.bf16.msra.mxu0 0
      %8531 = vmatpush.bf16.msra.mxu0 0
      %8532 = vmatpush.bf16.msra.mxu0 %v3812
      %8533 = vmatmul.bf16.gmra.mxu0 %v5088
      %v8534 = vpop.f32.mrf.mxu0
      %v8535 = vadd.f32 0.0, %v8534
      %v8536 = vpop.f32.mrf.mxu0
      %v8537 = vadd.f32 0.0, %v8536
      %8538 = vmatmul.bf16.gmra.mxu0 %v5091
      %v8539 = vpop.f32.mrf.mxu0
      %v8540 = vadd.f32 0.0, %v8539
      %v8541 = vpop.f32.mrf.mxu0
      %v8542 = vadd.f32 0.0, %v8541
      %8543 = vmatmul.bf16.gmra.mxu0 %v5094
      %v8544 = vpop.f32.mrf.mxu0
      %v8545 = vadd.f32 0.0, %v8544
      %v8546 = vpop.f32.mrf.mxu0
      %v8547 = vadd.f32 0.0, %v8546
      %8548 = vmatmul.bf16.gmra.mxu0 %v5097
      %v8549 = vpop.f32.mrf.mxu0
      %v8550 = vadd.f32 0.0, %v8549
      %v8551 = vpop.f32.mrf.mxu0
      %v8552 = vadd.f32 0.0, %v8551
      %8553 = vmatmul.bf16.gmra.mxu0 %v5100
      %v8554 = vpop.f32.mrf.mxu0
      %v8555 = vadd.f32 0.0, %v8554
      %v8556 = vpop.f32.mrf.mxu0
      %v8557 = vadd.f32 0.0, %v8556
      %8558 = vmatmul.bf16.gmra.mxu0 %v5103
      %v8559 = vpop.f32.mrf.mxu0
      %v8560 = vadd.f32 0.0, %v8559
      %v8561 = vpop.f32.mrf.mxu0
      %v8562 = vadd.f32 0.0, %v8561
      %8563 = vmatmul.bf16.gmra.mxu0 %v5106
      %v8564 = vpop.f32.mrf.mxu0
      %v8565 = vadd.f32 0.0, %v8564
      %v8566 = vpop.f32.mrf.mxu0
      %v8567 = vadd.f32 0.0, %v8566
      %8568 = vmatmul.bf16.gmra.mxu0 %v5109
      %v8569 = vpop.f32.mrf.mxu0
      %v8570 = vadd.f32 0.0, %v8569
      %v8571 = vpop.f32.mrf.mxu0
      %v8572 = vadd.f32 0.0, %v8571
      %8573 = vdwg.mxu0
      %8574 = vmatpush.bf16.msra.mxu0 0
      %8575 = vmatpush.bf16.msra.mxu0 0
      %8576 = vmatpush.bf16.msra.mxu0 0
      %8577 = vmatpush.bf16.msra.mxu0 0
      %8578 = vmatpush.bf16.msra.mxu0 0
      %8579 = vmatpush.bf16.msra.mxu0 0
      %8580 = vmatpush.bf16.msra.mxu0 0
      %8581 = vmatpush.bf16.msra.mxu0 %v3931
      %8582 = vmatmul.bf16.gmra.mxu0 %v4750
      %v8583 = vpop.f32.mrf.mxu0
      %v8584 = vadd.f32 %v8535, %v8583
      %v8585 = vpop.f32.mrf.mxu0
      %v8586 = vadd.f32 %v8537, %v8585
      %8587 = vmatmul.bf16.gmra.mxu0 %v4753
      %v8588 = vpop.f32.mrf.mxu0
      %v8589 = vadd.f32 %v8540, %v8588
      %v8590 = vpop.f32.mrf.mxu0
      %v8591 = vadd.f32 %v8542, %v8590
      %8592 = vmatmul.bf16.gmra.mxu0 %v4756
      %v8593 = vpop.f32.mrf.mxu0
      %v8594 = vadd.f32 %v8545, %v8593
      %v8595 = vpop.f32.mrf.mxu0
      %v8596 = vadd.f32 %v8547, %v8595
      %8597 = vmatmul.bf16.gmra.mxu0 %v4759
      %v8598 = vpop.f32.mrf.mxu0
      %v8599 = vadd.f32 %v8550, %v8598
      %v8600 = vpop.f32.mrf.mxu0
      %v8601 = vadd.f32 %v8552, %v8600
      %8602 = vmatmul.bf16.gmra.mxu0 %v4762
      %v8603 = vpop.f32.mrf.mxu0
      %v8604 = vadd.f32 %v8555, %v8603
      %v8605 = vpop.f32.mrf.mxu0
      %v8606 = vadd.f32 %v8557, %v8605
      %8607 = vmatmul.bf16.gmra.mxu0 %v4765
      %v8608 = vpop.f32.mrf.mxu0
      %v8609 = vadd.f32 %v8560, %v8608
      %v8610 = vpop.f32.mrf.mxu0
      %v8611 = vadd.f32 %v8562, %v8610
      %8612 = vmatmul.bf16.gmra.mxu0 %v4768
      %v8613 = vpop.f32.mrf.mxu0
      %v8614 = vadd.f32 %v8565, %v8613
      %v8615 = vpop.f32.mrf.mxu0
      %v8616 = vadd.f32 %v8567, %v8615
      %8617 = vmatmul.bf16.gmra.mxu0 %v4771
      %v8618 = vpop.f32.mrf.mxu0
      %v8619 = vadd.f32 %v8570, %v8618
      %v8620 = vpop.f32.mrf.mxu0
      %v8621 = vadd.f32 %v8572, %v8620
      %8622 = vdwg.mxu0
      %8623 = vmatpush.bf16.msra.mxu0 0
      %8624 = vmatpush.bf16.msra.mxu0 0
      %8625 = vmatpush.bf16.msra.mxu0 0
      %8626 = vmatpush.bf16.msra.mxu0 0
      %8627 = vmatpush.bf16.msra.mxu0 0
      %8628 = vmatpush.bf16.msra.mxu0 0
      %8629 = vmatpush.bf16.msra.mxu0 0
      %8630 = vmatpush.bf16.msra.mxu0 %v4253
      %8631 = vmatmul.bf16.gmra.mxu0 %v6671
      %v8632 = vpop.f32.mrf.mxu0
      %v8633 = vadd.f32 0.0, %v8632
      %v8634 = vpop.f32.mrf.mxu0
      %v8635 = vadd.f32 0.0, %v8634
      %8636 = vmatmul.bf16.gmra.mxu0 %v6674
      %v8637 = vpop.f32.mrf.mxu0
      %v8638 = vadd.f32 0.0, %v8637
      %v8639 = vpop.f32.mrf.mxu0
      %v8640 = vadd.f32 0.0, %v8639
      %8641 = vmatmul.bf16.gmra.mxu0 %v6677
      %v8642 = vpop.f32.mrf.mxu0
      %v8643 = vadd.f32 0.0, %v8642
      %v8644 = vpop.f32.mrf.mxu0
      %v8645 = vadd.f32 0.0, %v8644
      %8646 = vmatmul.bf16.gmra.mxu0 %v6680
      %v8647 = vpop.f32.mrf.mxu0
      %v8648 = vadd.f32 0.0, %v8647
      %v8649 = vpop.f32.mrf.mxu0
      %v8650 = vadd.f32 0.0, %v8649
      %8651 = vmatmul.bf16.gmra.mxu0 %v6683
      %v8652 = vpop.f32.mrf.mxu0
      %v8653 = vadd.f32 0.0, %v8652
      %v8654 = vpop.f32.mrf.mxu0
      %v8655 = vadd.f32 0.0, %v8654
      %8656 = vmatmul.bf16.gmra.mxu0 %v6686
      %v8657 = vpop.f32.mrf.mxu0
      %v8658 = vadd.f32 0.0, %v8657
      %v8659 = vpop.f32.mrf.mxu0
      %v8660 = vadd.f32 0.0, %v8659
      %8661 = vmatmul.bf16.gmra.mxu0 %v6689
      %v8662 = vpop.f32.mrf.mxu0
      %v8663 = vadd.f32 0.0, %v8662
      %v8664 = vpop.f32.mrf.mxu0
      %v8665 = vadd.f32 0.0, %v8664
      %8666 = vmatmul.bf16.gmra.mxu0 %v6692
      %v8667 = vpop.f32.mrf.mxu0
      %v8668 = vadd.f32 0.0, %v8667
      %v8669 = vpop.f32.mrf.mxu0
      %v8670 = vadd.f32 0.0, %v8669
      %8671 = vdwg.mxu0
      %v8672 = vadd.f32 %v8584, %v8633
      %v8673 = vadd.f32 %v8586, %v8635
      %v8674 = vadd.f32 %v8589, %v8638
      %v8675 = vadd.f32 %v8591, %v8640
      %v8676 = vadd.f32 %v8594, %v8643
      %v8677 = vadd.f32 %v8596, %v8645
      %v8678 = vadd.f32 %v8599, %v8648
      %v8679 = vadd.f32 %v8601, %v8650
      %v8680 = vadd.f32 %v8604, %v8653
      %v8681 = vadd.f32 %v8606, %v8655
      %v8682 = vadd.f32 %v8609, %v8658
      %v8683 = vadd.f32 %v8611, %v8660
      %v8684 = vadd.f32 %v8614, %v8663
      %v8685 = vadd.f32 %v8616, %v8665
      %v8686 = vadd.f32 %v8619, %v8668
      %v8687 = vadd.f32 %v8621, %v8670
      %8688 = vmatpush.bf16.msra.mxu0 0
      %8689 = vmatpush.bf16.msra.mxu0 0
      %8690 = vmatpush.bf16.msra.mxu0 0
      %8691 = vmatpush.bf16.msra.mxu0 0
      %8692 = vmatpush.bf16.msra.mxu0 0
      %8693 = vmatpush.bf16.msra.mxu0 0
      %8694 = vmatpush.bf16.msra.mxu0 0
      %8695 = vmatpush.bf16.msra.mxu0 %v4408
      %8696 = vmatmul.bf16.gmra.mxu0 %v5582
      %v8697 = vpop.f32.mrf.mxu0
      %v8698 = vadd.f32 0.0, %v8697
      %v8699 = vpop.f32.mrf.mxu0
      %v8700 = vadd.f32 0.0, %v8699
      %8701 = vmatmul.bf16.gmra.mxu0 %v5585
      %v8702 = vpop.f32.mrf.mxu0
      %v8703 = vadd.f32 0.0, %v8702
      %v8704 = vpop.f32.mrf.mxu0
      %v8705 = vadd.f32 0.0, %v8704
      %8706 = vmatmul.bf16.gmra.mxu0 %v5588
      %v8707 = vpop.f32.mrf.mxu0
      %v8708 = vadd.f32 0.0, %v8707
      %v8709 = vpop.f32.mrf.mxu0
      %v8710 = vadd.f32 0.0, %v8709
      %8711 = vmatmul.bf16.gmra.mxu0 %v5591
      %v8712 = vpop.f32.mrf.mxu0
      %v8713 = vadd.f32 0.0, %v8712
      %v8714 = vpop.f32.mrf.mxu0
      %v8715 = vadd.f32 0.0, %v8714
      %8716 = vmatmul.bf16.gmra.mxu0 %v5594
      %v8717 = vpop.f32.mrf.mxu0
      %v8718 = vadd.f32 0.0, %v8717
      %v8719 = vpop.f32.mrf.mxu0
      %v8720 = vadd.f32 0.0, %v8719
      %8721 = vmatmul.bf16.gmra.mxu0 %v5597
      %v8722 = vpop.f32.mrf.mxu0
      %v8723 = vadd.f32 0.0, %v8722
      %v8724 = vpop.f32.mrf.mxu0
      %v8725 = vadd.f32 0.0, %v8724
      %8726 = vmatmul.bf16.gmra.mxu0 %v5600
      %v8727 = vpop.f32.mrf.mxu0
      %v8728 = vadd.f32 0.0, %v8727
      %v8729 = vpop.f32.mrf.mxu0
      %v8730 = vadd.f32 0.0, %v8729
      %8731 = vmatmul.bf16.gmra.mxu0 %v5603
      %v8732 = vpop.f32.mrf.mxu0
      %v8733 = vadd.f32 0.0, %v8732
      %v8734 = vpop.f32.mrf.mxu0
      %v8735 = vadd.f32 0.0, %v8734
      %8736 = vdwg.mxu0
      %v8737 = vadd.f32 %v8672, %v8698
      %v8738 = vadd.f32 %v8673, %v8700
      %v8739 = vadd.f32 %v8674, %v8703
      %v8740 = vadd.f32 %v8675, %v8705
      %v8741 = vadd.f32 %v8676, %v8708
      %v8742 = vadd.f32 %v8677, %v8710
      %v8743 = vadd.f32 %v8678, %v8713
      %v8744 = vadd.f32 %v8679, %v8715
      %v8745 = vadd.f32 %v8680, %v8718
      %v8746 = vadd.f32 %v8681, %v8720
      %v8747 = vadd.f32 %v8682, %v8723
      %v8748 = vadd.f32 %v8683, %v8725
      %v8749 = vadd.f32 %v8684, %v8728
      %v8750 = vadd.f32 %v8685, %v8730
      %v8751 = vadd.f32 %v8686, %v8733
      %v8752 = vadd.f32 %v8687, %v8735
      %8753 = vmatpush.bf16.msra.mxu0 0
      %8754 = vmatpush.bf16.msra.mxu0 0
      %8755 = vmatpush.bf16.msra.mxu0 0
      %8756 = vmatpush.bf16.msra.mxu0 0
      %8757 = vmatpush.bf16.msra.mxu0 0
      %8758 = vmatpush.bf16.msra.mxu0 0
      %8759 = vmatpush.bf16.msra.mxu0 0
      %8760 = vmatpush.bf16.msra.mxu0 %v4747
      %8761 = vmatmul.bf16.gmra.mxu0 %v5920
      %v8762 = vpop.f32.mrf.mxu0
      %v8763 = vadd.f32 0.0, %v8762
      %v8764 = vpop.f32.mrf.mxu0
      %v8765 = vadd.f32 0.0, %v8764
      %8766 = vmatmul.bf16.gmra.mxu0 %v5923
      %v8767 = vpop.f32.mrf.mxu0
      %v8768 = vadd.f32 0.0, %v8767
      %v8769 = vpop.f32.mrf.mxu0
      %v8770 = vadd.f32 0.0, %v8769
      %8771 = vmatmul.bf16.gmra.mxu0 %v5926
      %v8772 = vpop.f32.mrf.mxu0
      %v8773 = vadd.f32 0.0, %v8772
      %v8774 = vpop.f32.mrf.mxu0
      %v8775 = vadd.f32 0.0, %v8774
      %8776 = vmatmul.bf16.gmra.mxu0 %v5929
      %v8777 = vpop.f32.mrf.mxu0
      %v8778 = vadd.f32 0.0, %v8777
      %v8779 = vpop.f32.mrf.mxu0
      %v8780 = vadd.f32 0.0, %v8779
      %8781 = vmatmul.bf16.gmra.mxu0 %v5932
      %v8782 = vpop.f32.mrf.mxu0
      %v8783 = vadd.f32 0.0, %v8782
      %v8784 = vpop.f32.mrf.mxu0
      %v8785 = vadd.f32 0.0, %v8784
      %8786 = vmatmul.bf16.gmra.mxu0 %v5935
      %v8787 = vpop.f32.mrf.mxu0
      %v8788 = vadd.f32 0.0, %v8787
      %v8789 = vpop.f32.mrf.mxu0
      %v8790 = vadd.f32 0.0, %v8789
      %8791 = vmatmul.bf16.gmra.mxu0 %v5938
      %v8792 = vpop.f32.mrf.mxu0
      %v8793 = vadd.f32 0.0, %v8792
      %v8794 = vpop.f32.mrf.mxu0
      %v8795 = vadd.f32 0.0, %v8794
      %8796 = vmatmul.bf16.gmra.mxu0 %v5941
      %v8797 = vpop.f32.mrf.mxu0
      %v8798 = vadd.f32 0.0, %v8797
      %v8799 = vpop.f32.mrf.mxu0
      %v8800 = vadd.f32 0.0, %v8799
      %8801 = vdwg.mxu0
      %v8802 = vadd.f32 %v8737, %v8763
      %v8803 = vadd.f32 %v8738, %v8765
      %v8804 = vadd.f32 %v8739, %v8768
      %v8805 = vadd.f32 %v8740, %v8770
      %v8806 = vadd.f32 %v8741, %v8773
      %v8807 = vadd.f32 %v8742, %v8775
      %v8808 = vadd.f32 %v8743, %v8778
      %v8809 = vadd.f32 %v8744, %v8780
      %v8810 = vadd.f32 %v8745, %v8783
      %v8811 = vadd.f32 %v8746, %v8785
      %v8812 = vadd.f32 %v8747, %v8788
      %v8813 = vadd.f32 %v8748, %v8790
      %v8814 = vadd.f32 %v8749, %v8793
      %v8815 = vadd.f32 %v8750, %v8795
      %v8816 = vadd.f32 %v8751, %v8798
      %v8817 = vadd.f32 %v8752, %v8800
      %8818 = vmatpush.bf16.msra.mxu0 0
      %8819 = vmatpush.bf16.msra.mxu0 0
      %8820 = vmatpush.bf16.msra.mxu0 0
      %8821 = vmatpush.bf16.msra.mxu0 0
      %8822 = vmatpush.bf16.msra.mxu0 0
      %8823 = vmatpush.bf16.msra.mxu0 0
      %8824 = vmatpush.bf16.msra.mxu0 0
      %8825 = vmatpush.bf16.msra.mxu0 %v5085
      %8826 = vmatmul.bf16.gmra.mxu0 %v7002
      %v8827 = vpop.f32.mrf.mxu0
      %v8828 = vadd.f32 0.0, %v8827
      %v8829 = vpop.f32.mrf.mxu0
      %v8830 = vadd.f32 0.0, %v8829
      %8831 = vmatmul.bf16.gmra.mxu0 %v7005
      %v8832 = vpop.f32.mrf.mxu0
      %v8833 = vadd.f32 0.0, %v8832
      %v8834 = vpop.f32.mrf.mxu0
      %v8835 = vadd.f32 0.0, %v8834
      %8836 = vmatmul.bf16.gmra.mxu0 %v7008
      %v8837 = vpop.f32.mrf.mxu0
      %v8838 = vadd.f32 0.0, %v8837
      %v8839 = vpop.f32.mrf.mxu0
      %v8840 = vadd.f32 0.0, %v8839
      %8841 = vmatmul.bf16.gmra.mxu0 %v7011
      %v8842 = vpop.f32.mrf.mxu0
      %v8843 = vadd.f32 0.0, %v8842
      %v8844 = vpop.f32.mrf.mxu0
      %v8845 = vadd.f32 0.0, %v8844
      %8846 = vmatmul.bf16.gmra.mxu0 %v7014
      %v8847 = vpop.f32.mrf.mxu0
      %v8848 = vadd.f32 0.0, %v8847
      %v8849 = vpop.f32.mrf.mxu0
      %v8850 = vadd.f32 0.0, %v8849
      %8851 = vmatmul.bf16.gmra.mxu0 %v7017
      %v8852 = vpop.f32.mrf.mxu0
      %v8853 = vadd.f32 0.0, %v8852
      %v8854 = vpop.f32.mrf.mxu0
      %v8855 = vadd.f32 0.0, %v8854
      %8856 = vmatmul.bf16.gmra.mxu0 %v7020
      %v8857 = vpop.f32.mrf.mxu0
      %v8858 = vadd.f32 0.0, %v8857
      %v8859 = vpop.f32.mrf.mxu0
      %v8860 = vadd.f32 0.0, %v8859
      %8861 = vmatmul.bf16.gmra.mxu0 %v7023
      %v8862 = vpop.f32.mrf.mxu0
      %v8863 = vadd.f32 0.0, %v8862
      %v8864 = vpop.f32.mrf.mxu0
      %v8865 = vadd.f32 0.0, %v8864
      %8866 = vdwg.mxu0
      %v8867 = vadd.f32 %v8802, %v8828
      %v8868 = vadd.f32 %v8803, %v8830
      %v8869 = vadd.f32 %v8804, %v8833
      %v8870 = vadd.f32 %v8805, %v8835
      %v8871 = vadd.f32 %v8806, %v8838
      %v8872 = vadd.f32 %v8807, %v8840
      %v8873 = vadd.f32 %v8808, %v8843
      %v8874 = vadd.f32 %v8809, %v8845
      %v8875 = vadd.f32 %v8810, %v8848
      %v8876 = vadd.f32 %v8811, %v8850
      %v8877 = vadd.f32 %v8812, %v8853
      %v8878 = vadd.f32 %v8813, %v8855
      %v8879 = vadd.f32 %v8814, %v8858
      %v8880 = vadd.f32 %v8815, %v8860
      %v8881 = vadd.f32 %v8816, %v8863
      %v8882 = vadd.f32 %v8817, %v8865
      %8883 = vmatpush.bf16.msra.mxu0 0
      %8884 = vmatpush.bf16.msra.mxu0 0
      %8885 = vmatpush.bf16.msra.mxu0 0
      %8886 = vmatpush.bf16.msra.mxu0 0
      %8887 = vmatpush.bf16.msra.mxu0 0
      %8888 = vmatpush.bf16.msra.mxu0 0
      %8889 = vmatpush.bf16.msra.mxu0 0
      %8890 = vmatpush.bf16.msra.mxu0 %v5240
      %8891 = vmatmul.bf16.gmra.mxu0 %v7980
      %v8892 = vpop.f32.mrf.mxu0
      %v8893 = vadd.f32 0.0, %v8892
      %v8894 = vpop.f32.mrf.mxu0
      %v8895 = vadd.f32 0.0, %v8894
      %8896 = vmatmul.bf16.gmra.mxu0 %v7983
      %v8897 = vpop.f32.mrf.mxu0
      %v8898 = vadd.f32 0.0, %v8897
      %v8899 = vpop.f32.mrf.mxu0
      %v8900 = vadd.f32 0.0, %v8899
      %8901 = vmatmul.bf16.gmra.mxu0 %v7986
      %v8902 = vpop.f32.mrf.mxu0
      %v8903 = vadd.f32 0.0, %v8902
      %v8904 = vpop.f32.mrf.mxu0
      %v8905 = vadd.f32 0.0, %v8904
      %8906 = vmatmul.bf16.gmra.mxu0 %v7989
      %v8907 = vpop.f32.mrf.mxu0
      %v8908 = vadd.f32 0.0, %v8907
      %v8909 = vpop.f32.mrf.mxu0
      %v8910 = vadd.f32 0.0, %v8909
      %8911 = vmatmul.bf16.gmra.mxu0 %v7992
      %v8912 = vpop.f32.mrf.mxu0
      %v8913 = vadd.f32 0.0, %v8912
      %v8914 = vpop.f32.mrf.mxu0
      %v8915 = vadd.f32 0.0, %v8914
      %8916 = vmatmul.bf16.gmra.mxu0 %v7995
      %v8917 = vpop.f32.mrf.mxu0
      %v8918 = vadd.f32 0.0, %v8917
      %v8919 = vpop.f32.mrf.mxu0
      %v8920 = vadd.f32 0.0, %v8919
      %8921 = vmatmul.bf16.gmra.mxu0 %v7998
      %v8922 = vpop.f32.mrf.mxu0
      %v8923 = vadd.f32 0.0, %v8922
      %v8924 = vpop.f32.mrf.mxu0
      %v8925 = vadd.f32 0.0, %v8924
      %8926 = vmatmul.bf16.gmra.mxu0 %v8001
      %v8927 = vpop.f32.mrf.mxu0
      %v8928 = vadd.f32 0.0, %v8927
      %v8929 = vpop.f32.mrf.mxu0
      %v8930 = vadd.f32 0.0, %v8929
      %8931 = vdwg.mxu0
      %v8932 = vadd.f32 %v8867, %v8893
      %v8933 = vadd.f32 %v8868, %v8895
      %v8934 = vadd.f32 %v8869, %v8898
      %v8935 = vadd.f32 %v8870, %v8900
      %v8936 = vadd.f32 %v8871, %v8903
      %v8937 = vadd.f32 %v8872, %v8905
      %v8938 = vadd.f32 %v8873, %v8908
      %v8939 = vadd.f32 %v8874, %v8910
      %v8940 = vadd.f32 %v8875, %v8913
      %v8941 = vadd.f32 %v8876, %v8915
      %v8942 = vadd.f32 %v8877, %v8918
      %v8943 = vadd.f32 %v8878, %v8920
      %v8944 = vadd.f32 %v8879, %v8923
      %v8945 = vadd.f32 %v8880, %v8925
      %v8946 = vadd.f32 %v8881, %v8928
      %v8947 = vadd.f32 %v8882, %v8930
      %8948 = vmatpush.bf16.msra.mxu0 0
      %8949 = vmatpush.bf16.msra.mxu0 0
      %8950 = vmatpush.bf16.msra.mxu0 0
      %8951 = vmatpush.bf16.msra.mxu0 0
      %8952 = vmatpush.bf16.msra.mxu0 0
      %8953 = vmatpush.bf16.msra.mxu0 0
      %8954 = vmatpush.bf16.msra.mxu0 0
      %8955 = vmatpush.bf16.msra.mxu0 %v5579
      %8956 = vmatmul.bf16.gmra.mxu0 %v8309
      %v8957 = vpop.f32.mrf.mxu0
      %v8958 = vadd.f32 0.0, %v8957
      %v8959 = vpop.f32.mrf.mxu0
      %v8960 = vadd.f32 0.0, %v8959
      %8961 = vmatmul.bf16.gmra.mxu0 %v8312
      %v8962 = vpop.f32.mrf.mxu0
      %v8963 = vadd.f32 0.0, %v8962
      %v8964 = vpop.f32.mrf.mxu0
      %v8965 = vadd.f32 0.0, %v8964
      %8966 = vmatmul.bf16.gmra.mxu0 %v8315
      %v8967 = vpop.f32.mrf.mxu0
      %v8968 = vadd.f32 0.0, %v8967
      %v8969 = vpop.f32.mrf.mxu0
      %v8970 = vadd.f32 0.0, %v8969
      %8971 = vmatmul.bf16.gmra.mxu0 %v8318
      %v8972 = vpop.f32.mrf.mxu0
      %v8973 = vadd.f32 0.0, %v8972
      %v8974 = vpop.f32.mrf.mxu0
      %v8975 = vadd.f32 0.0, %v8974
      %8976 = vmatmul.bf16.gmra.mxu0 %v8321
      %v8977 = vpop.f32.mrf.mxu0
      %v8978 = vadd.f32 0.0, %v8977
      %v8979 = vpop.f32.mrf.mxu0
      %v8980 = vadd.f32 0.0, %v8979
      %8981 = vmatmul.bf16.gmra.mxu0 %v8324
      %v8982 = vpop.f32.mrf.mxu0
      %v8983 = vadd.f32 0.0, %v8982
      %v8984 = vpop.f32.mrf.mxu0
      %v8985 = vadd.f32 0.0, %v8984
      %8986 = vmatmul.bf16.gmra.mxu0 %v8327
      %v8987 = vpop.f32.mrf.mxu0
      %v8988 = vadd.f32 0.0, %v8987
      %v8989 = vpop.f32.mrf.mxu0
      %v8990 = vadd.f32 0.0, %v8989
      %8991 = vmatmul.bf16.gmra.mxu0 %v8330
      %v8992 = vpop.f32.mrf.mxu0
      %v8993 = vadd.f32 0.0, %v8992
      %v8994 = vpop.f32.mrf.mxu0
      %v8995 = vadd.f32 0.0, %v8994
      %8996 = vdwg.mxu0
      %v8997 = vadd.f32 %v8932, %v8958
      %v8998 = vadd.f32 %v8933, %v8960
      %v8999 = vadd.f32 %v8934, %v8963
      %v9000 = vadd.f32 %v8935, %v8965
      %v9001 = vadd.f32 %v8936, %v8968
      %v9002 = vadd.f32 %v8937, %v8970
      %v9003 = vadd.f32 %v8938, %v8973
      %v9004 = vadd.f32 %v8939, %v8975
      %v9005 = vadd.f32 %v8940, %v8978
      %v9006 = vadd.f32 %v8941, %v8980
      %v9007 = vadd.f32 %v8942, %v8983
      %v9008 = vadd.f32 %v8943, %v8985
      %v9009 = vadd.f32 %v8944, %v8988
      %v9010 = vadd.f32 %v8945, %v8990
      %v9011 = vadd.f32 %v8946, %v8993
      %v9012 = vadd.f32 %v8947, %v8995
      %v9013 = vld [vmem:[%s7738] sm:$0xe]
      %v9014 = vld [vmem:[%s7738 + $0xc] sm:$0xe]
      %v9015 = vld [vmem:[%s7738 + $0x18] sm:$0xe]
      %v9016 = vld [vmem:[%s7738 + $0x24] sm:$0xe]
      %v9017 = vld [vmem:[%s7738 + $0x30] sm:$0xe]
      %v9018 = vld [vmem:[%s7738 + $0x3c] sm:$0xe]
      %v9019 = vld [vmem:[%s7738 + $0x48] sm:$0xe]
      %v9020 = vld [vmem:[%s7738 + $0x54] sm:$0xe]
      %v9045 = vrot.slane %v9013, 5
      %v9046 = vrot.slane %v9045, 4
      %v9047 = vrot.slane %v7740, 5
      %v9048 = vsel %vm6258, %v9046, %v9047
      %v9049 = vrot.slane %v9047, 4
      %v9050 = vrot.slane %v7741, 5
      %v9051 = vsel %vm6258, %v9049, %v9050
      %v9052 = vrot.slane %v9014, 5
      %v9053 = vrot.slane %v9052, 4
      %v9054 = vrot.slane %v7743, 5
      %v9055 = vsel %vm6258, %v9053, %v9054
      %v9056 = vrot.slane %v9054, 4
      %v9057 = vrot.slane %v7744, 5
      %v9058 = vsel %vm6258, %v9056, %v9057
      %v9059 = vrot.slane %v9015, 5
      %v9060 = vrot.slane %v9059, 4
      %v9061 = vrot.slane %v7746, 5
      %v9062 = vsel %vm6258, %v9060, %v9061
      %v9063 = vrot.slane %v9061, 4
      %v9064 = vrot.slane %v7747, 5
      %v9065 = vsel %vm6258, %v9063, %v9064
      %v9066 = vrot.slane %v9016, 5
      %v9067 = vrot.slane %v9066, 4
      %v9068 = vrot.slane %v7749, 5
      %v9069 = vsel %vm6258, %v9067, %v9068
      %v9070 = vrot.slane %v9068, 4
      %v9071 = vrot.slane %v7750, 5
      %v9072 = vsel %vm6258, %v9070, %v9071
      %v9073 = vrot.slane %v9017, 5
      %v9074 = vrot.slane %v9073, 4
      %v9075 = vrot.slane %v7752, 5
      %v9076 = vsel %vm6258, %v9074, %v9075
      %v9077 = vrot.slane %v9075, 4
      %v9078 = vrot.slane %v7753, 5
      %v9079 = vsel %vm6258, %v9077, %v9078
      %v9080 = vrot.slane %v9018, 5
      %v9081 = vrot.slane %v9080, 4
      %v9082 = vrot.slane %v7755, 5
      %v9083 = vsel %vm6258, %v9081, %v9082
      %v9084 = vrot.slane %v9082, 4
      %v9085 = vrot.slane %v7756, 5
      %v9086 = vsel %vm6258, %v9084, %v9085
      %v9087 = vrot.slane %v9019, 5
      %v9088 = vrot.slane %v9087, 4
      %v9089 = vrot.slane %v7758, 5
      %v9090 = vsel %vm6258, %v9088, %v9089
      %v9091 = vrot.slane %v9089, 4
      %v9092 = vrot.slane %v7759, 5
      %v9093 = vsel %vm6258, %v9091, %v9092
      %v9094 = vrot.slane %v9020, 5
      %v9095 = vrot.slane %v9094, 4
      %v9096 = vrot.slane %v7761, 5
      %v9097 = vsel %vm6258, %v9095, %v9096
      %v9098 = vrot.slane %v9096, 4
      %v9099 = vrot.slane %v7762, 5
      %v9100 = vsel %vm6258, %v9098, %v9099
      %v9101 = vunpack.c.l.b16 %v9048
      %v9102 = vunpack.c.l.b16 %v9051
      %v9103 = vunpack.c.l.b16 %v9055
      %v9104 = vunpack.c.l.b16 %v9058
      %v9105 = vunpack.c.l.b16 %v9062
      %v9106 = vunpack.c.l.b16 %v9065
      %v9107 = vunpack.c.l.b16 %v9069
      %v9108 = vunpack.c.l.b16 %v9072
      %v9109 = vunpack.c.l.b16 %v9076
      %v9110 = vunpack.c.l.b16 %v9079
      %v9111 = vunpack.c.l.b16 %v9083
      %v9112 = vunpack.c.l.b16 %v9086
      %v9113 = vunpack.c.l.b16 %v9090
      %v9114 = vunpack.c.l.b16 %v9093
      %v9115 = vunpack.c.l.b16 %v9097
      %v9116 = vunpack.c.l.b16 %v9100
      %v9117 = vpack.c.b16 %v9102, %v9101
      %v9118 = vpack.c.b16 %v9104, %v9103
      %v9119 = vpack.c.b16 %v9106, %v9105
      %v9120 = vpack.c.b16 %v9108, %v9107
      %v9121 = vpack.c.b16 %v9110, %v9109
      %v9122 = vpack.c.b16 %v9112, %v9111
      %v9123 = vpack.c.b16 %v9114, %v9113
      %v9124 = vpack.c.b16 %v9116, %v9115
      %v9126 = vsel %vm636, %v9117, 0
      %v9129 = vsel %vm636, %v9118, 0
      %v9132 = vsel %vm636, %v9119, 0
      %v9135 = vsel %vm636, %v9120, 0
      %v9138 = vsel %vm636, %v9121, 0
      %v9141 = vsel %vm636, %v9122, 0
      %v9144 = vsel %vm636, %v9123, 0
      %v9147 = vsel %vm636, %v9124, 0
      %9149 = vmatpush.bf16.msra.mxu0 0
      %9150 = vmatpush.bf16.msra.mxu0 0
      %9151 = vmatpush.bf16.msra.mxu0 0
      %9152 = vmatpush.bf16.msra.mxu0 0
      %9153 = vmatpush.bf16.msra.mxu0 0
      %9154 = vmatpush.bf16.msra.mxu0 0
      %9155 = vmatpush.bf16.msra.mxu0 0
      %9156 = vmatpush.bf16.msra.mxu0 %v5917
      %9157 = vmatmul.bf16.gmra.mxu0 %v9126
      %v9158 = vpop.f32.mrf.mxu0
      %v9159 = vadd.f32 0.0, %v9158
      %v9160 = vpop.f32.mrf.mxu0
      %v9161 = vadd.f32 0.0, %v9160
      %9162 = vmatmul.bf16.gmra.mxu0 %v9129
      %v9163 = vpop.f32.mrf.mxu0
      %v9164 = vadd.f32 0.0, %v9163
      %v9165 = vpop.f32.mrf.mxu0
      %v9166 = vadd.f32 0.0, %v9165
      %9167 = vmatmul.bf16.gmra.mxu0 %v9132
      %v9168 = vpop.f32.mrf.mxu0
      %v9169 = vadd.f32 0.0, %v9168
      %v9170 = vpop.f32.mrf.mxu0
      %v9171 = vadd.f32 0.0, %v9170
      %9172 = vmatmul.bf16.gmra.mxu0 %v9135
      %v9173 = vpop.f32.mrf.mxu0
      %v9174 = vadd.f32 0.0, %v9173
      %v9175 = vpop.f32.mrf.mxu0
      %v9176 = vadd.f32 0.0, %v9175
      %9177 = vmatmul.bf16.gmra.mxu0 %v9138
      %v9178 = vpop.f32.mrf.mxu0
      %v9179 = vadd.f32 0.0, %v9178
      %v9180 = vpop.f32.mrf.mxu0
      %v9181 = vadd.f32 0.0, %v9180
      %9182 = vmatmul.bf16.gmra.mxu0 %v9141
      %v9183 = vpop.f32.mrf.mxu0
      %v9184 = vadd.f32 0.0, %v9183
      %v9185 = vpop.f32.mrf.mxu0
      %v9186 = vadd.f32 0.0, %v9185
      %9187 = vmatmul.bf16.gmra.mxu0 %v9144
      %v9188 = vpop.f32.mrf.mxu0
      %v9189 = vadd.f32 0.0, %v9188
      %v9190 = vpop.f32.mrf.mxu0
      %v9191 = vadd.f32 0.0, %v9190
      %9192 = vmatmul.bf16.gmra.mxu0 %v9147
      %v9193 = vpop.f32.mrf.mxu0
      %v9194 = vadd.f32 0.0, %v9193
      %v9195 = vpop.f32.mrf.mxu0
      %v9196 = vadd.f32 0.0, %v9195
      %9197 = vdwg.mxu0
      %v9198 = vadd.f32 %v8997, %v9159
      %v9199 = vadd.f32 %v8998, %v9161
      %v9200 = vadd.f32 %v8999, %v9164
      %v9201 = vadd.f32 %v9000, %v9166
      %v9202 = vadd.f32 %v9001, %v9169
      %v9203 = vadd.f32 %v9002, %v9171
      %v9204 = vadd.f32 %v9003, %v9174
      %v9205 = vadd.f32 %v9004, %v9176
      %v9206 = vadd.f32 %v9005, %v9179
      %v9207 = vadd.f32 %v9006, %v9181
      %v9208 = vadd.f32 %v9007, %v9184
      %v9209 = vadd.f32 %v9008, %v9186
      %v9210 = vadd.f32 %v9009, %v9189
      %v9211 = vadd.f32 %v9010, %v9191
      %v9212 = vadd.f32 %v9011, %v9194
      %v9213 = vadd.f32 %v9012, %v9196
      %v9214 = vmul.f32 %v9198, %v6025
      %v9215 = vmul.f32 %v9199, %v6025
      %v9216 = vmul.f32 %v9200, %v6025
      %v9217 = vmul.f32 %v9201, %v6025
      %v9218 = vmul.f32 %v9202, %v6025
      %v9219 = vmul.f32 %v9203, %v6025
      %v9220 = vmul.f32 %v9204, %v6025
      %v9221 = vmul.f32 %v9205, %v6025
      %v9222 = vmul.f32 %v9206, %v6025
      %v9223 = vmul.f32 %v9207, %v6025
      %v9224 = vmul.f32 %v9208, %v6025
      %v9225 = vmul.f32 %v9209, %v6025
      %v9226 = vmul.f32 %v9210, %v6025
      %v9227 = vmul.f32 %v9211, %v6025
      %v9228 = vmul.f32 %v9212, %v6025
      %v9229 = vmul.f32 %v9213, %v6025
      %v9230 = vadd.f32 %v9214, %v6044
      %v9231 = vadd.f32 %v9215, %v6044
      %v9232 = vadd.f32 %v9216, %v6044
      %v9233 = vadd.f32 %v9217, %v6044
      %v9234 = vadd.f32 %v9218, %v6044
      %v9235 = vadd.f32 %v9219, %v6044
      %v9236 = vadd.f32 %v9220, %v6044
      %v9237 = vadd.f32 %v9221, %v6044
      %v9238 = vadd.f32 %v9222, %v6044
      %v9239 = vadd.f32 %v9223, %v6044
      %v9240 = vadd.f32 %v9224, %v6044
      %v9241 = vadd.f32 %v9225, %v6044
      %v9242 = vadd.f32 %v9226, %v6044
      %v9243 = vadd.f32 %v9227, %v6044
      %v9244 = vadd.f32 %v9228, %v6044
      %v9245 = vadd.f32 %v9229, %v6044
      %9246 = vrot.lane.b32.xlu0 %v6062, 80
      %v9247 = vpop.permute.xlu0 %9246
      %9248 = vrot.lane.b32.xlu0 %v6063, 80
      %v9249 = vpop.permute.xlu0 %9248
      %9250 = vrot.lane.b32.xlu0 %v6064, 80
      %v9251 = vpop.permute.xlu0 %9250
      %9252 = vrot.lane.b32.xlu0 %v6065, 80
      %v9253 = vpop.permute.xlu0 %9252
      %9254 = vrot.lane.b32.xlu0 %v6066, 80
      %v9255 = vpop.permute.xlu0 %9254
      %9256 = vrot.lane.b32.xlu0 %v6067, 80
      %v9257 = vpop.permute.xlu0 %9256
      %9258 = vrot.lane.b32.xlu0 %v6068, 80
      %v9259 = vpop.permute.xlu0 %9258
      %9260 = vrot.lane.b32.xlu0 %v6069, 80
      %v9261 = vpop.permute.xlu0 %9260
      %9262 = vrot.lane.b32.xlu0 %v6070, 80
      %v9263 = vpop.permute.xlu0 %9262
      %9264 = vrot.lane.b32.xlu0 %v6071, 80
      %v9265 = vpop.permute.xlu0 %9264
      %9266 = vrot.lane.b32.xlu0 %v6072, 80
      %v9267 = vpop.permute.xlu0 %9266
      %9268 = vrot.lane.b32.xlu0 %v6073, 80
      %v9269 = vpop.permute.xlu0 %9268
      %9270 = vrot.lane.b32.xlu0 %v6074, 80
      %v9271 = vpop.permute.xlu0 %9270
      %9272 = vrot.lane.b32.xlu0 %v6075, 80
      %v9273 = vpop.permute.xlu0 %9272
      %9274 = vrot.lane.b32.xlu0 %v6076, 80
      %v9275 = vpop.permute.xlu0 %9274
      %9276 = vrot.lane.b32.xlu0 %v6077, 80
      %v9277 = vpop.permute.xlu0 %9276
      %v9294 = vadd.f32 %v9230, %v9247
      %v9295 = vadd.f32 %v9231, %v9249
      %v9296 = vadd.f32 %v9232, %v9251
      %v9297 = vadd.f32 %v9233, %v9253
      %v9298 = vadd.f32 %v9234, %v9255
      %v9299 = vadd.f32 %v9235, %v9257
      %v9300 = vadd.f32 %v9236, %v9259
      %v9301 = vadd.f32 %v9237, %v9261
      %v9302 = vadd.f32 %v9238, %v9263
      %v9303 = vadd.f32 %v9239, %v9265
      %v9304 = vadd.f32 %v9240, %v9267
      %v9305 = vadd.f32 %v9241, %v9269
      %v9306 = vadd.f32 %v9242, %v9271
      %v9307 = vadd.f32 %v9243, %v9273
      %v9308 = vadd.f32 %v9244, %v9275
      %v9309 = vadd.f32 %v9245, %v9277
      %v9310 = vmax.f32 %v9294, 0.0
      %v9311 = vmax.f32 %v9295, 0.0
      %v9312 = vmax.f32 %v9296, 0.0
      %v9313 = vmax.f32 %v9297, 0.0
      %v9314 = vmax.f32 %v9298, 0.0
      %v9315 = vmax.f32 %v9299, 0.0
      %v9316 = vmax.f32 %v9300, 0.0
      %v9317 = vmax.f32 %v9301, 0.0
      %v9318 = vmax.f32 %v9302, 0.0
      %v9319 = vmax.f32 %v9303, 0.0
      %v9320 = vmax.f32 %v9304, 0.0
      %v9321 = vmax.f32 %v9305, 0.0
      %v9322 = vmax.f32 %v9306, 0.0
      %v9323 = vmax.f32 %v9307, 0.0
      %v9324 = vmax.f32 %v9308, 0.0
      %v9325 = vmax.f32 %v9309, 0.0
      %v9326 = vpack.c.bf16 %v9310, %v9310
      %v9327 = vpack.c.bf16 %v9311, %v9311
      %v9328 = vpack.c.bf16 %v9312, %v9312
      %v9329 = vpack.c.bf16 %v9313, %v9313
      %v9330 = vpack.c.bf16 %v9314, %v9314
      %v9331 = vpack.c.bf16 %v9315, %v9315
      %v9332 = vpack.c.bf16 %v9316, %v9316
      %v9333 = vpack.c.bf16 %v9317, %v9317
      %v9334 = vpack.c.bf16 %v9318, %v9318
      %v9335 = vpack.c.bf16 %v9319, %v9319
      %v9336 = vpack.c.bf16 %v9320, %v9320
      %v9337 = vpack.c.bf16 %v9321, %v9321
      %v9338 = vpack.c.bf16 %v9322, %v9322
      %v9339 = vpack.c.bf16 %v9323, %v9323
      %v9340 = vpack.c.bf16 %v9324, %v9324
      %v9341 = vpack.c.bf16 %v9325, %v9325
      %v9358 = vunpack.c.l.b16 %v6110
      %v9359 = vunpack.c.l.b16 %v6111
      %v9360 = vunpack.c.l.b16 %v6112
      %v9361 = vunpack.c.l.b16 %v6113
      %v9362 = vunpack.c.l.b16 %v6114
      %v9363 = vunpack.c.l.b16 %v6115
      %v9364 = vunpack.c.l.b16 %v6116
      %v9365 = vunpack.c.l.b16 %v6117
      %v9366 = vunpack.c.l.b16 %v6118
      %v9367 = vunpack.c.l.b16 %v6119
      %v9368 = vunpack.c.l.b16 %v6120
      %v9369 = vunpack.c.l.b16 %v6121
      %v9370 = vunpack.c.l.b16 %v6122
      %v9371 = vunpack.c.l.b16 %v6123
      %v9372 = vunpack.c.l.b16 %v6124
      %v9373 = vunpack.c.l.b16 %v6125
      %v9374 = vpack.c.b16 %v9359, %v9358
      %v9375 = vpack.c.b16 %v9361, %v9360
      %v9376 = vpack.c.b16 %v9363, %v9362
      %v9377 = vpack.c.b16 %v9365, %v9364
      %v9378 = vpack.c.b16 %v9367, %v9366
      %v9379 = vpack.c.b16 %v9369, %v9368
      %v9380 = vpack.c.b16 %v9371, %v9370
      %v9381 = vpack.c.b16 %v9373, %v9372
      %v9398 = vunpack.c.l.b16 %v7218
      %v9399 = vunpack.c.l.b16 %v7219
      %v9400 = vunpack.c.l.b16 %v7220
      %v9401 = vunpack.c.l.b16 %v7221
      %v9402 = vunpack.c.l.b16 %v7222
      %v9403 = vunpack.c.l.b16 %v7223
      %v9404 = vunpack.c.l.b16 %v7224
      %v9405 = vunpack.c.l.b16 %v7225
      %v9406 = vunpack.c.l.b16 %v7226
      %v9407 = vunpack.c.l.b16 %v7227
      %v9408 = vunpack.c.l.b16 %v7228
      %v9409 = vunpack.c.l.b16 %v7229
      %v9410 = vunpack.c.l.b16 %v7230
      %v9411 = vunpack.c.l.b16 %v7231
      %v9412 = vunpack.c.l.b16 %v7232
      %v9413 = vunpack.c.l.b16 %v7233
      %v9414 = vpack.c.b16 %v9399, %v9398
      %v9415 = vpack.c.b16 %v9401, %v9400
      %v9416 = vpack.c.b16 %v9403, %v9402
      %v9417 = vpack.c.b16 %v9405, %v9404
      %v9418 = vpack.c.b16 %v9407, %v9406
      %v9419 = vpack.c.b16 %v9409, %v9408
      %v9420 = vpack.c.b16 %v9411, %v9410
      %v9421 = vpack.c.b16 %v9413, %v9412
      %9422 = vrot.lane.b32.xlu0 %v9414, 16
      %v9423 = vpop.permute.xlu0 %9422
      %9424 = vrot.lane.b32.xlu0 %v9415, 16
      %v9425 = vpop.permute.xlu0 %9424
      %9426 = vrot.lane.b32.xlu0 %v9416, 16
      %v9427 = vpop.permute.xlu0 %9426
      %9428 = vrot.lane.b32.xlu0 %v9417, 16
      %v9429 = vpop.permute.xlu0 %9428
      %9430 = vrot.lane.b32.xlu0 %v9418, 16
      %v9431 = vpop.permute.xlu0 %9430
      %9432 = vrot.lane.b32.xlu0 %v9419, 16
      %v9433 = vpop.permute.xlu0 %9432
      %9434 = vrot.lane.b32.xlu0 %v9420, 16
      %v9435 = vpop.permute.xlu0 %9434
      %9436 = vrot.lane.b32.xlu0 %v9421, 16
      %v9437 = vpop.permute.xlu0 %9436
      %v9454 = vunpack.c.l.b16 %v8509
      %v9455 = vunpack.c.l.b16 %v8510
      %v9456 = vunpack.c.l.b16 %v8511
      %v9457 = vunpack.c.l.b16 %v8512
      %v9458 = vunpack.c.l.b16 %v8513
      %v9459 = vunpack.c.l.b16 %v8514
      %v9460 = vunpack.c.l.b16 %v8515
      %v9461 = vunpack.c.l.b16 %v8516
      %v9462 = vunpack.c.l.b16 %v8517
      %v9463 = vunpack.c.l.b16 %v8518
      %v9464 = vunpack.c.l.b16 %v8519
      %v9465 = vunpack.c.l.b16 %v8520
      %v9466 = vunpack.c.l.b16 %v8521
      %v9467 = vunpack.c.l.b16 %v8522
      %v9468 = vunpack.c.l.b16 %v8523
      %v9469 = vunpack.c.l.b16 %v8524
      %v9470 = vpack.c.b16 %v9455, %v9454
      %v9471 = vpack.c.b16 %v9457, %v9456
      %v9472 = vpack.c.b16 %v9459, %v9458
      %v9473 = vpack.c.b16 %v9461, %v9460
      %v9474 = vpack.c.b16 %v9463, %v9462
      %v9475 = vpack.c.b16 %v9465, %v9464
      %v9476 = vpack.c.b16 %v9467, %v9466
      %v9477 = vpack.c.b16 %v9469, %v9468
      %9478 = vrot.lane.b32.xlu0 %v9470, 32
      %v9479 = vpop.permute.xlu0 %9478
      %9480 = vrot.lane.b32.xlu0 %v9471, 32
      %v9481 = vpop.permute.xlu0 %9480
      %9482 = vrot.lane.b32.xlu0 %v9472, 32
      %v9483 = vpop.permute.xlu0 %9482
      %9484 = vrot.lane.b32.xlu0 %v9473, 32
      %v9485 = vpop.permute.xlu0 %9484
      %9486 = vrot.lane.b32.xlu0 %v9474, 32
      %v9487 = vpop.permute.xlu0 %9486
      %9488 = vrot.lane.b32.xlu0 %v9475, 32
      %v9489 = vpop.permute.xlu0 %9488
      %9490 = vrot.lane.b32.xlu0 %v9476, 32
      %v9491 = vpop.permute.xlu0 %9490
      %9492 = vrot.lane.b32.xlu0 %v9477, 32
      %v9493 = vpop.permute.xlu0 %9492
      %v9510 = vunpack.c.l.b16 %v9326
      %v9511 = vunpack.c.l.b16 %v9327
      %v9512 = vunpack.c.l.b16 %v9328
      %v9513 = vunpack.c.l.b16 %v9329
      %v9514 = vunpack.c.l.b16 %v9330
      %v9515 = vunpack.c.l.b16 %v9331
      %v9516 = vunpack.c.l.b16 %v9332
      %v9517 = vunpack.c.l.b16 %v9333
      %v9518 = vunpack.c.l.b16 %v9334
      %v9519 = vunpack.c.l.b16 %v9335
      %v9520 = vunpack.c.l.b16 %v9336
      %v9521 = vunpack.c.l.b16 %v9337
      %v9522 = vunpack.c.l.b16 %v9338
      %v9523 = vunpack.c.l.b16 %v9339
      %v9524 = vunpack.c.l.b16 %v9340
      %v9525 = vunpack.c.l.b16 %v9341
      %v9526 = vpack.c.b16 %v9511, %v9510
      %v9527 = vpack.c.b16 %v9513, %v9512
      %v9528 = vpack.c.b16 %v9515, %v9514
      %v9529 = vpack.c.b16 %v9517, %v9516
      %v9530 = vpack.c.b16 %v9519, %v9518
      %v9531 = vpack.c.b16 %v9521, %v9520
      %v9532 = vpack.c.b16 %v9523, %v9522
      %v9533 = vpack.c.b16 %v9525, %v9524
      %9534 = vrot.lane.b32.xlu0 %v9526, 48
      %v9535 = vpop.permute.xlu0 %9534
      %9536 = vrot.lane.b32.xlu0 %v9527, 48
      %v9537 = vpop.permute.xlu0 %9536
      %9538 = vrot.lane.b32.xlu0 %v9528, 48
      %v9539 = vpop.permute.xlu0 %9538
      %9540 = vrot.lane.b32.xlu0 %v9529, 48
      %v9541 = vpop.permute.xlu0 %9540
      %9542 = vrot.lane.b32.xlu0 %v9530, 48
      %v9543 = vpop.permute.xlu0 %9542
      %9544 = vrot.lane.b32.xlu0 %v9531, 48
      %v9545 = vpop.permute.xlu0 %9544
      %9546 = vrot.lane.b32.xlu0 %v9532, 48
      %v9547 = vpop.permute.xlu0 %9546
      %9548 = vrot.lane.b32.xlu0 %v9533, 48
      %v9549 = vpop.permute.xlu0 %9548
      %v9552 = vsel %vm636, %v9374, %v9423
      %v9555 = vsel %vm636, %v9375, %v9425
      %v9558 = vsel %vm636, %v9376, %v9427
      %v9561 = vsel %vm636, %v9377, %v9429
      %v9564 = vsel %vm636, %v9378, %v9431
      %v9567 = vsel %vm636, %v9379, %v9433
      %v9570 = vsel %vm636, %v9380, %v9435
      %v9573 = vsel %vm636, %v9381, %v9437
      %v9575 = vsel %vm657, %v9552, %v9479
      %v9577 = vsel %vm657, %v9555, %v9481
      %v9579 = vsel %vm657, %v9558, %v9483
      %v9581 = vsel %vm657, %v9561, %v9485
      %v9583 = vsel %vm657, %v9564, %v9487
      %v9585 = vsel %vm657, %v9567, %v9489
      %v9587 = vsel %vm657, %v9570, %v9491
      %v9589 = vsel %vm657, %v9573, %v9493
      %v9591 = vsel %vm678, %v9575, %v9535
      %v9593 = vsel %vm678, %v9577, %v9537
      %v9595 = vsel %vm678, %v9579, %v9539
      %v9597 = vsel %vm678, %v9581, %v9541
      %v9599 = vsel %vm678, %v9583, %v9543
      %v9601 = vsel %vm678, %v9585, %v9545
      %v9603 = vsel %vm678, %v9587, %v9547
      %v9605 = vsel %vm678, %v9589, %v9549
      %v9614 = vunpack.c.l.b16 %v9591
      %v9615 = vunpack.c.h.b16 %v9591
      %v9616 = vunpack.c.l.b16 %v9593
      %v9617 = vunpack.c.h.b16 %v9593
      %v9618 = vunpack.c.l.b16 %v9595
      %v9619 = vunpack.c.h.b16 %v9595
      %v9620 = vunpack.c.l.b16 %v9597
      %v9621 = vunpack.c.h.b16 %v9597
      %v9622 = vunpack.c.l.b16 %v9599
      %v9623 = vunpack.c.h.b16 %v9599
      %v9624 = vunpack.c.l.b16 %v9601
      %v9625 = vunpack.c.h.b16 %v9601
      %v9626 = vunpack.c.l.b16 %v9603
      %v9627 = vunpack.c.h.b16 %v9603
      %v9628 = vunpack.c.l.b16 %v9605
      %v9629 = vunpack.c.h.b16 %v9605
      %v9630 = vpack.c.b16 %v9614, %v9614
      %v9631 = vpack.c.b16 %v9615, %v9615
      %v9632 = vpack.c.b16 %v9616, %v9616
      %v9633 = vpack.c.b16 %v9617, %v9617
      %v9634 = vpack.c.b16 %v9618, %v9618
      %v9635 = vpack.c.b16 %v9619, %v9619
      %v9636 = vpack.c.b16 %v9620, %v9620
      %v9637 = vpack.c.b16 %v9621, %v9621
      %v9638 = vpack.c.b16 %v9622, %v9622
      %v9639 = vpack.c.b16 %v9623, %v9623
      %v9640 = vpack.c.b16 %v9624, %v9624
      %v9641 = vpack.c.b16 %v9625, %v9625
      %v9642 = vpack.c.b16 %v9626, %v9626
      %v9643 = vpack.c.b16 %v9627, %v9627
      %v9644 = vpack.c.b16 %v9628, %v9628
      %v9645 = vpack.c.b16 %v9629, %v9629
      %9662 = vst.msk [vmem:[%s314] sm:$0xf] %vm3525, %v9630
      %9663 = vst.msk [vmem:[%s314 + $0x4] sm:$0xf] %vm3525, %v9631
      %9664 = vst.msk [vmem:[%s314 + $0x8] sm:$0xf] %vm3525, %v9632
      %9665 = vst.msk [vmem:[%s314 + $0xc] sm:$0xf] %vm3525, %v9633
      %9666 = vst.msk [vmem:[%s314 + $0x10] sm:$0xf] %vm3525, %v9634
      %9667 = vst.msk [vmem:[%s314 + $0x14] sm:$0xf] %vm3525, %v9635
      %9668 = vst.msk [vmem:[%s314 + $0x18] sm:$0xf] %vm3525, %v9636
      %9669 = vst.msk [vmem:[%s314 + $0x1c] sm:$0xf] %vm3525, %v9637
      %9670 = vst.msk [vmem:[%s314 + $0x20] sm:$0xf] %vm3525, %v9638
      %9671 = vst.msk [vmem:[%s314 + $0x24] sm:$0xf] %vm3525, %v9639
      %9672 = vst.msk [vmem:[%s314 + $0x28] sm:$0xf] %vm3525, %v9640
      %9673 = vst.msk [vmem:[%s314 + $0x2c] sm:$0xf] %vm3525, %v9641
      %9674 = vst.msk [vmem:[%s314 + $0x30] sm:$0xf] %vm3525, %v9642
      %9675 = vst.msk [vmem:[%s314 + $0x34] sm:$0xf] %vm3525, %v9643
      %9676 = vst.msk [vmem:[%s314 + $0x38] sm:$0xf] %vm3525, %v9644
      %9677 = vst.msk [vmem:[%s314 + $0x3c] sm:$0xf] %vm3525, %v9645
      %s9678 = smul.u32 16, %s23
      %p9679 = scmp.lt.s32.totalorder %s22, 1
      %s9680 = scalar_select %p9679, %s22, 1
      %p9681 = scmp.lt.s32.totalorder %s9678, 31
      %s9682 = scalar_select %p9681, %s9678, 31
      %s9683 = smul.addr %s9680, 32
      %s9684 = sadd.s32 %s9682, %s9683
      %s9685 = smul.addr %s9684, 4
      %s9686 = scalar_lea.vmem %s7, %s9685
      // Predicated region
      $region81: #{upconvblock_forward.1} parent=47 // pred_check
        %p9687 = pneg %p204
      $region82: #{upconvblock_forward.1} parent=47 // pred_check_branch
        %9689 = sbr.rel (%p9687) target = $region84
      $region83: #{upconvblock_forward.1} parent=47 // pred_region
        %s9690 = smul.u32 16, %s23
      $region84: #{upconvblock_forward.1} parent=47 // pred_fallthru
        _
    $region48: #{upconvblock_forward.1} parent=5 // pred_fallthru
      _
    %p9691 = scmp.le.s32.totalorder 2, %s13
    // Predicated region
    $region85: #{upconvblock_forward.1} parent=5 // pred_check
      %p9692 = pneg %p9691
    $region86: #{upconvblock_forward.1} parent=5 // pred_check_branch
      %9694 = sbr.rel (%p9692) target = $region88
    $region87: #{upconvblock_forward.1} parent=5 // pred_region
      %s9695 = ssub.s32 %s13, 2
      // Predicated region
      $region89: #{upconvblock_forward.1} parent=87 // pred_check
        %p9696 = pneg %p210
      $region90: #{upconvblock_forward.1} parent=87 // pred_check_branch
        %9698 = sbr.rel (%p9696) target = $region92
      $region91: #{upconvblock_forward.1} parent=87 // pred_region
        %s9699 = smul.u32 16, %s25
        %p9700 = scmp.lt.s32.totalorder %s24, 1
        %s9701 = scalar_select %p9700, %s24, 1
        %p9702 = scmp.lt.s32.totalorder %s9699, 31
        %s9703 = scalar_select %p9702, %s9699, 31
        %s9704 = smul.addr %s9701, 32
        %s9705 = sadd.s32 %s9703, %s9704
        %s9706 = smul.addr %s9705, 4
        %s9707 = scalar_lea.vmem %s7, %s9706
      $region92: #{upconvblock_forward.1} parent=87 // pred_fallthru
        _
    $region88: #{upconvblock_forward.1} parent=5 // pred_fallthru
      _
  $region6: #{upconvblock_forward.1} parent=0 // loop_footer
    %s17 = sadd.s32 1, %s13
  $region7: #{upconvblock_forward.1} parent=0 // loop_footer_branch
    %12 = sbr.rel target = $region3
  $region8: #{upconvblock_forward.1} parent=0 // loop_exit
    _

</llo_original>
